<compile_context>
chip_gen: v7x
topology: tpu7x:2x2x1
jax: 0.10.0
libtpu: 0.0.40
codegen_flags: <defaults>
</compile_context>

<pallas_src>
import functools

import jax
import jax.numpy as jnp
from jax.experimental import pallas as pl
from jax.experimental.pallas import tpu as pltpu

_LN_EPS = 1e-5
_INV_SQRT2 = 0.7071067811865476  # hoisted GELU constant (python float literal)


def _layer_norm_f32(x_ref, g_ref, b_ref):
    xf = x_ref[...].astype(jnp.float32)
    mu = jnp.mean(xf, axis=-1, keepdims=True)
    xc = xf - mu
    var = jnp.mean(xc * xc, axis=-1, keepdims=True)
    inv = jax.lax.rsqrt(var + _LN_EPS)
    return xc * inv * g_ref[...].astype(jnp.float32) + b_ref[...].astype(jnp.float32)


# ---------------------------------------------------------------- kernel bodies
def _ln_linear_kernel(x_ref, g_ref, bt_ref, w_ref, b_ref, o_ref, ln_ref):
    # grid: (i over M tiles [parallel], j over output-column tiles [arbitrary])
    @pl.when(pl.program_id(1) == 0)
    def _():
        ln_ref[...] = _layer_norm_f32(x_ref, g_ref, bt_ref)

    ln = ln_ref[...].astype(w_ref.dtype)  # keep MXU operands in native dtype
    acc = jnp.dot(ln, w_ref[...], preferred_element_type=jnp.float32)
    o_ref[...] = (acc + b_ref[...].astype(jnp.float32)).astype(o_ref.dtype)


def _attn_kernel(q_ref, k_ref, v_ref, o_ref, *, scale):
    # blocks: (1, heads, N, head_dim) -- one batch element per grid step
    q = q_ref[0]
    k = k_ref[0]
    v = v_ref[0]
    s = jnp.einsum("hqd,hkd->hqk", q, k, preferred_element_type=jnp.float32) * scale
    m = jnp.max(s, axis=-1, keepdims=True)
    e = jnp.exp(s - m)
    p = e / jnp.sum(e, axis=-1, keepdims=True)
    ctx = jnp.einsum("hqk,hkd->hqd", p.astype(v.dtype), v,
                     preferred_element_type=jnp.float32)
    o_ref[0] = ctx.astype(o_ref.dtype)


def _proj_res_kernel(ctx_ref, w_ref, b_ref, res_ref, o_ref):
    y = jnp.dot(ctx_ref[...], w_ref[...], preferred_element_type=jnp.float32)
    y = y + b_ref[...].astype(jnp.float32) + res_ref[...].astype(jnp.float32)
    o_ref[...] = y.astype(o_ref.dtype)


def _ln_mlp_res_kernel(x_ref, g_ref, bt_ref, w1_ref, b1_ref, w2_ref, b2_ref,
                       o_ref, ln_ref, acc_ref):
    # grid: (i over M tiles [parallel], hk over hidden-dim tiles [arbitrary])
    hk = pl.program_id(1)

    @pl.when(hk == 0)
    def _():
        ln_ref[...] = _layer_norm_f32(x_ref, g_ref, bt_ref)
        # fold the fc2 bias into the accumulator init (broadcast hoisted out of loop)
        acc_ref[...] = jnp.broadcast_to(b2_ref[...].astype(jnp.float32),
                                        acc_ref.shape)

    ln = ln_ref[...].astype(w1_ref.dtype)
    h = jnp.dot(ln, w1_ref[...], preferred_element_type=jnp.float32)
    h = h + b1_ref[...].astype(jnp.float32)
    h = 0.5 * h * (1.0 + jax.lax.erf(h * _INV_SQRT2))  # exact GELU (torch default)
    acc_ref[...] += jnp.dot(h.astype(w2_ref.dtype), w2_ref[...],
                            preferred_element_type=jnp.float32)

    @pl.when(hk == pl.num_programs(1) - 1)
    def _():
        # second residual: x (input to norm2) + MLP branch
        o_ref[...] = (x_ref[...].astype(jnp.float32) + acc_ref[...]).astype(o_ref.dtype)


# --------------------------------------------------------------- pallas wrappers
def _ln_linear(x2, gamma, beta, w, b, *, tile_m, block_n):
    Mp, C = x2.shape
    NO = w.shape[1]
    bn = block_n if NO % block_n == 0 else NO
    grid = (Mp // tile_m, NO // bn)
    return pl.pallas_call(
        _ln_linear_kernel,
        out_shape=jax.ShapeDtypeStruct((Mp, NO), x2.dtype),
        grid_spec=pltpu.PrefetchScalarGridSpec(
            num_scalar_prefetch=0,
            grid=grid,
            in_specs=[
                pl.BlockSpec((tile_m, C), lambda i, j: (i, 0)),
                pl.BlockSpec((1, C), lambda i, j: (0, 0)),
                pl.BlockSpec((1, C), lambda i, j: (0, 0)),
                pl.BlockSpec((C, bn), lambda i, j: (0, j)),
                pl.BlockSpec((1, bn), lambda i, j: (0, j)),
            ],
            out_specs=pl.BlockSpec((tile_m, bn), lambda i, j: (i, j)),
            scratch_shapes=[pltpu.VMEM((tile_m, C), jnp.float32)],
        ),
        compiler_params=pltpu.CompilerParams(
            dimension_semantics=("parallel", "arbitrary")),
    )(x2, gamma.reshape(1, C), beta.reshape(1, C), w, b.reshape(1, NO))


def _attention(q, k, v, *, scale):
    B, H, N, D = q.shape
    kernel = functools.partial(_attn_kernel, scale=scale)
    spec = pl.BlockSpec((1, H, N, D), lambda b: (b, 0, 0, 0))
    return pl.pallas_call(
        kernel,
        out_shape=jax.ShapeDtypeStruct((B, H, N, D), q.dtype),
        grid_spec=pltpu.PrefetchScalarGridSpec(
            num_scalar_prefetch=0,
            grid=(B,),
            in_specs=[spec, spec, spec],
            out_specs=spec,
        ),
        compiler_params=pltpu.CompilerParams(dimension_semantics=("parallel",)),
    )(q, k, v)


def _proj_residual(ctx, w, b, res, *, tile_m):
    Mp, C = ctx.shape
    O = w.shape[1]
    grid = (Mp // tile_m,)
    return pl.pallas_call(
        _proj_res_kernel,
        out_shape=jax.ShapeDtypeStruct((Mp, O), ctx.dtype),
        grid_spec=pltpu.PrefetchScalarGridSpec(
            num_scalar_prefetch=0,
            grid=grid,
            in_specs=[
                pl.BlockSpec((tile_m, C), lambda i: (i, 0)),
                pl.BlockSpec((C, O), lambda i: (0, 0)),
                pl.BlockSpec((1, O), lambda i: (0, 0)),
                pl.BlockSpec((tile_m, O), lambda i: (i, 0)),
            ],
            out_specs=pl.BlockSpec((tile_m, O), lambda i: (i, 0)),
        ),
        compiler_params=pltpu.CompilerParams(dimension_semantics=("parallel",)),
    )(ctx, w, b.reshape(1, O), res)


def _ln_mlp_residual(x2, gamma, beta, w1, b1, w2, b2, *, tile_m, block_h):
    Mp, C = x2.shape
    H = w1.shape[1]
    O = w2.shape[1]
    bh = block_h if H % block_h == 0 else H
    grid = (Mp // tile_m, H // bh)
    return pl.pallas_call(
        _ln_mlp_res_kernel,
        out_shape=jax.ShapeDtypeStruct((Mp, O), x2.dtype),
        grid_spec=pltpu.PrefetchScalarGridSpec(
            num_scalar_prefetch=0,
            grid=grid,
            in_specs=[
                pl.BlockSpec((tile_m, C), lambda i, hk: (i, 0)),
                pl.BlockSpec((1, C), lambda i, hk: (0, 0)),
                pl.BlockSpec((1, C), lambda i, hk: (0, 0)),
                pl.BlockSpec((C, bh), lambda i, hk: (0, hk)),   # W1 chunk (stream H)
                pl.BlockSpec((1, bh), lambda i, hk: (0, hk)),   # b1 chunk
                pl.BlockSpec((bh, O), lambda i, hk: (hk, 0)),   # W2 chunk (stream H)
                pl.BlockSpec((1, O), lambda i, hk: (0, 0)),     # b2
            ],
            out_specs=pl.BlockSpec((tile_m, O), lambda i, hk: (i, 0)),
            scratch_shapes=[
                pltpu.VMEM((tile_m, C), jnp.float32),   # cached LayerNorm2 result
                pltpu.VMEM((tile_m, O), jnp.float32),   # f32 accumulator (init = b2)
            ],
        ),
        # NOTE: raise vmem_limit_bytes (e.g. ~100<<20 on v6e) if tile_m/block_h are
        # enlarged beyond the default 32 MiB scoped-VMEM budget.
        compiler_params=pltpu.CompilerParams(
            dimension_semantics=("parallel", "arbitrary")),
    )(x2, gamma.reshape(1, C), beta.reshape(1, C),
      w1, b1.reshape(1, H), w2, b2.reshape(1, O))


def _pad_rows(a, mult):
    pad = (-a.shape[0]) % mult
    if pad:
        a = jnp.pad(a, ((0, pad), (0, 0)))
    return a


@functools.partial(jax.jit, static_argnames=("heads", "tile_m", "block_h", "block_qkv"))
def transformer_block(x, params, *, heads, tile_m=128, block_h=256, block_qkv=128):
    """Pallas forward of the ViT TransformerBlock (eval: dropout / drop_path = identity)."""
    (g1, bt1, wqkv, bqkv, wp, bp, g2, bt2, w1, b1, w2, b2) = params
    B, N, C = x.shape
    hd = C // heads
    scale = float(hd) ** -0.5
    M = B * N
    tm = min(tile_m, M)

    x2 = x.reshape(M, C)
    x2p = _pad_rows(x2, tm)

    # LayerNorm1 fused with the QKV projection
    qkv = _ln_linear(x2p, g1, bt1, wqkv, bqkv, tile_m=tm, block_n=block_qkv)[:M]
    # head split/merge is layout plumbing done in XLA between kernels
    qkv = qkv.reshape(B, N, 3, heads, hd).transpose(2, 0, 3, 1, 4)
    q, k, v = qkv[0], qkv[1], qkv[2]

    # multi-head attention core (full sequence per batch element)
    # TODO(synk): for long sequences (N >> 1k) switch to a KV-tiled flash-attention kernel.
    ctx = _attention(q, k, v, scale=scale)
    ctx = ctx.transpose(0, 2, 1, 3).reshape(M, C)

    # attention output projection + first residual
    x1 = _proj_residual(_pad_rows(ctx, tm), wp, bp, x2p, tile_m=tm)

    # LayerNorm2 + MLP (streamed over the hidden dim) + second residual
    out = _ln_mlp_residual(x1, g2, bt2, w1, b1, w2, b2, tile_m=tm, block_h=block_h)

    return out[:M].reshape(B, N, C)


# --------------------------------------------------------------------- reference
def transformer_block_ref(x, params, heads):
    (g1, bt1, wqkv, bqkv, wp, bp, g2, bt2, w1, b1, w2, b2) = params

    def ln(t, g, b):
        mu = t.mean(-1, keepdims=True)
        var = ((t - mu) ** 2).mean(-1, keepdims=True)
        return (t - mu) / jnp.sqrt(var + _LN_EPS) * g + b

    B, N, C = x.shape
    hd = C // heads
    scale = float(hd) ** -0.5

    h = ln(x, g1, bt1)
    qkv = (h @ wqkv + bqkv).reshape(B, N, 3, heads, hd).transpose(2, 0, 3, 1, 4)
    q, k, v = qkv[0], qkv[1], qkv[2]
    attn = jax.nn.softmax((q @ jnp.swapaxes(k, -1, -2)) * scale, axis=-1)
    ctx = (attn @ v).transpose(0, 2, 1, 3).reshape(B, N, C)
    x = x + ctx @ wp + bp
    h2 = ln(x, g2, bt2)
    m = h2 @ w1 + b1
    m = 0.5 * m * (1.0 + jax.lax.erf(m * _INV_SQRT2))
    x = x + m @ w2 + b2
    return x


def init_params(key, embed_dim, mlp_ratio=4, dtype=jnp.float32):
    """Deterministic init mirroring nn.Linear / nn.LayerNorm shapes (weights as (in, out))."""
    C = embed_dim
    H = int(C * mlp_ratio)
    ks = jax.random.split(key, 12)

    def lin(kw, kb, fin, fout):
        bd = 1.0 / (fin ** 0.5)
        w = jax.random.uniform(kw, (fin, fout), dtype, -bd, bd)
        b = jax.random.uniform(kb, (fout,), dtype, -bd, bd)
        return w, b

    wqkv, bqkv = lin(ks[0], ks[1], C, 3 * C)
    wp, bp = lin(ks[2], ks[3], C, C)
    w1, b1 = lin(ks[4], ks[5], C, H)
    w2, b2 = lin(ks[6], ks[7], H, C)
    g1 = (1.0 + 0.05 * jax.random.normal(ks[8], (C,))).astype(dtype)
    bt1 = (0.05 * jax.random.normal(ks[9], (C,))).astype(dtype)
    g2 = (1.0 + 0.05 * jax.random.normal(ks[10], (C,))).astype(dtype)
    bt2 = (0.05 * jax.random.normal(ks[11], (C,))).astype(dtype)
    return (g1, bt1, wqkv, bqkv, wp, bp, g2, bt2, w1, b1, w2, b2)


if __name__ == "__main__":
    key = jax.random.PRNGKey(0)
    kx, kp = jax.random.split(key)

    # Small but hardware-friendly ViT-like shapes: lane-dense (128-aligned) feature dims.
    B, N, C, heads = 2, 128, 128, 8        # M = 256 tokens, head_dim = 16, hidden = 512
    x = jax.random.normal(kx, (B, N, C), dtype=jnp.float32)
    params = init_params(kp, C)

    # f32 run + strict correctness check
    out = jax.block_until_ready(transformer_block(x, params, heads=heads))
    ref = transformer_block_ref(x, params, heads)
    assert jnp.allclose(out, ref, atol=2e-3, rtol=2e-3), float(jnp.max(jnp.abs(out - ref)))

    # bf16 run (native MXU operand dtype, f32 accumulation) + loose sanity check
    xb = x.astype(jnp.bfloat16)
    pb = jax.tree_util.tree_map(lambda p: p.astype(jnp.bfloat16), params)
    outb = jax.block_until_ready(transformer_block(xb, pb, heads=heads))
    err = float(jnp.max(jnp.abs(outb.astype(jnp.float32) - ref)))
    assert err < 0.5, err

    print("KERNEL_OK")
</pallas_src>

<mosaic_0001>
module attributes {stable_mosaic.version = 11 : i64} {
  func.func @_ln_linear_kernel(%arg0: i32, %arg1: i32, %arg2: memref<128x128xf32, #tpu.memory_space<vmem>>, %arg3: memref<1x128xf32, #tpu.memory_space<vmem>>, %arg4: memref<1x128xf32, #tpu.memory_space<vmem>>, %arg5: memref<128x128xf32, #tpu.memory_space<vmem>>, %arg6: memref<1x128xf32, #tpu.memory_space<vmem>>, %arg7: memref<128x128xf32, #tpu.memory_space<vmem>>, %arg8: memref<128x128xf32, #tpu.memory_space<vmem>>) attributes {dimension_semantics = [#tpu.dimension_semantics<parallel>, #tpu.dimension_semantics<arbitrary>], iteration_bounds = array<i64: 2, 3>, scalar_prefetch = 0 : i64, scratch_operands = 1 : i64, tpu.core_type = #tpu.core_type<tc>, window_params = [{transform_indices = @transform_0, window_bounds = array<i64: 128, 128>}, {pipeline_mode = #tpu.pipeline_mode<synchronous>, transform_indices = @transform_1, window_bounds = array<i64: 1, 128>}, {pipeline_mode = #tpu.pipeline_mode<synchronous>, transform_indices = @transform_2, window_bounds = array<i64: 1, 128>}, {transform_indices = @transform_3, window_bounds = array<i64: 128, 128>}, {transform_indices = @transform_4, window_bounds = array<i64: 1, 128>}, {transform_indices = @transform_5, window_bounds = array<i64: 128, 128>}]} {
    %c0_i32 = arith.constant 0 : i32
    %0 = arith.cmpi eq, %arg1, %c0_i32 : i32
    %1 = arith.extui %0 : i1 to i32
    %c0_i32_0 = arith.constant 0 : i32
    %2 = arith.cmpi ne, %1, %c0_i32_0 : i32
    scf.if %2 {
      %c0_8 = arith.constant 0 : index
      %c0_9 = arith.constant 0 : index
      %10 = vector.load %arg2[%c0_8, %c0_9] : memref<128x128xf32, #tpu.memory_space<vmem>>, vector<128x128xf32>
      %cst_10 = arith.constant dense<0.000000e+00> : vector<128xf32>
      %11 = vector.multi_reduction <add>, %10, %cst_10 [1] : vector<128x128xf32> to vector<128xf32>
      %12 = vector.shape_cast %11 : vector<128xf32> to vector<128x1xf32>
      %cst_11 = arith.constant 1.280000e+02 : f32
      %13 = vector.broadcast %cst_11 : f32 to vector<128x1xf32>
      %14 = arith.divf %12, %13 : vector<128x1xf32>
      %15 = vector.broadcast %14 : vector<128x1xf32> to vector<128x128xf32>
      %16 = arith.subf %10, %15 : vector<128x128xf32>
      %17 = arith.mulf %16, %16 : vector<128x128xf32>
      %cst_12 = arith.constant dense<0.000000e+00> : vector<128xf32>
      %18 = vector.multi_reduction <add>, %17, %cst_12 [1] : vector<128x128xf32> to vector<128xf32>
      %19 = vector.shape_cast %18 : vector<128xf32> to vector<128x1xf32>
      %cst_13 = arith.constant 1.280000e+02 : f32
      %20 = vector.broadcast %cst_13 : f32 to vector<128x1xf32>
      %21 = arith.divf %19, %20 : vector<128x1xf32>
      %cst_14 = arith.constant 9.99999974E-6 : f32
      %22 = vector.broadcast %cst_14 : f32 to vector<128x1xf32>
      %23 = arith.addf %21, %22 : vector<128x1xf32>
      %24 = math.rsqrt %23 : vector<128x1xf32>
      %25 = vector.broadcast %24 : vector<128x1xf32> to vector<128x128xf32>
      %26 = arith.mulf %16, %25 : vector<128x128xf32>
      %c0_15 = arith.constant 0 : index
      %c0_16 = arith.constant 0 : index
      %27 = vector.load %arg3[%c0_15, %c0_16] : memref<1x128xf32, #tpu.memory_space<vmem>>, vector<1x128xf32>
      %28 = vector.broadcast %27 : vector<1x128xf32> to vector<128x128xf32>
      %29 = arith.mulf %26, %28 : vector<128x128xf32>
      %c0_17 = arith.constant 0 : index
      %c0_18 = arith.constant 0 : index
      %30 = vector.load %arg4[%c0_17, %c0_18] : memref<1x128xf32, #tpu.memory_space<vmem>>, vector<1x128xf32>
      %31 = vector.broadcast %30 : vector<1x128xf32> to vector<128x128xf32>
      %32 = arith.addf %29, %31 : vector<128x128xf32>
      %c0_19 = arith.constant 0 : index
      %c0_20 = arith.constant 0 : index
      %33 = vector.load %arg8[%c0_19, %c0_20] : memref<128x128xf32, #tpu.memory_space<vmem>>, vector<128x128xf32>
      tpu.vector_store %arg8[%c0_19, %c0_20], %32 {strides = array<i32>} : memref<128x128xf32, #tpu.memory_space<vmem>>, vector<128x128xf32>,
    } else {
    }
    %c0 = arith.constant 0 : index
    %c0_1 = arith.constant 0 : index
    %3 = vector.load %arg8[%c0, %c0_1] : memref<128x128xf32, #tpu.memory_space<vmem>>, vector<128x128xf32>
    %c0_2 = arith.constant 0 : index
    %c0_3 = arith.constant 0 : index
    %4 = vector.load %arg5[%c0_2, %c0_3] : memref<128x128xf32, #tpu.memory_space<vmem>>, vector<128x128xf32>
    %cst = arith.constant dense<0.000000e+00> : vector<128x128xf32>
    %5 = tpu.matmul %3, %4, %cst {dimension_numbers = #tpu.dot_dimension_numbers<[1], [0], [0], [1], [0, 0, 1, 1], [], []>} : vector<128x128xf32>, vector<128x128xf32>, vector<128x128xf32> -> vector<128x128xf32>
    %c0_4 = arith.constant 0 : index
    %c0_5 = arith.constant 0 : index
    %6 = vector.load %arg6[%c0_4, %c0_5] : memref<1x128xf32, #tpu.memory_space<vmem>>, vector<1x128xf32>
    %7 = vector.broadcast %6 : vector<1x128xf32> to vector<128x128xf32>
    %8 = arith.addf %5, %7 : vector<128x128xf32>
    %c0_6 = arith.constant 0 : index
    %c0_7 = arith.constant 0 : index
    %9 = vector.load %arg7[%c0_6, %c0_7] : memref<128x128xf32, #tpu.memory_space<vmem>>, vector<128x128xf32>
    tpu.vector_store %arg7[%c0_6, %c0_7], %8 {strides = array<i32>} : memref<128x128xf32, #tpu.memory_space<vmem>>, vector<128x128xf32>,
    return
  }
  func.func @transform_0(%arg0: i32, %arg1: i32) -> (i32, i32) {
    %c0_i32 = arith.constant 0 : i32
    %c0_i32_0 = arith.constant 0 : i32
    return %arg0, %c0_i32 : i32, i32
  }
  func.func @transform_1(%arg0: i32, %arg1: i32) -> (i32, i32) {
    %c0_i32 = arith.constant 0 : i32
    %c0_i32_0 = arith.constant 0 : i32
    %c0_i32_1 = arith.constant 0 : i32
    return %c0_i32, %c0_i32_0 : i32, i32
  }
  func.func @transform_2(%arg0: i32, %arg1: i32) -> (i32, i32) {
    %c0_i32 = arith.constant 0 : i32
    %c0_i32_0 = arith.constant 0 : i32
    %c0_i32_1 = arith.constant 0 : i32
    return %c0_i32, %c0_i32_0 : i32, i32
  }
  func.func @transform_3(%arg0: i32, %arg1: i32) -> (i32, i32) {
    %c0_i32 = arith.constant 0 : i32
    %c0_i32_0 = arith.constant 0 : i32
    return %c0_i32, %arg1 : i32, i32
  }
  func.func @transform_4(%arg0: i32, %arg1: i32) -> (i32, i32) {
    %c0_i32 = arith.constant 0 : i32
    %c0_i32_0 = arith.constant 0 : i32
    return %c0_i32, %arg1 : i32, i32
  }
  func.func @transform_5(%arg0: i32, %arg1: i32) -> (i32, i32) {
    %c0_i32 = arith.constant 0 : i32
    return %arg0, %arg1 : i32, i32
  }
}

module attributes {stable_mosaic.version = 11 : i64} {
  func.func @_attn_kernel(%arg0: i32, %arg1: memref<1x8x128x16xf32, #tpu.memory_space<vmem>>, %arg2: memref<1x8x128x16xf32, #tpu.memory_space<vmem>>, %arg3: memref<1x8x128x16xf32, #tpu.memory_space<vmem>>, %arg4: memref<1x8x128x16xf32, #tpu.memory_space<vmem>>) attributes {dimension_semantics = [#tpu.dimension_semantics<parallel>], iteration_bounds = array<i64: 2>, scalar_prefetch = 0 : i64, scratch_operands = 0 : i64, tpu.core_type = #tpu.core_type<tc>, window_params = [{transform_indices = @transform_0, window_bounds = array<i64: 1, 8, 128, 16>}, {transform_indices = @transform_1, window_bounds = array<i64: 1, 8, 128, 16>}, {transform_indices = @transform_2, window_bounds = array<i64: 1, 8, 128, 16>}, {transform_indices = @transform_3, window_bounds = array<i64: 1, 8, 128, 16>}]} {
    %c0 = arith.constant 0 : index
    %c0_0 = arith.constant 0 : index
    %c0_1 = arith.constant 0 : index
    %c0_2 = arith.constant 0 : index
    %0 = vector.load %arg1[%c0, %c0_0, %c0_1, %c0_2] : memref<1x8x128x16xf32, #tpu.memory_space<vmem>>, vector<1x8x128x16xf32>
    %1 = vector.shape_cast %0 : vector<1x8x128x16xf32> to vector<8x128x16xf32>
    %c0_3 = arith.constant 0 : index
    %c0_4 = arith.constant 0 : index
    %c0_5 = arith.constant 0 : index
    %c0_6 = arith.constant 0 : index
    %2 = vector.load %arg2[%c0_3, %c0_4, %c0_5, %c0_6] : memref<1x8x128x16xf32, #tpu.memory_space<vmem>>, vector<1x8x128x16xf32>
    %3 = vector.shape_cast %2 : vector<1x8x128x16xf32> to vector<8x128x16xf32>
    %c0_7 = arith.constant 0 : index
    %c0_8 = arith.constant 0 : index
    %c0_9 = arith.constant 0 : index
    %c0_10 = arith.constant 0 : index
    %4 = vector.load %arg3[%c0_7, %c0_8, %c0_9, %c0_10] : memref<1x8x128x16xf32, #tpu.memory_space<vmem>>, vector<1x8x128x16xf32>
    %5 = vector.shape_cast %4 : vector<1x8x128x16xf32> to vector<8x128x16xf32>
    "tpu.trace_start"() <{level = 10 : i32, message = "hqd,hkd->hqk"}> : () -> ()
    %cst = arith.constant dense<0.000000e+00> : vector<8x128x128xf32>
    %6 = tpu.matmul %1, %3, %cst {dimension_numbers = #tpu.dot_dimension_numbers<[2], [2], [1], [1], [0, 0, 0, 1, 1, 1], [0], [0]>} : vector<8x128x16xf32>, vector<8x128x16xf32>, vector<8x128x128xf32> -> vector<8x128x128xf32>
    "tpu.trace_stop"() : () -> ()
    %cst_11 = arith.constant 2.500000e-01 : f32
    %7 = vector.broadcast %cst_11 : f32 to vector<8x128x128xf32>
    %8 = arith.mulf %6, %7 : vector<8x128x128xf32>
    %cst_12 = arith.constant dense<0xFF800000> : vector<8x128xf32>
    %9 = vector.multi_reduction <maximumf>, %8, %cst_12 [2] : vector<8x128x128xf32> to vector<8x128xf32>
    %10 = vector.shape_cast %9 : vector<8x128xf32> to vector<8x128x1xf32>
    %11 = vector.broadcast %10 : vector<8x128x1xf32> to vector<8x128x128xf32>
    %12 = arith.subf %8, %11 : vector<8x128x128xf32>
    %13 = math.exp %12 : vector<8x128x128xf32>
    %cst_13 = arith.constant dense<0.000000e+00> : vector<8x128xf32>
    %14 = vector.multi_reduction <add>, %13, %cst_13 [2] : vector<8x128x128xf32> to vector<8x128xf32>
    %15 = vector.shape_cast %14 : vector<8x128xf32> to vector<8x128x1xf32>
    %16 = vector.broadcast %15 : vector<8x128x1xf32> to vector<8x128x128xf32>
    %17 = arith.divf %13, %16 : vector<8x128x128xf32>
    "tpu.trace_start"() <{level = 10 : i32, message = "hqk,hkd->hqd"}> : () -> ()
    %cst_14 = arith.constant dense<0.000000e+00> : vector<8x128x16xf32>
    %18 = tpu.matmul %17, %5, %cst_14 {dimension_numbers = #tpu.dot_dimension_numbers<[2], [1], [1], [2], [0, 0, 0, 1, 1, 2], [0], [0]>} : vector<8x128x128xf32>, vector<8x128x16xf32>, vector<8x128x16xf32> -> vector<8x128x16xf32>
    "tpu.trace_stop"() : () -> ()
    %c0_15 = arith.constant 0 : index
    %c0_16 = arith.constant 0 : index
    %c0_17 = arith.constant 0 : index
    %c0_18 = arith.constant 0 : index
    %19 = vector.load %arg4[%c0_15, %c0_16, %c0_17, %c0_18] : memref<1x8x128x16xf32, #tpu.memory_space<vmem>>, vector<1x8x128x16xf32>
    %20 = vector.shape_cast %19 : vector<1x8x128x16xf32> to vector<8x128x16xf32>
    %21 = vector.shape_cast %18 : vector<8x128x16xf32> to vector<1x8x128x16xf32>
    tpu.vector_store %arg4[%c0_15, %c0_16, %c0_17, %c0_18], %21 {strides = array<i32>} : memref<1x8x128x16xf32, #tpu.memory_space<vmem>>, vector<1x8x128x16xf32>,
    return
  }
  func.func @transform_0(%arg0: i32) -> (i32, i32, i32, i32) {
    %c0_i32 = arith.constant 0 : i32
    %c0_i32_0 = arith.constant 0 : i32
    %c0_i32_1 = arith.constant 0 : i32
    %c0_i32_2 = arith.constant 0 : i32
    return %arg0, %c0_i32, %c0_i32_0, %c0_i32_1 : i32, i32, i32, i32
  }
  func.func @transform_1(%arg0: i32) -> (i32, i32, i32, i32) {
    %c0_i32 = arith.constant 0 : i32
    %c0_i32_0 = arith.constant 0 : i32
    %c0_i32_1 = arith.constant 0 : i32
    %c0_i32_2 = arith.constant 0 : i32
    return %arg0, %c0_i32, %c0_i32_0, %c0_i32_1 : i32, i32, i32, i32
  }
  func.func @transform_2(%arg0: i32) -> (i32, i32, i32, i32) {
    %c0_i32 = arith.constant 0 : i32
    %c0_i32_0 = arith.constant 0 : i32
    %c0_i32_1 = arith.constant 0 : i32
    %c0_i32_2 = arith.constant 0 : i32
    return %arg0, %c0_i32, %c0_i32_0, %c0_i32_1 : i32, i32, i32, i32
  }
  func.func @transform_3(%arg0: i32) -> (i32, i32, i32, i32) {
    %c0_i32 = arith.constant 0 : i32
    %c0_i32_0 = arith.constant 0 : i32
    %c0_i32_1 = arith.constant 0 : i32
    %c0_i32_2 = arith.constant 0 : i32
    return %arg0, %c0_i32, %c0_i32_0, %c0_i32_1 : i32, i32, i32, i32
  }
}

module attributes {stable_mosaic.version = 11 : i64} {
  func.func @_proj_res_kernel(%arg0: i32, %arg1: memref<128x128xf32, #tpu.memory_space<vmem>>, %arg2: memref<128x128xf32, #tpu.memory_space<vmem>>, %arg3: memref<1x128xf32, #tpu.memory_space<vmem>>, %arg4: memref<128x128xf32, #tpu.memory_space<vmem>>, %arg5: memref<128x128xf32, #tpu.memory_space<vmem>>) attributes {dimension_semantics = [#tpu.dimension_semantics<parallel>], iteration_bounds = array<i64: 2>, scalar_prefetch = 0 : i64, scratch_operands = 0 : i64, tpu.core_type = #tpu.core_type<tc>, window_params = [{transform_indices = @transform_0, window_bounds = array<i64: 128, 128>}, {pipeline_mode = #tpu.pipeline_mode<synchronous>, transform_indices = @transform_1, window_bounds = array<i64: 128, 128>}, {pipeline_mode = #tpu.pipeline_mode<synchronous>, transform_indices = @transform_2, window_bounds = array<i64: 1, 128>}, {transform_indices = @transform_3, window_bounds = array<i64: 128, 128>}, {transform_indices = @transform_4, window_bounds = array<i64: 128, 128>}]} {
    %c0 = arith.constant 0 : index
    %c0_0 = arith.constant 0 : index
    %0 = vector.load %arg1[%c0, %c0_0] : memref<128x128xf32, #tpu.memory_space<vmem>>, vector<128x128xf32>
    %c0_1 = arith.constant 0 : index
    %c0_2 = arith.constant 0 : index
    %1 = vector.load %arg2[%c0_1, %c0_2] : memref<128x128xf32, #tpu.memory_space<vmem>>, vector<128x128xf32>
    %cst = arith.constant dense<0.000000e+00> : vector<128x128xf32>
    %2 = tpu.matmul %0, %1, %cst {dimension_numbers = #tpu.dot_dimension_numbers<[1], [0], [0], [1], [0, 0, 1, 1], [], []>} : vector<128x128xf32>, vector<128x128xf32>, vector<128x128xf32> -> vector<128x128xf32>
    %c0_3 = arith.constant 0 : index
    %c0_4 = arith.constant 0 : index
    %3 = vector.load %arg3[%c0_3, %c0_4] : memref<1x128xf32, #tpu.memory_space<vmem>>, vector<1x128xf32>
    %4 = vector.broadcast %3 : vector<1x128xf32> to vector<128x128xf32>
    %5 = arith.addf %2, %4 : vector<128x128xf32>
    %c0_5 = arith.constant 0 : index
    %c0_6 = arith.constant 0 : index
    %6 = vector.load %arg4[%c0_5, %c0_6] : memref<128x128xf32, #tpu.memory_space<vmem>>, vector<128x128xf32>
    %7 = arith.addf %5, %6 : vector<128x128xf32>
    %c0_7 = arith.constant 0 : index
    %c0_8 = arith.constant 0 : index
    %8 = vector.load %arg5[%c0_7, %c0_8] : memref<128x128xf32, #tpu.memory_space<vmem>>, vector<128x128xf32>
    tpu.vector_store %arg5[%c0_7, %c0_8], %7 {strides = array<i32>} : memref<128x128xf32, #tpu.memory_space<vmem>>, vector<128x128xf32>,
    return
  }
  func.func @transform_0(%arg0: i32) -> (i32, i32) {
    %c0_i32 = arith.constant 0 : i32
    %c0_i32_0 = arith.constant 0 : i32
    return %arg0, %c0_i32 : i32, i32
  }
  func.func @transform_1(%arg0: i32) -> (i32, i32) {
    %c0_i32 = arith.constant 0 : i32
    %c0_i32_0 = arith.constant 0 : i32
    %c0_i32_1 = arith.constant 0 : i32
    return %c0_i32, %c0_i32_0 : i32, i32
  }
  func.func @transform_2(%arg0: i32) -> (i32, i32) {
    %c0_i32 = arith.constant 0 : i32
    %c0_i32_0 = arith.constant 0 : i32
    %c0_i32_1 = arith.constant 0 : i32
    return %c0_i32, %c0_i32_0 : i32, i32
  }
  func.func @transform_3(%arg0: i32) -> (i32, i32) {
    %c0_i32 = arith.constant 0 : i32
    %c0_i32_0 = arith.constant 0 : i32
    return %arg0, %c0_i32 : i32, i32
  }
  func.func @transform_4(%arg0: i32) -> (i32, i32) {
    %c0_i32 = arith.constant 0 : i32
    %c0_i32_0 = arith.constant 0 : i32
    return %arg0, %c0_i32 : i32, i32
  }
}

module attributes {stable_mosaic.version = 11 : i64} {
  func.func @_ln_mlp_res_kernel(%arg0: i32, %arg1: i32, %arg2: memref<128x128xf32, #tpu.memory_space<vmem>>, %arg3: memref<1x128xf32, #tpu.memory_space<vmem>>, %arg4: memref<1x128xf32, #tpu.memory_space<vmem>>, %arg5: memref<128x256xf32, #tpu.memory_space<vmem>>, %arg6: memref<1x256xf32, #tpu.memory_space<vmem>>, %arg7: memref<256x128xf32, #tpu.memory_space<vmem>>, %arg8: memref<1x128xf32, #tpu.memory_space<vmem>>, %arg9: memref<128x128xf32, #tpu.memory_space<vmem>>, %arg10: memref<128x128xf32, #tpu.memory_space<vmem>>, %arg11: memref<128x128xf32, #tpu.memory_space<vmem>>) attributes {dimension_semantics = [#tpu.dimension_semantics<parallel>, #tpu.dimension_semantics<arbitrary>], iteration_bounds = array<i64: 2, 2>, scalar_prefetch = 0 : i64, scratch_operands = 2 : i64, tpu.core_type = #tpu.core_type<tc>, window_params = [{transform_indices = @transform_0, window_bounds = array<i64: 128, 128>}, {pipeline_mode = #tpu.pipeline_mode<synchronous>, transform_indices = @transform_1, window_bounds = array<i64: 1, 128>}, {pipeline_mode = #tpu.pipeline_mode<synchronous>, transform_indices = @transform_2, window_bounds = array<i64: 1, 128>}, {transform_indices = @transform_3, window_bounds = array<i64: 128, 256>}, {transform_indices = @transform_4, window_bounds = array<i64: 1, 256>}, {transform_indices = @transform_5, window_bounds = array<i64: 256, 128>}, {pipeline_mode = #tpu.pipeline_mode<synchronous>, transform_indices = @transform_6, window_bounds = array<i64: 1, 128>}, {transform_indices = @transform_7, window_bounds = array<i64: 128, 128>}]} {
    %c0_i32 = arith.constant 0 : i32
    %0 = arith.cmpi eq, %arg1, %c0_i32 : i32
    %1 = arith.extui %0 : i1 to i32
    %c0_i32_0 = arith.constant 0 : i32
    %2 = arith.cmpi ne, %1, %c0_i32_0 : i32
    scf.if %2 {
      %c0_17 = arith.constant 0 : index
      %c0_18 = arith.constant 0 : index
      %25 = vector.load %arg2[%c0_17, %c0_18] : memref<128x128xf32, #tpu.memory_space<vmem>>, vector<128x128xf32>
      %cst_19 = arith.constant dense<0.000000e+00> : vector<128xf32>
      %26 = vector.multi_reduction <add>, %25, %cst_19 [1] : vector<128x128xf32> to vector<128xf32>
      %27 = vector.shape_cast %26 : vector<128xf32> to vector<128x1xf32>
      %cst_20 = arith.constant 1.280000e+02 : f32
      %28 = vector.broadcast %cst_20 : f32 to vector<128x1xf32>
      %29 = arith.divf %27, %28 : vector<128x1xf32>
      %30 = vector.broadcast %29 : vector<128x1xf32> to vector<128x128xf32>
      %31 = arith.subf %25, %30 : vector<128x128xf32>
      %32 = arith.mulf %31, %31 : vector<128x128xf32>
      %cst_21 = arith.constant dense<0.000000e+00> : vector<128xf32>
      %33 = vector.multi_reduction <add>, %32, %cst_21 [1] : vector<128x128xf32> to vector<128xf32>
      %34 = vector.shape_cast %33 : vector<128xf32> to vector<128x1xf32>
      %cst_22 = arith.constant 1.280000e+02 : f32
      %35 = vector.broadcast %cst_22 : f32 to vector<128x1xf32>
      %36 = arith.divf %34, %35 : vector<128x1xf32>
      %cst_23 = arith.constant 9.99999974E-6 : f32
      %37 = vector.broadcast %cst_23 : f32 to vector<128x1xf32>
      %38 = arith.addf %36, %37 : vector<128x1xf32>
      %39 = math.rsqrt %38 : vector<128x1xf32>
      %40 = vector.broadcast %39 : vector<128x1xf32> to vector<128x128xf32>
      %41 = arith.mulf %31, %40 : vector<128x128xf32>
      %c0_24 = arith.constant 0 : index
      %c0_25 = arith.constant 0 : index
      %42 = vector.load %arg3[%c0_24, %c0_25] : memref<1x128xf32, #tpu.memory_space<vmem>>, vector<1x128xf32>
      %43 = vector.broadcast %42 : vector<1x128xf32> to vector<128x128xf32>
      %44 = arith.mulf %41, %43 : vector<128x128xf32>
      %c0_26 = arith.constant 0 : index
      %c0_27 = arith.constant 0 : index
      %45 = vector.load %arg4[%c0_26, %c0_27] : memref<1x128xf32, #tpu.memory_space<vmem>>, vector<1x128xf32>
      %46 = vector.broadcast %45 : vector<1x128xf32> to vector<128x128xf32>
      %47 = arith.addf %44, %46 : vector<128x128xf32>
      %c0_28 = arith.constant 0 : index
      %c0_29 = arith.constant 0 : index
      %48 = vector.load %arg10[%c0_28, %c0_29] : memref<128x128xf32, #tpu.memory_space<vmem>>, vector<128x128xf32>
      tpu.vector_store %arg10[%c0_28, %c0_29], %47 {strides = array<i32>} : memref<128x128xf32, #tpu.memory_space<vmem>>, vector<128x128xf32>,
      %c0_30 = arith.constant 0 : index
      %c0_31 = arith.constant 0 : index
      %49 = vector.load %arg8[%c0_30, %c0_31] : memref<1x128xf32, #tpu.memory_space<vmem>>, vector<1x128xf32>
      %50 = vector.shape_cast %49 : vector<1x128xf32> to vector<1x128xf32>
      %51 = vector.broadcast %50 : vector<1x128xf32> to vector<128x128xf32>
      %c0_32 = arith.constant 0 : index
      %c0_33 = arith.constant 0 : index
      %52 = vector.load %arg11[%c0_32, %c0_33] : memref<128x128xf32, #tpu.memory_space<vmem>>, vector<128x128xf32>
      tpu.vector_store %arg11[%c0_32, %c0_33], %51 {strides = array<i32>} : memref<128x128xf32, #tpu.memory_space<vmem>>, vector<128x128xf32>,
    } else {
    }
    %c0 = arith.constant 0 : index
    %c0_1 = arith.constant 0 : index
    %3 = vector.load %arg10[%c0, %c0_1] : memref<128x128xf32, #tpu.memory_space<vmem>>, vector<128x128xf32>
    %c0_2 = arith.constant 0 : index
    %c0_3 = arith.constant 0 : index
    %4 = vector.load %arg5[%c0_2, %c0_3] : memref<128x256xf32, #tpu.memory_space<vmem>>, vector<128x256xf32>
    %cst = arith.constant dense<0.000000e+00> : vector<128x256xf32>
    %5 = tpu.matmul %3, %4, %cst {dimension_numbers = #tpu.dot_dimension_numbers<[1], [0], [0], [1], [0, 0, 1, 1], [], []>} : vector<128x128xf32>, vector<128x256xf32>, vector<128x256xf32> -> vector<128x256xf32>
    %c0_4 = arith.constant 0 : index
    %c0_5 = arith.constant 0 : index
    %6 = vector.load %arg6[%c0_4, %c0_5] : memref<1x256xf32, #tpu.memory_space<vmem>>, vector<1x256xf32>
    %7 = vector.broadcast %6 : vector<1x256xf32> to vector<128x256xf32>
    %8 = arith.addf %5, %7 : vector<128x256xf32>
    %cst_6 = arith.constant 5.000000e-01 : f32
    %9 = vector.broadcast %cst_6 : f32 to vector<128x256xf32>
    %10 = arith.mulf %9, %8 : vector<128x256xf32>
    %cst_7 = arith.constant 0.707106769 : f32
    %11 = vector.broadcast %cst_7 : f32 to vector<128x256xf32>
    %12 = arith.mulf %8, %11 : vector<128x256xf32>
    %13 = math.erf %12 : vector<128x256xf32>
    %cst_8 = arith.constant 1.000000e+00 : f32
    %14 = vector.broadcast %cst_8 : f32 to vector<128x256xf32>
    %15 = arith.addf %14, %13 : vector<128x256xf32>
    %16 = arith.mulf %10, %15 : vector<128x256xf32>
    %c0_9 = arith.constant 0 : index
    %c0_10 = arith.constant 0 : index
    %17 = vector.load %arg11[%c0_9, %c0_10] : memref<128x128xf32, #tpu.memory_space<vmem>>, vector<128x128xf32>
    %c0_11 = arith.constant 0 : index
    %c0_12 = arith.constant 0 : index
    %18 = vector.load %arg7[%c0_11, %c0_12] : memref<256x128xf32, #tpu.memory_space<vmem>>, vector<256x128xf32>
    %cst_13 = arith.constant dense<0.000000e+00> : vector<128x128xf32>
    %19 = tpu.matmul %16, %18, %cst_13 {dimension_numbers = #tpu.dot_dimension_numbers<[1], [0], [0], [1], [0, 0, 1, 1], [], []>} : vector<128x256xf32>, vector<256x128xf32>, vector<128x128xf32> -> vector<128x128xf32>
    %20 = arith.addf %17, %19 : vector<128x128xf32>
    %c0_14 = arith.constant 0 : index
    %c0_15 = arith.constant 0 : index
    %21 = vector.load %arg11[%c0_14, %c0_15] : memref<128x128xf32, #tpu.memory_space<vmem>>, vector<128x128xf32>
    tpu.vector_store %arg11[%c0_14, %c0_15], %20 {strides = array<i32>} : memref<128x128xf32, #tpu.memory_space<vmem>>, vector<128x128xf32>,
    %c1_i32 = arith.constant 1 : i32
    %22 = arith.cmpi eq, %arg1, %c1_i32 : i32
    %23 = arith.extui %22 : i1 to i32
    %c0_i32_16 = arith.constant 0 : i32
    %24 = arith.cmpi ne, %23, %c0_i32_16 : i32
    scf.if %24 {
      %c0_17 = arith.constant 0 : index
      %c0_18 = arith.constant 0 : index
      %25 = vector.load %arg2[%c0_17, %c0_18] : memref<128x128xf32, #tpu.memory_space<vmem>>, vector<128x128xf32>
      %c0_19 = arith.constant 0 : index
      %c0_20 = arith.constant 0 : index
      %26 = vector.load %arg11[%c0_19, %c0_20] : memref<128x128xf32, #tpu.memory_space<vmem>>, vector<128x128xf32>
      %27 = arith.addf %25, %26 : vector<128x128xf32>
      %c0_21 = arith.constant 0 : index
      %c0_22 = arith.constant 0 : index
      %28 = vector.load %arg9[%c0_21, %c0_22] : memref<128x128xf32, #tpu.memory_space<vmem>>, vector<128x128xf32>
      tpu.vector_store %arg9[%c0_21, %c0_22], %27 {strides = array<i32>} : memref<128x128xf32, #tpu.memory_space<vmem>>, vector<128x128xf32>,
    } else {
    }
    return
  }
  func.func @transform_0(%arg0: i32, %arg1: i32) -> (i32, i32) {
    %c0_i32 = arith.constant 0 : i32
    %c0_i32_0 = arith.constant 0 : i32
    return %arg0, %c0_i32 : i32, i32
  }
  func.func @transform_1(%arg0: i32, %arg1: i32) -> (i32, i32) {
    %c0_i32 = arith.constant 0 : i32
    %c0_i32_0 = arith.constant 0 : i32
    %c0_i32_1 = arith.constant 0 : i32
    return %c0_i32, %c0_i32_0 : i32, i32
  }
  func.func @transform_2(%arg0: i32, %arg1: i32) -> (i32, i32) {
    %c0_i32 = arith.constant 0 : i32
    %c0_i32_0 = arith.constant 0 : i32
    %c0_i32_1 = arith.constant 0 : i32
    return %c0_i32, %c0_i32_0 : i32, i32
  }
  func.func @transform_3(%arg0: i32, %arg1: i32) -> (i32, i32) {
    %c0_i32 = arith.constant 0 : i32
    %c0_i32_0 = arith.constant 0 : i32
    return %c0_i32, %arg1 : i32, i32
  }
  func.func @transform_4(%arg0: i32, %arg1: i32) -> (i32, i32) {
    %c0_i32 = arith.constant 0 : i32
    %c0_i32_0 = arith.constant 0 : i32
    return %c0_i32, %arg1 : i32, i32
  }
  func.func @transform_5(%arg0: i32, %arg1: i32) -> (i32, i32) {
    %c0_i32 = arith.constant 0 : i32
    %c0_i32_0 = arith.constant 0 : i32
    return %arg1, %c0_i32 : i32, i32
  }
  func.func @transform_6(%arg0: i32, %arg1: i32) -> (i32, i32) {
    %c0_i32 = arith.constant 0 : i32
    %c0_i32_0 = arith.constant 0 : i32
    %c0_i32_1 = arith.constant 0 : i32
    return %c0_i32, %c0_i32_0 : i32, i32
  }
  func.func @transform_7(%arg0: i32, %arg1: i32) -> (i32, i32) {
    %c0_i32 = arith.constant 0 : i32
    %c0_i32_0 = arith.constant 0 : i32
    return %arg0, %c0_i32 : i32, i32
  }
}

</mosaic_0001>

<llo_original>
// kernel: transformer_block.4
$region0: #{transformer_block.4}
  #allocation0 [shape = 'u32[]', space=smem, size = 0x4, offset = 0x4, fixed_abs, tag = 'smem constant byte address 0x4 - core index']
  #allocation1 [shape = 'u32[144,128]{1,0:T(1,128)}', space=vmem, size = 0x12000, scoped, tag = 'internal scratch']
  #allocation2 [shape = 'f32[128,128]{1,0:T(8,128)}', space=vmem, size = 0x10000, scoped, tag = 'scratch operand']
  %s0 = inlined_call_operand.hbm [shape: f32[256,128], index: 0, kind: input, shape index: {}]
  %s1 = inlined_call_operand.hbm [shape: f32[1,128], index: 1, kind: input, shape index: {}]
  %s2 = inlined_call_operand.hbm [shape: f32[1,128], index: 2, kind: input, shape index: {}]
  %s3 = inlined_call_operand.hbm [shape: f32[128,384], index: 3, kind: input, shape index: {}]
  %s4 = inlined_call_operand.vmem [shape: f32[1,384], index: 4, kind: input, shape index: {}]
  %s5 = inlined_call_operand.vmem [shape: f32[256,384], index: 5, kind: output, shape index: {}]
  %s6 = sld [smem:[#allocation0]]
  $region107: #{transformer_block.4} parent=0
    _
  %s8 = ssub.s32 1, %s6
  %s9 = scalar_select 0, %s8, %s6
  $region1: #{transformer_block.4} parent=0
    #allocation3 [shape = 'u8[131072]{0}', space=vmem, size = 0x20000, scoped, tag = 'input window, operand 0']
    #allocation4 [shape = 's32[2]{0}', space=sflag, size = 0x8, scoped, tag = 'scoped memory for transformer_block.4']
    #allocation5 [shape = 'u8[512]{0}', space=vmem, size = 0x400, scoped, tag = 'input window, operand 1, single buffered']
    #allocation6 [shape = 's32[1]{0}', space=sflag, size = 0x4, scoped, tag = 'scoped memory for transformer_block.4']
    #allocation7 [shape = 'u8[512]{0}', space=vmem, size = 0x400, scoped, tag = 'input window, operand 2, single buffered']
    #allocation8 [shape = 'u8[131072]{0}', space=vmem, size = 0x20000, scoped, tag = 'input window, operand 3']
    #allocation9 [shape = 's32[2]{0}', space=sflag, size = 0x8, scoped, tag = 'scoped memory for transformer_block.4']
    #allocation10 [shape = 'u8[131072]{0}', space=vmem, size = 0x20000, scoped, tag = 'output window, operand 0']
    %10 = vsyncpa [#allocation4], 0
    %s11 = scalar_lea.sflag [#allocation4], 1
    %12 = vsyncpa %s11, 0
    %13 = vsyncpa [#allocation6], 0
    %14 = vsyncpa [#allocation9], 0
    %s15 = scalar_lea.sflag [#allocation9], 1
    %16 = vsyncpa %s15, 0
    loop: start=0, step=1, limit=8
    $region2: #{transformer_block.4} parent=1 // loop_pre_header
      _
    $region3: #{transformer_block.4} parent=1 // loop_header
      %s18 = sphi 0, %s22
      %p19 = scmp.ge.s32.totalorder %s18, 8
      %s25 = sphi 0, %s37
      %s26 = sphi 0, %s33
      %s27 = sphi 0, %s25
      %s28 = sphi 0, %s26
      %s29 = sphi 0, %s27
      %s30 = sphi 0, %s28
      %s40 = sphi 0, %s42
      %s43 = sphi 0, %s40
      %s44 = sphi 0, %s43
      %s60 = sphi 0, %s44
      %s64 = sphi 0, %s64
      %s66 = sphi 0, %s64
      %s67 = sphi 0, %s66
      %s81 = sphi 0, %s67
      %s85 = sphi 0, %s85
      %s87 = sphi 0, %s85
      %s88 = sphi 0, %s87
      %s102 = sphi 0, %s88
      %s108 = sphi 0, %s110
      %s111 = sphi 0, %s108
      %s112 = sphi 0, %s111
      %s128 = sphi 0, %s112
      %s134 = sphi 0, %s136
      %s137 = sphi 0, %s134
      %s138 = sphi 0, %s137
      %s154 = sphi 0, %s138
      %s162 = sphi 0, %s164
      %s165 = sphi 0, %s162
      %s166 = sphi 0, %s165
      %s182 = sphi 0, %s166
    $region4: #{transformer_block.4} parent=1 // loop_header_branch
      %21 = sbr.rel (%p19) target = $region8
    $region5: #{transformer_block.4} parent=1 // loop_body
      %s23 = ssub.s32 %s18, 1
      %s24 = ssub.s32 %s18, 2
      %s31 = sadd.s32 1, %s26
      %p32 = scmp.ge.s32.totalorder %s31, 3
      %s33 = scalar_select %p32, 0, %s31
      %s34 = sadd.s32 1, %s25
      %s35 = scalar_select %p32, %s34, %s25
      %p36 = scmp.ge.s32.totalorder %s35, 2
      %s37 = scalar_select %p36, 0, %s35
      %s38 = ssub.s32 %s25, %s37
      %p39 = scmp.eq.s32.totalorder %s38, 0
      %s41 = sadd.s32 %s40, 1
      %s42 = scalar_select %p39, %s40, %s41
      %p45 = pneg %p39
      %p46 = scmp.eq.s32.totalorder %s18, 5
      %p47 = por %p45, %p46
      %p48 = scmp.ne.s32.totalorder %s40, %s43
      %p49 = scmp.eq.s32.totalorder %s18, 0
      %p50 = por %p48, %p49
      %p51 = scmp.ne.s32.totalorder %s40, %s43
      %p52 = scmp.eq.s32.totalorder %s23, 5
      %p53 = por %p51, %p52
      %p54 = scmp.ne.s32.totalorder %s43, %s44
      %p55 = scmp.eq.s32.totalorder %s23, 0
      %p56 = por %p54, %p55
      %p57 = scmp.ne.s32.totalorder %s43, %s44
      %p58 = scmp.eq.s32.totalorder %s24, 5
      %p59 = por %p57, %p58
      %p61 = scmp.ne.s32.totalorder %s44, %s60
      %p62 = scmp.eq.s32.totalorder %s24, 0
      %p63 = por %p61, %p62
      %s65 = sadd.s32 %s64, 1
      %p68 = scmp.eq.s32.totalorder %s18, 5
      %p69 = scmp.ne.s32.totalorder %s64, %s66
      %p70 = scmp.eq.s32.totalorder %s18, 0
      %p71 = por %p69, %p70
      %p72 = scmp.ne.s32.totalorder %s64, %s66
      %p73 = scmp.eq.s32.totalorder %s23, 5
      %p74 = por %p72, %p73
      %p75 = scmp.ne.s32.totalorder %s66, %s67
      %p76 = scmp.eq.s32.totalorder %s23, 0
      %p77 = por %p75, %p76
      %p78 = scmp.ne.s32.totalorder %s66, %s67
      %p79 = scmp.eq.s32.totalorder %s24, 5
      %p80 = por %p78, %p79
      %p82 = scmp.ne.s32.totalorder %s67, %s81
      %p83 = scmp.eq.s32.totalorder %s24, 0
      %p84 = por %p82, %p83
      %s86 = sadd.s32 %s85, 1
      %p89 = scmp.eq.s32.totalorder %s18, 5
      %p90 = scmp.ne.s32.totalorder %s85, %s87
      %p91 = scmp.eq.s32.totalorder %s18, 0
      %p92 = por %p90, %p91
      %p93 = scmp.ne.s32.totalorder %s85, %s87
      %p94 = scmp.eq.s32.totalorder %s23, 5
      %p95 = por %p93, %p94
      %p96 = scmp.ne.s32.totalorder %s87, %s88
      %p97 = scmp.eq.s32.totalorder %s23, 0
      %p98 = por %p96, %p97
      %p99 = scmp.ne.s32.totalorder %s87, %s88
      %p100 = scmp.eq.s32.totalorder %s24, 5
      %p101 = por %p99, %p100
      %p103 = scmp.ne.s32.totalorder %s88, %s102
      %p104 = scmp.eq.s32.totalorder %s24, 0
      %p105 = por %p103, %p104
      %s106 = ssub.s32 %s26, %s33
      %p107 = scmp.eq.s32.totalorder %s106, 0
      %s109 = sadd.s32 %s108, 1
      %s110 = scalar_select %p107, %s108, %s109
      %p113 = pneg %p107
      %p114 = scmp.eq.s32.totalorder %s18, 5
      %p115 = por %p113, %p114
      %p116 = scmp.ne.s32.totalorder %s108, %s111
      %p117 = scmp.eq.s32.totalorder %s18, 0
      %p118 = por %p116, %p117
      %p119 = scmp.ne.s32.totalorder %s108, %s111
      %p120 = scmp.eq.s32.totalorder %s23, 5
      %p121 = por %p119, %p120
      %p122 = scmp.ne.s32.totalorder %s111, %s112
      %p123 = scmp.eq.s32.totalorder %s23, 0
      %p124 = por %p122, %p123
      %p125 = scmp.ne.s32.totalorder %s111, %s112
      %p126 = scmp.eq.s32.totalorder %s24, 5
      %p127 = por %p125, %p126
      %p129 = scmp.ne.s32.totalorder %s112, %s128
      %p130 = scmp.eq.s32.totalorder %s24, 0
      %p131 = por %p129, %p130
      %s132 = ssub.s32 %s26, %s33
      %p133 = scmp.eq.s32.totalorder %s132, 0
      %s135 = sadd.s32 %s134, 1
      %s136 = scalar_select %p133, %s134, %s135
      %p139 = pneg %p133
      %p140 = scmp.eq.s32.totalorder %s18, 5
      %p141 = por %p139, %p140
      %p142 = scmp.ne.s32.totalorder %s134, %s137
      %p143 = scmp.eq.s32.totalorder %s18, 0
      %p144 = por %p142, %p143
      %p145 = scmp.ne.s32.totalorder %s134, %s137
      %p146 = scmp.eq.s32.totalorder %s23, 5
      %p147 = por %p145, %p146
      %p148 = scmp.ne.s32.totalorder %s137, %s138
      %p149 = scmp.eq.s32.totalorder %s23, 0
      %p150 = por %p148, %p149
      %p151 = scmp.ne.s32.totalorder %s137, %s138
      %p152 = scmp.eq.s32.totalorder %s24, 5
      %p153 = por %p151, %p152
      %p155 = scmp.ne.s32.totalorder %s138, %s154
      %p156 = scmp.eq.s32.totalorder %s24, 0
      %p157 = por %p155, %p156
      %s158 = ssub.s32 %s25, %s37
      %s159 = ssub.s32 %s26, %s33
      %s160 = sor.u32 %s158, %s159
      %p161 = scmp.eq.s32.totalorder %s160, 0
      %s163 = sadd.s32 %s162, 1
      %s164 = scalar_select %p161, %s162, %s163
      %p167 = pneg %p161
      %p168 = scmp.eq.s32.totalorder %s18, 5
      %p169 = por %p167, %p168
      %p170 = scmp.ne.s32.totalorder %s162, %s165
      %p171 = scmp.eq.s32.totalorder %s18, 0
      %p172 = por %p170, %p171
      %p173 = scmp.ne.s32.totalorder %s162, %s165
      %p174 = scmp.eq.s32.totalorder %s23, 5
      %p175 = por %p173, %p174
      %p176 = scmp.ne.s32.totalorder %s165, %s166
      %p177 = scmp.eq.s32.totalorder %s23, 0
      %p178 = por %p176, %p177
      %p179 = scmp.ne.s32.totalorder %s165, %s166
      %p180 = scmp.eq.s32.totalorder %s24, 5
      %p181 = por %p179, %p180
      %p183 = scmp.ne.s32.totalorder %s166, %s182
      %p184 = scmp.eq.s32.totalorder %s24, 0
      %p185 = por %p183, %p184
      %p186 = scmp.le.s32.totalorder 1, %s18
      %p187 = scmp.lt.s32.totalorder %s18, 7
      %p188 = pnand %p186, %p187
      %p189 = pneg %p188
      // Predicated region
      $region9: #{transformer_block.4} parent=5 // pred_check
        _
      $region10: #{transformer_block.4} parent=5 // pred_check_branch
        %191 = sbr.rel (%p188) target = $region12
      $region11: #{transformer_block.4} parent=5 // pred_region
        %s192 = ssub.s32 %s18, 1
        // Predicated region
        $region13: #{transformer_block.4} parent=11 // pred_check
          %p193 = pneg %p77
        $region14: #{transformer_block.4} parent=11 // pred_check_branch
          %195 = sbr.rel (%p193) target = $region16
        $region15: #{transformer_block.4} parent=11 // pred_region
          %s197 = ssub.s32 16, 16
          %198 = vsyncadd [#allocation6], %s197
          %s200 = sshll.u32 [#allocation5], 4
          %s201 = int_to_ptr.vmem [resolvable:$true] %s200
          %203 = dma.hbm_to_vmem [thread:$0]  %s1, 16, %s201, [#allocation6]
        $region16: #{transformer_block.4} parent=11 // pred_fallthru
          _
        // Predicated region
        $region17: #{transformer_block.4} parent=11 // pred_check
          %p204 = pneg %p98
        $region18: #{transformer_block.4} parent=11 // pred_check_branch
          %206 = sbr.rel (%p204) target = $region20
        $region19: #{transformer_block.4} parent=11 // pred_region
          %s208 = ssub.s32 16, 16
          %209 = vsyncadd [#allocation6], %s208
          %s211 = sshll.u32 [#allocation7], 4
          %s212 = int_to_ptr.vmem [resolvable:$true] %s211
          %214 = dma.hbm_to_vmem [thread:$0]  %s2, 16, %s212, [#allocation6]
        $region20: #{transformer_block.4} parent=11 // pred_fallthru
          _
      $region12: #{transformer_block.4} parent=5 // pred_fallthru
        _
      %p215 = scmp.lt.s32.totalorder %s18, 6
      // Predicated region
      $region21: #{transformer_block.4} parent=5 // pred_check
        %p216 = pneg %p215
      $region22: #{transformer_block.4} parent=5 // pred_check_branch
        %218 = sbr.rel (%p216) target = $region24
      $region23: #{transformer_block.4} parent=5 // pred_region
        // Predicated region
        $region25: #{transformer_block.4} parent=23 // pred_check
          %p219 = pneg %p50
        $region26: #{transformer_block.4} parent=23 // pred_check_branch
          %221 = sbr.rel (%p219) target = $region28
        $region27: #{transformer_block.4} parent=23 // pred_region
          %s222 = sand.u32 %s40, 1
          %s223 = scalar_lea.sflag [#allocation4], %s222
          %s224 = sand.u32 %s40, 1
          %s225 = smul.addr %s224, 128
          %s226 = scalar_lea.vmem [#allocation3], %s225
          %s227 = smul.u32 16, %s25
          %s229 = ssub.s32 2048, 2048
          %230 = vsyncadd %s223, %s229
          %s231 = smul.addr %s227, 128
          %s232 = scalar_lea.hbm %s0, %s231
          %s233 = sshll.u32 %s226, 4
          %s234 = int_to_ptr.vmem [resolvable:$true] %s233
          %239 = dma.hbm_to_vmem [thread:$0]  %s232, 2048, %s234, %s223, 128, 128, 8
        $region28: #{transformer_block.4} parent=23 // pred_fallthru
          _
        // Predicated region
        $region29: #{transformer_block.4} parent=23 // pred_check
          %p240 = pneg %p118
        $region30: #{transformer_block.4} parent=23 // pred_check_branch
          %242 = sbr.rel (%p240) target = $region32
        $region31: #{transformer_block.4} parent=23 // pred_region
          %s243 = sand.u32 %s108, 1
          %s244 = scalar_lea.sflag [#allocation9], %s243
          %s245 = sand.u32 %s108, 1
          %s246 = smul.addr %s245, 128
          %s247 = scalar_lea.vmem [#allocation8], %s246
          %s249 = ssub.s32 2048, 2048
          %250 = vsyncadd %s244, %s249
          %s251 = smul.addr %s26, 128
          %s252 = scalar_lea.hbm %s3, %s251
          %s253 = sshll.u32 %s247, 4
          %s254 = int_to_ptr.vmem [resolvable:$true] %s253
          %259 = dma.hbm_to_vmem [thread:$0]  %s252, 2048, %s254, %s244, 384, 128, 8
        $region32: #{transformer_block.4} parent=23 // pred_fallthru
          _
        // Predicated region
        $region33: #{transformer_block.4} parent=23 // pred_check
          %p260 = pneg %p144
        $region34: #{transformer_block.4} parent=23 // pred_check_branch
          %262 = sbr.rel (%p260) target = $region36
        $region35: #{transformer_block.4} parent=23 // pred_region
          %p263 = scmp.lt.s32.totalorder %s26, 2
          %s264 = scalar_select %p263, %s26, 2
          %s265 = scalar_lea.vmem %s4, %s264
        $region36: #{transformer_block.4} parent=23 // pred_fallthru
          _
      $region24: #{transformer_block.4} parent=5 // pred_fallthru
        _
      %p266 = scmp.le.s32.totalorder 1, %s18
      %p267 = scmp.lt.s32.totalorder %s18, 7
      %p268 = pnand %p266, %p267
      %p269 = pneg %p268
      // Predicated region
      $region37: #{transformer_block.4} parent=5 // pred_check
        _
      $region38: #{transformer_block.4} parent=5 // pred_check_branch
        %271 = sbr.rel (%p268) target = $region40
      $region39: #{transformer_block.4} parent=5 // pred_region
        %s272 = ssub.s32 %s18, 1
        %s273 = sand.u32 %s43, 1
        %s274 = scalar_lea.sflag [#allocation4], %s273
        %s275 = sand.u32 %s43, 1
        %s276 = smul.addr %s275, 128
        %s277 = scalar_lea.vmem [#allocation3], %s276
        // Predicated region
        $region41: #{transformer_block.4} parent=39 // pred_check
          %p278 = pneg %p56
        $region42: #{transformer_block.4} parent=39 // pred_check_branch
          %280 = sbr.rel (%p278) target = $region44
        $region43: #{transformer_block.4} parent=39 // pred_region
          %281 = dma.done %s274, 2048
        $region44: #{transformer_block.4} parent=39 // pred_fallthru
          _
        // Predicated region
        $region45: #{transformer_block.4} parent=39 // pred_check
          %p282 = pneg %p77
        $region46: #{transformer_block.4} parent=39 // pred_check_branch
          %284 = sbr.rel (%p282) target = $region48
        $region47: #{transformer_block.4} parent=39 // pred_region
          %285 = dma.done [#allocation6], 16
        $region48: #{transformer_block.4} parent=39 // pred_fallthru
          _
        // Predicated region
        $region49: #{transformer_block.4} parent=39 // pred_check
          %p286 = pneg %p98
        $region50: #{transformer_block.4} parent=39 // pred_check_branch
          %288 = sbr.rel (%p286) target = $region52
        $region51: #{transformer_block.4} parent=39 // pred_region
          %289 = dma.done [#allocation6], 16
        $region52: #{transformer_block.4} parent=39 // pred_fallthru
          _
        %s290 = sand.u32 %s111, 1
        %s291 = scalar_lea.sflag [#allocation9], %s290
        %s292 = sand.u32 %s111, 1
        %s293 = smul.addr %s292, 128
        %s294 = scalar_lea.vmem [#allocation8], %s293
        // Predicated region
        $region53: #{transformer_block.4} parent=39 // pred_check
          %p295 = pneg %p124
        $region54: #{transformer_block.4} parent=39 // pred_check_branch
          %297 = sbr.rel (%p295) target = $region56
        $region55: #{transformer_block.4} parent=39 // pred_region
          %298 = dma.done %s291, 2048
        $region56: #{transformer_block.4} parent=39 // pred_fallthru
          _
        %s299 = sand.u32 %s43, 1
        %s300 = scalar_lea.sflag [#allocation4], %s299
        %s301 = sand.u32 %s43, 1
        %s302 = smul.addr %s301, 128
        %s303 = scalar_lea.vmem [#allocation3], %s302
        %p304 = pneg %p56
        %p305 = pneg %p53
        %p306 = pneg %p77
        %p307 = pneg %p74
        %p308 = pneg %p98
        %p309 = pneg %p95
        %s310 = sand.u32 %s111, 1
        %s311 = scalar_lea.sflag [#allocation9], %s310
        %s312 = sand.u32 %s111, 1
        %s313 = smul.addr %s312, 128
        %s314 = scalar_lea.vmem [#allocation8], %s313
        %p315 = pneg %p124
        %p316 = pneg %p121
        %p317 = scmp.lt.s32.totalorder %s28, 2
        %s318 = scalar_select %p317, %s28, 2
        %s319 = scalar_lea.vmem %s4, %s318
        %p320 = pneg %p150
        %p321 = pneg %p147
        %p322 = pneg %p178
        %p323 = pneg %p175
        %s324 = sand.u32 %s165, 1
        %s325 = sand.u32 %s165, 1
        %s326 = smul.addr %s325, 128
        %s327 = scalar_lea.vmem [#allocation10], %s326
        %s328 = smul.u32 16, %s27
        %p329 = scmp.lt.s32.totalorder %s28, 2
        %s330 = scalar_select %p329, %s28, 2
        %s331 = scalar_lea.vmem %s4, %s330
        %s332 = smul.u32 16, %s27
        %p333 = scmp.eq.s32.totalorder %s28, 0
        // Predicated region
        $region57: #{transformer_block.4} parent=39 // pred_check
          %p334 = pneg %p333
        $region58: #{transformer_block.4} parent=39 // pred_check_branch
          %336 = sbr.rel (%p334) target = $region60
        $region59: #{transformer_block.4} parent=39 // pred_region
          %v337 = vld [vmem:[%s277] sm:$0xff]
          %v338 = vld [vmem:[%s277 + $0x8] sm:$0xff]
          %v339 = vld [vmem:[%s277 + $0x10] sm:$0xff]
          %v340 = vld [vmem:[%s277 + $0x18] sm:$0xff]
          %v341 = vld [vmem:[%s277 + $0x20] sm:$0xff]
          %v342 = vld [vmem:[%s277 + $0x28] sm:$0xff]
          %v343 = vld [vmem:[%s277 + $0x30] sm:$0xff]
          %v344 = vld [vmem:[%s277 + $0x38] sm:$0xff]
          %v345 = vld [vmem:[%s277 + $0x40] sm:$0xff]
          %v346 = vld [vmem:[%s277 + $0x48] sm:$0xff]
          %v347 = vld [vmem:[%s277 + $0x50] sm:$0xff]
          %v348 = vld [vmem:[%s277 + $0x58] sm:$0xff]
          %v349 = vld [vmem:[%s277 + $0x60] sm:$0xff]
          %v350 = vld [vmem:[%s277 + $0x68] sm:$0xff]
          %v351 = vld [vmem:[%s277 + $0x70] sm:$0xff]
          %v352 = vld [vmem:[%s277 + $0x78] sm:$0xff]
          %353 = vadd.xlane.f32.xlu0 %v337
          %v354 = vpop.xlane.xlu0 %353
          %355 = vadd.xlane.f32.xlu0 %v338
          %v356 = vpop.xlane.xlu0 %355
          %357 = vadd.xlane.f32.xlu0 %v339
          %v358 = vpop.xlane.xlu0 %357
          %359 = vadd.xlane.f32.xlu0 %v340
          %v360 = vpop.xlane.xlu0 %359
          %361 = vadd.xlane.f32.xlu0 %v341
          %v362 = vpop.xlane.xlu0 %361
          %363 = vadd.xlane.f32.xlu0 %v342
          %v364 = vpop.xlane.xlu0 %363
          %365 = vadd.xlane.f32.xlu0 %v343
          %v366 = vpop.xlane.xlu0 %365
          %367 = vadd.xlane.f32.xlu0 %v344
          %v368 = vpop.xlane.xlu0 %367
          %369 = vadd.xlane.f32.xlu0 %v345
          %v370 = vpop.xlane.xlu0 %369
          %371 = vadd.xlane.f32.xlu0 %v346
          %v372 = vpop.xlane.xlu0 %371
          %373 = vadd.xlane.f32.xlu0 %v347
          %v374 = vpop.xlane.xlu0 %373
          %375 = vadd.xlane.f32.xlu0 %v348
          %v376 = vpop.xlane.xlu0 %375
          %377 = vadd.xlane.f32.xlu0 %v349
          %v378 = vpop.xlane.xlu0 %377
          %379 = vadd.xlane.f32.xlu0 %v350
          %v380 = vpop.xlane.xlu0 %379
          %381 = vadd.xlane.f32.xlu0 %v351
          %v382 = vpop.xlane.xlu0 %381
          %383 = vadd.xlane.f32.xlu0 %v352
          %v384 = vpop.xlane.xlu0 %383
          %v385 = vrcp.pop 128.0
          %v386 = vmul.f32 %v354, %v385
          %v387 = vmul.f32 %v356, %v385
          %v388 = vmul.f32 %v358, %v385
          %v389 = vmul.f32 %v360, %v385
          %v390 = vmul.f32 %v362, %v385
          %v391 = vmul.f32 %v364, %v385
          %v392 = vmul.f32 %v366, %v385
          %v393 = vmul.f32 %v368, %v385
          %v394 = vmul.f32 %v370, %v385
          %v395 = vmul.f32 %v372, %v385
          %v396 = vmul.f32 %v374, %v385
          %v397 = vmul.f32 %v376, %v385
          %v398 = vmul.f32 %v378, %v385
          %v399 = vmul.f32 %v380, %v385
          %v400 = vmul.f32 %v382, %v385
          %v401 = vmul.f32 %v384, %v385
          %v402 = vsub.f32 %v337, %v386
          %v403 = vsub.f32 %v338, %v387
          %v404 = vsub.f32 %v339, %v388
          %v405 = vsub.f32 %v340, %v389
          %v406 = vsub.f32 %v341, %v390
          %v407 = vsub.f32 %v342, %v391
          %v408 = vsub.f32 %v343, %v392
          %v409 = vsub.f32 %v344, %v393
          %v410 = vsub.f32 %v345, %v394
          %v411 = vsub.f32 %v346, %v395
          %v412 = vsub.f32 %v347, %v396
          %v413 = vsub.f32 %v348, %v397
          %v414 = vsub.f32 %v349, %v398
          %v415 = vsub.f32 %v350, %v399
          %v416 = vsub.f32 %v351, %v400
          %v417 = vsub.f32 %v352, %v401
          %v418 = vmul.f32 %v402, %v402
          %v419 = vmul.f32 %v403, %v403
          %v420 = vmul.f32 %v404, %v404
          %v421 = vmul.f32 %v405, %v405
          %v422 = vmul.f32 %v406, %v406
          %v423 = vmul.f32 %v407, %v407
          %v424 = vmul.f32 %v408, %v408
          %v425 = vmul.f32 %v409, %v409
          %v426 = vmul.f32 %v410, %v410
          %v427 = vmul.f32 %v411, %v411
          %v428 = vmul.f32 %v412, %v412
          %v429 = vmul.f32 %v413, %v413
          %v430 = vmul.f32 %v414, %v414
          %v431 = vmul.f32 %v415, %v415
          %v432 = vmul.f32 %v416, %v416
          %v433 = vmul.f32 %v417, %v417
          %434 = vadd.xlane.f32.xlu0 %v418
          %v435 = vpop.xlane.xlu0 %434
          %436 = vadd.xlane.f32.xlu0 %v419
          %v437 = vpop.xlane.xlu0 %436
          %438 = vadd.xlane.f32.xlu0 %v420
          %v439 = vpop.xlane.xlu0 %438
          %440 = vadd.xlane.f32.xlu0 %v421
          %v441 = vpop.xlane.xlu0 %440
          %442 = vadd.xlane.f32.xlu0 %v422
          %v443 = vpop.xlane.xlu0 %442
          %444 = vadd.xlane.f32.xlu0 %v423
          %v445 = vpop.xlane.xlu0 %444
          %446 = vadd.xlane.f32.xlu0 %v424
          %v447 = vpop.xlane.xlu0 %446
          %448 = vadd.xlane.f32.xlu0 %v425
          %v449 = vpop.xlane.xlu0 %448
          %450 = vadd.xlane.f32.xlu0 %v426
          %v451 = vpop.xlane.xlu0 %450
          %452 = vadd.xlane.f32.xlu0 %v427
          %v453 = vpop.xlane.xlu0 %452
          %454 = vadd.xlane.f32.xlu0 %v428
          %v455 = vpop.xlane.xlu0 %454
          %456 = vadd.xlane.f32.xlu0 %v429
          %v457 = vpop.xlane.xlu0 %456
          %458 = vadd.xlane.f32.xlu0 %v430
          %v459 = vpop.xlane.xlu0 %458
          %460 = vadd.xlane.f32.xlu0 %v431
          %v461 = vpop.xlane.xlu0 %460
          %462 = vadd.xlane.f32.xlu0 %v432
          %v463 = vpop.xlane.xlu0 %462
          %464 = vadd.xlane.f32.xlu0 %v433
          %v465 = vpop.xlane.xlu0 %464
          %v466 = vmul.f32 %v435, %v385
          %v467 = vmul.f32 %v437, %v385
          %v468 = vmul.f32 %v439, %v385
          %v469 = vmul.f32 %v441, %v385
          %v470 = vmul.f32 %v443, %v385
          %v471 = vmul.f32 %v445, %v385
          %v472 = vmul.f32 %v447, %v385
          %v473 = vmul.f32 %v449, %v385
          %v474 = vmul.f32 %v451, %v385
          %v475 = vmul.f32 %v453, %v385
          %v476 = vmul.f32 %v455, %v385
          %v477 = vmul.f32 %v457, %v385
          %v478 = vmul.f32 %v459, %v385
          %v479 = vmul.f32 %v461, %v385
          %v480 = vmul.f32 %v463, %v385
          %v481 = vmul.f32 %v465, %v385
          %v482 = vadd.f32 %v466, 1e-05
          %v483 = vadd.f32 %v467, 1e-05
          %v484 = vadd.f32 %v468, 1e-05
          %v485 = vadd.f32 %v469, 1e-05
          %v486 = vadd.f32 %v470, 1e-05
          %v487 = vadd.f32 %v471, 1e-05
          %v488 = vadd.f32 %v472, 1e-05
          %v489 = vadd.f32 %v473, 1e-05
          %v490 = vadd.f32 %v474, 1e-05
          %v491 = vadd.f32 %v475, 1e-05
          %v492 = vadd.f32 %v476, 1e-05
          %v493 = vadd.f32 %v477, 1e-05
          %v494 = vadd.f32 %v478, 1e-05
          %v495 = vadd.f32 %v479, 1e-05
          %v496 = vadd.f32 %v480, 1e-05
          %v497 = vadd.f32 %v481, 1e-05
          %v498 = vrsqrt.pop %v482
          %v499 = vrsqrt.pop %v483
          %v500 = vrsqrt.pop %v484
          %v501 = vrsqrt.pop %v485
          %v502 = vrsqrt.pop %v486
          %v503 = vrsqrt.pop %v487
          %v504 = vrsqrt.pop %v488
          %v505 = vrsqrt.pop %v489
          %v506 = vrsqrt.pop %v490
          %v507 = vrsqrt.pop %v491
          %v508 = vrsqrt.pop %v492
          %v509 = vrsqrt.pop %v493
          %v510 = vrsqrt.pop %v494
          %v511 = vrsqrt.pop %v495
          %v512 = vrsqrt.pop %v496
          %v513 = vrsqrt.pop %v497
          %v514 = vmul.f32 %v402, %v498
          %v515 = vmul.f32 %v403, %v499
          %v516 = vmul.f32 %v404, %v500
          %v517 = vmul.f32 %v405, %v501
          %v518 = vmul.f32 %v406, %v502
          %v519 = vmul.f32 %v407, %v503
          %v520 = vmul.f32 %v408, %v504
          %v521 = vmul.f32 %v409, %v505
          %v522 = vmul.f32 %v410, %v506
          %v523 = vmul.f32 %v411, %v507
          %v524 = vmul.f32 %v412, %v508
          %v525 = vmul.f32 %v413, %v509
          %v526 = vmul.f32 %v414, %v510
          %v527 = vmul.f32 %v415, %v511
          %v528 = vmul.f32 %v416, %v512
          %v529 = vmul.f32 %v417, %v513
          %v530 = vld [vmem:[#allocation5] sm:$0x1]
          %v532 = vlaneseq
          %v533 = vshrl.u32 %v532, 7
          %v534 = vsub.s32 0, %v533
          %v535 = vrot.slane %v530, %v534
          %v537 = vmul.f32 %v514, %v535
          %v538 = vmul.f32 %v515, %v535
          %v539 = vmul.f32 %v516, %v535
          %v540 = vmul.f32 %v517, %v535
          %v541 = vmul.f32 %v518, %v535
          %v542 = vmul.f32 %v519, %v535
          %v543 = vmul.f32 %v520, %v535
          %v544 = vmul.f32 %v521, %v535
          %v545 = vmul.f32 %v522, %v535
          %v546 = vmul.f32 %v523, %v535
          %v547 = vmul.f32 %v524, %v535
          %v548 = vmul.f32 %v525, %v535
          %v549 = vmul.f32 %v526, %v535
          %v550 = vmul.f32 %v527, %v535
          %v551 = vmul.f32 %v528, %v535
          %v552 = vmul.f32 %v529, %v535
          %v553 = vld [vmem:[#allocation7] sm:$0x1]
          %v555 = vlaneseq
          %v556 = vshrl.u32 %v555, 7
          %v557 = vsub.s32 0, %v556
          %v558 = vrot.slane %v553, %v557
          %v560 = vadd.f32 %v537, %v558
          %v561 = vadd.f32 %v538, %v558
          %v562 = vadd.f32 %v539, %v558
          %v563 = vadd.f32 %v540, %v558
          %v564 = vadd.f32 %v541, %v558
          %v565 = vadd.f32 %v542, %v558
          %v566 = vadd.f32 %v543, %v558
          %v567 = vadd.f32 %v544, %v558
          %v568 = vadd.f32 %v545, %v558
          %v569 = vadd.f32 %v546, %v558
          %v570 = vadd.f32 %v547, %v558
          %v571 = vadd.f32 %v548, %v558
          %v572 = vadd.f32 %v549, %v558
          %v573 = vadd.f32 %v550, %v558
          %v574 = vadd.f32 %v551, %v558
          %v575 = vadd.f32 %v552, %v558
          %576 = vst [vmem:[#allocation2] sm:$0xff] %v560
          %577 = vst [vmem:[#allocation2 + $0x8] sm:$0xff] %v561
          %578 = vst [vmem:[#allocation2 + $0x10] sm:$0xff] %v562
          %579 = vst [vmem:[#allocation2 + $0x18] sm:$0xff] %v563
          %580 = vst [vmem:[#allocation2 + $0x20] sm:$0xff] %v564
          %581 = vst [vmem:[#allocation2 + $0x28] sm:$0xff] %v565
          %582 = vst [vmem:[#allocation2 + $0x30] sm:$0xff] %v566
          %583 = vst [vmem:[#allocation2 + $0x38] sm:$0xff] %v567
          %584 = vst [vmem:[#allocation2 + $0x40] sm:$0xff] %v568
          %585 = vst [vmem:[#allocation2 + $0x48] sm:$0xff] %v569
          %586 = vst [vmem:[#allocation2 + $0x50] sm:$0xff] %v570
          %587 = vst [vmem:[#allocation2 + $0x58] sm:$0xff] %v571
          %588 = vst [vmem:[#allocation2 + $0x60] sm:$0xff] %v572
          %589 = vst [vmem:[#allocation2 + $0x68] sm:$0xff] %v573
          %590 = vst [vmem:[#allocation2 + $0x70] sm:$0xff] %v574
          %591 = vst [vmem:[#allocation2 + $0x78] sm:$0xff] %v575
        $region60: #{transformer_block.4} parent=39 // pred_fallthru
          _
        %v592 = vld [vmem:[#allocation2] sm:$0xff]
        %v593 = vld [vmem:[#allocation2 + $0x8] sm:$0xff]
        %v594 = vld [vmem:[#allocation2 + $0x10] sm:$0xff]
        %v595 = vld [vmem:[#allocation2 + $0x18] sm:$0xff]
        %v596 = vld [vmem:[#allocation2 + $0x20] sm:$0xff]
        %v597 = vld [vmem:[#allocation2 + $0x28] sm:$0xff]
        %v598 = vld [vmem:[#allocation2 + $0x30] sm:$0xff]
        %v599 = vld [vmem:[#allocation2 + $0x38] sm:$0xff]
        %v600 = vld [vmem:[#allocation2 + $0x40] sm:$0xff]
        %v601 = vld [vmem:[#allocation2 + $0x48] sm:$0xff]
        %v602 = vld [vmem:[#allocation2 + $0x50] sm:$0xff]
        %v603 = vld [vmem:[#allocation2 + $0x58] sm:$0xff]
        %v604 = vld [vmem:[#allocation2 + $0x60] sm:$0xff]
        %v605 = vld [vmem:[#allocation2 + $0x68] sm:$0xff]
        %v606 = vld [vmem:[#allocation2 + $0x70] sm:$0xff]
        %v607 = vld [vmem:[#allocation2 + $0x78] sm:$0xff]
        %v608 = vld [vmem:[%s294] sm:$0xff]
        %v609 = vld [vmem:[%s294 + $0x8] sm:$0xff]
        %v610 = vld [vmem:[%s294 + $0x10] sm:$0xff]
        %v611 = vld [vmem:[%s294 + $0x18] sm:$0xff]
        %v612 = vld [vmem:[%s294 + $0x20] sm:$0xff]
        %v613 = vld [vmem:[%s294 + $0x28] sm:$0xff]
        %v614 = vld [vmem:[%s294 + $0x30] sm:$0xff]
        %v615 = vld [vmem:[%s294 + $0x38] sm:$0xff]
        %v616 = vld [vmem:[%s294 + $0x40] sm:$0xff]
        %v617 = vld [vmem:[%s294 + $0x48] sm:$0xff]
        %v618 = vld [vmem:[%s294 + $0x50] sm:$0xff]
        %v619 = vld [vmem:[%s294 + $0x58] sm:$0xff]
        %v620 = vld [vmem:[%s294 + $0x60] sm:$0xff]
        %v621 = vld [vmem:[%s294 + $0x68] sm:$0xff]
        %v622 = vld [vmem:[%s294 + $0x70] sm:$0xff]
        %v623 = vld [vmem:[%s294 + $0x78] sm:$0xff]
        %v624 = vld [vmem:[%s331] sm:$0x1]
        %v626 = vlaneseq
        %v627 = vshrl.u32 %v626, 7
        %v628 = vsub.s32 0, %v627
        %v629 = vrot.slane %v624, %v628
        %631 = vmatprep.subr.mxu0 0.0
        %632 = vmatpush1.msra.mxu0 %v608
        %633 = vmatprep.subr.mxu0 0.0
        %634 = vmatpush1.msra.mxu0 %v609
        %635 = vmatprep.subr.mxu0 0.0
        %636 = vmatpush1.msra.mxu0 %v610
        %637 = vmatprep.subr.mxu0 0.0
        %638 = vmatpush1.msra.mxu0 %v611
        %639 = vmatprep.subr.mxu0 0.0
        %640 = vmatpush1.msra.mxu0 %v612
        %641 = vmatprep.subr.mxu0 0.0
        %642 = vmatpush1.msra.mxu0 %v613
        %643 = vmatprep.subr.mxu0 0.0
        %644 = vmatpush1.msra.mxu0 %v614
        %645 = vmatprep.subr.mxu0 0.0
        %646 = vmatpush1.msra.mxu0 %v615
        %647 = vmatprep.subr.mxu0 0.0
        %648 = vmatpush1.msra.mxu0 %v616
        %649 = vmatprep.subr.mxu0 0.0
        %650 = vmatpush1.msra.mxu0 %v617
        %651 = vmatprep.subr.mxu0 0.0
        %652 = vmatpush1.msra.mxu0 %v618
        %653 = vmatprep.subr.mxu0 0.0
        %654 = vmatpush1.msra.mxu0 %v619
        %655 = vmatprep.subr.mxu0 0.0
        %656 = vmatpush1.msra.mxu0 %v620
        %657 = vmatprep.subr.mxu0 0.0
        %658 = vmatpush1.msra.mxu0 %v621
        %659 = vmatprep.subr.mxu0 0.0
        %660 = vmatpush1.msra.mxu0 %v622
        %661 = vmatprep.subr.mxu0 0.0
        %662 = vmatpush1.msra.mxu0 %v623
        %663 = vmatprep.subr.mxu0 0.0
        %664 = vmatpush1.msra.mxu0 0.0
        %665 = vmatprep.subr.mxu0 0.0
        %666 = vmatpush1.msra.mxu0 0.0
        %667 = vmatprep.subr.mxu0 0.0
        %668 = vmatpush1.msra.mxu0 0.0
        %669 = vmatprep.subr.mxu0 0.0
        %670 = vmatpush1.msra.mxu0 0.0
        %671 = vmatprep.subr.mxu0 0.0
        %672 = vmatpush1.msra.mxu0 0.0
        %673 = vmatprep.subr.mxu0 0.0
        %674 = vmatpush1.msra.mxu0 0.0
        %675 = vmatprep.subr.mxu0 0.0
        %676 = vmatpush1.msra.mxu0 0.0
        %677 = vmatprep.subr.mxu0 0.0
        %678 = vmatpush1.msra.mxu0 0.0
        %679 = vmatprep.subr.mxu0 0.0
        %680 = vmatpush1.msra.mxu0 0.0
        %681 = vmatprep.subr.mxu0 0.0
        %682 = vmatpush1.msra.mxu0 0.0
        %683 = vmatprep.subr.mxu0 0.0
        %684 = vmatpush1.msra.mxu0 0.0
        %685 = vmatprep.subr.mxu0 0.0
        %686 = vmatpush1.msra.mxu0 0.0
        %687 = vmatprep.subr.mxu0 0.0
        %688 = vmatpush1.msra.mxu0 0.0
        %689 = vmatprep.subr.mxu0 0.0
        %690 = vmatpush1.msra.mxu0 0.0
        %691 = vmatprep.subr.mxu0 0.0
        %692 = vmatpush1.msra.mxu0 0.0
        %693 = vmatprep.subr.mxu0 0.0
        %694 = vmatpush1.msra.mxu0 0.0
        %695 = vmatprep.mubr.f32.mxu0 0.0
        %696 = vmatmul.mubr.f32.gmra.mrb[0].mxu0 %v592
        %v697 = vpop.f32.mrb[0].mxu0
        %v698 = vadd.f32 %v629, %v697
        %v699 = vpop.f32.mrb[0].mxu0
        %700 = vmatprep.mubr.f32.mxu0 0.0
        %701 = vmatmul.mubr.f32.gmra.mrb[0].mxu0 %v593
        %v702 = vpop.f32.mrb[0].mxu0
        %v703 = vadd.f32 %v629, %v702
        %v704 = vpop.f32.mrb[0].mxu0
        %705 = vmatprep.mubr.f32.mxu0 0.0
        %706 = vmatmul.mubr.f32.gmra.mrb[0].mxu0 %v594
        %v707 = vpop.f32.mrb[0].mxu0
        %v708 = vadd.f32 %v629, %v707
        %v709 = vpop.f32.mrb[0].mxu0
        %710 = vmatprep.mubr.f32.mxu0 0.0
        %711 = vmatmul.mubr.f32.gmra.mrb[0].mxu0 %v595
        %v712 = vpop.f32.mrb[0].mxu0
        %v713 = vadd.f32 %v629, %v712
        %v714 = vpop.f32.mrb[0].mxu0
        %715 = vmatprep.mubr.f32.mxu0 0.0
        %716 = vmatmul.mubr.f32.gmra.mrb[0].mxu0 %v596
        %v717 = vpop.f32.mrb[0].mxu0
        %v718 = vadd.f32 %v629, %v717
        %v719 = vpop.f32.mrb[0].mxu0
        %720 = vmatprep.mubr.f32.mxu0 0.0
        %721 = vmatmul.mubr.f32.gmra.mrb[0].mxu0 %v597
        %v722 = vpop.f32.mrb[0].mxu0
        %v723 = vadd.f32 %v629, %v722
        %v724 = vpop.f32.mrb[0].mxu0
        %725 = vmatprep.mubr.f32.mxu0 0.0
        %726 = vmatmul.mubr.f32.gmra.mrb[0].mxu0 %v598
        %v727 = vpop.f32.mrb[0].mxu0
        %v728 = vadd.f32 %v629, %v727
        %v729 = vpop.f32.mrb[0].mxu0
        %730 = vmatprep.mubr.f32.mxu0 0.0
        %731 = vmatmul.mubr.f32.gmra.mrb[0].mxu0 %v599
        %v732 = vpop.f32.mrb[0].mxu0
        %v733 = vadd.f32 %v629, %v732
        %v734 = vpop.f32.mrb[0].mxu0
        %735 = vmatprep.mubr.f32.mxu0 0.0
        %736 = vmatmul.mubr.f32.gmra.mrb[0].mxu0 %v600
        %v737 = vpop.f32.mrb[0].mxu0
        %v738 = vadd.f32 %v629, %v737
        %v739 = vpop.f32.mrb[0].mxu0
        %740 = vmatprep.mubr.f32.mxu0 0.0
        %741 = vmatmul.mubr.f32.gmra.mrb[0].mxu0 %v601
        %v742 = vpop.f32.mrb[0].mxu0
        %v743 = vadd.f32 %v629, %v742
        %v744 = vpop.f32.mrb[0].mxu0
        %745 = vmatprep.mubr.f32.mxu0 0.0
        %746 = vmatmul.mubr.f32.gmra.mrb[0].mxu0 %v602
        %v747 = vpop.f32.mrb[0].mxu0
        %v748 = vadd.f32 %v629, %v747
        %v749 = vpop.f32.mrb[0].mxu0
        %750 = vmatprep.mubr.f32.mxu0 0.0
        %751 = vmatmul.mubr.f32.gmra.mrb[0].mxu0 %v603
        %v752 = vpop.f32.mrb[0].mxu0
        %v753 = vadd.f32 %v629, %v752
        %v754 = vpop.f32.mrb[0].mxu0
        %755 = vmatprep.mubr.f32.mxu0 0.0
        %756 = vmatmul.mubr.f32.gmra.mrb[0].mxu0 %v604
        %v757 = vpop.f32.mrb[0].mxu0
        %v758 = vadd.f32 %v629, %v757
        %v759 = vpop.f32.mrb[0].mxu0
        %760 = vmatprep.mubr.f32.mxu0 0.0
        %761 = vmatmul.mubr.f32.gmra.mrb[0].mxu0 %v605
        %v762 = vpop.f32.mrb[0].mxu0
        %v763 = vadd.f32 %v629, %v762
        %v764 = vpop.f32.mrb[0].mxu0
        %765 = vmatprep.mubr.f32.mxu0 0.0
        %766 = vmatmul.mubr.f32.gmra.mrb[0].mxu0 %v606
        %v767 = vpop.f32.mrb[0].mxu0
        %v768 = vadd.f32 %v629, %v767
        %v769 = vpop.f32.mrb[0].mxu0
        %770 = vmatprep.mubr.f32.mxu0 0.0
        %771 = vmatmul.mubr.f32.gmra.mrb[0].mxu0 %v607
        %v772 = vpop.f32.mrb[0].mxu0
        %v773 = vadd.f32 %v629, %v772
        %v774 = vpop.f32.mrb[0].mxu0
        %775 = vdwg.mxu0
        %776 = vst [vmem:[%s327] sm:$0xff] %v698
        %777 = vst [vmem:[%s327 + $0x8] sm:$0xff] %v703
        %778 = vst [vmem:[%s327 + $0x10] sm:$0xff] %v708
        %779 = vst [vmem:[%s327 + $0x18] sm:$0xff] %v713
        %780 = vst [vmem:[%s327 + $0x20] sm:$0xff] %v718
        %781 = vst [vmem:[%s327 + $0x28] sm:$0xff] %v723
        %782 = vst [vmem:[%s327 + $0x30] sm:$0xff] %v728
        %783 = vst [vmem:[%s327 + $0x38] sm:$0xff] %v733
        %784 = vst [vmem:[%s327 + $0x40] sm:$0xff] %v738
        %785 = vst [vmem:[%s327 + $0x48] sm:$0xff] %v743
        %786 = vst [vmem:[%s327 + $0x50] sm:$0xff] %v748
        %787 = vst [vmem:[%s327 + $0x58] sm:$0xff] %v753
        %788 = vst [vmem:[%s327 + $0x60] sm:$0xff] %v758
        %789 = vst [vmem:[%s327 + $0x68] sm:$0xff] %v763
        %790 = vst [vmem:[%s327 + $0x70] sm:$0xff] %v768
        %791 = vst [vmem:[%s327 + $0x78] sm:$0xff] %v773
        %s792 = sand.u32 %s165, 1
        %s793 = sand.u32 %s165, 1
        %s794 = smul.addr %s793, 128
        %s795 = scalar_lea.vmem [#allocation10], %s794
        // Predicated region
        $region61: #{transformer_block.4} parent=39 // pred_check
          %p796 = pneg %p175
        $region62: #{transformer_block.4} parent=39 // pred_check_branch
          %798 = sbr.rel (%p796) target = $region64
        $region63: #{transformer_block.4} parent=39 // pred_region
          %s799 = smul.u32 16, %s27
          %s800 = smul.addr %s799, 3
          %s801 = sadd.s32 %s28, %s800
          %s802 = smul.addr %s801, 8
          %s803 = scalar_lea.vmem %s5, %s802
          // Predicated region
          $region65: #{transformer_block.4} parent=63 // pred_check
            _
          $region66: #{transformer_block.4} parent=63 // pred_check_branch
            %805 = sbr.rel (0) target = $region68
          $region67: #{transformer_block.4} parent=63 // pred_region
            // Predicated region
            $region69: #{transformer_block.4} parent=67 // pred_check
              _
            $region70: #{transformer_block.4} parent=67 // pred_check_branch
              %807 = sbr.rel (0) target = $region72
            $region71: #{transformer_block.4} parent=67 // pred_region
              // Predicated region
              $region84: #{transformer_block.4} parent=71 // pred_check
                _
              $region85: #{transformer_block.4} parent=71 // pred_check_branch
                %852 = sbr.rel (0) target = $region87
              $region86: #{transformer_block.4} parent=71 // pred_region
                loop: start=0, step=1, limit=1
                $region88: #{transformer_block.4} parent=86 // loop_pre_header
                  _
                $region89: #{transformer_block.4} parent=86 // loop_header
                  %s854 = sphi 0, %s858
                  %p855 = scmp.ge.s32.totalorder %s854, 1
                  %s859 = sphi %s795, %s795
                  %s860 = sphi %s803, %s803
                $region90: #{transformer_block.4} parent=86 // loop_header_branch
                  %857 = sbr.rel (%p855) target = $region94
                $region91: #{transformer_block.4} parent=86 // loop_body
                  %v861 = vld [vmem:[%s859] sm:$0xff]
                  %862 = vst [vmem:[%s860] sm:$0xff] %v861
                  %v863 = vld [vmem:[%s859 + $0x8] sm:$0xff]
                  %864 = vst [vmem:[%s860 + $0x18] sm:$0xff] %v863
                  %v865 = vld [vmem:[%s859 + $0x10] sm:$0xff]
                  %866 = vst [vmem:[%s860 + $0x30] sm:$0xff] %v865
                  %v867 = vld [vmem:[%s859 + $0x18] sm:$0xff]
                  %868 = vst [vmem:[%s860 + $0x48] sm:$0xff] %v867
                  %v869 = vld [vmem:[%s859 + $0x20] sm:$0xff]
                  %870 = vst [vmem:[%s860 + $0x60] sm:$0xff] %v869
                  %v871 = vld [vmem:[%s859 + $0x28] sm:$0xff]
                  %872 = vst [vmem:[%s860 + $0x78] sm:$0xff] %v871
                  %v873 = vld [vmem:[%s859 + $0x30] sm:$0xff]
                  %874 = vst [vmem:[%s860 + $0x90] sm:$0xff] %v873
                  %v875 = vld [vmem:[%s859 + $0x38] sm:$0xff]
                  %876 = vst [vmem:[%s860 + $0xa8] sm:$0xff] %v875
                  %v877 = vld [vmem:[%s859 + $0x40] sm:$0xff]
                  %878 = vst [vmem:[%s860 + $0xc0] sm:$0xff] %v877
                  %v879 = vld [vmem:[%s859 + $0x48] sm:$0xff]
                  %880 = vst [vmem:[%s860 + $0xd8] sm:$0xff] %v879
                  %v881 = vld [vmem:[%s859 + $0x50] sm:$0xff]
                  %882 = vst [vmem:[%s860 + $0xf0] sm:$0xff] %v881
                  %v883 = vld [vmem:[%s859 + $0x58] sm:$0xff]
                  %884 = vst [vmem:[%s860 + $0x108] sm:$0xff] %v883
                  %v885 = vld [vmem:[%s859 + $0x60] sm:$0xff]
                  %886 = vst [vmem:[%s860 + $0x120] sm:$0xff] %v885
                  %v887 = vld [vmem:[%s859 + $0x68] sm:$0xff]
                  %888 = vst [vmem:[%s860 + $0x138] sm:$0xff] %v887
                  %v889 = vld [vmem:[%s859 + $0x70] sm:$0xff]
                  %890 = vst [vmem:[%s860 + $0x150] sm:$0xff] %v889
                  %v891 = vld [vmem:[%s859 + $0x78] sm:$0xff]
                  %892 = vst [vmem:[%s860 + $0x168] sm:$0xff] %v891
                $region92: #{transformer_block.4} parent=86 // loop_footer
                  %s858 = sadd.s32 1, %s854
                $region93: #{transformer_block.4} parent=86 // loop_footer_branch
                  %853 = sbr.rel target = $region89
                $region94: #{transformer_block.4} parent=86 // loop_exit
                  _
              $region87: #{transformer_block.4} parent=71 // pred_fallthru
                _
              // Predicated region
              $region95: #{transformer_block.4} parent=71 // pred_check
                _
              $region96: #{transformer_block.4} parent=71 // pred_check_branch
                %894 = sbr.rel target = $region98
              $region97: #{transformer_block.4} parent=71 // pred_region
                _
              $region98: #{transformer_block.4} parent=71 // pred_fallthru
                _
            $region72: #{transformer_block.4} parent=67 // pred_fallthru
              _
            // Predicated region
            $region73: #{transformer_block.4} parent=67 // pred_check
              _
            $region74: #{transformer_block.4} parent=67 // pred_check_branch
              %809 = sbr.rel target = $region76
            $region75: #{transformer_block.4} parent=67 // pred_region
              loop: start=0, step=1, limit=1
              $region77: #{transformer_block.4} parent=75 // loop_pre_header
                _
              $region78: #{transformer_block.4} parent=75 // loop_header
                %s812 = sphi 0, %s816
                %p813 = scmp.ge.s32.totalorder %s812, 1
                %s817 = sphi %s795, %s795
                %s818 = sphi %s803, %s803
              $region79: #{transformer_block.4} parent=75 // loop_header_branch
                %815 = sbr.rel (%p813) target = $region83
              $region80: #{transformer_block.4} parent=75 // loop_body
                %v819 = vld [vmem:[%s817] sm:$0xff]
                %820 = vst [vmem:[%s818] sm:$0xff] %v819
                %v821 = vld [vmem:[%s817 + $0x8] sm:$0xff]
                %822 = vst [vmem:[%s818 + $0x18] sm:$0xff] %v821
                %v823 = vld [vmem:[%s817 + $0x10] sm:$0xff]
                %824 = vst [vmem:[%s818 + $0x30] sm:$0xff] %v823
                %v825 = vld [vmem:[%s817 + $0x18] sm:$0xff]
                %826 = vst [vmem:[%s818 + $0x48] sm:$0xff] %v825
                %v827 = vld [vmem:[%s817 + $0x20] sm:$0xff]
                %828 = vst [vmem:[%s818 + $0x60] sm:$0xff] %v827
                %v829 = vld [vmem:[%s817 + $0x28] sm:$0xff]
                %830 = vst [vmem:[%s818 + $0x78] sm:$0xff] %v829
                %v831 = vld [vmem:[%s817 + $0x30] sm:$0xff]
                %832 = vst [vmem:[%s818 + $0x90] sm:$0xff] %v831
                %v833 = vld [vmem:[%s817 + $0x38] sm:$0xff]
                %834 = vst [vmem:[%s818 + $0xa8] sm:$0xff] %v833
                %v835 = vld [vmem:[%s817 + $0x40] sm:$0xff]
                %836 = vst [vmem:[%s818 + $0xc0] sm:$0xff] %v835
                %v837 = vld [vmem:[%s817 + $0x48] sm:$0xff]
                %838 = vst [vmem:[%s818 + $0xd8] sm:$0xff] %v837
                %v839 = vld [vmem:[%s817 + $0x50] sm:$0xff]
                %840 = vst [vmem:[%s818 + $0xf0] sm:$0xff] %v839
                %v841 = vld [vmem:[%s817 + $0x58] sm:$0xff]
                %842 = vst [vmem:[%s818 + $0x108] sm:$0xff] %v841
                %v843 = vld [vmem:[%s817 + $0x60] sm:$0xff]
                %844 = vst [vmem:[%s818 + $0x120] sm:$0xff] %v843
                %v845 = vld [vmem:[%s817 + $0x68] sm:$0xff]
                %846 = vst [vmem:[%s818 + $0x138] sm:$0xff] %v845
                %v847 = vld [vmem:[%s817 + $0x70] sm:$0xff]
                %848 = vst [vmem:[%s818 + $0x150] sm:$0xff] %v847
                %v849 = vld [vmem:[%s817 + $0x78] sm:$0xff]
                %850 = vst [vmem:[%s818 + $0x168] sm:$0xff] %v849
              $region81: #{transformer_block.4} parent=75 // loop_footer
                %s816 = sadd.s32 1, %s812
              $region82: #{transformer_block.4} parent=75 // loop_footer_branch
                %811 = sbr.rel target = $region78
              $region83: #{transformer_block.4} parent=75 // loop_exit
                _
            $region76: #{transformer_block.4} parent=67 // pred_fallthru
              _
          $region68: #{transformer_block.4} parent=63 // pred_fallthru
            _
          %895 = vnop
        $region64: #{transformer_block.4} parent=39 // pred_fallthru
          _
      $region40: #{transformer_block.4} parent=5 // pred_fallthru
        _
      %p896 = scmp.le.s32.totalorder 2, %s18
      // Predicated region
      $region99: #{transformer_block.4} parent=5 // pred_check
        %p897 = pneg %p896
      $region100: #{transformer_block.4} parent=5 // pred_check_branch
        %899 = sbr.rel (%p897) target = $region102
      $region101: #{transformer_block.4} parent=5 // pred_region
        %s900 = ssub.s32 %s18, 2
        // Predicated region
        $region103: #{transformer_block.4} parent=101 // pred_check
          %p901 = pneg %p181
        $region104: #{transformer_block.4} parent=101 // pred_check_branch
          %903 = sbr.rel (%p901) target = $region106
        $region105: #{transformer_block.4} parent=101 // pred_region
          %s904 = sand.u32 %s166, 1
          %s905 = sand.u32 %s166, 1
          %s906 = smul.addr %s905, 128
          %s907 = scalar_lea.vmem [#allocation10], %s906
        $region106: #{transformer_block.4} parent=101 // pred_fallthru
          _
      $region102: #{transformer_block.4} parent=5 // pred_fallthru
        _
    $region6: #{transformer_block.4} parent=1 // loop_footer
      %s22 = sadd.s32 1, %s18
    $region7: #{transformer_block.4} parent=1 // loop_footer_branch
      %17 = sbr.rel target = $region3
    $region8: #{transformer_block.4} parent=1 // loop_exit
      _
    %908 = vsyncpa [#allocation4], 1
    %s909 = scalar_lea.sflag [#allocation4], 1
    %910 = vsyncpa %s909, 1
    %911 = vsyncpa [#allocation6], 1
    %912 = vsyncpa [#allocation9], 1
    %s913 = scalar_lea.sflag [#allocation9], 1
    %914 = vsyncpa %s913, 1

// kernel: transformer_block.6
$region0: #{transformer_block.6}
  #allocation0 [shape = 'u32[]', space=smem, size = 0x4, offset = 0x4, fixed_abs, tag = 'smem constant byte address 0x4 - core index']
  #allocation1 [shape = 'u32[144,128]{1,0:T(1,128)}', space=vmem, size = 0x12000, scoped, tag = 'internal scratch']
  %s0 = inlined_call_operand.vmem [shape: f32[256,128], index: 0, kind: input, shape index: {}]
  %s1 = inlined_call_operand.vmem [shape: f32[128,128], index: 1, kind: input, shape index: {}]
  %s2 = inlined_call_operand.vmem [shape: f32[1,128], index: 2, kind: input, shape index: {}]
  %s3 = inlined_call_operand.vmem [shape: f32[256,128], index: 3, kind: input, shape index: {}]
  %s4 = inlined_call_operand.vmem [shape: f32[256,128], index: 4, kind: output, shape index: {}]
  %s5 = sld [smem:[#allocation0]]
  $region49: #{transformer_block.6} parent=0
    _
  %s7 = ssub.s32 1, %s5
  %s8 = scalar_select 0, %s7, %s5
  loop: start=0, step=1, limit=4
  $region2: #{transformer_block.6} parent=0 // loop_pre_header
    _
  $region3: #{transformer_block.6} parent=0 // loop_header
    %s10 = sphi 0, %s14
    %p11 = scmp.ge.s32.totalorder %s10, 4
    %s20 = sphi 0, %s22
    %s23 = sphi 0, %s20
    %s24 = sphi 0, %s23
    %s40 = sphi 0, %s24
    %s44 = sphi 0, %s44
    %s46 = sphi 0, %s44
    %s47 = sphi 0, %s46
    %s61 = sphi 0, %s47
    %s65 = sphi 0, %s65
    %s67 = sphi 0, %s65
    %s68 = sphi 0, %s67
    %s82 = sphi 0, %s68
    %s88 = sphi 0, %s90
    %s91 = sphi 0, %s88
    %s92 = sphi 0, %s91
    %s108 = sphi 0, %s92
    %s114 = sphi 0, %s116
    %s117 = sphi 0, %s114
    %s118 = sphi 0, %s117
    %s134 = sphi 0, %s118
  $region4: #{transformer_block.6} parent=0 // loop_header_branch
    %13 = sbr.rel (%p11) target = $region8
  $region5: #{transformer_block.6} parent=0 // loop_body
    %s15 = ssub.s32 %s10, 1
    %s16 = ssub.s32 %s10, 2
    %s17 = sadd.s32 %s10, 1
    %s18 = ssub.s32 %s10, %s17
    %p19 = scmp.eq.s32.totalorder %s18, 0
    %s21 = sadd.s32 %s20, 1
    %s22 = scalar_select %p19, %s20, %s21
    %p25 = pneg %p19
    %p26 = scmp.eq.s32.totalorder %s10, 1
    %p27 = por %p25, %p26
    %p28 = scmp.ne.s32.totalorder %s20, %s23
    %p29 = scmp.eq.s32.totalorder %s10, 0
    %p30 = por %p28, %p29
    %p31 = scmp.ne.s32.totalorder %s20, %s23
    %p32 = scmp.eq.s32.totalorder %s15, 1
    %p33 = por %p31, %p32
    %p34 = scmp.ne.s32.totalorder %s23, %s24
    %p35 = scmp.eq.s32.totalorder %s15, 0
    %p36 = por %p34, %p35
    %p37 = scmp.ne.s32.totalorder %s23, %s24
    %p38 = scmp.eq.s32.totalorder %s16, 1
    %p39 = por %p37, %p38
    %p41 = scmp.ne.s32.totalorder %s24, %s40
    %p42 = scmp.eq.s32.totalorder %s16, 0
    %p43 = por %p41, %p42
    %s45 = sadd.s32 %s44, 1
    %p48 = scmp.eq.s32.totalorder %s10, 1
    %p49 = scmp.ne.s32.totalorder %s44, %s46
    %p50 = scmp.eq.s32.totalorder %s10, 0
    %p51 = por %p49, %p50
    %p52 = scmp.ne.s32.totalorder %s44, %s46
    %p53 = scmp.eq.s32.totalorder %s15, 1
    %p54 = por %p52, %p53
    %p55 = scmp.ne.s32.totalorder %s46, %s47
    %p56 = scmp.eq.s32.totalorder %s15, 0
    %p57 = por %p55, %p56
    %p58 = scmp.ne.s32.totalorder %s46, %s47
    %p59 = scmp.eq.s32.totalorder %s16, 1
    %p60 = por %p58, %p59
    %p62 = scmp.ne.s32.totalorder %s47, %s61
    %p63 = scmp.eq.s32.totalorder %s16, 0
    %p64 = por %p62, %p63
    %s66 = sadd.s32 %s65, 1
    %p69 = scmp.eq.s32.totalorder %s10, 1
    %p70 = scmp.ne.s32.totalorder %s65, %s67
    %p71 = scmp.eq.s32.totalorder %s10, 0
    %p72 = por %p70, %p71
    %p73 = scmp.ne.s32.totalorder %s65, %s67
    %p74 = scmp.eq.s32.totalorder %s15, 1
    %p75 = por %p73, %p74
    %p76 = scmp.ne.s32.totalorder %s67, %s68
    %p77 = scmp.eq.s32.totalorder %s15, 0
    %p78 = por %p76, %p77
    %p79 = scmp.ne.s32.totalorder %s67, %s68
    %p80 = scmp.eq.s32.totalorder %s16, 1
    %p81 = por %p79, %p80
    %p83 = scmp.ne.s32.totalorder %s68, %s82
    %p84 = scmp.eq.s32.totalorder %s16, 0
    %p85 = por %p83, %p84
    %s86 = ssub.s32 %s10, %s17
    %p87 = scmp.eq.s32.totalorder %s86, 0
    %s89 = sadd.s32 %s88, 1
    %s90 = scalar_select %p87, %s88, %s89
    %p93 = pneg %p87
    %p94 = scmp.eq.s32.totalorder %s10, 1
    %p95 = por %p93, %p94
    %p96 = scmp.ne.s32.totalorder %s88, %s91
    %p97 = scmp.eq.s32.totalorder %s10, 0
    %p98 = por %p96, %p97
    %p99 = scmp.ne.s32.totalorder %s88, %s91
    %p100 = scmp.eq.s32.totalorder %s15, 1
    %p101 = por %p99, %p100
    %p102 = scmp.ne.s32.totalorder %s91, %s92
    %p103 = scmp.eq.s32.totalorder %s15, 0
    %p104 = por %p102, %p103
    %p105 = scmp.ne.s32.totalorder %s91, %s92
    %p106 = scmp.eq.s32.totalorder %s16, 1
    %p107 = por %p105, %p106
    %p109 = scmp.ne.s32.totalorder %s92, %s108
    %p110 = scmp.eq.s32.totalorder %s16, 0
    %p111 = por %p109, %p110
    %s112 = ssub.s32 %s10, %s17
    %p113 = scmp.eq.s32.totalorder %s112, 0
    %s115 = sadd.s32 %s114, 1
    %s116 = scalar_select %p113, %s114, %s115
    %p119 = pneg %p113
    %p120 = scmp.eq.s32.totalorder %s10, 1
    %p121 = por %p119, %p120
    %p122 = scmp.ne.s32.totalorder %s114, %s117
    %p123 = scmp.eq.s32.totalorder %s10, 0
    %p124 = por %p122, %p123
    %p125 = scmp.ne.s32.totalorder %s114, %s117
    %p126 = scmp.eq.s32.totalorder %s15, 1
    %p127 = por %p125, %p126
    %p128 = scmp.ne.s32.totalorder %s117, %s118
    %p129 = scmp.eq.s32.totalorder %s15, 0
    %p130 = por %p128, %p129
    %p131 = scmp.ne.s32.totalorder %s117, %s118
    %p132 = scmp.eq.s32.totalorder %s16, 1
    %p133 = por %p131, %p132
    %p135 = scmp.ne.s32.totalorder %s118, %s134
    %p136 = scmp.eq.s32.totalorder %s16, 0
    %p137 = por %p135, %p136
    %p138 = scmp.le.s32.totalorder 1, %s10
    %p139 = scmp.lt.s32.totalorder %s10, 3
    %p140 = pnand %p138, %p139
    %p141 = pneg %p140
    // Predicated region
    $region9: #{transformer_block.6} parent=5 // pred_check
      _
    $region10: #{transformer_block.6} parent=5 // pred_check_branch
      %143 = sbr.rel (%p140) target = $region12
    $region11: #{transformer_block.6} parent=5 // pred_region
      %s144 = ssub.s32 %s10, 1
      // Predicated region
      $region13: #{transformer_block.6} parent=11 // pred_check
        %p145 = pneg %p57
      $region14: #{transformer_block.6} parent=11 // pred_check_branch
        %147 = sbr.rel (%p145) target = $region16
      $region15: #{transformer_block.6} parent=11 // pred_region
        _
      $region16: #{transformer_block.6} parent=11 // pred_fallthru
        _
      // Predicated region
      $region17: #{transformer_block.6} parent=11 // pred_check
        %p148 = pneg %p78
      $region18: #{transformer_block.6} parent=11 // pred_check_branch
        %150 = sbr.rel (%p148) target = $region20
      $region19: #{transformer_block.6} parent=11 // pred_region
        _
      $region20: #{transformer_block.6} parent=11 // pred_fallthru
        _
    $region12: #{transformer_block.6} parent=5 // pred_fallthru
      _
    %p151 = scmp.lt.s32.totalorder %s10, 2
    // Predicated region
    $region21: #{transformer_block.6} parent=5 // pred_check
      %p152 = pneg %p151
    $region22: #{transformer_block.6} parent=5 // pred_check_branch
      %154 = sbr.rel (%p152) target = $region24
    $region23: #{transformer_block.6} parent=5 // pred_region
      // Predicated region
      $region25: #{transformer_block.6} parent=23 // pred_check
        %p155 = pneg %p30
      $region26: #{transformer_block.6} parent=23 // pred_check_branch
        %157 = sbr.rel (%p155) target = $region28
      $region27: #{transformer_block.6} parent=23 // pred_region
        %s158 = smul.u32 16, %s10
        %p159 = scmp.lt.s32.totalorder %s158, 31
        %s160 = scalar_select %p159, %s158, 31
        %s161 = smul.addr %s160, 8
        %s162 = scalar_lea.vmem %s0, %s161
        %s163 = smul.u32 16, %s10
      $region28: #{transformer_block.6} parent=23 // pred_fallthru
        _
      // Predicated region
      $region29: #{transformer_block.6} parent=23 // pred_check
        %p164 = pneg %p98
      $region30: #{transformer_block.6} parent=23 // pred_check_branch
        %166 = sbr.rel (%p164) target = $region32
      $region31: #{transformer_block.6} parent=23 // pred_region
        %s167 = smul.u32 16, %s10
        %p168 = scmp.lt.s32.totalorder %s167, 31
        %s169 = scalar_select %p168, %s167, 31
        %s170 = smul.addr %s169, 8
        %s171 = scalar_lea.vmem %s3, %s170
        %s172 = smul.u32 16, %s10
      $region32: #{transformer_block.6} parent=23 // pred_fallthru
        _
    $region24: #{transformer_block.6} parent=5 // pred_fallthru
      _
    %p173 = scmp.le.s32.totalorder 1, %s10
    %p174 = scmp.lt.s32.totalorder %s10, 3
    %p175 = pnand %p173, %p174
    %p176 = pneg %p175
    // Predicated region
    $region33: #{transformer_block.6} parent=5 // pred_check
      _
    $region34: #{transformer_block.6} parent=5 // pred_check_branch
      %178 = sbr.rel (%p175) target = $region36
    $region35: #{transformer_block.6} parent=5 // pred_region
      %s179 = ssub.s32 %s10, 1
      %s180 = smul.u32 16, %s15
      %p181 = scmp.lt.s32.totalorder %s180, 31
      %s182 = scalar_select %p181, %s180, 31
      %s183 = smul.addr %s182, 8
      %s184 = scalar_lea.vmem %s0, %s183
      %p185 = pneg %p36
      %p186 = pneg %p33
      %p187 = pneg %p57
      %p188 = pneg %p54
      %p189 = pneg %p78
      %p190 = pneg %p75
      %s191 = smul.u32 16, %s15
      %p192 = scmp.lt.s32.totalorder %s191, 31
      %s193 = scalar_select %p192, %s191, 31
      %s194 = smul.addr %s193, 8
      %s195 = scalar_lea.vmem %s3, %s194
      %p196 = pneg %p104
      %p197 = pneg %p101
      %p198 = pneg %p130
      %p199 = pneg %p127
      %s200 = smul.u32 16, %s15
      %p201 = scmp.lt.s32.totalorder %s200, 31
      %s202 = scalar_select %p201, %s200, 31
      %s203 = smul.addr %s202, 8
      %s204 = scalar_lea.vmem %s4, %s203
      %s205 = smul.u32 16, %s15
      %p206 = scmp.lt.s32.totalorder %s205, 31
      %s207 = scalar_select %p206, %s205, 31
      %s208 = smul.addr %s207, 8
      %s209 = scalar_lea.vmem %s0, %s208
      %s210 = smul.u32 16, %s15
      %s211 = smul.u32 16, %s15
      %p212 = scmp.lt.s32.totalorder %s211, 31
      %s213 = scalar_select %p212, %s211, 31
      %s214 = smul.addr %s213, 8
      %s215 = scalar_lea.vmem %s3, %s214
      %s216 = smul.u32 16, %s15
      %s217 = smul.u32 16, %s15
      %p218 = scmp.lt.s32.totalorder %s217, 31
      %s219 = scalar_select %p218, %s217, 31
      %s220 = smul.addr %s219, 8
      %s221 = scalar_lea.vmem %s4, %s220
      %s222 = smul.u32 16, %s15
      %v223 = vld [vmem:[%s209] sm:$0xff]
      %v224 = vld [vmem:[%s209 + $0x8] sm:$0xff]
      %v225 = vld [vmem:[%s209 + $0x10] sm:$0xff]
      %v226 = vld [vmem:[%s209 + $0x18] sm:$0xff]
      %v227 = vld [vmem:[%s209 + $0x20] sm:$0xff]
      %v228 = vld [vmem:[%s209 + $0x28] sm:$0xff]
      %v229 = vld [vmem:[%s209 + $0x30] sm:$0xff]
      %v230 = vld [vmem:[%s209 + $0x38] sm:$0xff]
      %v231 = vld [vmem:[%s209 + $0x40] sm:$0xff]
      %v232 = vld [vmem:[%s209 + $0x48] sm:$0xff]
      %v233 = vld [vmem:[%s209 + $0x50] sm:$0xff]
      %v234 = vld [vmem:[%s209 + $0x58] sm:$0xff]
      %v235 = vld [vmem:[%s209 + $0x60] sm:$0xff]
      %v236 = vld [vmem:[%s209 + $0x68] sm:$0xff]
      %v237 = vld [vmem:[%s209 + $0x70] sm:$0xff]
      %v238 = vld [vmem:[%s209 + $0x78] sm:$0xff]
      %v239 = vld [vmem:[%s1] sm:$0xff]
      %v240 = vld [vmem:[%s1 + $0x8] sm:$0xff]
      %v241 = vld [vmem:[%s1 + $0x10] sm:$0xff]
      %v242 = vld [vmem:[%s1 + $0x18] sm:$0xff]
      %v243 = vld [vmem:[%s1 + $0x20] sm:$0xff]
      %v244 = vld [vmem:[%s1 + $0x28] sm:$0xff]
      %v245 = vld [vmem:[%s1 + $0x30] sm:$0xff]
      %v246 = vld [vmem:[%s1 + $0x38] sm:$0xff]
      %v247 = vld [vmem:[%s1 + $0x40] sm:$0xff]
      %v248 = vld [vmem:[%s1 + $0x48] sm:$0xff]
      %v249 = vld [vmem:[%s1 + $0x50] sm:$0xff]
      %v250 = vld [vmem:[%s1 + $0x58] sm:$0xff]
      %v251 = vld [vmem:[%s1 + $0x60] sm:$0xff]
      %v252 = vld [vmem:[%s1 + $0x68] sm:$0xff]
      %v253 = vld [vmem:[%s1 + $0x70] sm:$0xff]
      %v254 = vld [vmem:[%s1 + $0x78] sm:$0xff]
      %v255 = vld [vmem:[%s2] sm:$0x1]
      %v257 = vlaneseq
      %v258 = vshrl.u32 %v257, 7
      %v259 = vsub.s32 0, %v258
      %v260 = vrot.slane %v255, %v259
      %262 = vmatprep.subr.mxu0 0.0
      %263 = vmatpush1.msra.mxu0 %v239
      %264 = vmatprep.subr.mxu0 0.0
      %265 = vmatpush1.msra.mxu0 %v240
      %266 = vmatprep.subr.mxu0 0.0
      %267 = vmatpush1.msra.mxu0 %v241
      %268 = vmatprep.subr.mxu0 0.0
      %269 = vmatpush1.msra.mxu0 %v242
      %270 = vmatprep.subr.mxu0 0.0
      %271 = vmatpush1.msra.mxu0 %v243
      %272 = vmatprep.subr.mxu0 0.0
      %273 = vmatpush1.msra.mxu0 %v244
      %274 = vmatprep.subr.mxu0 0.0
      %275 = vmatpush1.msra.mxu0 %v245
      %276 = vmatprep.subr.mxu0 0.0
      %277 = vmatpush1.msra.mxu0 %v246
      %278 = vmatprep.subr.mxu0 0.0
      %279 = vmatpush1.msra.mxu0 %v247
      %280 = vmatprep.subr.mxu0 0.0
      %281 = vmatpush1.msra.mxu0 %v248
      %282 = vmatprep.subr.mxu0 0.0
      %283 = vmatpush1.msra.mxu0 %v249
      %284 = vmatprep.subr.mxu0 0.0
      %285 = vmatpush1.msra.mxu0 %v250
      %286 = vmatprep.subr.mxu0 0.0
      %287 = vmatpush1.msra.mxu0 %v251
      %288 = vmatprep.subr.mxu0 0.0
      %289 = vmatpush1.msra.mxu0 %v252
      %290 = vmatprep.subr.mxu0 0.0
      %291 = vmatpush1.msra.mxu0 %v253
      %292 = vmatprep.subr.mxu0 0.0
      %293 = vmatpush1.msra.mxu0 %v254
      %294 = vmatprep.subr.mxu0 0.0
      %295 = vmatpush1.msra.mxu0 0.0
      %296 = vmatprep.subr.mxu0 0.0
      %297 = vmatpush1.msra.mxu0 0.0
      %298 = vmatprep.subr.mxu0 0.0
      %299 = vmatpush1.msra.mxu0 0.0
      %300 = vmatprep.subr.mxu0 0.0
      %301 = vmatpush1.msra.mxu0 0.0
      %302 = vmatprep.subr.mxu0 0.0
      %303 = vmatpush1.msra.mxu0 0.0
      %304 = vmatprep.subr.mxu0 0.0
      %305 = vmatpush1.msra.mxu0 0.0
      %306 = vmatprep.subr.mxu0 0.0
      %307 = vmatpush1.msra.mxu0 0.0
      %308 = vmatprep.subr.mxu0 0.0
      %309 = vmatpush1.msra.mxu0 0.0
      %310 = vmatprep.subr.mxu0 0.0
      %311 = vmatpush1.msra.mxu0 0.0
      %312 = vmatprep.subr.mxu0 0.0
      %313 = vmatpush1.msra.mxu0 0.0
      %314 = vmatprep.subr.mxu0 0.0
      %315 = vmatpush1.msra.mxu0 0.0
      %316 = vmatprep.subr.mxu0 0.0
      %317 = vmatpush1.msra.mxu0 0.0
      %318 = vmatprep.subr.mxu0 0.0
      %319 = vmatpush1.msra.mxu0 0.0
      %320 = vmatprep.subr.mxu0 0.0
      %321 = vmatpush1.msra.mxu0 0.0
      %322 = vmatprep.subr.mxu0 0.0
      %323 = vmatpush1.msra.mxu0 0.0
      %324 = vmatprep.subr.mxu0 0.0
      %325 = vmatpush1.msra.mxu0 0.0
      %326 = vmatprep.mubr.f32.mxu0 0.0
      %327 = vmatmul.mubr.f32.gmra.mrb[0].mxu0 %v223
      %v328 = vpop.f32.mrb[0].mxu0
      %v329 = vadd.f32 %v260, %v328
      %v330 = vpop.f32.mrb[0].mxu0
      %331 = vmatprep.mubr.f32.mxu0 0.0
      %332 = vmatmul.mubr.f32.gmra.mrb[0].mxu0 %v224
      %v333 = vpop.f32.mrb[0].mxu0
      %v334 = vadd.f32 %v260, %v333
      %v335 = vpop.f32.mrb[0].mxu0
      %336 = vmatprep.mubr.f32.mxu0 0.0
      %337 = vmatmul.mubr.f32.gmra.mrb[0].mxu0 %v225
      %v338 = vpop.f32.mrb[0].mxu0
      %v339 = vadd.f32 %v260, %v338
      %v340 = vpop.f32.mrb[0].mxu0
      %341 = vmatprep.mubr.f32.mxu0 0.0
      %342 = vmatmul.mubr.f32.gmra.mrb[0].mxu0 %v226
      %v343 = vpop.f32.mrb[0].mxu0
      %v344 = vadd.f32 %v260, %v343
      %v345 = vpop.f32.mrb[0].mxu0
      %346 = vmatprep.mubr.f32.mxu0 0.0
      %347 = vmatmul.mubr.f32.gmra.mrb[0].mxu0 %v227
      %v348 = vpop.f32.mrb[0].mxu0
      %v349 = vadd.f32 %v260, %v348
      %v350 = vpop.f32.mrb[0].mxu0
      %351 = vmatprep.mubr.f32.mxu0 0.0
      %352 = vmatmul.mubr.f32.gmra.mrb[0].mxu0 %v228
      %v353 = vpop.f32.mrb[0].mxu0
      %v354 = vadd.f32 %v260, %v353
      %v355 = vpop.f32.mrb[0].mxu0
      %356 = vmatprep.mubr.f32.mxu0 0.0
      %357 = vmatmul.mubr.f32.gmra.mrb[0].mxu0 %v229
      %v358 = vpop.f32.mrb[0].mxu0
      %v359 = vadd.f32 %v260, %v358
      %v360 = vpop.f32.mrb[0].mxu0
      %361 = vmatprep.mubr.f32.mxu0 0.0
      %362 = vmatmul.mubr.f32.gmra.mrb[0].mxu0 %v230
      %v363 = vpop.f32.mrb[0].mxu0
      %v364 = vadd.f32 %v260, %v363
      %v365 = vpop.f32.mrb[0].mxu0
      %366 = vmatprep.mubr.f32.mxu0 0.0
      %367 = vmatmul.mubr.f32.gmra.mrb[0].mxu0 %v231
      %v368 = vpop.f32.mrb[0].mxu0
      %v369 = vadd.f32 %v260, %v368
      %v370 = vpop.f32.mrb[0].mxu0
      %371 = vmatprep.mubr.f32.mxu0 0.0
      %372 = vmatmul.mubr.f32.gmra.mrb[0].mxu0 %v232
      %v373 = vpop.f32.mrb[0].mxu0
      %v374 = vadd.f32 %v260, %v373
      %v375 = vpop.f32.mrb[0].mxu0
      %376 = vmatprep.mubr.f32.mxu0 0.0
      %377 = vmatmul.mubr.f32.gmra.mrb[0].mxu0 %v233
      %v378 = vpop.f32.mrb[0].mxu0
      %v379 = vadd.f32 %v260, %v378
      %v380 = vpop.f32.mrb[0].mxu0
      %381 = vmatprep.mubr.f32.mxu0 0.0
      %382 = vmatmul.mubr.f32.gmra.mrb[0].mxu0 %v234
      %v383 = vpop.f32.mrb[0].mxu0
      %v384 = vadd.f32 %v260, %v383
      %v385 = vpop.f32.mrb[0].mxu0
      %386 = vmatprep.mubr.f32.mxu0 0.0
      %387 = vmatmul.mubr.f32.gmra.mrb[0].mxu0 %v235
      %v388 = vpop.f32.mrb[0].mxu0
      %v389 = vadd.f32 %v260, %v388
      %v390 = vpop.f32.mrb[0].mxu0
      %391 = vmatprep.mubr.f32.mxu0 0.0
      %392 = vmatmul.mubr.f32.gmra.mrb[0].mxu0 %v236
      %v393 = vpop.f32.mrb[0].mxu0
      %v394 = vadd.f32 %v260, %v393
      %v395 = vpop.f32.mrb[0].mxu0
      %396 = vmatprep.mubr.f32.mxu0 0.0
      %397 = vmatmul.mubr.f32.gmra.mrb[0].mxu0 %v237
      %v398 = vpop.f32.mrb[0].mxu0
      %v399 = vadd.f32 %v260, %v398
      %v400 = vpop.f32.mrb[0].mxu0
      %401 = vmatprep.mubr.f32.mxu0 0.0
      %402 = vmatmul.mubr.f32.gmra.mrb[0].mxu0 %v238
      %v403 = vpop.f32.mrb[0].mxu0
      %v404 = vadd.f32 %v260, %v403
      %v405 = vpop.f32.mrb[0].mxu0
      %406 = vdwg.mxu0
      %v407 = vld [vmem:[%s215] sm:$0xff]
      %v408 = vld [vmem:[%s215 + $0x8] sm:$0xff]
      %v409 = vld [vmem:[%s215 + $0x10] sm:$0xff]
      %v410 = vld [vmem:[%s215 + $0x18] sm:$0xff]
      %v411 = vld [vmem:[%s215 + $0x20] sm:$0xff]
      %v412 = vld [vmem:[%s215 + $0x28] sm:$0xff]
      %v413 = vld [vmem:[%s215 + $0x30] sm:$0xff]
      %v414 = vld [vmem:[%s215 + $0x38] sm:$0xff]
      %v415 = vld [vmem:[%s215 + $0x40] sm:$0xff]
      %v416 = vld [vmem:[%s215 + $0x48] sm:$0xff]
      %v417 = vld [vmem:[%s215 + $0x50] sm:$0xff]
      %v418 = vld [vmem:[%s215 + $0x58] sm:$0xff]
      %v419 = vld [vmem:[%s215 + $0x60] sm:$0xff]
      %v420 = vld [vmem:[%s215 + $0x68] sm:$0xff]
      %v421 = vld [vmem:[%s215 + $0x70] sm:$0xff]
      %v422 = vld [vmem:[%s215 + $0x78] sm:$0xff]
      %v423 = vadd.f32 %v329, %v407
      %v424 = vadd.f32 %v334, %v408
      %v425 = vadd.f32 %v339, %v409
      %v426 = vadd.f32 %v344, %v410
      %v427 = vadd.f32 %v349, %v411
      %v428 = vadd.f32 %v354, %v412
      %v429 = vadd.f32 %v359, %v413
      %v430 = vadd.f32 %v364, %v414
      %v431 = vadd.f32 %v369, %v415
      %v432 = vadd.f32 %v374, %v416
      %v433 = vadd.f32 %v379, %v417
      %v434 = vadd.f32 %v384, %v418
      %v435 = vadd.f32 %v389, %v419
      %v436 = vadd.f32 %v394, %v420
      %v437 = vadd.f32 %v399, %v421
      %v438 = vadd.f32 %v404, %v422
      %439 = vst [vmem:[%s221] sm:$0xff] %v423
      %440 = vst [vmem:[%s221 + $0x8] sm:$0xff] %v424
      %441 = vst [vmem:[%s221 + $0x10] sm:$0xff] %v425
      %442 = vst [vmem:[%s221 + $0x18] sm:$0xff] %v426
      %443 = vst [vmem:[%s221 + $0x20] sm:$0xff] %v427
      %444 = vst [vmem:[%s221 + $0x28] sm:$0xff] %v428
      %445 = vst [vmem:[%s221 + $0x30] sm:$0xff] %v429
      %446 = vst [vmem:[%s221 + $0x38] sm:$0xff] %v430
      %447 = vst [vmem:[%s221 + $0x40] sm:$0xff] %v431
      %448 = vst [vmem:[%s221 + $0x48] sm:$0xff] %v432
      %449 = vst [vmem:[%s221 + $0x50] sm:$0xff] %v433
      %450 = vst [vmem:[%s221 + $0x58] sm:$0xff] %v434
      %451 = vst [vmem:[%s221 + $0x60] sm:$0xff] %v435
      %452 = vst [vmem:[%s221 + $0x68] sm:$0xff] %v436
      %453 = vst [vmem:[%s221 + $0x70] sm:$0xff] %v437
      %454 = vst [vmem:[%s221 + $0x78] sm:$0xff] %v438
      %s455 = smul.u32 16, %s15
      %p456 = scmp.lt.s32.totalorder %s455, 31
      %s457 = scalar_select %p456, %s455, 31
      %s458 = smul.addr %s457, 8
      %s459 = scalar_lea.vmem %s4, %s458
      // Predicated region
      $region37: #{transformer_block.6} parent=35 // pred_check
        %p460 = pneg %p127
      $region38: #{transformer_block.6} parent=35 // pred_check_branch
        %462 = sbr.rel (%p460) target = $region40
      $region39: #{transformer_block.6} parent=35 // pred_region
        %s463 = smul.u32 16, %s15
      $region40: #{transformer_block.6} parent=35 // pred_fallthru
        _
    $region36: #{transformer_block.6} parent=5 // pred_fallthru
      _
    %p464 = scmp.le.s32.totalorder 2, %s10
    // Predicated region
    $region41: #{transformer_block.6} parent=5 // pred_check
      %p465 = pneg %p464
    $region42: #{transformer_block.6} parent=5 // pred_check_branch
      %467 = sbr.rel (%p465) target = $region44
    $region43: #{transformer_block.6} parent=5 // pred_region
      %s468 = ssub.s32 %s10, 2
      // Predicated region
      $region45: #{transformer_block.6} parent=43 // pred_check
        %p469 = pneg %p133
      $region46: #{transformer_block.6} parent=43 // pred_check_branch
        %471 = sbr.rel (%p469) target = $region48
      $region47: #{transformer_block.6} parent=43 // pred_region
        %s472 = smul.u32 16, %s16
        %p473 = scmp.lt.s32.totalorder %s472, 31
        %s474 = scalar_select %p473, %s472, 31
        %s475 = smul.addr %s474, 8
        %s476 = scalar_lea.vmem %s4, %s475
      $region48: #{transformer_block.6} parent=43 // pred_fallthru
        _
    $region44: #{transformer_block.6} parent=5 // pred_fallthru
      _
  $region6: #{transformer_block.6} parent=0 // loop_footer
    %s14 = sadd.s32 1, %s10
  $region7: #{transformer_block.6} parent=0 // loop_footer_branch
    %9 = sbr.rel target = $region3
  $region8: #{transformer_block.6} parent=0 // loop_exit
    _

// kernel: transformer_block.7
$region0: #{transformer_block.7}
  #allocation0 [shape = 'u32[]', space=smem, size = 0x4, offset = 0x4, fixed_abs, tag = 'smem constant byte address 0x4 - core index']
  #allocation1 [shape = 'u32[144,128]{1,0:T(1,128)}', space=vmem, size = 0x12000, scoped, tag = 'internal scratch']
  #allocation2 [shape = 'f32[128,128]{1,0:T(8,128)}', space=vmem, size = 0x10000, scoped, tag = 'scratch operand']
  #allocation3 [shape = 'f32[128,128]{1,0:T(8,128)}', space=vmem, size = 0x10000, scoped, tag = 'scratch operand']
  %s0 = inlined_call_operand.vmem [shape: f32[256,128], index: 0, kind: input, shape index: {}]
  %s1 = inlined_call_operand.vmem [shape: f32[1,128], index: 1, kind: input, shape index: {}]
  %s2 = inlined_call_operand.vmem [shape: f32[1,128], index: 2, kind: input, shape index: {}]
  %s3 = inlined_call_operand.vmem [shape: f32[128,512], index: 3, kind: input, shape index: {}]
  %s4 = inlined_call_operand.vmem [shape: f32[1,512], index: 4, kind: input, shape index: {}]
  %s5 = inlined_call_operand.vmem [shape: f32[512,128], index: 5, kind: input, shape index: {}]
  %s6 = inlined_call_operand.vmem [shape: f32[1,128], index: 6, kind: input, shape index: {}]
  %s7 = inlined_call_operand.hbm [shape: f32[256,128], index: 7, kind: output, shape index: {}]
  %s8 = sld [smem:[#allocation0]]
  $region92: #{transformer_block.7} parent=0
    _
  %s10 = ssub.s32 1, %s8
  %s11 = scalar_select 0, %s10, %s8
  $region1: #{transformer_block.7} parent=0
    #allocation4 [shape = 'u8[262144]{0}', space=vmem, size = 0x40000, scoped, tag = 'input window, operand 3']
    #allocation5 [shape = 'u8[131072]{0}', space=vmem, size = 0x20000, scoped, tag = 'output window, operand 0']
    #allocation6 [shape = 's32[2]{0}', space=sflag, size = 0x8, scoped, tag = 'scoped memory for transformer_block.7']
    %12 = vsyncpa [#allocation6], 0
    %s13 = scalar_lea.sflag [#allocation6], 1
    %14 = vsyncpa %s13, 0
    loop: start=0, step=1, limit=6
    $region2: #{transformer_block.7} parent=1 // loop_pre_header
      _
    $region3: #{transformer_block.7} parent=1 // loop_header
      %s16 = sphi 0, %s20
      %p17 = scmp.ge.s32.totalorder %s16, 6
      %s23 = sphi 0, %s35
      %s24 = sphi 0, %s31
      %s25 = sphi 0, %s23
      %s26 = sphi 0, %s24
      %s27 = sphi 0, %s25
      %s28 = sphi 0, %s26
      %s38 = sphi 0, %s40
      %s41 = sphi 0, %s38
      %s42 = sphi 0, %s41
      %s58 = sphi 0, %s42
      %s62 = sphi 0, %s62
      %s64 = sphi 0, %s62
      %s65 = sphi 0, %s64
      %s79 = sphi 0, %s65
      %s83 = sphi 0, %s83
      %s85 = sphi 0, %s83
      %s86 = sphi 0, %s85
      %s100 = sphi 0, %s86
      %s106 = sphi 0, %s108
      %s109 = sphi 0, %s106
      %s110 = sphi 0, %s109
      %s126 = sphi 0, %s110
      %s132 = sphi 0, %s134
      %s135 = sphi 0, %s132
      %s136 = sphi 0, %s135
      %s152 = sphi 0, %s136
      %s158 = sphi 0, %s160
      %s161 = sphi 0, %s158
      %s162 = sphi 0, %s161
      %s178 = sphi 0, %s162
      %s182 = sphi 0, %s182
      %s184 = sphi 0, %s182
      %s185 = sphi 0, %s184
      %s199 = sphi 0, %s185
      %s205 = sphi 0, %s207
      %s208 = sphi 0, %s205
      %s209 = sphi 0, %s208
      %s225 = sphi 0, %s209
    $region4: #{transformer_block.7} parent=1 // loop_header_branch
      %19 = sbr.rel (%p17) target = $region8
    $region5: #{transformer_block.7} parent=1 // loop_body
      %s21 = ssub.s32 %s16, 1
      %s22 = ssub.s32 %s16, 2
      %s29 = sadd.s32 1, %s24
      %p30 = scmp.ge.s32.totalorder %s29, 2
      %s31 = scalar_select %p30, 0, %s29
      %s32 = sadd.s32 1, %s23
      %s33 = scalar_select %p30, %s32, %s23
      %p34 = scmp.ge.s32.totalorder %s33, 2
      %s35 = scalar_select %p34, 0, %s33
      %s36 = ssub.s32 %s23, %s35
      %p37 = scmp.eq.s32.totalorder %s36, 0
      %s39 = sadd.s32 %s38, 1
      %s40 = scalar_select %p37, %s38, %s39
      %p43 = pneg %p37
      %p44 = scmp.eq.s32.totalorder %s16, 3
      %p45 = por %p43, %p44
      %p46 = scmp.ne.s32.totalorder %s38, %s41
      %p47 = scmp.eq.s32.totalorder %s16, 0
      %p48 = por %p46, %p47
      %p49 = scmp.ne.s32.totalorder %s38, %s41
      %p50 = scmp.eq.s32.totalorder %s21, 3
      %p51 = por %p49, %p50
      %p52 = scmp.ne.s32.totalorder %s41, %s42
      %p53 = scmp.eq.s32.totalorder %s21, 0
      %p54 = por %p52, %p53
      %p55 = scmp.ne.s32.totalorder %s41, %s42
      %p56 = scmp.eq.s32.totalorder %s22, 3
      %p57 = por %p55, %p56
      %p59 = scmp.ne.s32.totalorder %s42, %s58
      %p60 = scmp.eq.s32.totalorder %s22, 0
      %p61 = por %p59, %p60
      %s63 = sadd.s32 %s62, 1
      %p66 = scmp.eq.s32.totalorder %s16, 3
      %p67 = scmp.ne.s32.totalorder %s62, %s64
      %p68 = scmp.eq.s32.totalorder %s16, 0
      %p69 = por %p67, %p68
      %p70 = scmp.ne.s32.totalorder %s62, %s64
      %p71 = scmp.eq.s32.totalorder %s21, 3
      %p72 = por %p70, %p71
      %p73 = scmp.ne.s32.totalorder %s64, %s65
      %p74 = scmp.eq.s32.totalorder %s21, 0
      %p75 = por %p73, %p74
      %p76 = scmp.ne.s32.totalorder %s64, %s65
      %p77 = scmp.eq.s32.totalorder %s22, 3
      %p78 = por %p76, %p77
      %p80 = scmp.ne.s32.totalorder %s65, %s79
      %p81 = scmp.eq.s32.totalorder %s22, 0
      %p82 = por %p80, %p81
      %s84 = sadd.s32 %s83, 1
      %p87 = scmp.eq.s32.totalorder %s16, 3
      %p88 = scmp.ne.s32.totalorder %s83, %s85
      %p89 = scmp.eq.s32.totalorder %s16, 0
      %p90 = por %p88, %p89
      %p91 = scmp.ne.s32.totalorder %s83, %s85
      %p92 = scmp.eq.s32.totalorder %s21, 3
      %p93 = por %p91, %p92
      %p94 = scmp.ne.s32.totalorder %s85, %s86
      %p95 = scmp.eq.s32.totalorder %s21, 0
      %p96 = por %p94, %p95
      %p97 = scmp.ne.s32.totalorder %s85, %s86
      %p98 = scmp.eq.s32.totalorder %s22, 3
      %p99 = por %p97, %p98
      %p101 = scmp.ne.s32.totalorder %s86, %s100
      %p102 = scmp.eq.s32.totalorder %s22, 0
      %p103 = por %p101, %p102
      %s104 = ssub.s32 %s24, %s31
      %p105 = scmp.eq.s32.totalorder %s104, 0
      %s107 = sadd.s32 %s106, 1
      %s108 = scalar_select %p105, %s106, %s107
      %p111 = pneg %p105
      %p112 = scmp.eq.s32.totalorder %s16, 3
      %p113 = por %p111, %p112
      %p114 = scmp.ne.s32.totalorder %s106, %s109
      %p115 = scmp.eq.s32.totalorder %s16, 0
      %p116 = por %p114, %p115
      %p117 = scmp.ne.s32.totalorder %s106, %s109
      %p118 = scmp.eq.s32.totalorder %s21, 3
      %p119 = por %p117, %p118
      %p120 = scmp.ne.s32.totalorder %s109, %s110
      %p121 = scmp.eq.s32.totalorder %s21, 0
      %p122 = por %p120, %p121
      %p123 = scmp.ne.s32.totalorder %s109, %s110
      %p124 = scmp.eq.s32.totalorder %s22, 3
      %p125 = por %p123, %p124
      %p127 = scmp.ne.s32.totalorder %s110, %s126
      %p128 = scmp.eq.s32.totalorder %s22, 0
      %p129 = por %p127, %p128
      %s130 = ssub.s32 %s24, %s31
      %p131 = scmp.eq.s32.totalorder %s130, 0
      %s133 = sadd.s32 %s132, 1
      %s134 = scalar_select %p131, %s132, %s133
      %p137 = pneg %p131
      %p138 = scmp.eq.s32.totalorder %s16, 3
      %p139 = por %p137, %p138
      %p140 = scmp.ne.s32.totalorder %s132, %s135
      %p141 = scmp.eq.s32.totalorder %s16, 0
      %p142 = por %p140, %p141
      %p143 = scmp.ne.s32.totalorder %s132, %s135
      %p144 = scmp.eq.s32.totalorder %s21, 3
      %p145 = por %p143, %p144
      %p146 = scmp.ne.s32.totalorder %s135, %s136
      %p147 = scmp.eq.s32.totalorder %s21, 0
      %p148 = por %p146, %p147
      %p149 = scmp.ne.s32.totalorder %s135, %s136
      %p150 = scmp.eq.s32.totalorder %s22, 3
      %p151 = por %p149, %p150
      %p153 = scmp.ne.s32.totalorder %s136, %s152
      %p154 = scmp.eq.s32.totalorder %s22, 0
      %p155 = por %p153, %p154
      %s156 = ssub.s32 %s24, %s31
      %p157 = scmp.eq.s32.totalorder %s156, 0
      %s159 = sadd.s32 %s158, 1
      %s160 = scalar_select %p157, %s158, %s159
      %p163 = pneg %p157
      %p164 = scmp.eq.s32.totalorder %s16, 3
      %p165 = por %p163, %p164
      %p166 = scmp.ne.s32.totalorder %s158, %s161
      %p167 = scmp.eq.s32.totalorder %s16, 0
      %p168 = por %p166, %p167
      %p169 = scmp.ne.s32.totalorder %s158, %s161
      %p170 = scmp.eq.s32.totalorder %s21, 3
      %p171 = por %p169, %p170
      %p172 = scmp.ne.s32.totalorder %s161, %s162
      %p173 = scmp.eq.s32.totalorder %s21, 0
      %p174 = por %p172, %p173
      %p175 = scmp.ne.s32.totalorder %s161, %s162
      %p176 = scmp.eq.s32.totalorder %s22, 3
      %p177 = por %p175, %p176
      %p179 = scmp.ne.s32.totalorder %s162, %s178
      %p180 = scmp.eq.s32.totalorder %s22, 0
      %p181 = por %p179, %p180
      %s183 = sadd.s32 %s182, 1
      %p186 = scmp.eq.s32.totalorder %s16, 3
      %p187 = scmp.ne.s32.totalorder %s182, %s184
      %p188 = scmp.eq.s32.totalorder %s16, 0
      %p189 = por %p187, %p188
      %p190 = scmp.ne.s32.totalorder %s182, %s184
      %p191 = scmp.eq.s32.totalorder %s21, 3
      %p192 = por %p190, %p191
      %p193 = scmp.ne.s32.totalorder %s184, %s185
      %p194 = scmp.eq.s32.totalorder %s21, 0
      %p195 = por %p193, %p194
      %p196 = scmp.ne.s32.totalorder %s184, %s185
      %p197 = scmp.eq.s32.totalorder %s22, 3
      %p198 = por %p196, %p197
      %p200 = scmp.ne.s32.totalorder %s185, %s199
      %p201 = scmp.eq.s32.totalorder %s22, 0
      %p202 = por %p200, %p201
      %s203 = ssub.s32 %s23, %s35
      %p204 = scmp.eq.s32.totalorder %s203, 0
      %s206 = sadd.s32 %s205, 1
      %s207 = scalar_select %p204, %s205, %s206
      %p210 = pneg %p204
      %p211 = scmp.eq.s32.totalorder %s16, 3
      %p212 = por %p210, %p211
      %p213 = scmp.ne.s32.totalorder %s205, %s208
      %p214 = scmp.eq.s32.totalorder %s16, 0
      %p215 = por %p213, %p214
      %p216 = scmp.ne.s32.totalorder %s205, %s208
      %p217 = scmp.eq.s32.totalorder %s21, 3
      %p218 = por %p216, %p217
      %p219 = scmp.ne.s32.totalorder %s208, %s209
      %p220 = scmp.eq.s32.totalorder %s21, 0
      %p221 = por %p219, %p220
      %p222 = scmp.ne.s32.totalorder %s208, %s209
      %p223 = scmp.eq.s32.totalorder %s22, 3
      %p224 = por %p222, %p223
      %p226 = scmp.ne.s32.totalorder %s209, %s225
      %p227 = scmp.eq.s32.totalorder %s22, 0
      %p228 = por %p226, %p227
      %p229 = scmp.le.s32.totalorder 1, %s16
      %p230 = scmp.lt.s32.totalorder %s16, 5
      %p231 = pnand %p229, %p230
      %p232 = pneg %p231
      // Predicated region
      $region9: #{transformer_block.7} parent=5 // pred_check
        _
      $region10: #{transformer_block.7} parent=5 // pred_check_branch
        %234 = sbr.rel (%p231) target = $region12
      $region11: #{transformer_block.7} parent=5 // pred_region
        %s235 = ssub.s32 %s16, 1
        // Predicated region
        $region13: #{transformer_block.7} parent=11 // pred_check
          %p236 = pneg %p75
        $region14: #{transformer_block.7} parent=11 // pred_check_branch
          %238 = sbr.rel (%p236) target = $region16
        $region15: #{transformer_block.7} parent=11 // pred_region
          _
        $region16: #{transformer_block.7} parent=11 // pred_fallthru
          _
        // Predicated region
        $region17: #{transformer_block.7} parent=11 // pred_check
          %p239 = pneg %p96
        $region18: #{transformer_block.7} parent=11 // pred_check_branch
          %241 = sbr.rel (%p239) target = $region20
        $region19: #{transformer_block.7} parent=11 // pred_region
          _
        $region20: #{transformer_block.7} parent=11 // pred_fallthru
          _
        // Predicated region
        $region21: #{transformer_block.7} parent=11 // pred_check
          %p242 = pneg %p195
        $region22: #{transformer_block.7} parent=11 // pred_check_branch
          %244 = sbr.rel (%p242) target = $region24
        $region23: #{transformer_block.7} parent=11 // pred_region
          _
        $region24: #{transformer_block.7} parent=11 // pred_fallthru
          _
      $region12: #{transformer_block.7} parent=5 // pred_fallthru
        _
      %p245 = scmp.lt.s32.totalorder %s16, 4
      // Predicated region
      $region25: #{transformer_block.7} parent=5 // pred_check
        %p246 = pneg %p245
      $region26: #{transformer_block.7} parent=5 // pred_check_branch
        %248 = sbr.rel (%p246) target = $region28
      $region27: #{transformer_block.7} parent=5 // pred_region
        // Predicated region
        $region29: #{transformer_block.7} parent=27 // pred_check
          %p249 = pneg %p48
        $region30: #{transformer_block.7} parent=27 // pred_check_branch
          %251 = sbr.rel (%p249) target = $region32
        $region31: #{transformer_block.7} parent=27 // pred_region
          %s252 = smul.u32 16, %s23
          %p253 = scmp.lt.s32.totalorder %s252, 31
          %s254 = scalar_select %p253, %s252, 31
          %s255 = smul.addr %s254, 8
          %s256 = scalar_lea.vmem %s0, %s255
          %s257 = smul.u32 16, %s23
        $region32: #{transformer_block.7} parent=27 // pred_fallthru
          _
        // Predicated region
        $region33: #{transformer_block.7} parent=27 // pred_check
          %p258 = pneg %p116
        $region34: #{transformer_block.7} parent=27 // pred_check_branch
          %260 = sbr.rel (%p258) target = $region36
        $region35: #{transformer_block.7} parent=27 // pred_region
          %s261 = sand.u32 %s106, 1
          %s262 = sand.u32 %s106, 1
          %s263 = smul.addr %s262, 256
          %s264 = scalar_lea.vmem [#allocation4], %s263
          %s265 = smul.u32 2, %s24
          %s266 = smul.addr %s265, 8
          %s267 = scalar_lea.vmem %s3, %s266
          // Predicated region
          $region37: #{transformer_block.7} parent=35 // pred_check
            _
          $region38: #{transformer_block.7} parent=35 // pred_check_branch
            %269 = sbr.rel (0) target = $region40
          $region39: #{transformer_block.7} parent=35 // pred_region
            // Predicated region
            $region41: #{transformer_block.7} parent=39 // pred_check
              _
            $region42: #{transformer_block.7} parent=39 // pred_check_branch
              %271 = sbr.rel (0) target = $region44
            $region43: #{transformer_block.7} parent=39 // pred_region
              loop: start=0, step=1, limit=1
              $region45: #{transformer_block.7} parent=43 // loop_pre_header
                _
              $region46: #{transformer_block.7} parent=43 // loop_header
                %s273 = sphi 0, %s277
                %p274 = scmp.ge.s32.totalorder %s273, 1
                %s278 = sphi %s267, %s267
                %s279 = sphi %s264, %s264
              $region47: #{transformer_block.7} parent=43 // loop_header_branch
                %276 = sbr.rel (%p274) target = $region51
              $region48: #{transformer_block.7} parent=43 // loop_body
                %v280 = vld [vmem:[%s278] sm:$0xff]
                %281 = vst [vmem:[%s279] sm:$0xff] %v280
                %v282 = vld [vmem:[%s278 + $0x8] sm:$0xff]
                %283 = vst [vmem:[%s279 + $0x8] sm:$0xff] %v282
                %v284 = vld [vmem:[%s278 + $0x20] sm:$0xff]
                %285 = vst [vmem:[%s279 + $0x10] sm:$0xff] %v284
                %v286 = vld [vmem:[%s278 + $0x28] sm:$0xff]
                %287 = vst [vmem:[%s279 + $0x18] sm:$0xff] %v286
                %v288 = vld [vmem:[%s278 + $0x40] sm:$0xff]
                %289 = vst [vmem:[%s279 + $0x20] sm:$0xff] %v288
                %v290 = vld [vmem:[%s278 + $0x48] sm:$0xff]
                %291 = vst [vmem:[%s279 + $0x28] sm:$0xff] %v290
                %v292 = vld [vmem:[%s278 + $0x60] sm:$0xff]
                %293 = vst [vmem:[%s279 + $0x30] sm:$0xff] %v292
                %v294 = vld [vmem:[%s278 + $0x68] sm:$0xff]
                %295 = vst [vmem:[%s279 + $0x38] sm:$0xff] %v294
                %v296 = vld [vmem:[%s278 + $0x80] sm:$0xff]
                %297 = vst [vmem:[%s279 + $0x40] sm:$0xff] %v296
                %v298 = vld [vmem:[%s278 + $0x88] sm:$0xff]
                %299 = vst [vmem:[%s279 + $0x48] sm:$0xff] %v298
                %v300 = vld [vmem:[%s278 + $0xa0] sm:$0xff]
                %301 = vst [vmem:[%s279 + $0x50] sm:$0xff] %v300
                %v302 = vld [vmem:[%s278 + $0xa8] sm:$0xff]
                %303 = vst [vmem:[%s279 + $0x58] sm:$0xff] %v302
                %v304 = vld [vmem:[%s278 + $0xc0] sm:$0xff]
                %305 = vst [vmem:[%s279 + $0x60] sm:$0xff] %v304
                %v306 = vld [vmem:[%s278 + $0xc8] sm:$0xff]
                %307 = vst [vmem:[%s279 + $0x68] sm:$0xff] %v306
                %v308 = vld [vmem:[%s278 + $0xe0] sm:$0xff]
                %309 = vst [vmem:[%s279 + $0x70] sm:$0xff] %v308
                %v310 = vld [vmem:[%s278 + $0xe8] sm:$0xff]
                %311 = vst [vmem:[%s279 + $0x78] sm:$0xff] %v310
                %v312 = vld [vmem:[%s278 + $0x100] sm:$0xff]
                %313 = vst [vmem:[%s279 + $0x80] sm:$0xff] %v312
                %v314 = vld [vmem:[%s278 + $0x108] sm:$0xff]
                %315 = vst [vmem:[%s279 + $0x88] sm:$0xff] %v314
                %v316 = vld [vmem:[%s278 + $0x120] sm:$0xff]
                %317 = vst [vmem:[%s279 + $0x90] sm:$0xff] %v316
                %v318 = vld [vmem:[%s278 + $0x128] sm:$0xff]
                %319 = vst [vmem:[%s279 + $0x98] sm:$0xff] %v318
                %v320 = vld [vmem:[%s278 + $0x140] sm:$0xff]
                %321 = vst [vmem:[%s279 + $0xa0] sm:$0xff] %v320
                %v322 = vld [vmem:[%s278 + $0x148] sm:$0xff]
                %323 = vst [vmem:[%s279 + $0xa8] sm:$0xff] %v322
                %v324 = vld [vmem:[%s278 + $0x160] sm:$0xff]
                %325 = vst [vmem:[%s279 + $0xb0] sm:$0xff] %v324
                %v326 = vld [vmem:[%s278 + $0x168] sm:$0xff]
                %327 = vst [vmem:[%s279 + $0xb8] sm:$0xff] %v326
                %v328 = vld [vmem:[%s278 + $0x180] sm:$0xff]
                %329 = vst [vmem:[%s279 + $0xc0] sm:$0xff] %v328
                %v330 = vld [vmem:[%s278 + $0x188] sm:$0xff]
                %331 = vst [vmem:[%s279 + $0xc8] sm:$0xff] %v330
                %v332 = vld [vmem:[%s278 + $0x1a0] sm:$0xff]
                %333 = vst [vmem:[%s279 + $0xd0] sm:$0xff] %v332
                %v334 = vld [vmem:[%s278 + $0x1a8] sm:$0xff]
                %335 = vst [vmem:[%s279 + $0xd8] sm:$0xff] %v334
                %v336 = vld [vmem:[%s278 + $0x1c0] sm:$0xff]
                %337 = vst [vmem:[%s279 + $0xe0] sm:$0xff] %v336
                %v338 = vld [vmem:[%s278 + $0x1c8] sm:$0xff]
                %339 = vst [vmem:[%s279 + $0xe8] sm:$0xff] %v338
                %v340 = vld [vmem:[%s278 + $0x1e0] sm:$0xff]
                %341 = vst [vmem:[%s279 + $0xf0] sm:$0xff] %v340
                %v342 = vld [vmem:[%s278 + $0x1e8] sm:$0xff]
                %343 = vst [vmem:[%s279 + $0xf8] sm:$0xff] %v342
              $region49: #{transformer_block.7} parent=43 // loop_footer
                %s277 = sadd.s32 1, %s273
              $region50: #{transformer_block.7} parent=43 // loop_footer_branch
                %272 = sbr.rel target = $region46
              $region51: #{transformer_block.7} parent=43 // loop_exit
                _
            $region44: #{transformer_block.7} parent=39 // pred_fallthru
              _
            // Predicated region
            $region52: #{transformer_block.7} parent=39 // pred_check
              _
            $region53: #{transformer_block.7} parent=39 // pred_check_branch
              %345 = sbr.rel target = $region55
            $region54: #{transformer_block.7} parent=39 // pred_region
              _
            $region55: #{transformer_block.7} parent=39 // pred_fallthru
              _
          $region40: #{transformer_block.7} parent=35 // pred_fallthru
            _
          %346 = vnop
        $region36: #{transformer_block.7} parent=27 // pred_fallthru
          _
        // Predicated region
        $region56: #{transformer_block.7} parent=27 // pred_check
          %p347 = pneg %p142
        $region57: #{transformer_block.7} parent=27 // pred_check_branch
          %349 = sbr.rel (%p347) target = $region59
        $region58: #{transformer_block.7} parent=27 // pred_region
          %s350 = smul.u32 2, %s24
          %p351 = scmp.lt.s32.totalorder %s350, 3
          %s352 = scalar_select %p351, %s350, 3
          %s353 = scalar_lea.vmem %s4, %s352
          %s354 = smul.u32 2, %s24
        $region59: #{transformer_block.7} parent=27 // pred_fallthru
          _
        // Predicated region
        $region60: #{transformer_block.7} parent=27 // pred_check
          %p355 = pneg %p168
        $region61: #{transformer_block.7} parent=27 // pred_check_branch
          %357 = sbr.rel (%p355) target = $region63
        $region62: #{transformer_block.7} parent=27 // pred_region
          %s358 = smul.u32 32, %s24
          %p359 = scmp.lt.s32.totalorder %s358, 63
          %s360 = scalar_select %p359, %s358, 63
          %s361 = smul.addr %s360, 8
          %s362 = scalar_lea.vmem %s5, %s361
          %s363 = smul.u32 32, %s24
        $region63: #{transformer_block.7} parent=27 // pred_fallthru
          _
      $region28: #{transformer_block.7} parent=5 // pred_fallthru
        _
      %p364 = scmp.le.s32.totalorder 1, %s16
      %p365 = scmp.lt.s32.totalorder %s16, 5
      %p366 = pnand %p364, %p365
      %p367 = pneg %p366
      // Predicated region
      $region64: #{transformer_block.7} parent=5 // pred_check
        _
      $region65: #{transformer_block.7} parent=5 // pred_check_branch
        %369 = sbr.rel (%p366) target = $region67
      $region66: #{transformer_block.7} parent=5 // pred_region
        %s370 = ssub.s32 %s16, 1
        %s371 = sand.u32 %s109, 1
        %s372 = sand.u32 %s109, 1
        %s373 = smul.addr %s372, 256
        %s374 = scalar_lea.vmem [#allocation4], %s373
        // Predicated region
        $region68: #{transformer_block.7} parent=66 // pred_check
          %p375 = pneg %p122
        $region69: #{transformer_block.7} parent=66 // pred_check_branch
          %377 = sbr.rel (%p375) target = $region71
        $region70: #{transformer_block.7} parent=66 // pred_region
          _
        $region71: #{transformer_block.7} parent=66 // pred_fallthru
          _
        %s378 = smul.u32 16, %s25
        %p379 = scmp.lt.s32.totalorder %s378, 31
        %s380 = scalar_select %p379, %s378, 31
        %s381 = smul.addr %s380, 8
        %s382 = scalar_lea.vmem %s0, %s381
        %p383 = pneg %p54
        %p384 = pneg %p51
        %p385 = pneg %p75
        %p386 = pneg %p72
        %p387 = pneg %p96
        %p388 = pneg %p93
        %s389 = sand.u32 %s109, 1
        %s390 = sand.u32 %s109, 1
        %s391 = smul.addr %s390, 256
        %s392 = scalar_lea.vmem [#allocation4], %s391
        %p393 = pneg %p122
        %p394 = pneg %p119
        %s395 = smul.u32 2, %s26
        %p396 = scmp.lt.s32.totalorder %s395, 3
        %s397 = scalar_select %p396, %s395, 3
        %s398 = scalar_lea.vmem %s4, %s397
        %p399 = pneg %p148
        %p400 = pneg %p145
        %s401 = smul.u32 32, %s26
        %p402 = scmp.lt.s32.totalorder %s401, 63
        %s403 = scalar_select %p402, %s401, 63
        %s404 = smul.addr %s403, 8
        %s405 = scalar_lea.vmem %s5, %s404
        %p406 = pneg %p174
        %p407 = pneg %p171
        %p408 = pneg %p195
        %p409 = pneg %p192
        %p410 = pneg %p221
        %p411 = pneg %p218
        %s412 = sand.u32 %s208, 1
        %s413 = scalar_lea.sflag [#allocation6], %s412
        %s414 = sand.u32 %s208, 1
        %s415 = smul.addr %s414, 128
        %s416 = scalar_lea.vmem [#allocation5], %s415
        %s417 = smul.u32 16, %s25
        %p418 = scmp.lt.s32.totalorder %s417, 31
        %s419 = scalar_select %p418, %s417, 31
        %s420 = smul.addr %s419, 8
        %s421 = scalar_lea.vmem %s0, %s420
        %s422 = smul.u32 16, %s25
        %s423 = smul.u32 2, %s26
        %s424 = smul.u32 2, %s26
        %p425 = scmp.lt.s32.totalorder %s424, 3
        %s426 = scalar_select %p425, %s424, 3
        %s427 = scalar_lea.vmem %s4, %s426
        %s428 = smul.u32 2, %s26
        %s429 = smul.u32 32, %s26
        %p430 = scmp.lt.s32.totalorder %s429, 63
        %s431 = scalar_select %p430, %s429, 63
        %s432 = smul.addr %s431, 8
        %s433 = scalar_lea.vmem %s5, %s432
        %s434 = smul.u32 32, %s26
        %s435 = smul.u32 16, %s25
        %p436 = scmp.eq.s32.totalorder %s26, 0
        // Predicated region
        $region72: #{transformer_block.7} parent=66 // pred_check
          %p437 = pneg %p436
        $region73: #{transformer_block.7} parent=66 // pred_check_branch
          %439 = sbr.rel (%p437) target = $region75
        $region74: #{transformer_block.7} parent=66 // pred_region
          %v440 = vld [vmem:[%s421] sm:$0xff]
          %v441 = vld [vmem:[%s421 + $0x8] sm:$0xff]
          %v442 = vld [vmem:[%s421 + $0x10] sm:$0xff]
          %v443 = vld [vmem:[%s421 + $0x18] sm:$0xff]
          %v444 = vld [vmem:[%s421 + $0x20] sm:$0xff]
          %v445 = vld [vmem:[%s421 + $0x28] sm:$0xff]
          %v446 = vld [vmem:[%s421 + $0x30] sm:$0xff]
          %v447 = vld [vmem:[%s421 + $0x38] sm:$0xff]
          %v448 = vld [vmem:[%s421 + $0x40] sm:$0xff]
          %v449 = vld [vmem:[%s421 + $0x48] sm:$0xff]
          %v450 = vld [vmem:[%s421 + $0x50] sm:$0xff]
          %v451 = vld [vmem:[%s421 + $0x58] sm:$0xff]
          %v452 = vld [vmem:[%s421 + $0x60] sm:$0xff]
          %v453 = vld [vmem:[%s421 + $0x68] sm:$0xff]
          %v454 = vld [vmem:[%s421 + $0x70] sm:$0xff]
          %v455 = vld [vmem:[%s421 + $0x78] sm:$0xff]
          %456 = vadd.xlane.f32.xlu0 %v440
          %v457 = vpop.xlane.xlu0 %456
          %458 = vadd.xlane.f32.xlu0 %v441
          %v459 = vpop.xlane.xlu0 %458
          %460 = vadd.xlane.f32.xlu0 %v442
          %v461 = vpop.xlane.xlu0 %460
          %462 = vadd.xlane.f32.xlu0 %v443
          %v463 = vpop.xlane.xlu0 %462
          %464 = vadd.xlane.f32.xlu0 %v444
          %v465 = vpop.xlane.xlu0 %464
          %466 = vadd.xlane.f32.xlu0 %v445
          %v467 = vpop.xlane.xlu0 %466
          %468 = vadd.xlane.f32.xlu0 %v446
          %v469 = vpop.xlane.xlu0 %468
          %470 = vadd.xlane.f32.xlu0 %v447
          %v471 = vpop.xlane.xlu0 %470
          %472 = vadd.xlane.f32.xlu0 %v448
          %v473 = vpop.xlane.xlu0 %472
          %474 = vadd.xlane.f32.xlu0 %v449
          %v475 = vpop.xlane.xlu0 %474
          %476 = vadd.xlane.f32.xlu0 %v450
          %v477 = vpop.xlane.xlu0 %476
          %478 = vadd.xlane.f32.xlu0 %v451
          %v479 = vpop.xlane.xlu0 %478
          %480 = vadd.xlane.f32.xlu0 %v452
          %v481 = vpop.xlane.xlu0 %480
          %482 = vadd.xlane.f32.xlu0 %v453
          %v483 = vpop.xlane.xlu0 %482
          %484 = vadd.xlane.f32.xlu0 %v454
          %v485 = vpop.xlane.xlu0 %484
          %486 = vadd.xlane.f32.xlu0 %v455
          %v487 = vpop.xlane.xlu0 %486
          %v488 = vrcp.pop 128.0
          %v489 = vmul.f32 %v457, %v488
          %v490 = vmul.f32 %v459, %v488
          %v491 = vmul.f32 %v461, %v488
          %v492 = vmul.f32 %v463, %v488
          %v493 = vmul.f32 %v465, %v488
          %v494 = vmul.f32 %v467, %v488
          %v495 = vmul.f32 %v469, %v488
          %v496 = vmul.f32 %v471, %v488
          %v497 = vmul.f32 %v473, %v488
          %v498 = vmul.f32 %v475, %v488
          %v499 = vmul.f32 %v477, %v488
          %v500 = vmul.f32 %v479, %v488
          %v501 = vmul.f32 %v481, %v488
          %v502 = vmul.f32 %v483, %v488
          %v503 = vmul.f32 %v485, %v488
          %v504 = vmul.f32 %v487, %v488
          %v505 = vsub.f32 %v440, %v489
          %v506 = vsub.f32 %v441, %v490
          %v507 = vsub.f32 %v442, %v491
          %v508 = vsub.f32 %v443, %v492
          %v509 = vsub.f32 %v444, %v493
          %v510 = vsub.f32 %v445, %v494
          %v511 = vsub.f32 %v446, %v495
          %v512 = vsub.f32 %v447, %v496
          %v513 = vsub.f32 %v448, %v497
          %v514 = vsub.f32 %v449, %v498
          %v515 = vsub.f32 %v450, %v499
          %v516 = vsub.f32 %v451, %v500
          %v517 = vsub.f32 %v452, %v501
          %v518 = vsub.f32 %v453, %v502
          %v519 = vsub.f32 %v454, %v503
          %v520 = vsub.f32 %v455, %v504
          %v521 = vmul.f32 %v505, %v505
          %v522 = vmul.f32 %v506, %v506
          %v523 = vmul.f32 %v507, %v507
          %v524 = vmul.f32 %v508, %v508
          %v525 = vmul.f32 %v509, %v509
          %v526 = vmul.f32 %v510, %v510
          %v527 = vmul.f32 %v511, %v511
          %v528 = vmul.f32 %v512, %v512
          %v529 = vmul.f32 %v513, %v513
          %v530 = vmul.f32 %v514, %v514
          %v531 = vmul.f32 %v515, %v515
          %v532 = vmul.f32 %v516, %v516
          %v533 = vmul.f32 %v517, %v517
          %v534 = vmul.f32 %v518, %v518
          %v535 = vmul.f32 %v519, %v519
          %v536 = vmul.f32 %v520, %v520
          %537 = vadd.xlane.f32.xlu0 %v521
          %v538 = vpop.xlane.xlu0 %537
          %539 = vadd.xlane.f32.xlu0 %v522
          %v540 = vpop.xlane.xlu0 %539
          %541 = vadd.xlane.f32.xlu0 %v523
          %v542 = vpop.xlane.xlu0 %541
          %543 = vadd.xlane.f32.xlu0 %v524
          %v544 = vpop.xlane.xlu0 %543
          %545 = vadd.xlane.f32.xlu0 %v525
          %v546 = vpop.xlane.xlu0 %545
          %547 = vadd.xlane.f32.xlu0 %v526
          %v548 = vpop.xlane.xlu0 %547
          %549 = vadd.xlane.f32.xlu0 %v527
          %v550 = vpop.xlane.xlu0 %549
          %551 = vadd.xlane.f32.xlu0 %v528
          %v552 = vpop.xlane.xlu0 %551
          %553 = vadd.xlane.f32.xlu0 %v529
          %v554 = vpop.xlane.xlu0 %553
          %555 = vadd.xlane.f32.xlu0 %v530
          %v556 = vpop.xlane.xlu0 %555
          %557 = vadd.xlane.f32.xlu0 %v531
          %v558 = vpop.xlane.xlu0 %557
          %559 = vadd.xlane.f32.xlu0 %v532
          %v560 = vpop.xlane.xlu0 %559
          %561 = vadd.xlane.f32.xlu0 %v533
          %v562 = vpop.xlane.xlu0 %561
          %563 = vadd.xlane.f32.xlu0 %v534
          %v564 = vpop.xlane.xlu0 %563
          %565 = vadd.xlane.f32.xlu0 %v535
          %v566 = vpop.xlane.xlu0 %565
          %567 = vadd.xlane.f32.xlu0 %v536
          %v568 = vpop.xlane.xlu0 %567
          %v569 = vmul.f32 %v538, %v488
          %v570 = vmul.f32 %v540, %v488
          %v571 = vmul.f32 %v542, %v488
          %v572 = vmul.f32 %v544, %v488
          %v573 = vmul.f32 %v546, %v488
          %v574 = vmul.f32 %v548, %v488
          %v575 = vmul.f32 %v550, %v488
          %v576 = vmul.f32 %v552, %v488
          %v577 = vmul.f32 %v554, %v488
          %v578 = vmul.f32 %v556, %v488
          %v579 = vmul.f32 %v558, %v488
          %v580 = vmul.f32 %v560, %v488
          %v581 = vmul.f32 %v562, %v488
          %v582 = vmul.f32 %v564, %v488
          %v583 = vmul.f32 %v566, %v488
          %v584 = vmul.f32 %v568, %v488
          %v585 = vadd.f32 %v569, 1e-05
          %v586 = vadd.f32 %v570, 1e-05
          %v587 = vadd.f32 %v571, 1e-05
          %v588 = vadd.f32 %v572, 1e-05
          %v589 = vadd.f32 %v573, 1e-05
          %v590 = vadd.f32 %v574, 1e-05
          %v591 = vadd.f32 %v575, 1e-05
          %v592 = vadd.f32 %v576, 1e-05
          %v593 = vadd.f32 %v577, 1e-05
          %v594 = vadd.f32 %v578, 1e-05
          %v595 = vadd.f32 %v579, 1e-05
          %v596 = vadd.f32 %v580, 1e-05
          %v597 = vadd.f32 %v581, 1e-05
          %v598 = vadd.f32 %v582, 1e-05
          %v599 = vadd.f32 %v583, 1e-05
          %v600 = vadd.f32 %v584, 1e-05
          %v601 = vrsqrt.pop %v585
          %v602 = vrsqrt.pop %v586
          %v603 = vrsqrt.pop %v587
          %v604 = vrsqrt.pop %v588
          %v605 = vrsqrt.pop %v589
          %v606 = vrsqrt.pop %v590
          %v607 = vrsqrt.pop %v591
          %v608 = vrsqrt.pop %v592
          %v609 = vrsqrt.pop %v593
          %v610 = vrsqrt.pop %v594
          %v611 = vrsqrt.pop %v595
          %v612 = vrsqrt.pop %v596
          %v613 = vrsqrt.pop %v597
          %v614 = vrsqrt.pop %v598
          %v615 = vrsqrt.pop %v599
          %v616 = vrsqrt.pop %v600
          %v617 = vmul.f32 %v505, %v601
          %v618 = vmul.f32 %v506, %v602
          %v619 = vmul.f32 %v507, %v603
          %v620 = vmul.f32 %v508, %v604
          %v621 = vmul.f32 %v509, %v605
          %v622 = vmul.f32 %v510, %v606
          %v623 = vmul.f32 %v511, %v607
          %v624 = vmul.f32 %v512, %v608
          %v625 = vmul.f32 %v513, %v609
          %v626 = vmul.f32 %v514, %v610
          %v627 = vmul.f32 %v515, %v611
          %v628 = vmul.f32 %v516, %v612
          %v629 = vmul.f32 %v517, %v613
          %v630 = vmul.f32 %v518, %v614
          %v631 = vmul.f32 %v519, %v615
          %v632 = vmul.f32 %v520, %v616
          %v633 = vld [vmem:[%s1] sm:$0x1]
          %v635 = vlaneseq
          %v636 = vshrl.u32 %v635, 7
          %v637 = vsub.s32 0, %v636
          %v638 = vrot.slane %v633, %v637
          %v640 = vmul.f32 %v617, %v638
          %v641 = vmul.f32 %v618, %v638
          %v642 = vmul.f32 %v619, %v638
          %v643 = vmul.f32 %v620, %v638
          %v644 = vmul.f32 %v621, %v638
          %v645 = vmul.f32 %v622, %v638
          %v646 = vmul.f32 %v623, %v638
          %v647 = vmul.f32 %v624, %v638
          %v648 = vmul.f32 %v625, %v638
          %v649 = vmul.f32 %v626, %v638
          %v650 = vmul.f32 %v627, %v638
          %v651 = vmul.f32 %v628, %v638
          %v652 = vmul.f32 %v629, %v638
          %v653 = vmul.f32 %v630, %v638
          %v654 = vmul.f32 %v631, %v638
          %v655 = vmul.f32 %v632, %v638
          %v656 = vld [vmem:[%s2] sm:$0x1]
          %v658 = vlaneseq
          %v659 = vshrl.u32 %v658, 7
          %v660 = vsub.s32 0, %v659
          %v661 = vrot.slane %v656, %v660
          %v663 = vadd.f32 %v640, %v661
          %v664 = vadd.f32 %v641, %v661
          %v665 = vadd.f32 %v642, %v661
          %v666 = vadd.f32 %v643, %v661
          %v667 = vadd.f32 %v644, %v661
          %v668 = vadd.f32 %v645, %v661
          %v669 = vadd.f32 %v646, %v661
          %v670 = vadd.f32 %v647, %v661
          %v671 = vadd.f32 %v648, %v661
          %v672 = vadd.f32 %v649, %v661
          %v673 = vadd.f32 %v650, %v661
          %v674 = vadd.f32 %v651, %v661
          %v675 = vadd.f32 %v652, %v661
          %v676 = vadd.f32 %v653, %v661
          %v677 = vadd.f32 %v654, %v661
          %v678 = vadd.f32 %v655, %v661
          %679 = vst [vmem:[#allocation2] sm:$0xff] %v663
          %680 = vst [vmem:[#allocation2 + $0x8] sm:$0xff] %v664
          %681 = vst [vmem:[#allocation2 + $0x10] sm:$0xff] %v665
          %682 = vst [vmem:[#allocation2 + $0x18] sm:$0xff] %v666
          %683 = vst [vmem:[#allocation2 + $0x20] sm:$0xff] %v667
          %684 = vst [vmem:[#allocation2 + $0x28] sm:$0xff] %v668
          %685 = vst [vmem:[#allocation2 + $0x30] sm:$0xff] %v669
          %686 = vst [vmem:[#allocation2 + $0x38] sm:$0xff] %v670
          %687 = vst [vmem:[#allocation2 + $0x40] sm:$0xff] %v671
          %688 = vst [vmem:[#allocation2 + $0x48] sm:$0xff] %v672
          %689 = vst [vmem:[#allocation2 + $0x50] sm:$0xff] %v673
          %690 = vst [vmem:[#allocation2 + $0x58] sm:$0xff] %v674
          %691 = vst [vmem:[#allocation2 + $0x60] sm:$0xff] %v675
          %692 = vst [vmem:[#allocation2 + $0x68] sm:$0xff] %v676
          %693 = vst [vmem:[#allocation2 + $0x70] sm:$0xff] %v677
          %694 = vst [vmem:[#allocation2 + $0x78] sm:$0xff] %v678
          %v695 = vld [vmem:[%s6] sm:$0x1]
          %v697 = vlaneseq
          %v698 = vshrl.u32 %v697, 7
          %v699 = vsub.s32 0, %v698
          %v700 = vrot.slane %v695, %v699
          %702 = vst [vmem:[#allocation3] sm:$0xff] %v700
          %703 = vst [vmem:[#allocation3 + $0x8] sm:$0xff] %v700
          %704 = vst [vmem:[#allocation3 + $0x10] sm:$0xff] %v700
          %705 = vst [vmem:[#allocation3 + $0x18] sm:$0xff] %v700
          %706 = vst [vmem:[#allocation3 + $0x20] sm:$0xff] %v700
          %707 = vst [vmem:[#allocation3 + $0x28] sm:$0xff] %v700
          %708 = vst [vmem:[#allocation3 + $0x30] sm:$0xff] %v700
          %709 = vst [vmem:[#allocation3 + $0x38] sm:$0xff] %v700
          %710 = vst [vmem:[#allocation3 + $0x40] sm:$0xff] %v700
          %711 = vst [vmem:[#allocation3 + $0x48] sm:$0xff] %v700
          %712 = vst [vmem:[#allocation3 + $0x50] sm:$0xff] %v700
          %713 = vst [vmem:[#allocation3 + $0x58] sm:$0xff] %v700
          %714 = vst [vmem:[#allocation3 + $0x60] sm:$0xff] %v700
          %715 = vst [vmem:[#allocation3 + $0x68] sm:$0xff] %v700
          %716 = vst [vmem:[#allocation3 + $0x70] sm:$0xff] %v700
          %717 = vst [vmem:[#allocation3 + $0x78] sm:$0xff] %v700
        $region75: #{transformer_block.7} parent=66 // pred_fallthru
          _
        %v718 = vld [vmem:[#allocation2] sm:$0xff]
        %v719 = vld [vmem:[#allocation2 + $0x8] sm:$0xff]
        %v720 = vld [vmem:[#allocation2 + $0x10] sm:$0xff]
        %v721 = vld [vmem:[#allocation2 + $0x18] sm:$0xff]
        %v722 = vld [vmem:[#allocation2 + $0x20] sm:$0xff]
        %v723 = vld [vmem:[#allocation2 + $0x28] sm:$0xff]
        %v724 = vld [vmem:[#allocation2 + $0x30] sm:$0xff]
        %v725 = vld [vmem:[#allocation2 + $0x38] sm:$0xff]
        %v726 = vld [vmem:[#allocation2 + $0x40] sm:$0xff]
        %v727 = vld [vmem:[#allocation2 + $0x48] sm:$0xff]
        %v728 = vld [vmem:[#allocation2 + $0x50] sm:$0xff]
        %v729 = vld [vmem:[#allocation2 + $0x58] sm:$0xff]
        %v730 = vld [vmem:[#allocation2 + $0x60] sm:$0xff]
        %v731 = vld [vmem:[#allocation2 + $0x68] sm:$0xff]
        %v732 = vld [vmem:[#allocation2 + $0x70] sm:$0xff]
        %v733 = vld [vmem:[#allocation2 + $0x78] sm:$0xff]
        %v734 = vld [vmem:[%s374] sm:$0xff]
        %v735 = vld [vmem:[%s374 + $0x8] sm:$0xff]
        %v736 = vld [vmem:[%s374 + $0x10] sm:$0xff]
        %v737 = vld [vmem:[%s374 + $0x18] sm:$0xff]
        %v738 = vld [vmem:[%s374 + $0x20] sm:$0xff]
        %v739 = vld [vmem:[%s374 + $0x28] sm:$0xff]
        %v740 = vld [vmem:[%s374 + $0x30] sm:$0xff]
        %v741 = vld [vmem:[%s374 + $0x38] sm:$0xff]
        %v742 = vld [vmem:[%s374 + $0x40] sm:$0xff]
        %v743 = vld [vmem:[%s374 + $0x48] sm:$0xff]
        %v744 = vld [vmem:[%s374 + $0x50] sm:$0xff]
        %v745 = vld [vmem:[%s374 + $0x58] sm:$0xff]
        %v746 = vld [vmem:[%s374 + $0x60] sm:$0xff]
        %v747 = vld [vmem:[%s374 + $0x68] sm:$0xff]
        %v748 = vld [vmem:[%s374 + $0x70] sm:$0xff]
        %v749 = vld [vmem:[%s374 + $0x78] sm:$0xff]
        %v750 = vld [vmem:[%s374 + $0x80] sm:$0xff]
        %v751 = vld [vmem:[%s374 + $0x88] sm:$0xff]
        %v752 = vld [vmem:[%s374 + $0x90] sm:$0xff]
        %v753 = vld [vmem:[%s374 + $0x98] sm:$0xff]
        %v754 = vld [vmem:[%s374 + $0xa0] sm:$0xff]
        %v755 = vld [vmem:[%s374 + $0xa8] sm:$0xff]
        %v756 = vld [vmem:[%s374 + $0xb0] sm:$0xff]
        %v757 = vld [vmem:[%s374 + $0xb8] sm:$0xff]
        %v758 = vld [vmem:[%s374 + $0xc0] sm:$0xff]
        %v759 = vld [vmem:[%s374 + $0xc8] sm:$0xff]
        %v760 = vld [vmem:[%s374 + $0xd0] sm:$0xff]
        %v761 = vld [vmem:[%s374 + $0xd8] sm:$0xff]
        %v762 = vld [vmem:[%s374 + $0xe0] sm:$0xff]
        %v763 = vld [vmem:[%s374 + $0xe8] sm:$0xff]
        %v764 = vld [vmem:[%s374 + $0xf0] sm:$0xff]
        %v765 = vld [vmem:[%s374 + $0xf8] sm:$0xff]
        %v766 = vld [vmem:[%s427] sm:$0x3]
        %v768 = vlaneseq
        %v769 = vshrl.u32 %v768, 7
        %v770 = vsub.s32 0, %v769
        %v771 = vrot.slane %v766, %v770
        %v772 = vlaneseq
        %v773 = vshrl.u32 %v772, 7
        %v774 = vsub.s32 1, %v773
        %v775 = vrot.slane %v766, %v774
        %778 = vmatprep.subr.mxu0 %v735
        %779 = vmatpush1.msra.mxu0 %v734
        %780 = vmatprep.subr.mxu0 %v737
        %781 = vmatpush1.msra.mxu0 %v736
        %782 = vmatprep.subr.mxu0 %v739
        %783 = vmatpush1.msra.mxu0 %v738
        %784 = vmatprep.subr.mxu0 %v741
        %785 = vmatpush1.msra.mxu0 %v740
        %786 = vmatprep.subr.mxu0 %v743
        %787 = vmatpush1.msra.mxu0 %v742
        %788 = vmatprep.subr.mxu0 %v745
        %789 = vmatpush1.msra.mxu0 %v744
        %790 = vmatprep.subr.mxu0 %v747
        %791 = vmatpush1.msra.mxu0 %v746
        %792 = vmatprep.subr.mxu0 %v749
        %793 = vmatpush1.msra.mxu0 %v748
        %794 = vmatprep.subr.mxu0 %v751
        %795 = vmatpush1.msra.mxu0 %v750
        %796 = vmatprep.subr.mxu0 %v753
        %797 = vmatpush1.msra.mxu0 %v752
        %798 = vmatprep.subr.mxu0 %v755
        %799 = vmatpush1.msra.mxu0 %v754
        %800 = vmatprep.subr.mxu0 %v757
        %801 = vmatpush1.msra.mxu0 %v756
        %802 = vmatprep.subr.mxu0 %v759
        %803 = vmatpush1.msra.mxu0 %v758
        %804 = vmatprep.subr.mxu0 %v761
        %805 = vmatpush1.msra.mxu0 %v760
        %806 = vmatprep.subr.mxu0 %v763
        %807 = vmatpush1.msra.mxu0 %v762
        %808 = vmatprep.subr.mxu0 %v765
        %809 = vmatpush1.msra.mxu0 %v764
        %810 = vmatprep.subr.mxu0 0.0
        %811 = vmatpush1.msra.mxu0 0.0
        %812 = vmatprep.subr.mxu0 0.0
        %813 = vmatpush1.msra.mxu0 0.0
        %814 = vmatprep.subr.mxu0 0.0
        %815 = vmatpush1.msra.mxu0 0.0
        %816 = vmatprep.subr.mxu0 0.0
        %817 = vmatpush1.msra.mxu0 0.0
        %818 = vmatprep.subr.mxu0 0.0
        %819 = vmatpush1.msra.mxu0 0.0
        %820 = vmatprep.subr.mxu0 0.0
        %821 = vmatpush1.msra.mxu0 0.0
        %822 = vmatprep.subr.mxu0 0.0
        %823 = vmatpush1.msra.mxu0 0.0
        %824 = vmatprep.subr.mxu0 0.0
        %825 = vmatpush1.msra.mxu0 0.0
        %826 = vmatprep.subr.mxu0 0.0
        %827 = vmatpush1.msra.mxu0 0.0
        %828 = vmatprep.subr.mxu0 0.0
        %829 = vmatpush1.msra.mxu0 0.0
        %830 = vmatprep.subr.mxu0 0.0
        %831 = vmatpush1.msra.mxu0 0.0
        %832 = vmatprep.subr.mxu0 0.0
        %833 = vmatpush1.msra.mxu0 0.0
        %834 = vmatprep.subr.mxu0 0.0
        %835 = vmatpush1.msra.mxu0 0.0
        %836 = vmatprep.subr.mxu0 0.0
        %837 = vmatpush1.msra.mxu0 0.0
        %838 = vmatprep.subr.mxu0 0.0
        %839 = vmatpush1.msra.mxu0 0.0
        %840 = vmatprep.subr.mxu0 0.0
        %841 = vmatpush1.msra.mxu0 0.0
        %842 = vmatprep.mubr.f32.mxu0 0.0
        %843 = vmatmul.mubr.f32.gmra.mrb[0].mxu0 %v718
        %v844 = vpop.f32.mrb[0].mxu0
        %v845 = vadd.f32 %v771, %v844
        %v846 = vpop.f32.mrb[0].mxu0
        %v847 = vadd.f32 %v775, %v846
        %848 = vmatprep.mubr.f32.mxu0 0.0
        %849 = vmatmul.mubr.f32.gmra.mrb[0].mxu0 %v719
        %v850 = vpop.f32.mrb[0].mxu0
        %v851 = vadd.f32 %v771, %v850
        %v852 = vpop.f32.mrb[0].mxu0
        %v853 = vadd.f32 %v775, %v852
        %854 = vmatprep.mubr.f32.mxu0 0.0
        %855 = vmatmul.mubr.f32.gmra.mrb[0].mxu0 %v720
        %v856 = vpop.f32.mrb[0].mxu0
        %v857 = vadd.f32 %v771, %v856
        %v858 = vpop.f32.mrb[0].mxu0
        %v859 = vadd.f32 %v775, %v858
        %860 = vmatprep.mubr.f32.mxu0 0.0
        %861 = vmatmul.mubr.f32.gmra.mrb[0].mxu0 %v721
        %v862 = vpop.f32.mrb[0].mxu0
        %v863 = vadd.f32 %v771, %v862
        %v864 = vpop.f32.mrb[0].mxu0
        %v865 = vadd.f32 %v775, %v864
        %866 = vmatprep.mubr.f32.mxu0 0.0
        %867 = vmatmul.mubr.f32.gmra.mrb[0].mxu0 %v722
        %v868 = vpop.f32.mrb[0].mxu0
        %v869 = vadd.f32 %v771, %v868
        %v870 = vpop.f32.mrb[0].mxu0
        %v871 = vadd.f32 %v775, %v870
        %872 = vmatprep.mubr.f32.mxu0 0.0
        %873 = vmatmul.mubr.f32.gmra.mrb[0].mxu0 %v723
        %v874 = vpop.f32.mrb[0].mxu0
        %v875 = vadd.f32 %v771, %v874
        %v876 = vpop.f32.mrb[0].mxu0
        %v877 = vadd.f32 %v775, %v876
        %878 = vmatprep.mubr.f32.mxu0 0.0
        %879 = vmatmul.mubr.f32.gmra.mrb[0].mxu0 %v724
        %v880 = vpop.f32.mrb[0].mxu0
        %v881 = vadd.f32 %v771, %v880
        %v882 = vpop.f32.mrb[0].mxu0
        %v883 = vadd.f32 %v775, %v882
        %884 = vmatprep.mubr.f32.mxu0 0.0
        %885 = vmatmul.mubr.f32.gmra.mrb[0].mxu0 %v725
        %v886 = vpop.f32.mrb[0].mxu0
        %v887 = vadd.f32 %v771, %v886
        %v888 = vpop.f32.mrb[0].mxu0
        %v889 = vadd.f32 %v775, %v888
        %890 = vmatprep.mubr.f32.mxu0 0.0
        %891 = vmatmul.mubr.f32.gmra.mrb[0].mxu0 %v726
        %v892 = vpop.f32.mrb[0].mxu0
        %v893 = vadd.f32 %v771, %v892
        %v894 = vpop.f32.mrb[0].mxu0
        %v895 = vadd.f32 %v775, %v894
        %896 = vmatprep.mubr.f32.mxu0 0.0
        %897 = vmatmul.mubr.f32.gmra.mrb[0].mxu0 %v727
        %v898 = vpop.f32.mrb[0].mxu0
        %v899 = vadd.f32 %v771, %v898
        %v900 = vpop.f32.mrb[0].mxu0
        %v901 = vadd.f32 %v775, %v900
        %902 = vmatprep.mubr.f32.mxu0 0.0
        %903 = vmatmul.mubr.f32.gmra.mrb[0].mxu0 %v728
        %v904 = vpop.f32.mrb[0].mxu0
        %v905 = vadd.f32 %v771, %v904
        %v906 = vpop.f32.mrb[0].mxu0
        %v907 = vadd.f32 %v775, %v906
        %908 = vmatprep.mubr.f32.mxu0 0.0
        %909 = vmatmul.mubr.f32.gmra.mrb[0].mxu0 %v729
        %v910 = vpop.f32.mrb[0].mxu0
        %v911 = vadd.f32 %v771, %v910
        %v912 = vpop.f32.mrb[0].mxu0
        %v913 = vadd.f32 %v775, %v912
        %914 = vmatprep.mubr.f32.mxu0 0.0
        %915 = vmatmul.mubr.f32.gmra.mrb[0].mxu0 %v730
        %v916 = vpop.f32.mrb[0].mxu0
        %v917 = vadd.f32 %v771, %v916
        %v918 = vpop.f32.mrb[0].mxu0
        %v919 = vadd.f32 %v775, %v918
        %920 = vmatprep.mubr.f32.mxu0 0.0
        %921 = vmatmul.mubr.f32.gmra.mrb[0].mxu0 %v731
        %v922 = vpop.f32.mrb[0].mxu0
        %v923 = vadd.f32 %v771, %v922
        %v924 = vpop.f32.mrb[0].mxu0
        %v925 = vadd.f32 %v775, %v924
        %926 = vmatprep.mubr.f32.mxu0 0.0
        %927 = vmatmul.mubr.f32.gmra.mrb[0].mxu0 %v732
        %v928 = vpop.f32.mrb[0].mxu0
        %v929 = vadd.f32 %v771, %v928
        %v930 = vpop.f32.mrb[0].mxu0
        %v931 = vadd.f32 %v775, %v930
        %932 = vmatprep.mubr.f32.mxu0 0.0
        %933 = vmatmul.mubr.f32.gmra.mrb[0].mxu0 %v733
        %v934 = vpop.f32.mrb[0].mxu0
        %v935 = vadd.f32 %v771, %v934
        %v936 = vpop.f32.mrb[0].mxu0
        %v937 = vadd.f32 %v775, %v936
        %938 = vdwg.mxu0
        %v939 = vmul.f32 %v845, 0.5
        %v940 = vmul.f32 %v847, 0.5
        %v941 = vmul.f32 %v851, 0.5
        %v942 = vmul.f32 %v853, 0.5
        %v943 = vmul.f32 %v857, 0.5
        %v944 = vmul.f32 %v859, 0.5
        %v945 = vmul.f32 %v863, 0.5
        %v946 = vmul.f32 %v865, 0.5
        %v947 = vmul.f32 %v869, 0.5
        %v948 = vmul.f32 %v871, 0.5
        %v949 = vmul.f32 %v875, 0.5
        %v950 = vmul.f32 %v877, 0.5
        %v951 = vmul.f32 %v881, 0.5
        %v952 = vmul.f32 %v883, 0.5
        %v953 = vmul.f32 %v887, 0.5
        %v954 = vmul.f32 %v889, 0.5
        %v955 = vmul.f32 %v893, 0.5
        %v956 = vmul.f32 %v895, 0.5
        %v957 = vmul.f32 %v899, 0.5
        %v958 = vmul.f32 %v901, 0.5
        %v959 = vmul.f32 %v905, 0.5
        %v960 = vmul.f32 %v907, 0.5
        %v961 = vmul.f32 %v911, 0.5
        %v962 = vmul.f32 %v913, 0.5
        %v963 = vmul.f32 %v917, 0.5
        %v964 = vmul.f32 %v919, 0.5
        %v965 = vmul.f32 %v923, 0.5
        %v966 = vmul.f32 %v925, 0.5
        %v967 = vmul.f32 %v929, 0.5
        %v968 = vmul.f32 %v931, 0.5
        %v969 = vmul.f32 %v935, 0.5
        %v970 = vmul.f32 %v937, 0.5
        %v971 = vmul.f32 %v845, 0.70710677
        %v972 = vmul.f32 %v847, 0.70710677
        %v973 = vmul.f32 %v851, 0.70710677
        %v974 = vmul.f32 %v853, 0.70710677
        %v975 = vmul.f32 %v857, 0.70710677
        %v976 = vmul.f32 %v859, 0.70710677
        %v977 = vmul.f32 %v863, 0.70710677
        %v978 = vmul.f32 %v865, 0.70710677
        %v979 = vmul.f32 %v869, 0.70710677
        %v980 = vmul.f32 %v871, 0.70710677
        %v981 = vmul.f32 %v875, 0.70710677
        %v982 = vmul.f32 %v877, 0.70710677
        %v983 = vmul.f32 %v881, 0.70710677
        %v984 = vmul.f32 %v883, 0.70710677
        %v985 = vmul.f32 %v887, 0.70710677
        %v986 = vmul.f32 %v889, 0.70710677
        %v987 = vmul.f32 %v893, 0.70710677
        %v988 = vmul.f32 %v895, 0.70710677
        %v989 = vmul.f32 %v899, 0.70710677
        %v990 = vmul.f32 %v901, 0.70710677
        %v991 = vmul.f32 %v905, 0.70710677
        %v992 = vmul.f32 %v907, 0.70710677
        %v993 = vmul.f32 %v911, 0.70710677
        %v994 = vmul.f32 %v913, 0.70710677
        %v995 = vmul.f32 %v917, 0.70710677
        %v996 = vmul.f32 %v919, 0.70710677
        %v997 = vmul.f32 %v923, 0.70710677
        %v998 = vmul.f32 %v925, 0.70710677
        %v999 = vmul.f32 %v929, 0.70710677
        %v1000 = vmul.f32 %v931, 0.70710677
        %v1001 = vmul.f32 %v935, 0.70710677
        %v1002 = vmul.f32 %v937, 0.70710677
        %v1003 = verf.f32.pop %v971
        %v1004 = verf.f32.pop %v972
        %v1005 = verf.f32.pop %v973
        %v1006 = verf.f32.pop %v974
        %v1007 = verf.f32.pop %v975
        %v1008 = verf.f32.pop %v976
        %v1009 = verf.f32.pop %v977
        %v1010 = verf.f32.pop %v978
        %v1011 = verf.f32.pop %v979
        %v1012 = verf.f32.pop %v980
        %v1013 = verf.f32.pop %v981
        %v1014 = verf.f32.pop %v982
        %v1015 = verf.f32.pop %v983
        %v1016 = verf.f32.pop %v984
        %v1017 = verf.f32.pop %v985
        %v1018 = verf.f32.pop %v986
        %v1019 = verf.f32.pop %v987
        %v1020 = verf.f32.pop %v988
        %v1021 = verf.f32.pop %v989
        %v1022 = verf.f32.pop %v990
        %v1023 = verf.f32.pop %v991
        %v1024 = verf.f32.pop %v992
        %v1025 = verf.f32.pop %v993
        %v1026 = verf.f32.pop %v994
        %v1027 = verf.f32.pop %v995
        %v1028 = verf.f32.pop %v996
        %v1029 = verf.f32.pop %v997
        %v1030 = verf.f32.pop %v998
        %v1031 = verf.f32.pop %v999
        %v1032 = verf.f32.pop %v1000
        %v1033 = verf.f32.pop %v1001
        %v1034 = verf.f32.pop %v1002
        %v1035 = vadd.f32 %v1003, 1.0
        %v1036 = vadd.f32 %v1004, 1.0
        %v1037 = vadd.f32 %v1005, 1.0
        %v1038 = vadd.f32 %v1006, 1.0
        %v1039 = vadd.f32 %v1007, 1.0
        %v1040 = vadd.f32 %v1008, 1.0
        %v1041 = vadd.f32 %v1009, 1.0
        %v1042 = vadd.f32 %v1010, 1.0
        %v1043 = vadd.f32 %v1011, 1.0
        %v1044 = vadd.f32 %v1012, 1.0
        %v1045 = vadd.f32 %v1013, 1.0
        %v1046 = vadd.f32 %v1014, 1.0
        %v1047 = vadd.f32 %v1015, 1.0
        %v1048 = vadd.f32 %v1016, 1.0
        %v1049 = vadd.f32 %v1017, 1.0
        %v1050 = vadd.f32 %v1018, 1.0
        %v1051 = vadd.f32 %v1019, 1.0
        %v1052 = vadd.f32 %v1020, 1.0
        %v1053 = vadd.f32 %v1021, 1.0
        %v1054 = vadd.f32 %v1022, 1.0
        %v1055 = vadd.f32 %v1023, 1.0
        %v1056 = vadd.f32 %v1024, 1.0
        %v1057 = vadd.f32 %v1025, 1.0
        %v1058 = vadd.f32 %v1026, 1.0
        %v1059 = vadd.f32 %v1027, 1.0
        %v1060 = vadd.f32 %v1028, 1.0
        %v1061 = vadd.f32 %v1029, 1.0
        %v1062 = vadd.f32 %v1030, 1.0
        %v1063 = vadd.f32 %v1031, 1.0
        %v1064 = vadd.f32 %v1032, 1.0
        %v1065 = vadd.f32 %v1033, 1.0
        %v1066 = vadd.f32 %v1034, 1.0
        %v1067 = vmul.f32 %v939, %v1035
        %v1068 = vmul.f32 %v940, %v1036
        %v1069 = vmul.f32 %v941, %v1037
        %v1070 = vmul.f32 %v942, %v1038
        %v1071 = vmul.f32 %v943, %v1039
        %v1072 = vmul.f32 %v944, %v1040
        %v1073 = vmul.f32 %v945, %v1041
        %v1074 = vmul.f32 %v946, %v1042
        %v1075 = vmul.f32 %v947, %v1043
        %v1076 = vmul.f32 %v948, %v1044
        %v1077 = vmul.f32 %v949, %v1045
        %v1078 = vmul.f32 %v950, %v1046
        %v1079 = vmul.f32 %v951, %v1047
        %v1080 = vmul.f32 %v952, %v1048
        %v1081 = vmul.f32 %v953, %v1049
        %v1082 = vmul.f32 %v954, %v1050
        %v1083 = vmul.f32 %v955, %v1051
        %v1084 = vmul.f32 %v956, %v1052
        %v1085 = vmul.f32 %v957, %v1053
        %v1086 = vmul.f32 %v958, %v1054
        %v1087 = vmul.f32 %v959, %v1055
        %v1088 = vmul.f32 %v960, %v1056
        %v1089 = vmul.f32 %v961, %v1057
        %v1090 = vmul.f32 %v962, %v1058
        %v1091 = vmul.f32 %v963, %v1059
        %v1092 = vmul.f32 %v964, %v1060
        %v1093 = vmul.f32 %v965, %v1061
        %v1094 = vmul.f32 %v966, %v1062
        %v1095 = vmul.f32 %v967, %v1063
        %v1096 = vmul.f32 %v968, %v1064
        %v1097 = vmul.f32 %v969, %v1065
        %v1098 = vmul.f32 %v970, %v1066
        %v1099 = vld [vmem:[#allocation3] sm:$0xff]
        %v1100 = vld [vmem:[#allocation3 + $0x8] sm:$0xff]
        %v1101 = vld [vmem:[#allocation3 + $0x10] sm:$0xff]
        %v1102 = vld [vmem:[#allocation3 + $0x18] sm:$0xff]
        %v1103 = vld [vmem:[#allocation3 + $0x20] sm:$0xff]
        %v1104 = vld [vmem:[#allocation3 + $0x28] sm:$0xff]
        %v1105 = vld [vmem:[#allocation3 + $0x30] sm:$0xff]
        %v1106 = vld [vmem:[#allocation3 + $0x38] sm:$0xff]
        %v1107 = vld [vmem:[#allocation3 + $0x40] sm:$0xff]
        %v1108 = vld [vmem:[#allocation3 + $0x48] sm:$0xff]
        %v1109 = vld [vmem:[#allocation3 + $0x50] sm:$0xff]
        %v1110 = vld [vmem:[#allocation3 + $0x58] sm:$0xff]
        %v1111 = vld [vmem:[#allocation3 + $0x60] sm:$0xff]
        %v1112 = vld [vmem:[#allocation3 + $0x68] sm:$0xff]
        %v1113 = vld [vmem:[#allocation3 + $0x70] sm:$0xff]
        %v1114 = vld [vmem:[#allocation3 + $0x78] sm:$0xff]
        %v1115 = vld [vmem:[%s433] sm:$0xff]
        %v1116 = vld [vmem:[%s433 + $0x8] sm:$0xff]
        %v1117 = vld [vmem:[%s433 + $0x10] sm:$0xff]
        %v1118 = vld [vmem:[%s433 + $0x18] sm:$0xff]
        %v1119 = vld [vmem:[%s433 + $0x20] sm:$0xff]
        %v1120 = vld [vmem:[%s433 + $0x28] sm:$0xff]
        %v1121 = vld [vmem:[%s433 + $0x30] sm:$0xff]
        %v1122 = vld [vmem:[%s433 + $0x38] sm:$0xff]
        %v1123 = vld [vmem:[%s433 + $0x40] sm:$0xff]
        %v1124 = vld [vmem:[%s433 + $0x48] sm:$0xff]
        %v1125 = vld [vmem:[%s433 + $0x50] sm:$0xff]
        %v1126 = vld [vmem:[%s433 + $0x58] sm:$0xff]
        %v1127 = vld [vmem:[%s433 + $0x60] sm:$0xff]
        %v1128 = vld [vmem:[%s433 + $0x68] sm:$0xff]
        %v1129 = vld [vmem:[%s433 + $0x70] sm:$0xff]
        %v1130 = vld [vmem:[%s433 + $0x78] sm:$0xff]
        %v1131 = vld [vmem:[%s433 + $0x80] sm:$0xff]
        %v1132 = vld [vmem:[%s433 + $0x88] sm:$0xff]
        %v1133 = vld [vmem:[%s433 + $0x90] sm:$0xff]
        %v1134 = vld [vmem:[%s433 + $0x98] sm:$0xff]
        %v1135 = vld [vmem:[%s433 + $0xa0] sm:$0xff]
        %v1136 = vld [vmem:[%s433 + $0xa8] sm:$0xff]
        %v1137 = vld [vmem:[%s433 + $0xb0] sm:$0xff]
        %v1138 = vld [vmem:[%s433 + $0xb8] sm:$0xff]
        %v1139 = vld [vmem:[%s433 + $0xc0] sm:$0xff]
        %v1140 = vld [vmem:[%s433 + $0xc8] sm:$0xff]
        %v1141 = vld [vmem:[%s433 + $0xd0] sm:$0xff]
        %v1142 = vld [vmem:[%s433 + $0xd8] sm:$0xff]
        %v1143 = vld [vmem:[%s433 + $0xe0] sm:$0xff]
        %v1144 = vld [vmem:[%s433 + $0xe8] sm:$0xff]
        %v1145 = vld [vmem:[%s433 + $0xf0] sm:$0xff]
        %v1146 = vld [vmem:[%s433 + $0xf8] sm:$0xff]
        %1147 = vmatprep.subr.mxu0 0.0
        %1148 = vmatpush1.msra.mxu0 %v1115
        %1149 = vmatprep.subr.mxu0 0.0
        %1150 = vmatpush1.msra.mxu0 %v1116
        %1151 = vmatprep.subr.mxu0 0.0
        %1152 = vmatpush1.msra.mxu0 %v1117
        %1153 = vmatprep.subr.mxu0 0.0
        %1154 = vmatpush1.msra.mxu0 %v1118
        %1155 = vmatprep.subr.mxu0 0.0
        %1156 = vmatpush1.msra.mxu0 %v1119
        %1157 = vmatprep.subr.mxu0 0.0
        %1158 = vmatpush1.msra.mxu0 %v1120
        %1159 = vmatprep.subr.mxu0 0.0
        %1160 = vmatpush1.msra.mxu0 %v1121
        %1161 = vmatprep.subr.mxu0 0.0
        %1162 = vmatpush1.msra.mxu0 %v1122
        %1163 = vmatprep.subr.mxu0 0.0
        %1164 = vmatpush1.msra.mxu0 %v1123
        %1165 = vmatprep.subr.mxu0 0.0
        %1166 = vmatpush1.msra.mxu0 %v1124
        %1167 = vmatprep.subr.mxu0 0.0
        %1168 = vmatpush1.msra.mxu0 %v1125
        %1169 = vmatprep.subr.mxu0 0.0
        %1170 = vmatpush1.msra.mxu0 %v1126
        %1171 = vmatprep.subr.mxu0 0.0
        %1172 = vmatpush1.msra.mxu0 %v1127
        %1173 = vmatprep.subr.mxu0 0.0
        %1174 = vmatpush1.msra.mxu0 %v1128
        %1175 = vmatprep.subr.mxu0 0.0
        %1176 = vmatpush1.msra.mxu0 %v1129
        %1177 = vmatprep.subr.mxu0 0.0
        %1178 = vmatpush1.msra.mxu0 %v1130
        %1179 = vmatprep.subr.mxu0 0.0
        %1180 = vmatpush1.msra.mxu0 %v1131
        %1181 = vmatprep.subr.mxu0 0.0
        %1182 = vmatpush1.msra.mxu0 %v1132
        %1183 = vmatprep.subr.mxu0 0.0
        %1184 = vmatpush1.msra.mxu0 %v1133
        %1185 = vmatprep.subr.mxu0 0.0
        %1186 = vmatpush1.msra.mxu0 %v1134
        %1187 = vmatprep.subr.mxu0 0.0
        %1188 = vmatpush1.msra.mxu0 %v1135
        %1189 = vmatprep.subr.mxu0 0.0
        %1190 = vmatpush1.msra.mxu0 %v1136
        %1191 = vmatprep.subr.mxu0 0.0
        %1192 = vmatpush1.msra.mxu0 %v1137
        %1193 = vmatprep.subr.mxu0 0.0
        %1194 = vmatpush1.msra.mxu0 %v1138
        %1195 = vmatprep.subr.mxu0 0.0
        %1196 = vmatpush1.msra.mxu0 %v1139
        %1197 = vmatprep.subr.mxu0 0.0
        %1198 = vmatpush1.msra.mxu0 %v1140
        %1199 = vmatprep.subr.mxu0 0.0
        %1200 = vmatpush1.msra.mxu0 %v1141
        %1201 = vmatprep.subr.mxu0 0.0
        %1202 = vmatpush1.msra.mxu0 %v1142
        %1203 = vmatprep.subr.mxu0 0.0
        %1204 = vmatpush1.msra.mxu0 %v1143
        %1205 = vmatprep.subr.mxu0 0.0
        %1206 = vmatpush1.msra.mxu0 %v1144
        %1207 = vmatprep.subr.mxu0 0.0
        %1208 = vmatpush1.msra.mxu0 %v1145
        %1209 = vmatprep.subr.mxu0 0.0
        %1210 = vmatpush1.msra.mxu0 %v1146
        %1211 = vmatprep.mubr.f32.mxu0 %v1068
        %1212 = vmatmul.mubr.f32.gmra.mrb[0].mxu0 %v1067
        %v1213 = vpop.f32.mrb[0].mxu0
        %v1214 = vadd.f32 0.0, %v1213
        %v1215 = vpop.f32.mrb[0].mxu0
        %1216 = vmatprep.mubr.f32.mxu0 %v1070
        %1217 = vmatmul.mubr.f32.gmra.mrb[0].mxu0 %v1069
        %v1218 = vpop.f32.mrb[0].mxu0
        %v1219 = vadd.f32 0.0, %v1218
        %v1220 = vpop.f32.mrb[0].mxu0
        %1221 = vmatprep.mubr.f32.mxu0 %v1072
        %1222 = vmatmul.mubr.f32.gmra.mrb[0].mxu0 %v1071
        %v1223 = vpop.f32.mrb[0].mxu0
        %v1224 = vadd.f32 0.0, %v1223
        %v1225 = vpop.f32.mrb[0].mxu0
        %1226 = vmatprep.mubr.f32.mxu0 %v1074
        %1227 = vmatmul.mubr.f32.gmra.mrb[0].mxu0 %v1073
        %v1228 = vpop.f32.mrb[0].mxu0
        %v1229 = vadd.f32 0.0, %v1228
        %v1230 = vpop.f32.mrb[0].mxu0
        %1231 = vmatprep.mubr.f32.mxu0 %v1076
        %1232 = vmatmul.mubr.f32.gmra.mrb[0].mxu0 %v1075
        %v1233 = vpop.f32.mrb[0].mxu0
        %v1234 = vadd.f32 0.0, %v1233
        %v1235 = vpop.f32.mrb[0].mxu0
        %1236 = vmatprep.mubr.f32.mxu0 %v1078
        %1237 = vmatmul.mubr.f32.gmra.mrb[0].mxu0 %v1077
        %v1238 = vpop.f32.mrb[0].mxu0
        %v1239 = vadd.f32 0.0, %v1238
        %v1240 = vpop.f32.mrb[0].mxu0
        %1241 = vmatprep.mubr.f32.mxu0 %v1080
        %1242 = vmatmul.mubr.f32.gmra.mrb[0].mxu0 %v1079
        %v1243 = vpop.f32.mrb[0].mxu0
        %v1244 = vadd.f32 0.0, %v1243
        %v1245 = vpop.f32.mrb[0].mxu0
        %1246 = vmatprep.mubr.f32.mxu0 %v1082
        %1247 = vmatmul.mubr.f32.gmra.mrb[0].mxu0 %v1081
        %v1248 = vpop.f32.mrb[0].mxu0
        %v1249 = vadd.f32 0.0, %v1248
        %v1250 = vpop.f32.mrb[0].mxu0
        %1251 = vmatprep.mubr.f32.mxu0 %v1084
        %1252 = vmatmul.mubr.f32.gmra.mrb[0].mxu0 %v1083
        %v1253 = vpop.f32.mrb[0].mxu0
        %v1254 = vadd.f32 0.0, %v1253
        %v1255 = vpop.f32.mrb[0].mxu0
        %1256 = vmatprep.mubr.f32.mxu0 %v1086
        %1257 = vmatmul.mubr.f32.gmra.mrb[0].mxu0 %v1085
        %v1258 = vpop.f32.mrb[0].mxu0
        %v1259 = vadd.f32 0.0, %v1258
        %v1260 = vpop.f32.mrb[0].mxu0
        %1261 = vmatprep.mubr.f32.mxu0 %v1088
        %1262 = vmatmul.mubr.f32.gmra.mrb[0].mxu0 %v1087
        %v1263 = vpop.f32.mrb[0].mxu0
        %v1264 = vadd.f32 0.0, %v1263
        %v1265 = vpop.f32.mrb[0].mxu0
        %1266 = vmatprep.mubr.f32.mxu0 %v1090
        %1267 = vmatmul.mubr.f32.gmra.mrb[0].mxu0 %v1089
        %v1268 = vpop.f32.mrb[0].mxu0
        %v1269 = vadd.f32 0.0, %v1268
        %v1270 = vpop.f32.mrb[0].mxu0
        %1271 = vmatprep.mubr.f32.mxu0 %v1092
        %1272 = vmatmul.mubr.f32.gmra.mrb[0].mxu0 %v1091
        %v1273 = vpop.f32.mrb[0].mxu0
        %v1274 = vadd.f32 0.0, %v1273
        %v1275 = vpop.f32.mrb[0].mxu0
        %1276 = vmatprep.mubr.f32.mxu0 %v1094
        %1277 = vmatmul.mubr.f32.gmra.mrb[0].mxu0 %v1093
        %v1278 = vpop.f32.mrb[0].mxu0
        %v1279 = vadd.f32 0.0, %v1278
        %v1280 = vpop.f32.mrb[0].mxu0
        %1281 = vmatprep.mubr.f32.mxu0 %v1096
        %1282 = vmatmul.mubr.f32.gmra.mrb[0].mxu0 %v1095
        %v1283 = vpop.f32.mrb[0].mxu0
        %v1284 = vadd.f32 0.0, %v1283
        %v1285 = vpop.f32.mrb[0].mxu0
        %1286 = vmatprep.mubr.f32.mxu0 %v1098
        %1287 = vmatmul.mubr.f32.gmra.mrb[0].mxu0 %v1097
        %v1288 = vpop.f32.mrb[0].mxu0
        %v1289 = vadd.f32 0.0, %v1288
        %v1290 = vpop.f32.mrb[0].mxu0
        %1291 = vdwg.mxu0
        %v1292 = vadd.f32 %v1099, %v1214
        %v1293 = vadd.f32 %v1100, %v1219
        %v1294 = vadd.f32 %v1101, %v1224
        %v1295 = vadd.f32 %v1102, %v1229
        %v1296 = vadd.f32 %v1103, %v1234
        %v1297 = vadd.f32 %v1104, %v1239
        %v1298 = vadd.f32 %v1105, %v1244
        %v1299 = vadd.f32 %v1106, %v1249
        %v1300 = vadd.f32 %v1107, %v1254
        %v1301 = vadd.f32 %v1108, %v1259
        %v1302 = vadd.f32 %v1109, %v1264
        %v1303 = vadd.f32 %v1110, %v1269
        %v1304 = vadd.f32 %v1111, %v1274
        %v1305 = vadd.f32 %v1112, %v1279
        %v1306 = vadd.f32 %v1113, %v1284
        %v1307 = vadd.f32 %v1114, %v1289
        %1308 = vst [vmem:[#allocation3] sm:$0xff] %v1292
        %1309 = vst [vmem:[#allocation3 + $0x8] sm:$0xff] %v1293
        %1310 = vst [vmem:[#allocation3 + $0x10] sm:$0xff] %v1294
        %1311 = vst [vmem:[#allocation3 + $0x18] sm:$0xff] %v1295
        %1312 = vst [vmem:[#allocation3 + $0x20] sm:$0xff] %v1296
        %1313 = vst [vmem:[#allocation3 + $0x28] sm:$0xff] %v1297
        %1314 = vst [vmem:[#allocation3 + $0x30] sm:$0xff] %v1298
        %1315 = vst [vmem:[#allocation3 + $0x38] sm:$0xff] %v1299
        %1316 = vst [vmem:[#allocation3 + $0x40] sm:$0xff] %v1300
        %1317 = vst [vmem:[#allocation3 + $0x48] sm:$0xff] %v1301
        %1318 = vst [vmem:[#allocation3 + $0x50] sm:$0xff] %v1302
        %1319 = vst [vmem:[#allocation3 + $0x58] sm:$0xff] %v1303
        %1320 = vst [vmem:[#allocation3 + $0x60] sm:$0xff] %v1304
        %1321 = vst [vmem:[#allocation3 + $0x68] sm:$0xff] %v1305
        %1322 = vst [vmem:[#allocation3 + $0x70] sm:$0xff] %v1306
        %1323 = vst [vmem:[#allocation3 + $0x78] sm:$0xff] %v1307
        %p1324 = scmp.eq.s32.totalorder %s26, 1
        // Predicated region
        $region76: #{transformer_block.7} parent=66 // pred_check
          %p1325 = pneg %p1324
        $region77: #{transformer_block.7} parent=66 // pred_check_branch
          %1327 = sbr.rel (%p1325) target = $region79
        $region78: #{transformer_block.7} parent=66 // pred_region
          %v1328 = vld [vmem:[%s421] sm:$0xff]
          %v1329 = vld [vmem:[%s421 + $0x8] sm:$0xff]
          %v1330 = vld [vmem:[%s421 + $0x10] sm:$0xff]
          %v1331 = vld [vmem:[%s421 + $0x18] sm:$0xff]
          %v1332 = vld [vmem:[%s421 + $0x20] sm:$0xff]
          %v1333 = vld [vmem:[%s421 + $0x28] sm:$0xff]
          %v1334 = vld [vmem:[%s421 + $0x30] sm:$0xff]
          %v1335 = vld [vmem:[%s421 + $0x38] sm:$0xff]
          %v1336 = vld [vmem:[%s421 + $0x40] sm:$0xff]
          %v1337 = vld [vmem:[%s421 + $0x48] sm:$0xff]
          %v1338 = vld [vmem:[%s421 + $0x50] sm:$0xff]
          %v1339 = vld [vmem:[%s421 + $0x58] sm:$0xff]
          %v1340 = vld [vmem:[%s421 + $0x60] sm:$0xff]
          %v1341 = vld [vmem:[%s421 + $0x68] sm:$0xff]
          %v1342 = vld [vmem:[%s421 + $0x70] sm:$0xff]
          %v1343 = vld [vmem:[%s421 + $0x78] sm:$0xff]
          %v1344 = vld [vmem:[#allocation3] sm:$0xff]
          %v1345 = vld [vmem:[#allocation3 + $0x8] sm:$0xff]
          %v1346 = vld [vmem:[#allocation3 + $0x10] sm:$0xff]
          %v1347 = vld [vmem:[#allocation3 + $0x18] sm:$0xff]
          %v1348 = vld [vmem:[#allocation3 + $0x20] sm:$0xff]
          %v1349 = vld [vmem:[#allocation3 + $0x28] sm:$0xff]
          %v1350 = vld [vmem:[#allocation3 + $0x30] sm:$0xff]
          %v1351 = vld [vmem:[#allocation3 + $0x38] sm:$0xff]
          %v1352 = vld [vmem:[#allocation3 + $0x40] sm:$0xff]
          %v1353 = vld [vmem:[#allocation3 + $0x48] sm:$0xff]
          %v1354 = vld [vmem:[#allocation3 + $0x50] sm:$0xff]
          %v1355 = vld [vmem:[#allocation3 + $0x58] sm:$0xff]
          %v1356 = vld [vmem:[#allocation3 + $0x60] sm:$0xff]
          %v1357 = vld [vmem:[#allocation3 + $0x68] sm:$0xff]
          %v1358 = vld [vmem:[#allocation3 + $0x70] sm:$0xff]
          %v1359 = vld [vmem:[#allocation3 + $0x78] sm:$0xff]
          %v1360 = vadd.f32 %v1328, %v1344
          %v1361 = vadd.f32 %v1329, %v1345
          %v1362 = vadd.f32 %v1330, %v1346
          %v1363 = vadd.f32 %v1331, %v1347
          %v1364 = vadd.f32 %v1332, %v1348
          %v1365 = vadd.f32 %v1333, %v1349
          %v1366 = vadd.f32 %v1334, %v1350
          %v1367 = vadd.f32 %v1335, %v1351
          %v1368 = vadd.f32 %v1336, %v1352
          %v1369 = vadd.f32 %v1337, %v1353
          %v1370 = vadd.f32 %v1338, %v1354
          %v1371 = vadd.f32 %v1339, %v1355
          %v1372 = vadd.f32 %v1340, %v1356
          %v1373 = vadd.f32 %v1341, %v1357
          %v1374 = vadd.f32 %v1342, %v1358
          %v1375 = vadd.f32 %v1343, %v1359
          %1376 = vst [vmem:[%s416] sm:$0xff] %v1360
          %1377 = vst [vmem:[%s416 + $0x8] sm:$0xff] %v1361
          %1378 = vst [vmem:[%s416 + $0x10] sm:$0xff] %v1362
          %1379 = vst [vmem:[%s416 + $0x18] sm:$0xff] %v1363
          %1380 = vst [vmem:[%s416 + $0x20] sm:$0xff] %v1364
          %1381 = vst [vmem:[%s416 + $0x28] sm:$0xff] %v1365
          %1382 = vst [vmem:[%s416 + $0x30] sm:$0xff] %v1366
          %1383 = vst [vmem:[%s416 + $0x38] sm:$0xff] %v1367
          %1384 = vst [vmem:[%s416 + $0x40] sm:$0xff] %v1368
          %1385 = vst [vmem:[%s416 + $0x48] sm:$0xff] %v1369
          %1386 = vst [vmem:[%s416 + $0x50] sm:$0xff] %v1370
          %1387 = vst [vmem:[%s416 + $0x58] sm:$0xff] %v1371
          %1388 = vst [vmem:[%s416 + $0x60] sm:$0xff] %v1372
          %1389 = vst [vmem:[%s416 + $0x68] sm:$0xff] %v1373
          %1390 = vst [vmem:[%s416 + $0x70] sm:$0xff] %v1374
          %1391 = vst [vmem:[%s416 + $0x78] sm:$0xff] %v1375
        $region79: #{transformer_block.7} parent=66 // pred_fallthru
          _
        %s1392 = sand.u32 %s208, 1
        %s1393 = scalar_lea.sflag [#allocation6], %s1392
        %s1394 = sand.u32 %s208, 1
        %s1395 = smul.addr %s1394, 128
        %s1396 = scalar_lea.vmem [#allocation5], %s1395
        // Predicated region
        $region80: #{transformer_block.7} parent=66 // pred_check
          %p1397 = pneg %p218
        $region81: #{transformer_block.7} parent=66 // pred_check_branch
          %1399 = sbr.rel (%p1397) target = $region83
        $region82: #{transformer_block.7} parent=66 // pred_region
          %s1400 = smul.u32 16, %s25
          %s1402 = ssub.s32 2048, 2048
          %1403 = vsyncadd %s1393, %s1402
          %s1404 = smul.addr %s1400, 128
          %s1405 = scalar_lea.hbm %s7, %s1404
          %s1406 = sshll.u32 %s1396, 4
          %s1407 = int_to_ptr.vmem [resolvable:$true] %s1406
          %1412 = dma.vmem_to_hbm [thread:$0]  %s1407, 2048, %s1405, %s1393, 128, 128, 8
        $region83: #{transformer_block.7} parent=66 // pred_fallthru
          _
      $region67: #{transformer_block.7} parent=5 // pred_fallthru
        _
      %p1413 = scmp.le.s32.totalorder 2, %s16
      // Predicated region
      $region84: #{transformer_block.7} parent=5 // pred_check
        %p1414 = pneg %p1413
      $region85: #{transformer_block.7} parent=5 // pred_check_branch
        %1416 = sbr.rel (%p1414) target = $region87
      $region86: #{transformer_block.7} parent=5 // pred_region
        %s1417 = ssub.s32 %s16, 2
        // Predicated region
        $region88: #{transformer_block.7} parent=86 // pred_check
          %p1418 = pneg %p224
        $region89: #{transformer_block.7} parent=86 // pred_check_branch
          %1420 = sbr.rel (%p1418) target = $region91
        $region90: #{transformer_block.7} parent=86 // pred_region
          %s1421 = sand.u32 %s209, 1
          %s1422 = scalar_lea.sflag [#allocation6], %s1421
          %s1423 = sand.u32 %s209, 1
          %s1424 = smul.addr %s1423, 128
          %s1425 = scalar_lea.vmem [#allocation5], %s1424
          %1426 = dma.done %s1422, 2048
        $region91: #{transformer_block.7} parent=86 // pred_fallthru
          _
      $region87: #{transformer_block.7} parent=5 // pred_fallthru
        _
    $region6: #{transformer_block.7} parent=1 // loop_footer
      %s20 = sadd.s32 1, %s16
    $region7: #{transformer_block.7} parent=1 // loop_footer_branch
      %15 = sbr.rel target = $region3
    $region8: #{transformer_block.7} parent=1 // loop_exit
      _
    %1427 = vsyncpa [#allocation6], 1
    %s1428 = scalar_lea.sflag [#allocation6], 1
    %1429 = vsyncpa %s1428, 1

// kernel: transformer_block.5
$region0: #{transformer_block.5}
  #allocation0 [shape = 'u32[]', space=smem, size = 0x4, offset = 0x4, fixed_abs, tag = 'smem constant byte address 0x4 - core index']
  #allocation1 [shape = 'u32[144,128]{1,0:T(1,128)}', space=vmem, size = 0x12000, scoped, tag = 'internal scratch']
  %s0 = inlined_call_operand.vmem [shape: f32[2,8,128,16], index: 0, kind: input, shape index: {}]
  %s1 = inlined_call_operand.vmem [shape: f32[2,8,128,16], index: 1, kind: input, shape index: {}]
  %s2 = inlined_call_operand.vmem [shape: f32[2,8,128,16], index: 2, kind: input, shape index: {}]
  %s3 = inlined_call_operand.vmem [shape: f32[2,8,128,16], index: 3, kind: output, shape index: {}]
  %s4 = sld [smem:[#allocation0]]
  $region45: #{transformer_block.5} parent=0
    _
  %s6 = ssub.s32 1, %s4
  %s7 = scalar_select 0, %s6, %s4
  loop: start=0, step=1, limit=4
  $region2: #{transformer_block.5} parent=0 // loop_pre_header
    _
  $region3: #{transformer_block.5} parent=0 // loop_header
    %s9 = sphi 0, %s13
    %p10 = scmp.ge.s32.totalorder %s9, 4
    %s19 = sphi 0, %s21
    %s22 = sphi 0, %s19
    %s23 = sphi 0, %s22
    %s39 = sphi 0, %s23
    %s45 = sphi 0, %s47
    %s48 = sphi 0, %s45
    %s49 = sphi 0, %s48
    %s65 = sphi 0, %s49
    %s71 = sphi 0, %s73
    %s74 = sphi 0, %s71
    %s75 = sphi 0, %s74
    %s91 = sphi 0, %s75
    %s97 = sphi 0, %s99
    %s100 = sphi 0, %s97
    %s101 = sphi 0, %s100
    %s117 = sphi 0, %s101
  $region4: #{transformer_block.5} parent=0 // loop_header_branch
    %12 = sbr.rel (%p10) target = $region8
  $region5: #{transformer_block.5} parent=0 // loop_body
    %s14 = ssub.s32 %s9, 1
    %s15 = ssub.s32 %s9, 2
    %s16 = sadd.s32 %s9, 1
    %s17 = ssub.s32 %s9, %s16
    %p18 = scmp.eq.s32.totalorder %s17, 0
    %s20 = sadd.s32 %s19, 1
    %s21 = scalar_select %p18, %s19, %s20
    %p24 = pneg %p18
    %p25 = scmp.eq.s32.totalorder %s9, 1
    %p26 = por %p24, %p25
    %p27 = scmp.ne.s32.totalorder %s19, %s22
    %p28 = scmp.eq.s32.totalorder %s9, 0
    %p29 = por %p27, %p28
    %p30 = scmp.ne.s32.totalorder %s19, %s22
    %p31 = scmp.eq.s32.totalorder %s14, 1
    %p32 = por %p30, %p31
    %p33 = scmp.ne.s32.totalorder %s22, %s23
    %p34 = scmp.eq.s32.totalorder %s14, 0
    %p35 = por %p33, %p34
    %p36 = scmp.ne.s32.totalorder %s22, %s23
    %p37 = scmp.eq.s32.totalorder %s15, 1
    %p38 = por %p36, %p37
    %p40 = scmp.ne.s32.totalorder %s23, %s39
    %p41 = scmp.eq.s32.totalorder %s15, 0
    %p42 = por %p40, %p41
    %s43 = ssub.s32 %s9, %s16
    %p44 = scmp.eq.s32.totalorder %s43, 0
    %s46 = sadd.s32 %s45, 1
    %s47 = scalar_select %p44, %s45, %s46
    %p50 = pneg %p44
    %p51 = scmp.eq.s32.totalorder %s9, 1
    %p52 = por %p50, %p51
    %p53 = scmp.ne.s32.totalorder %s45, %s48
    %p54 = scmp.eq.s32.totalorder %s9, 0
    %p55 = por %p53, %p54
    %p56 = scmp.ne.s32.totalorder %s45, %s48
    %p57 = scmp.eq.s32.totalorder %s14, 1
    %p58 = por %p56, %p57
    %p59 = scmp.ne.s32.totalorder %s48, %s49
    %p60 = scmp.eq.s32.totalorder %s14, 0
    %p61 = por %p59, %p60
    %p62 = scmp.ne.s32.totalorder %s48, %s49
    %p63 = scmp.eq.s32.totalorder %s15, 1
    %p64 = por %p62, %p63
    %p66 = scmp.ne.s32.totalorder %s49, %s65
    %p67 = scmp.eq.s32.totalorder %s15, 0
    %p68 = por %p66, %p67
    %s69 = ssub.s32 %s9, %s16
    %p70 = scmp.eq.s32.totalorder %s69, 0
    %s72 = sadd.s32 %s71, 1
    %s73 = scalar_select %p70, %s71, %s72
    %p76 = pneg %p70
    %p77 = scmp.eq.s32.totalorder %s9, 1
    %p78 = por %p76, %p77
    %p79 = scmp.ne.s32.totalorder %s71, %s74
    %p80 = scmp.eq.s32.totalorder %s9, 0
    %p81 = por %p79, %p80
    %p82 = scmp.ne.s32.totalorder %s71, %s74
    %p83 = scmp.eq.s32.totalorder %s14, 1
    %p84 = por %p82, %p83
    %p85 = scmp.ne.s32.totalorder %s74, %s75
    %p86 = scmp.eq.s32.totalorder %s14, 0
    %p87 = por %p85, %p86
    %p88 = scmp.ne.s32.totalorder %s74, %s75
    %p89 = scmp.eq.s32.totalorder %s15, 1
    %p90 = por %p88, %p89
    %p92 = scmp.ne.s32.totalorder %s75, %s91
    %p93 = scmp.eq.s32.totalorder %s15, 0
    %p94 = por %p92, %p93
    %s95 = ssub.s32 %s9, %s16
    %p96 = scmp.eq.s32.totalorder %s95, 0
    %s98 = sadd.s32 %s97, 1
    %s99 = scalar_select %p96, %s97, %s98
    %p102 = pneg %p96
    %p103 = scmp.eq.s32.totalorder %s9, 1
    %p104 = por %p102, %p103
    %p105 = scmp.ne.s32.totalorder %s97, %s100
    %p106 = scmp.eq.s32.totalorder %s9, 0
    %p107 = por %p105, %p106
    %p108 = scmp.ne.s32.totalorder %s97, %s100
    %p109 = scmp.eq.s32.totalorder %s14, 1
    %p110 = por %p108, %p109
    %p111 = scmp.ne.s32.totalorder %s100, %s101
    %p112 = scmp.eq.s32.totalorder %s14, 0
    %p113 = por %p111, %p112
    %p114 = scmp.ne.s32.totalorder %s100, %s101
    %p115 = scmp.eq.s32.totalorder %s15, 1
    %p116 = por %p114, %p115
    %p118 = scmp.ne.s32.totalorder %s101, %s117
    %p119 = scmp.eq.s32.totalorder %s15, 0
    %p120 = por %p118, %p119
    %p121 = scmp.le.s32.totalorder 1, %s9
    %p122 = scmp.lt.s32.totalorder %s9, 3
    %p123 = pnand %p121, %p122
    %p124 = pneg %p123
    // Predicated region
    $region9: #{transformer_block.5} parent=5 // pred_check
      _
    $region10: #{transformer_block.5} parent=5 // pred_check_branch
      %126 = sbr.rel (%p123) target = $region12
    $region11: #{transformer_block.5} parent=5 // pred_region
      %s127 = ssub.s32 %s9, 1
    $region12: #{transformer_block.5} parent=5 // pred_fallthru
      _
    %p128 = scmp.lt.s32.totalorder %s9, 2
    // Predicated region
    $region13: #{transformer_block.5} parent=5 // pred_check
      %p129 = pneg %p128
    $region14: #{transformer_block.5} parent=5 // pred_check_branch
      %131 = sbr.rel (%p129) target = $region16
    $region15: #{transformer_block.5} parent=5 // pred_region
      // Predicated region
      $region17: #{transformer_block.5} parent=15 // pred_check
        %p132 = pneg %p29
      $region18: #{transformer_block.5} parent=15 // pred_check_branch
        %134 = sbr.rel (%p132) target = $region20
      $region19: #{transformer_block.5} parent=15 // pred_region
        %p135 = scmp.lt.s32.totalorder %s9, 1
        %s136 = scalar_select %p135, %s9, 1
        %s137 = smul.addr %s136, 128
        %s138 = smul.addr %s137, 8
        %s139 = scalar_lea.vmem %s0, %s138
      $region20: #{transformer_block.5} parent=15 // pred_fallthru
        _
      // Predicated region
      $region21: #{transformer_block.5} parent=15 // pred_check
        %p140 = pneg %p55
      $region22: #{transformer_block.5} parent=15 // pred_check_branch
        %142 = sbr.rel (%p140) target = $region24
      $region23: #{transformer_block.5} parent=15 // pred_region
        %p143 = scmp.lt.s32.totalorder %s9, 1
        %s144 = scalar_select %p143, %s9, 1
        %s145 = smul.addr %s144, 128
        %s146 = smul.addr %s145, 8
        %s147 = scalar_lea.vmem %s1, %s146
      $region24: #{transformer_block.5} parent=15 // pred_fallthru
        _
      // Predicated region
      $region25: #{transformer_block.5} parent=15 // pred_check
        %p148 = pneg %p81
      $region26: #{transformer_block.5} parent=15 // pred_check_branch
        %150 = sbr.rel (%p148) target = $region28
      $region27: #{transformer_block.5} parent=15 // pred_region
        %p151 = scmp.lt.s32.totalorder %s9, 1
        %s152 = scalar_select %p151, %s9, 1
        %s153 = smul.addr %s152, 128
        %s154 = smul.addr %s153, 8
        %s155 = scalar_lea.vmem %s2, %s154
      $region28: #{transformer_block.5} parent=15 // pred_fallthru
        _
    $region16: #{transformer_block.5} parent=5 // pred_fallthru
      _
    %p156 = scmp.le.s32.totalorder 1, %s9
    %p157 = scmp.lt.s32.totalorder %s9, 3
    %p158 = pnand %p156, %p157
    %p159 = pneg %p158
    // Predicated region
    $region29: #{transformer_block.5} parent=5 // pred_check
      _
    $region30: #{transformer_block.5} parent=5 // pred_check_branch
      %161 = sbr.rel (%p158) target = $region32
    $region31: #{transformer_block.5} parent=5 // pred_region
      %s162 = ssub.s32 %s9, 1
      %p163 = scmp.lt.s32.totalorder %s14, 1
      %s164 = scalar_select %p163, %s14, 1
      %s165 = smul.addr %s164, 128
      %s166 = smul.addr %s165, 8
      %s167 = scalar_lea.vmem %s0, %s166
      %p168 = pneg %p35
      %p169 = pneg %p32
      %p170 = scmp.lt.s32.totalorder %s14, 1
      %s171 = scalar_select %p170, %s14, 1
      %s172 = smul.addr %s171, 128
      %s173 = smul.addr %s172, 8
      %s174 = scalar_lea.vmem %s1, %s173
      %p175 = pneg %p61
      %p176 = pneg %p58
      %p177 = scmp.lt.s32.totalorder %s14, 1
      %s178 = scalar_select %p177, %s14, 1
      %s179 = smul.addr %s178, 128
      %s180 = smul.addr %s179, 8
      %s181 = scalar_lea.vmem %s2, %s180
      %p182 = pneg %p87
      %p183 = pneg %p84
      %p184 = pneg %p113
      %p185 = pneg %p110
      %p186 = scmp.lt.s32.totalorder %s14, 1
      %s187 = scalar_select %p186, %s14, 1
      %s188 = smul.addr %s187, 128
      %s189 = smul.addr %s188, 8
      %s190 = scalar_lea.vmem %s3, %s189
      %p191 = scmp.lt.s32.totalorder %s14, 1
      %s192 = scalar_select %p191, %s14, 1
      %s193 = smul.addr %s192, 128
      %s194 = smul.addr %s193, 8
      %s195 = scalar_lea.vmem %s0, %s194
      %p196 = scmp.lt.s32.totalorder %s14, 1
      %s197 = scalar_select %p196, %s14, 1
      %s198 = smul.addr %s197, 128
      %s199 = smul.addr %s198, 8
      %s200 = scalar_lea.vmem %s1, %s199
      %p201 = scmp.lt.s32.totalorder %s14, 1
      %s202 = scalar_select %p201, %s14, 1
      %s203 = smul.addr %s202, 128
      %s204 = smul.addr %s203, 8
      %s205 = scalar_lea.vmem %s2, %s204
      %p206 = scmp.lt.s32.totalorder %s14, 1
      %s207 = scalar_select %p206, %s14, 1
      %s208 = smul.addr %s207, 128
      %s209 = smul.addr %s208, 8
      %s210 = scalar_lea.vmem %s3, %s209
      %v211 = vld [vmem:[%s195] sm:$0xff]
      %v212 = vld [vmem:[%s195 + $0x8] sm:$0xff]
      %v213 = vld [vmem:[%s195 + $0x10] sm:$0xff]
      %v214 = vld [vmem:[%s195 + $0x18] sm:$0xff]
      %v215 = vld [vmem:[%s195 + $0x20] sm:$0xff]
      %v216 = vld [vmem:[%s195 + $0x28] sm:$0xff]
      %v217 = vld [vmem:[%s195 + $0x30] sm:$0xff]
      %v218 = vld [vmem:[%s195 + $0x38] sm:$0xff]
      %v219 = vld [vmem:[%s195 + $0x40] sm:$0xff]
      %v220 = vld [vmem:[%s195 + $0x48] sm:$0xff]
      %v221 = vld [vmem:[%s195 + $0x50] sm:$0xff]
      %v222 = vld [vmem:[%s195 + $0x58] sm:$0xff]
      %v223 = vld [vmem:[%s195 + $0x60] sm:$0xff]
      %v224 = vld [vmem:[%s195 + $0x68] sm:$0xff]
      %v225 = vld [vmem:[%s195 + $0x70] sm:$0xff]
      %v226 = vld [vmem:[%s195 + $0x78] sm:$0xff]
      %v227 = vld [vmem:[%s195 + $0x80] sm:$0xff]
      %v228 = vld [vmem:[%s195 + $0x88] sm:$0xff]
      %v229 = vld [vmem:[%s195 + $0x90] sm:$0xff]
      %v230 = vld [vmem:[%s195 + $0x98] sm:$0xff]
      %v231 = vld [vmem:[%s195 + $0xa0] sm:$0xff]
      %v232 = vld [vmem:[%s195 + $0xa8] sm:$0xff]
      %v233 = vld [vmem:[%s195 + $0xb0] sm:$0xff]
      %v234 = vld [vmem:[%s195 + $0xb8] sm:$0xff]
      %v235 = vld [vmem:[%s195 + $0xc0] sm:$0xff]
      %v236 = vld [vmem:[%s195 + $0xc8] sm:$0xff]
      %v237 = vld [vmem:[%s195 + $0xd0] sm:$0xff]
      %v238 = vld [vmem:[%s195 + $0xd8] sm:$0xff]
      %v239 = vld [vmem:[%s195 + $0xe0] sm:$0xff]
      %v240 = vld [vmem:[%s195 + $0xe8] sm:$0xff]
      %v241 = vld [vmem:[%s195 + $0xf0] sm:$0xff]
      %v242 = vld [vmem:[%s195 + $0xf8] sm:$0xff]
      %v243 = vld [vmem:[%s195 + $0x100] sm:$0xff]
      %v244 = vld [vmem:[%s195 + $0x108] sm:$0xff]
      %v245 = vld [vmem:[%s195 + $0x110] sm:$0xff]
      %v246 = vld [vmem:[%s195 + $0x118] sm:$0xff]
      %v247 = vld [vmem:[%s195 + $0x120] sm:$0xff]
      %v248 = vld [vmem:[%s195 + $0x128] sm:$0xff]
      %v249 = vld [vmem:[%s195 + $0x130] sm:$0xff]
      %v250 = vld [vmem:[%s195 + $0x138] sm:$0xff]
      %v251 = vld [vmem:[%s195 + $0x140] sm:$0xff]
      %v252 = vld [vmem:[%s195 + $0x148] sm:$0xff]
      %v253 = vld [vmem:[%s195 + $0x150] sm:$0xff]
      %v254 = vld [vmem:[%s195 + $0x158] sm:$0xff]
      %v255 = vld [vmem:[%s195 + $0x160] sm:$0xff]
      %v256 = vld [vmem:[%s195 + $0x168] sm:$0xff]
      %v257 = vld [vmem:[%s195 + $0x170] sm:$0xff]
      %v258 = vld [vmem:[%s195 + $0x178] sm:$0xff]
      %v259 = vld [vmem:[%s195 + $0x180] sm:$0xff]
      %v260 = vld [vmem:[%s195 + $0x188] sm:$0xff]
      %v261 = vld [vmem:[%s195 + $0x190] sm:$0xff]
      %v262 = vld [vmem:[%s195 + $0x198] sm:$0xff]
      %v263 = vld [vmem:[%s195 + $0x1a0] sm:$0xff]
      %v264 = vld [vmem:[%s195 + $0x1a8] sm:$0xff]
      %v265 = vld [vmem:[%s195 + $0x1b0] sm:$0xff]
      %v266 = vld [vmem:[%s195 + $0x1b8] sm:$0xff]
      %v267 = vld [vmem:[%s195 + $0x1c0] sm:$0xff]
      %v268 = vld [vmem:[%s195 + $0x1c8] sm:$0xff]
      %v269 = vld [vmem:[%s195 + $0x1d0] sm:$0xff]
      %v270 = vld [vmem:[%s195 + $0x1d8] sm:$0xff]
      %v271 = vld [vmem:[%s195 + $0x1e0] sm:$0xff]
      %v272 = vld [vmem:[%s195 + $0x1e8] sm:$0xff]
      %v273 = vld [vmem:[%s195 + $0x1f0] sm:$0xff]
      %v274 = vld [vmem:[%s195 + $0x1f8] sm:$0xff]
      %v275 = vld [vmem:[%s195 + $0x200] sm:$0xff]
      %v276 = vld [vmem:[%s195 + $0x208] sm:$0xff]
      %v277 = vld [vmem:[%s195 + $0x210] sm:$0xff]
      %v278 = vld [vmem:[%s195 + $0x218] sm:$0xff]
      %v279 = vld [vmem:[%s195 + $0x220] sm:$0xff]
      %v280 = vld [vmem:[%s195 + $0x228] sm:$0xff]
      %v281 = vld [vmem:[%s195 + $0x230] sm:$0xff]
      %v282 = vld [vmem:[%s195 + $0x238] sm:$0xff]
      %v283 = vld [vmem:[%s195 + $0x240] sm:$0xff]
      %v284 = vld [vmem:[%s195 + $0x248] sm:$0xff]
      %v285 = vld [vmem:[%s195 + $0x250] sm:$0xff]
      %v286 = vld [vmem:[%s195 + $0x258] sm:$0xff]
      %v287 = vld [vmem:[%s195 + $0x260] sm:$0xff]
      %v288 = vld [vmem:[%s195 + $0x268] sm:$0xff]
      %v289 = vld [vmem:[%s195 + $0x270] sm:$0xff]
      %v290 = vld [vmem:[%s195 + $0x278] sm:$0xff]
      %v291 = vld [vmem:[%s195 + $0x280] sm:$0xff]
      %v292 = vld [vmem:[%s195 + $0x288] sm:$0xff]
      %v293 = vld [vmem:[%s195 + $0x290] sm:$0xff]
      %v294 = vld [vmem:[%s195 + $0x298] sm:$0xff]
      %v295 = vld [vmem:[%s195 + $0x2a0] sm:$0xff]
      %v296 = vld [vmem:[%s195 + $0x2a8] sm:$0xff]
      %v297 = vld [vmem:[%s195 + $0x2b0] sm:$0xff]
      %v298 = vld [vmem:[%s195 + $0x2b8] sm:$0xff]
      %v299 = vld [vmem:[%s195 + $0x2c0] sm:$0xff]
      %v300 = vld [vmem:[%s195 + $0x2c8] sm:$0xff]
      %v301 = vld [vmem:[%s195 + $0x2d0] sm:$0xff]
      %v302 = vld [vmem:[%s195 + $0x2d8] sm:$0xff]
      %v303 = vld [vmem:[%s195 + $0x2e0] sm:$0xff]
      %v304 = vld [vmem:[%s195 + $0x2e8] sm:$0xff]
      %v305 = vld [vmem:[%s195 + $0x2f0] sm:$0xff]
      %v306 = vld [vmem:[%s195 + $0x2f8] sm:$0xff]
      %v307 = vld [vmem:[%s195 + $0x300] sm:$0xff]
      %v308 = vld [vmem:[%s195 + $0x308] sm:$0xff]
      %v309 = vld [vmem:[%s195 + $0x310] sm:$0xff]
      %v310 = vld [vmem:[%s195 + $0x318] sm:$0xff]
      %v311 = vld [vmem:[%s195 + $0x320] sm:$0xff]
      %v312 = vld [vmem:[%s195 + $0x328] sm:$0xff]
      %v313 = vld [vmem:[%s195 + $0x330] sm:$0xff]
      %v314 = vld [vmem:[%s195 + $0x338] sm:$0xff]
      %v315 = vld [vmem:[%s195 + $0x340] sm:$0xff]
      %v316 = vld [vmem:[%s195 + $0x348] sm:$0xff]
      %v317 = vld [vmem:[%s195 + $0x350] sm:$0xff]
      %v318 = vld [vmem:[%s195 + $0x358] sm:$0xff]
      %v319 = vld [vmem:[%s195 + $0x360] sm:$0xff]
      %v320 = vld [vmem:[%s195 + $0x368] sm:$0xff]
      %v321 = vld [vmem:[%s195 + $0x370] sm:$0xff]
      %v322 = vld [vmem:[%s195 + $0x378] sm:$0xff]
      %v323 = vld [vmem:[%s195 + $0x380] sm:$0xff]
      %v324 = vld [vmem:[%s195 + $0x388] sm:$0xff]
      %v325 = vld [vmem:[%s195 + $0x390] sm:$0xff]
      %v326 = vld [vmem:[%s195 + $0x398] sm:$0xff]
      %v327 = vld [vmem:[%s195 + $0x3a0] sm:$0xff]
      %v328 = vld [vmem:[%s195 + $0x3a8] sm:$0xff]
      %v329 = vld [vmem:[%s195 + $0x3b0] sm:$0xff]
      %v330 = vld [vmem:[%s195 + $0x3b8] sm:$0xff]
      %v331 = vld [vmem:[%s195 + $0x3c0] sm:$0xff]
      %v332 = vld [vmem:[%s195 + $0x3c8] sm:$0xff]
      %v333 = vld [vmem:[%s195 + $0x3d0] sm:$0xff]
      %v334 = vld [vmem:[%s195 + $0x3d8] sm:$0xff]
      %v335 = vld [vmem:[%s195 + $0x3e0] sm:$0xff]
      %v336 = vld [vmem:[%s195 + $0x3e8] sm:$0xff]
      %v337 = vld [vmem:[%s195 + $0x3f0] sm:$0xff]
      %v338 = vld [vmem:[%s195 + $0x3f8] sm:$0xff]
      %v339 = vld [vmem:[%s200] sm:$0xff]
      %v340 = vld [vmem:[%s200 + $0x8] sm:$0xff]
      %v341 = vld [vmem:[%s200 + $0x10] sm:$0xff]
      %v342 = vld [vmem:[%s200 + $0x18] sm:$0xff]
      %v343 = vld [vmem:[%s200 + $0x20] sm:$0xff]
      %v344 = vld [vmem:[%s200 + $0x28] sm:$0xff]
      %v345 = vld [vmem:[%s200 + $0x30] sm:$0xff]
      %v346 = vld [vmem:[%s200 + $0x38] sm:$0xff]
      %v347 = vld [vmem:[%s200 + $0x40] sm:$0xff]
      %v348 = vld [vmem:[%s200 + $0x48] sm:$0xff]
      %v349 = vld [vmem:[%s200 + $0x50] sm:$0xff]
      %v350 = vld [vmem:[%s200 + $0x58] sm:$0xff]
      %v351 = vld [vmem:[%s200 + $0x60] sm:$0xff]
      %v352 = vld [vmem:[%s200 + $0x68] sm:$0xff]
      %v353 = vld [vmem:[%s200 + $0x70] sm:$0xff]
      %v354 = vld [vmem:[%s200 + $0x78] sm:$0xff]
      %v355 = vld [vmem:[%s200 + $0x80] sm:$0xff]
      %v356 = vld [vmem:[%s200 + $0x88] sm:$0xff]
      %v357 = vld [vmem:[%s200 + $0x90] sm:$0xff]
      %v358 = vld [vmem:[%s200 + $0x98] sm:$0xff]
      %v359 = vld [vmem:[%s200 + $0xa0] sm:$0xff]
      %v360 = vld [vmem:[%s200 + $0xa8] sm:$0xff]
      %v361 = vld [vmem:[%s200 + $0xb0] sm:$0xff]
      %v362 = vld [vmem:[%s200 + $0xb8] sm:$0xff]
      %v363 = vld [vmem:[%s200 + $0xc0] sm:$0xff]
      %v364 = vld [vmem:[%s200 + $0xc8] sm:$0xff]
      %v365 = vld [vmem:[%s200 + $0xd0] sm:$0xff]
      %v366 = vld [vmem:[%s200 + $0xd8] sm:$0xff]
      %v367 = vld [vmem:[%s200 + $0xe0] sm:$0xff]
      %v368 = vld [vmem:[%s200 + $0xe8] sm:$0xff]
      %v369 = vld [vmem:[%s200 + $0xf0] sm:$0xff]
      %v370 = vld [vmem:[%s200 + $0xf8] sm:$0xff]
      %v371 = vld [vmem:[%s200 + $0x100] sm:$0xff]
      %v372 = vld [vmem:[%s200 + $0x108] sm:$0xff]
      %v373 = vld [vmem:[%s200 + $0x110] sm:$0xff]
      %v374 = vld [vmem:[%s200 + $0x118] sm:$0xff]
      %v375 = vld [vmem:[%s200 + $0x120] sm:$0xff]
      %v376 = vld [vmem:[%s200 + $0x128] sm:$0xff]
      %v377 = vld [vmem:[%s200 + $0x130] sm:$0xff]
      %v378 = vld [vmem:[%s200 + $0x138] sm:$0xff]
      %v379 = vld [vmem:[%s200 + $0x140] sm:$0xff]
      %v380 = vld [vmem:[%s200 + $0x148] sm:$0xff]
      %v381 = vld [vmem:[%s200 + $0x150] sm:$0xff]
      %v382 = vld [vmem:[%s200 + $0x158] sm:$0xff]
      %v383 = vld [vmem:[%s200 + $0x160] sm:$0xff]
      %v384 = vld [vmem:[%s200 + $0x168] sm:$0xff]
      %v385 = vld [vmem:[%s200 + $0x170] sm:$0xff]
      %v386 = vld [vmem:[%s200 + $0x178] sm:$0xff]
      %v387 = vld [vmem:[%s200 + $0x180] sm:$0xff]
      %v388 = vld [vmem:[%s200 + $0x188] sm:$0xff]
      %v389 = vld [vmem:[%s200 + $0x190] sm:$0xff]
      %v390 = vld [vmem:[%s200 + $0x198] sm:$0xff]
      %v391 = vld [vmem:[%s200 + $0x1a0] sm:$0xff]
      %v392 = vld [vmem:[%s200 + $0x1a8] sm:$0xff]
      %v393 = vld [vmem:[%s200 + $0x1b0] sm:$0xff]
      %v394 = vld [vmem:[%s200 + $0x1b8] sm:$0xff]
      %v395 = vld [vmem:[%s200 + $0x1c0] sm:$0xff]
      %v396 = vld [vmem:[%s200 + $0x1c8] sm:$0xff]
      %v397 = vld [vmem:[%s200 + $0x1d0] sm:$0xff]
      %v398 = vld [vmem:[%s200 + $0x1d8] sm:$0xff]
      %v399 = vld [vmem:[%s200 + $0x1e0] sm:$0xff]
      %v400 = vld [vmem:[%s200 + $0x1e8] sm:$0xff]
      %v401 = vld [vmem:[%s200 + $0x1f0] sm:$0xff]
      %v402 = vld [vmem:[%s200 + $0x1f8] sm:$0xff]
      %v403 = vld [vmem:[%s200 + $0x200] sm:$0xff]
      %v404 = vld [vmem:[%s200 + $0x208] sm:$0xff]
      %v405 = vld [vmem:[%s200 + $0x210] sm:$0xff]
      %v406 = vld [vmem:[%s200 + $0x218] sm:$0xff]
      %v407 = vld [vmem:[%s200 + $0x220] sm:$0xff]
      %v408 = vld [vmem:[%s200 + $0x228] sm:$0xff]
      %v409 = vld [vmem:[%s200 + $0x230] sm:$0xff]
      %v410 = vld [vmem:[%s200 + $0x238] sm:$0xff]
      %v411 = vld [vmem:[%s200 + $0x240] sm:$0xff]
      %v412 = vld [vmem:[%s200 + $0x248] sm:$0xff]
      %v413 = vld [vmem:[%s200 + $0x250] sm:$0xff]
      %v414 = vld [vmem:[%s200 + $0x258] sm:$0xff]
      %v415 = vld [vmem:[%s200 + $0x260] sm:$0xff]
      %v416 = vld [vmem:[%s200 + $0x268] sm:$0xff]
      %v417 = vld [vmem:[%s200 + $0x270] sm:$0xff]
      %v418 = vld [vmem:[%s200 + $0x278] sm:$0xff]
      %v419 = vld [vmem:[%s200 + $0x280] sm:$0xff]
      %v420 = vld [vmem:[%s200 + $0x288] sm:$0xff]
      %v421 = vld [vmem:[%s200 + $0x290] sm:$0xff]
      %v422 = vld [vmem:[%s200 + $0x298] sm:$0xff]
      %v423 = vld [vmem:[%s200 + $0x2a0] sm:$0xff]
      %v424 = vld [vmem:[%s200 + $0x2a8] sm:$0xff]
      %v425 = vld [vmem:[%s200 + $0x2b0] sm:$0xff]
      %v426 = vld [vmem:[%s200 + $0x2b8] sm:$0xff]
      %v427 = vld [vmem:[%s200 + $0x2c0] sm:$0xff]
      %v428 = vld [vmem:[%s200 + $0x2c8] sm:$0xff]
      %v429 = vld [vmem:[%s200 + $0x2d0] sm:$0xff]
      %v430 = vld [vmem:[%s200 + $0x2d8] sm:$0xff]
      %v431 = vld [vmem:[%s200 + $0x2e0] sm:$0xff]
      %v432 = vld [vmem:[%s200 + $0x2e8] sm:$0xff]
      %v433 = vld [vmem:[%s200 + $0x2f0] sm:$0xff]
      %v434 = vld [vmem:[%s200 + $0x2f8] sm:$0xff]
      %v435 = vld [vmem:[%s200 + $0x300] sm:$0xff]
      %v436 = vld [vmem:[%s200 + $0x308] sm:$0xff]
      %v437 = vld [vmem:[%s200 + $0x310] sm:$0xff]
      %v438 = vld [vmem:[%s200 + $0x318] sm:$0xff]
      %v439 = vld [vmem:[%s200 + $0x320] sm:$0xff]
      %v440 = vld [vmem:[%s200 + $0x328] sm:$0xff]
      %v441 = vld [vmem:[%s200 + $0x330] sm:$0xff]
      %v442 = vld [vmem:[%s200 + $0x338] sm:$0xff]
      %v443 = vld [vmem:[%s200 + $0x340] sm:$0xff]
      %v444 = vld [vmem:[%s200 + $0x348] sm:$0xff]
      %v445 = vld [vmem:[%s200 + $0x350] sm:$0xff]
      %v446 = vld [vmem:[%s200 + $0x358] sm:$0xff]
      %v447 = vld [vmem:[%s200 + $0x360] sm:$0xff]
      %v448 = vld [vmem:[%s200 + $0x368] sm:$0xff]
      %v449 = vld [vmem:[%s200 + $0x370] sm:$0xff]
      %v450 = vld [vmem:[%s200 + $0x378] sm:$0xff]
      %v451 = vld [vmem:[%s200 + $0x380] sm:$0xff]
      %v452 = vld [vmem:[%s200 + $0x388] sm:$0xff]
      %v453 = vld [vmem:[%s200 + $0x390] sm:$0xff]
      %v454 = vld [vmem:[%s200 + $0x398] sm:$0xff]
      %v455 = vld [vmem:[%s200 + $0x3a0] sm:$0xff]
      %v456 = vld [vmem:[%s200 + $0x3a8] sm:$0xff]
      %v457 = vld [vmem:[%s200 + $0x3b0] sm:$0xff]
      %v458 = vld [vmem:[%s200 + $0x3b8] sm:$0xff]
      %v459 = vld [vmem:[%s200 + $0x3c0] sm:$0xff]
      %v460 = vld [vmem:[%s200 + $0x3c8] sm:$0xff]
      %v461 = vld [vmem:[%s200 + $0x3d0] sm:$0xff]
      %v462 = vld [vmem:[%s200 + $0x3d8] sm:$0xff]
      %v463 = vld [vmem:[%s200 + $0x3e0] sm:$0xff]
      %v464 = vld [vmem:[%s200 + $0x3e8] sm:$0xff]
      %v465 = vld [vmem:[%s200 + $0x3f0] sm:$0xff]
      %v466 = vld [vmem:[%s200 + $0x3f8] sm:$0xff]
      %v467 = vld [vmem:[%s205] sm:$0xff]
      %v468 = vld [vmem:[%s205 + $0x8] sm:$0xff]
      %v469 = vld [vmem:[%s205 + $0x10] sm:$0xff]
      %v470 = vld [vmem:[%s205 + $0x18] sm:$0xff]
      %v471 = vld [vmem:[%s205 + $0x20] sm:$0xff]
      %v472 = vld [vmem:[%s205 + $0x28] sm:$0xff]
      %v473 = vld [vmem:[%s205 + $0x30] sm:$0xff]
      %v474 = vld [vmem:[%s205 + $0x38] sm:$0xff]
      %v475 = vld [vmem:[%s205 + $0x40] sm:$0xff]
      %v476 = vld [vmem:[%s205 + $0x48] sm:$0xff]
      %v477 = vld [vmem:[%s205 + $0x50] sm:$0xff]
      %v478 = vld [vmem:[%s205 + $0x58] sm:$0xff]
      %v479 = vld [vmem:[%s205 + $0x60] sm:$0xff]
      %v480 = vld [vmem:[%s205 + $0x68] sm:$0xff]
      %v481 = vld [vmem:[%s205 + $0x70] sm:$0xff]
      %v482 = vld [vmem:[%s205 + $0x78] sm:$0xff]
      %v483 = vld [vmem:[%s205 + $0x80] sm:$0xff]
      %v484 = vld [vmem:[%s205 + $0x88] sm:$0xff]
      %v485 = vld [vmem:[%s205 + $0x90] sm:$0xff]
      %v486 = vld [vmem:[%s205 + $0x98] sm:$0xff]
      %v487 = vld [vmem:[%s205 + $0xa0] sm:$0xff]
      %v488 = vld [vmem:[%s205 + $0xa8] sm:$0xff]
      %v489 = vld [vmem:[%s205 + $0xb0] sm:$0xff]
      %v490 = vld [vmem:[%s205 + $0xb8] sm:$0xff]
      %v491 = vld [vmem:[%s205 + $0xc0] sm:$0xff]
      %v492 = vld [vmem:[%s205 + $0xc8] sm:$0xff]
      %v493 = vld [vmem:[%s205 + $0xd0] sm:$0xff]
      %v494 = vld [vmem:[%s205 + $0xd8] sm:$0xff]
      %v495 = vld [vmem:[%s205 + $0xe0] sm:$0xff]
      %v496 = vld [vmem:[%s205 + $0xe8] sm:$0xff]
      %v497 = vld [vmem:[%s205 + $0xf0] sm:$0xff]
      %v498 = vld [vmem:[%s205 + $0xf8] sm:$0xff]
      %v499 = vld [vmem:[%s205 + $0x100] sm:$0xff]
      %v500 = vld [vmem:[%s205 + $0x108] sm:$0xff]
      %v501 = vld [vmem:[%s205 + $0x110] sm:$0xff]
      %v502 = vld [vmem:[%s205 + $0x118] sm:$0xff]
      %v503 = vld [vmem:[%s205 + $0x120] sm:$0xff]
      %v504 = vld [vmem:[%s205 + $0x128] sm:$0xff]
      %v505 = vld [vmem:[%s205 + $0x130] sm:$0xff]
      %v506 = vld [vmem:[%s205 + $0x138] sm:$0xff]
      %v507 = vld [vmem:[%s205 + $0x140] sm:$0xff]
      %v508 = vld [vmem:[%s205 + $0x148] sm:$0xff]
      %v509 = vld [vmem:[%s205 + $0x150] sm:$0xff]
      %v510 = vld [vmem:[%s205 + $0x158] sm:$0xff]
      %v511 = vld [vmem:[%s205 + $0x160] sm:$0xff]
      %v512 = vld [vmem:[%s205 + $0x168] sm:$0xff]
      %v513 = vld [vmem:[%s205 + $0x170] sm:$0xff]
      %v514 = vld [vmem:[%s205 + $0x178] sm:$0xff]
      %v515 = vld [vmem:[%s205 + $0x180] sm:$0xff]
      %v516 = vld [vmem:[%s205 + $0x188] sm:$0xff]
      %v517 = vld [vmem:[%s205 + $0x190] sm:$0xff]
      %v518 = vld [vmem:[%s205 + $0x198] sm:$0xff]
      %v519 = vld [vmem:[%s205 + $0x1a0] sm:$0xff]
      %v520 = vld [vmem:[%s205 + $0x1a8] sm:$0xff]
      %v521 = vld [vmem:[%s205 + $0x1b0] sm:$0xff]
      %v522 = vld [vmem:[%s205 + $0x1b8] sm:$0xff]
      %v523 = vld [vmem:[%s205 + $0x1c0] sm:$0xff]
      %v524 = vld [vmem:[%s205 + $0x1c8] sm:$0xff]
      %v525 = vld [vmem:[%s205 + $0x1d0] sm:$0xff]
      %v526 = vld [vmem:[%s205 + $0x1d8] sm:$0xff]
      %v527 = vld [vmem:[%s205 + $0x1e0] sm:$0xff]
      %v528 = vld [vmem:[%s205 + $0x1e8] sm:$0xff]
      %v529 = vld [vmem:[%s205 + $0x1f0] sm:$0xff]
      %v530 = vld [vmem:[%s205 + $0x1f8] sm:$0xff]
      %v531 = vld [vmem:[%s205 + $0x200] sm:$0xff]
      %v532 = vld [vmem:[%s205 + $0x208] sm:$0xff]
      %v533 = vld [vmem:[%s205 + $0x210] sm:$0xff]
      %v534 = vld [vmem:[%s205 + $0x218] sm:$0xff]
      %v535 = vld [vmem:[%s205 + $0x220] sm:$0xff]
      %v536 = vld [vmem:[%s205 + $0x228] sm:$0xff]
      %v537 = vld [vmem:[%s205 + $0x230] sm:$0xff]
      %v538 = vld [vmem:[%s205 + $0x238] sm:$0xff]
      %v539 = vld [vmem:[%s205 + $0x240] sm:$0xff]
      %v540 = vld [vmem:[%s205 + $0x248] sm:$0xff]
      %v541 = vld [vmem:[%s205 + $0x250] sm:$0xff]
      %v542 = vld [vmem:[%s205 + $0x258] sm:$0xff]
      %v543 = vld [vmem:[%s205 + $0x260] sm:$0xff]
      %v544 = vld [vmem:[%s205 + $0x268] sm:$0xff]
      %v545 = vld [vmem:[%s205 + $0x270] sm:$0xff]
      %v546 = vld [vmem:[%s205 + $0x278] sm:$0xff]
      %v547 = vld [vmem:[%s205 + $0x280] sm:$0xff]
      %v548 = vld [vmem:[%s205 + $0x288] sm:$0xff]
      %v549 = vld [vmem:[%s205 + $0x290] sm:$0xff]
      %v550 = vld [vmem:[%s205 + $0x298] sm:$0xff]
      %v551 = vld [vmem:[%s205 + $0x2a0] sm:$0xff]
      %v552 = vld [vmem:[%s205 + $0x2a8] sm:$0xff]
      %v553 = vld [vmem:[%s205 + $0x2b0] sm:$0xff]
      %v554 = vld [vmem:[%s205 + $0x2b8] sm:$0xff]
      %v555 = vld [vmem:[%s205 + $0x2c0] sm:$0xff]
      %v556 = vld [vmem:[%s205 + $0x2c8] sm:$0xff]
      %v557 = vld [vmem:[%s205 + $0x2d0] sm:$0xff]
      %v558 = vld [vmem:[%s205 + $0x2d8] sm:$0xff]
      %v559 = vld [vmem:[%s205 + $0x2e0] sm:$0xff]
      %v560 = vld [vmem:[%s205 + $0x2e8] sm:$0xff]
      %v561 = vld [vmem:[%s205 + $0x2f0] sm:$0xff]
      %v562 = vld [vmem:[%s205 + $0x2f8] sm:$0xff]
      %v563 = vld [vmem:[%s205 + $0x300] sm:$0xff]
      %v564 = vld [vmem:[%s205 + $0x308] sm:$0xff]
      %v565 = vld [vmem:[%s205 + $0x310] sm:$0xff]
      %v566 = vld [vmem:[%s205 + $0x318] sm:$0xff]
      %v567 = vld [vmem:[%s205 + $0x320] sm:$0xff]
      %v568 = vld [vmem:[%s205 + $0x328] sm:$0xff]
      %v569 = vld [vmem:[%s205 + $0x330] sm:$0xff]
      %v570 = vld [vmem:[%s205 + $0x338] sm:$0xff]
      %v571 = vld [vmem:[%s205 + $0x340] sm:$0xff]
      %v572 = vld [vmem:[%s205 + $0x348] sm:$0xff]
      %v573 = vld [vmem:[%s205 + $0x350] sm:$0xff]
      %v574 = vld [vmem:[%s205 + $0x358] sm:$0xff]
      %v575 = vld [vmem:[%s205 + $0x360] sm:$0xff]
      %v576 = vld [vmem:[%s205 + $0x368] sm:$0xff]
      %v577 = vld [vmem:[%s205 + $0x370] sm:$0xff]
      %v578 = vld [vmem:[%s205 + $0x378] sm:$0xff]
      %v579 = vld [vmem:[%s205 + $0x380] sm:$0xff]
      %v580 = vld [vmem:[%s205 + $0x388] sm:$0xff]
      %v581 = vld [vmem:[%s205 + $0x390] sm:$0xff]
      %v582 = vld [vmem:[%s205 + $0x398] sm:$0xff]
      %v583 = vld [vmem:[%s205 + $0x3a0] sm:$0xff]
      %v584 = vld [vmem:[%s205 + $0x3a8] sm:$0xff]
      %v585 = vld [vmem:[%s205 + $0x3b0] sm:$0xff]
      %v586 = vld [vmem:[%s205 + $0x3b8] sm:$0xff]
      %v587 = vld [vmem:[%s205 + $0x3c0] sm:$0xff]
      %v588 = vld [vmem:[%s205 + $0x3c8] sm:$0xff]
      %v589 = vld [vmem:[%s205 + $0x3d0] sm:$0xff]
      %v590 = vld [vmem:[%s205 + $0x3d8] sm:$0xff]
      %v591 = vld [vmem:[%s205 + $0x3e0] sm:$0xff]
      %v592 = vld [vmem:[%s205 + $0x3e8] sm:$0xff]
      %v593 = vld [vmem:[%s205 + $0x3f0] sm:$0xff]
      %v594 = vld [vmem:[%s205 + $0x3f8] sm:$0xff]
      %vm595 = vcmask 130048
      %v597 = vsel %vm595, %v211, 0
      %v600 = vsel %vm595, %v212, 0
      %v603 = vsel %vm595, %v213, 0
      %v606 = vsel %vm595, %v214, 0
      %v609 = vsel %vm595, %v215, 0
      %v612 = vsel %vm595, %v216, 0
      %v615 = vsel %vm595, %v217, 0
      %v618 = vsel %vm595, %v218, 0
      %v621 = vsel %vm595, %v219, 0
      %v624 = vsel %vm595, %v220, 0
      %v627 = vsel %vm595, %v221, 0
      %v630 = vsel %vm595, %v222, 0
      %v633 = vsel %vm595, %v223, 0
      %v636 = vsel %vm595, %v224, 0
      %v639 = vsel %vm595, %v225, 0
      %v642 = vsel %vm595, %v226, 0
      %v645 = vsel %vm595, %v339, 0
      %v648 = vsel %vm595, %v340, 0
      %v651 = vsel %vm595, %v341, 0
      %v654 = vsel %vm595, %v342, 0
      %v657 = vsel %vm595, %v343, 0
      %v660 = vsel %vm595, %v344, 0
      %v663 = vsel %vm595, %v345, 0
      %v666 = vsel %vm595, %v346, 0
      %v669 = vsel %vm595, %v347, 0
      %v672 = vsel %vm595, %v348, 0
      %v675 = vsel %vm595, %v349, 0
      %v678 = vsel %vm595, %v350, 0
      %v681 = vsel %vm595, %v351, 0
      %v684 = vsel %vm595, %v352, 0
      %v687 = vsel %vm595, %v353, 0
      %v690 = vsel %vm595, %v354, 0
      %692 = vmatprep.subr.mxu0 0.0
      %693 = vmatpush1.xpose.msra.mxu0 %v645
      %694 = vmatprep.subr.mxu0 0.0
      %695 = vmatpush1.xpose.msra.mxu0 %v648
      %696 = vmatprep.subr.mxu0 0.0
      %697 = vmatpush1.xpose.msra.mxu0 %v651
      %698 = vmatprep.subr.mxu0 0.0
      %699 = vmatpush1.xpose.msra.mxu0 %v654
      %700 = vmatprep.subr.mxu0 0.0
      %701 = vmatpush1.xpose.msra.mxu0 %v657
      %702 = vmatprep.subr.mxu0 0.0
      %703 = vmatpush1.xpose.msra.mxu0 %v660
      %704 = vmatprep.subr.mxu0 0.0
      %705 = vmatpush1.xpose.msra.mxu0 %v663
      %706 = vmatprep.subr.mxu0 0.0
      %707 = vmatpush1.xpose.msra.mxu0 %v666
      %708 = vmatprep.subr.mxu0 0.0
      %709 = vmatpush1.xpose.msra.mxu0 %v669
      %710 = vmatprep.subr.mxu0 0.0
      %711 = vmatpush1.xpose.msra.mxu0 %v672
      %712 = vmatprep.subr.mxu0 0.0
      %713 = vmatpush1.xpose.msra.mxu0 %v675
      %714 = vmatprep.subr.mxu0 0.0
      %715 = vmatpush1.xpose.msra.mxu0 %v678
      %716 = vmatprep.subr.mxu0 0.0
      %717 = vmatpush1.xpose.msra.mxu0 %v681
      %718 = vmatprep.subr.mxu0 0.0
      %719 = vmatpush1.xpose.msra.mxu0 %v684
      %720 = vmatprep.subr.mxu0 0.0
      %721 = vmatpush1.xpose.msra.mxu0 %v687
      %722 = vmatprep.subr.mxu0 0.0
      %723 = vmatpush1.xpose.msra.mxu0 %v690
      %724 = vmatprep.subr.mxu0 0.0
      %725 = vmatpush1.xpose.msra.mxu0 0.0
      %726 = vmatprep.subr.mxu0 0.0
      %727 = vmatpush1.xpose.msra.mxu0 0.0
      %728 = vmatprep.subr.mxu0 0.0
      %729 = vmatpush1.xpose.msra.mxu0 0.0
      %730 = vmatprep.subr.mxu0 0.0
      %731 = vmatpush1.xpose.msra.mxu0 0.0
      %732 = vmatprep.subr.mxu0 0.0
      %733 = vmatpush1.xpose.msra.mxu0 0.0
      %734 = vmatprep.subr.mxu0 0.0
      %735 = vmatpush1.xpose.msra.mxu0 0.0
      %736 = vmatprep.subr.mxu0 0.0
      %737 = vmatpush1.xpose.msra.mxu0 0.0
      %738 = vmatprep.subr.mxu0 0.0
      %739 = vmatpush1.xpose.msra.mxu0 0.0
      %740 = vmatprep.subr.mxu0 0.0
      %741 = vmatpush1.xpose.msra.mxu0 0.0
      %742 = vmatprep.subr.mxu0 0.0
      %743 = vmatpush1.xpose.msra.mxu0 0.0
      %744 = vmatprep.subr.mxu0 0.0
      %745 = vmatpush1.xpose.msra.mxu0 0.0
      %746 = vmatprep.subr.mxu0 0.0
      %747 = vmatpush1.xpose.msra.mxu0 0.0
      %748 = vmatprep.subr.mxu0 0.0
      %749 = vmatpush1.xpose.msra.mxu0 0.0
      %750 = vmatprep.subr.mxu0 0.0
      %751 = vmatpush1.xpose.msra.mxu0 0.0
      %752 = vmatprep.subr.mxu0 0.0
      %753 = vmatpush1.xpose.msra.mxu0 0.0
      %754 = vmatprep.subr.mxu0 0.0
      %755 = vmatpush1.xpose.msra.mxu0 0.0
      %756 = vmatprep.mubr.f32.mxu0 0.0
      %757 = vmatmul.mubr.f32.gmra.mrb[0].mxu0 %v597
      %v758 = vpop.f32.mrb[0].mxu0
      %v759 = vadd.f32 0.0, %v758
      %v760 = vpop.f32.mrb[0].mxu0
      %761 = vmatprep.mubr.f32.mxu0 0.0
      %762 = vmatmul.mubr.f32.gmra.mrb[0].mxu0 %v600
      %v763 = vpop.f32.mrb[0].mxu0
      %v764 = vadd.f32 0.0, %v763
      %v765 = vpop.f32.mrb[0].mxu0
      %766 = vmatprep.mubr.f32.mxu0 0.0
      %767 = vmatmul.mubr.f32.gmra.mrb[0].mxu0 %v603
      %v768 = vpop.f32.mrb[0].mxu0
      %v769 = vadd.f32 0.0, %v768
      %v770 = vpop.f32.mrb[0].mxu0
      %771 = vmatprep.mubr.f32.mxu0 0.0
      %772 = vmatmul.mubr.f32.gmra.mrb[0].mxu0 %v606
      %v773 = vpop.f32.mrb[0].mxu0
      %v774 = vadd.f32 0.0, %v773
      %v775 = vpop.f32.mrb[0].mxu0
      %776 = vmatprep.mubr.f32.mxu0 0.0
      %777 = vmatmul.mubr.f32.gmra.mrb[0].mxu0 %v609
      %v778 = vpop.f32.mrb[0].mxu0
      %v779 = vadd.f32 0.0, %v778
      %v780 = vpop.f32.mrb[0].mxu0
      %781 = vmatprep.mubr.f32.mxu0 0.0
      %782 = vmatmul.mubr.f32.gmra.mrb[0].mxu0 %v612
      %v783 = vpop.f32.mrb[0].mxu0
      %v784 = vadd.f32 0.0, %v783
      %v785 = vpop.f32.mrb[0].mxu0
      %786 = vmatprep.mubr.f32.mxu0 0.0
      %787 = vmatmul.mubr.f32.gmra.mrb[0].mxu0 %v615
      %v788 = vpop.f32.mrb[0].mxu0
      %v789 = vadd.f32 0.0, %v788
      %v790 = vpop.f32.mrb[0].mxu0
      %791 = vmatprep.mubr.f32.mxu0 0.0
      %792 = vmatmul.mubr.f32.gmra.mrb[0].mxu0 %v618
      %v793 = vpop.f32.mrb[0].mxu0
      %v794 = vadd.f32 0.0, %v793
      %v795 = vpop.f32.mrb[0].mxu0
      %796 = vmatprep.mubr.f32.mxu0 0.0
      %797 = vmatmul.mubr.f32.gmra.mrb[0].mxu0 %v621
      %v798 = vpop.f32.mrb[0].mxu0
      %v799 = vadd.f32 0.0, %v798
      %v800 = vpop.f32.mrb[0].mxu0
      %801 = vmatprep.mubr.f32.mxu0 0.0
      %802 = vmatmul.mubr.f32.gmra.mrb[0].mxu0 %v624
      %v803 = vpop.f32.mrb[0].mxu0
      %v804 = vadd.f32 0.0, %v803
      %v805 = vpop.f32.mrb[0].mxu0
      %806 = vmatprep.mubr.f32.mxu0 0.0
      %807 = vmatmul.mubr.f32.gmra.mrb[0].mxu0 %v627
      %v808 = vpop.f32.mrb[0].mxu0
      %v809 = vadd.f32 0.0, %v808
      %v810 = vpop.f32.mrb[0].mxu0
      %811 = vmatprep.mubr.f32.mxu0 0.0
      %812 = vmatmul.mubr.f32.gmra.mrb[0].mxu0 %v630
      %v813 = vpop.f32.mrb[0].mxu0
      %v814 = vadd.f32 0.0, %v813
      %v815 = vpop.f32.mrb[0].mxu0
      %816 = vmatprep.mubr.f32.mxu0 0.0
      %817 = vmatmul.mubr.f32.gmra.mrb[0].mxu0 %v633
      %v818 = vpop.f32.mrb[0].mxu0
      %v819 = vadd.f32 0.0, %v818
      %v820 = vpop.f32.mrb[0].mxu0
      %821 = vmatprep.mubr.f32.mxu0 0.0
      %822 = vmatmul.mubr.f32.gmra.mrb[0].mxu0 %v636
      %v823 = vpop.f32.mrb[0].mxu0
      %v824 = vadd.f32 0.0, %v823
      %v825 = vpop.f32.mrb[0].mxu0
      %826 = vmatprep.mubr.f32.mxu0 0.0
      %827 = vmatmul.mubr.f32.gmra.mrb[0].mxu0 %v639
      %v828 = vpop.f32.mrb[0].mxu0
      %v829 = vadd.f32 0.0, %v828
      %v830 = vpop.f32.mrb[0].mxu0
      %831 = vmatprep.mubr.f32.mxu0 0.0
      %832 = vmatmul.mubr.f32.gmra.mrb[0].mxu0 %v642
      %v833 = vpop.f32.mrb[0].mxu0
      %v834 = vadd.f32 0.0, %v833
      %v835 = vpop.f32.mrb[0].mxu0
      %836 = vdwg.mxu0
      %v838 = vsel %vm595, %v227, 0
      %v841 = vsel %vm595, %v228, 0
      %v844 = vsel %vm595, %v229, 0
      %v847 = vsel %vm595, %v230, 0
      %v850 = vsel %vm595, %v231, 0
      %v853 = vsel %vm595, %v232, 0
      %v856 = vsel %vm595, %v233, 0
      %v859 = vsel %vm595, %v234, 0
      %v862 = vsel %vm595, %v235, 0
      %v865 = vsel %vm595, %v236, 0
      %v868 = vsel %vm595, %v237, 0
      %v871 = vsel %vm595, %v238, 0
      %v874 = vsel %vm595, %v239, 0
      %v877 = vsel %vm595, %v240, 0
      %v880 = vsel %vm595, %v241, 0
      %v883 = vsel %vm595, %v242, 0
      %v886 = vsel %vm595, %v355, 0
      %v889 = vsel %vm595, %v356, 0
      %v892 = vsel %vm595, %v357, 0
      %v895 = vsel %vm595, %v358, 0
      %v898 = vsel %vm595, %v359, 0
      %v901 = vsel %vm595, %v360, 0
      %v904 = vsel %vm595, %v361, 0
      %v907 = vsel %vm595, %v362, 0
      %v910 = vsel %vm595, %v363, 0
      %v913 = vsel %vm595, %v364, 0
      %v916 = vsel %vm595, %v365, 0
      %v919 = vsel %vm595, %v366, 0
      %v922 = vsel %vm595, %v367, 0
      %v925 = vsel %vm595, %v368, 0
      %v928 = vsel %vm595, %v369, 0
      %v931 = vsel %vm595, %v370, 0
      %933 = vmatprep.subr.mxu0 0.0
      %934 = vmatpush1.xpose.msra.mxu0 %v886
      %935 = vmatprep.subr.mxu0 0.0
      %936 = vmatpush1.xpose.msra.mxu0 %v889
      %937 = vmatprep.subr.mxu0 0.0
      %938 = vmatpush1.xpose.msra.mxu0 %v892
      %939 = vmatprep.subr.mxu0 0.0
      %940 = vmatpush1.xpose.msra.mxu0 %v895
      %941 = vmatprep.subr.mxu0 0.0
      %942 = vmatpush1.xpose.msra.mxu0 %v898
      %943 = vmatprep.subr.mxu0 0.0
      %944 = vmatpush1.xpose.msra.mxu0 %v901
      %945 = vmatprep.subr.mxu0 0.0
      %946 = vmatpush1.xpose.msra.mxu0 %v904
      %947 = vmatprep.subr.mxu0 0.0
      %948 = vmatpush1.xpose.msra.mxu0 %v907
      %949 = vmatprep.subr.mxu0 0.0
      %950 = vmatpush1.xpose.msra.mxu0 %v910
      %951 = vmatprep.subr.mxu0 0.0
      %952 = vmatpush1.xpose.msra.mxu0 %v913
      %953 = vmatprep.subr.mxu0 0.0
      %954 = vmatpush1.xpose.msra.mxu0 %v916
      %955 = vmatprep.subr.mxu0 0.0
      %956 = vmatpush1.xpose.msra.mxu0 %v919
      %957 = vmatprep.subr.mxu0 0.0
      %958 = vmatpush1.xpose.msra.mxu0 %v922
      %959 = vmatprep.subr.mxu0 0.0
      %960 = vmatpush1.xpose.msra.mxu0 %v925
      %961 = vmatprep.subr.mxu0 0.0
      %962 = vmatpush1.xpose.msra.mxu0 %v928
      %963 = vmatprep.subr.mxu0 0.0
      %964 = vmatpush1.xpose.msra.mxu0 %v931
      %965 = vmatprep.subr.mxu0 0.0
      %966 = vmatpush1.xpose.msra.mxu0 0.0
      %967 = vmatprep.subr.mxu0 0.0
      %968 = vmatpush1.xpose.msra.mxu0 0.0
      %969 = vmatprep.subr.mxu0 0.0
      %970 = vmatpush1.xpose.msra.mxu0 0.0
      %971 = vmatprep.subr.mxu0 0.0
      %972 = vmatpush1.xpose.msra.mxu0 0.0
      %973 = vmatprep.subr.mxu0 0.0
      %974 = vmatpush1.xpose.msra.mxu0 0.0
      %975 = vmatprep.subr.mxu0 0.0
      %976 = vmatpush1.xpose.msra.mxu0 0.0
      %977 = vmatprep.subr.mxu0 0.0
      %978 = vmatpush1.xpose.msra.mxu0 0.0
      %979 = vmatprep.subr.mxu0 0.0
      %980 = vmatpush1.xpose.msra.mxu0 0.0
      %981 = vmatprep.subr.mxu0 0.0
      %982 = vmatpush1.xpose.msra.mxu0 0.0
      %983 = vmatprep.subr.mxu0 0.0
      %984 = vmatpush1.xpose.msra.mxu0 0.0
      %985 = vmatprep.subr.mxu0 0.0
      %986 = vmatpush1.xpose.msra.mxu0 0.0
      %987 = vmatprep.subr.mxu0 0.0
      %988 = vmatpush1.xpose.msra.mxu0 0.0
      %989 = vmatprep.subr.mxu0 0.0
      %990 = vmatpush1.xpose.msra.mxu0 0.0
      %991 = vmatprep.subr.mxu0 0.0
      %992 = vmatpush1.xpose.msra.mxu0 0.0
      %993 = vmatprep.subr.mxu0 0.0
      %994 = vmatpush1.xpose.msra.mxu0 0.0
      %995 = vmatprep.subr.mxu0 0.0
      %996 = vmatpush1.xpose.msra.mxu0 0.0
      %997 = vmatprep.mubr.f32.mxu0 0.0
      %998 = vmatmul.mubr.f32.gmra.mrb[0].mxu0 %v838
      %v999 = vpop.f32.mrb[0].mxu0
      %v1000 = vadd.f32 0.0, %v999
      %v1001 = vpop.f32.mrb[0].mxu0
      %1002 = vmatprep.mubr.f32.mxu0 0.0
      %1003 = vmatmul.mubr.f32.gmra.mrb[0].mxu0 %v841
      %v1004 = vpop.f32.mrb[0].mxu0
      %v1005 = vadd.f32 0.0, %v1004
      %v1006 = vpop.f32.mrb[0].mxu0
      %1007 = vmatprep.mubr.f32.mxu0 0.0
      %1008 = vmatmul.mubr.f32.gmra.mrb[0].mxu0 %v844
      %v1009 = vpop.f32.mrb[0].mxu0
      %v1010 = vadd.f32 0.0, %v1009
      %v1011 = vpop.f32.mrb[0].mxu0
      %1012 = vmatprep.mubr.f32.mxu0 0.0
      %1013 = vmatmul.mubr.f32.gmra.mrb[0].mxu0 %v847
      %v1014 = vpop.f32.mrb[0].mxu0
      %v1015 = vadd.f32 0.0, %v1014
      %v1016 = vpop.f32.mrb[0].mxu0
      %1017 = vmatprep.mubr.f32.mxu0 0.0
      %1018 = vmatmul.mubr.f32.gmra.mrb[0].mxu0 %v850
      %v1019 = vpop.f32.mrb[0].mxu0
      %v1020 = vadd.f32 0.0, %v1019
      %v1021 = vpop.f32.mrb[0].mxu0
      %1022 = vmatprep.mubr.f32.mxu0 0.0
      %1023 = vmatmul.mubr.f32.gmra.mrb[0].mxu0 %v853
      %v1024 = vpop.f32.mrb[0].mxu0
      %v1025 = vadd.f32 0.0, %v1024
      %v1026 = vpop.f32.mrb[0].mxu0
      %1027 = vmatprep.mubr.f32.mxu0 0.0
      %1028 = vmatmul.mubr.f32.gmra.mrb[0].mxu0 %v856
      %v1029 = vpop.f32.mrb[0].mxu0
      %v1030 = vadd.f32 0.0, %v1029
      %v1031 = vpop.f32.mrb[0].mxu0
      %1032 = vmatprep.mubr.f32.mxu0 0.0
      %1033 = vmatmul.mubr.f32.gmra.mrb[0].mxu0 %v859
      %v1034 = vpop.f32.mrb[0].mxu0
      %v1035 = vadd.f32 0.0, %v1034
      %v1036 = vpop.f32.mrb[0].mxu0
      %1037 = vmatprep.mubr.f32.mxu0 0.0
      %1038 = vmatmul.mubr.f32.gmra.mrb[0].mxu0 %v862
      %v1039 = vpop.f32.mrb[0].mxu0
      %v1040 = vadd.f32 0.0, %v1039
      %v1041 = vpop.f32.mrb[0].mxu0
      %1042 = vmatprep.mubr.f32.mxu0 0.0
      %1043 = vmatmul.mubr.f32.gmra.mrb[0].mxu0 %v865
      %v1044 = vpop.f32.mrb[0].mxu0
      %v1045 = vadd.f32 0.0, %v1044
      %v1046 = vpop.f32.mrb[0].mxu0
      %1047 = vmatprep.mubr.f32.mxu0 0.0
      %1048 = vmatmul.mubr.f32.gmra.mrb[0].mxu0 %v868
      %v1049 = vpop.f32.mrb[0].mxu0
      %v1050 = vadd.f32 0.0, %v1049
      %v1051 = vpop.f32.mrb[0].mxu0
      %1052 = vmatprep.mubr.f32.mxu0 0.0
      %1053 = vmatmul.mubr.f32.gmra.mrb[0].mxu0 %v871
      %v1054 = vpop.f32.mrb[0].mxu0
      %v1055 = vadd.f32 0.0, %v1054
      %v1056 = vpop.f32.mrb[0].mxu0
      %1057 = vmatprep.mubr.f32.mxu0 0.0
      %1058 = vmatmul.mubr.f32.gmra.mrb[0].mxu0 %v874
      %v1059 = vpop.f32.mrb[0].mxu0
      %v1060 = vadd.f32 0.0, %v1059
      %v1061 = vpop.f32.mrb[0].mxu0
      %1062 = vmatprep.mubr.f32.mxu0 0.0
      %1063 = vmatmul.mubr.f32.gmra.mrb[0].mxu0 %v877
      %v1064 = vpop.f32.mrb[0].mxu0
      %v1065 = vadd.f32 0.0, %v1064
      %v1066 = vpop.f32.mrb[0].mxu0
      %1067 = vmatprep.mubr.f32.mxu0 0.0
      %1068 = vmatmul.mubr.f32.gmra.mrb[0].mxu0 %v880
      %v1069 = vpop.f32.mrb[0].mxu0
      %v1070 = vadd.f32 0.0, %v1069
      %v1071 = vpop.f32.mrb[0].mxu0
      %1072 = vmatprep.mubr.f32.mxu0 0.0
      %1073 = vmatmul.mubr.f32.gmra.mrb[0].mxu0 %v883
      %v1074 = vpop.f32.mrb[0].mxu0
      %v1075 = vadd.f32 0.0, %v1074
      %v1076 = vpop.f32.mrb[0].mxu0
      %1077 = vdwg.mxu0
      %v1079 = vsel %vm595, %v243, 0
      %v1082 = vsel %vm595, %v244, 0
      %v1085 = vsel %vm595, %v245, 0
      %v1088 = vsel %vm595, %v246, 0
      %v1091 = vsel %vm595, %v247, 0
      %v1094 = vsel %vm595, %v248, 0
      %v1097 = vsel %vm595, %v249, 0
      %v1100 = vsel %vm595, %v250, 0
      %v1103 = vsel %vm595, %v251, 0
      %v1106 = vsel %vm595, %v252, 0
      %v1109 = vsel %vm595, %v253, 0
      %v1112 = vsel %vm595, %v254, 0
      %v1115 = vsel %vm595, %v255, 0
      %v1118 = vsel %vm595, %v256, 0
      %v1121 = vsel %vm595, %v257, 0
      %v1124 = vsel %vm595, %v258, 0
      %v1127 = vsel %vm595, %v371, 0
      %v1130 = vsel %vm595, %v372, 0
      %v1133 = vsel %vm595, %v373, 0
      %v1136 = vsel %vm595, %v374, 0
      %v1139 = vsel %vm595, %v375, 0
      %v1142 = vsel %vm595, %v376, 0
      %v1145 = vsel %vm595, %v377, 0
      %v1148 = vsel %vm595, %v378, 0
      %v1151 = vsel %vm595, %v379, 0
      %v1154 = vsel %vm595, %v380, 0
      %v1157 = vsel %vm595, %v381, 0
      %v1160 = vsel %vm595, %v382, 0
      %v1163 = vsel %vm595, %v383, 0
      %v1166 = vsel %vm595, %v384, 0
      %v1169 = vsel %vm595, %v385, 0
      %v1172 = vsel %vm595, %v386, 0
      %1174 = vmatprep.subr.mxu0 0.0
      %1175 = vmatpush1.xpose.msra.mxu0 %v1127
      %1176 = vmatprep.subr.mxu0 0.0
      %1177 = vmatpush1.xpose.msra.mxu0 %v1130
      %1178 = vmatprep.subr.mxu0 0.0
      %1179 = vmatpush1.xpose.msra.mxu0 %v1133
      %1180 = vmatprep.subr.mxu0 0.0
      %1181 = vmatpush1.xpose.msra.mxu0 %v1136
      %1182 = vmatprep.subr.mxu0 0.0
      %1183 = vmatpush1.xpose.msra.mxu0 %v1139
      %1184 = vmatprep.subr.mxu0 0.0
      %1185 = vmatpush1.xpose.msra.mxu0 %v1142
      %1186 = vmatprep.subr.mxu0 0.0
      %1187 = vmatpush1.xpose.msra.mxu0 %v1145
      %1188 = vmatprep.subr.mxu0 0.0
      %1189 = vmatpush1.xpose.msra.mxu0 %v1148
      %1190 = vmatprep.subr.mxu0 0.0
      %1191 = vmatpush1.xpose.msra.mxu0 %v1151
      %1192 = vmatprep.subr.mxu0 0.0
      %1193 = vmatpush1.xpose.msra.mxu0 %v1154
      %1194 = vmatprep.subr.mxu0 0.0
      %1195 = vmatpush1.xpose.msra.mxu0 %v1157
      %1196 = vmatprep.subr.mxu0 0.0
      %1197 = vmatpush1.xpose.msra.mxu0 %v1160
      %1198 = vmatprep.subr.mxu0 0.0
      %1199 = vmatpush1.xpose.msra.mxu0 %v1163
      %1200 = vmatprep.subr.mxu0 0.0
      %1201 = vmatpush1.xpose.msra.mxu0 %v1166
      %1202 = vmatprep.subr.mxu0 0.0
      %1203 = vmatpush1.xpose.msra.mxu0 %v1169
      %1204 = vmatprep.subr.mxu0 0.0
      %1205 = vmatpush1.xpose.msra.mxu0 %v1172
      %1206 = vmatprep.subr.mxu0 0.0
      %1207 = vmatpush1.xpose.msra.mxu0 0.0
      %1208 = vmatprep.subr.mxu0 0.0
      %1209 = vmatpush1.xpose.msra.mxu0 0.0
      %1210 = vmatprep.subr.mxu0 0.0
      %1211 = vmatpush1.xpose.msra.mxu0 0.0
      %1212 = vmatprep.subr.mxu0 0.0
      %1213 = vmatpush1.xpose.msra.mxu0 0.0
      %1214 = vmatprep.subr.mxu0 0.0
      %1215 = vmatpush1.xpose.msra.mxu0 0.0
      %1216 = vmatprep.subr.mxu0 0.0
      %1217 = vmatpush1.xpose.msra.mxu0 0.0
      %1218 = vmatprep.subr.mxu0 0.0
      %1219 = vmatpush1.xpose.msra.mxu0 0.0
      %1220 = vmatprep.subr.mxu0 0.0
      %1221 = vmatpush1.xpose.msra.mxu0 0.0
      %1222 = vmatprep.subr.mxu0 0.0
      %1223 = vmatpush1.xpose.msra.mxu0 0.0
      %1224 = vmatprep.subr.mxu0 0.0
      %1225 = vmatpush1.xpose.msra.mxu0 0.0
      %1226 = vmatprep.subr.mxu0 0.0
      %1227 = vmatpush1.xpose.msra.mxu0 0.0
      %1228 = vmatprep.subr.mxu0 0.0
      %1229 = vmatpush1.xpose.msra.mxu0 0.0
      %1230 = vmatprep.subr.mxu0 0.0
      %1231 = vmatpush1.xpose.msra.mxu0 0.0
      %1232 = vmatprep.subr.mxu0 0.0
      %1233 = vmatpush1.xpose.msra.mxu0 0.0
      %1234 = vmatprep.subr.mxu0 0.0
      %1235 = vmatpush1.xpose.msra.mxu0 0.0
      %1236 = vmatprep.subr.mxu0 0.0
      %1237 = vmatpush1.xpose.msra.mxu0 0.0
      %1238 = vmatprep.mubr.f32.mxu0 0.0
      %1239 = vmatmul.mubr.f32.gmra.mrb[0].mxu0 %v1079
      %v1240 = vpop.f32.mrb[0].mxu0
      %v1241 = vadd.f32 0.0, %v1240
      %v1242 = vpop.f32.mrb[0].mxu0
      %1243 = vmatprep.mubr.f32.mxu0 0.0
      %1244 = vmatmul.mubr.f32.gmra.mrb[0].mxu0 %v1082
      %v1245 = vpop.f32.mrb[0].mxu0
      %v1246 = vadd.f32 0.0, %v1245
      %v1247 = vpop.f32.mrb[0].mxu0
      %1248 = vmatprep.mubr.f32.mxu0 0.0
      %1249 = vmatmul.mubr.f32.gmra.mrb[0].mxu0 %v1085
      %v1250 = vpop.f32.mrb[0].mxu0
      %v1251 = vadd.f32 0.0, %v1250
      %v1252 = vpop.f32.mrb[0].mxu0
      %1253 = vmatprep.mubr.f32.mxu0 0.0
      %1254 = vmatmul.mubr.f32.gmra.mrb[0].mxu0 %v1088
      %v1255 = vpop.f32.mrb[0].mxu0
      %v1256 = vadd.f32 0.0, %v1255
      %v1257 = vpop.f32.mrb[0].mxu0
      %1258 = vmatprep.mubr.f32.mxu0 0.0
      %1259 = vmatmul.mubr.f32.gmra.mrb[0].mxu0 %v1091
      %v1260 = vpop.f32.mrb[0].mxu0
      %v1261 = vadd.f32 0.0, %v1260
      %v1262 = vpop.f32.mrb[0].mxu0
      %1263 = vmatprep.mubr.f32.mxu0 0.0
      %1264 = vmatmul.mubr.f32.gmra.mrb[0].mxu0 %v1094
      %v1265 = vpop.f32.mrb[0].mxu0
      %v1266 = vadd.f32 0.0, %v1265
      %v1267 = vpop.f32.mrb[0].mxu0
      %1268 = vmatprep.mubr.f32.mxu0 0.0
      %1269 = vmatmul.mubr.f32.gmra.mrb[0].mxu0 %v1097
      %v1270 = vpop.f32.mrb[0].mxu0
      %v1271 = vadd.f32 0.0, %v1270
      %v1272 = vpop.f32.mrb[0].mxu0
      %1273 = vmatprep.mubr.f32.mxu0 0.0
      %1274 = vmatmul.mubr.f32.gmra.mrb[0].mxu0 %v1100
      %v1275 = vpop.f32.mrb[0].mxu0
      %v1276 = vadd.f32 0.0, %v1275
      %v1277 = vpop.f32.mrb[0].mxu0
      %1278 = vmatprep.mubr.f32.mxu0 0.0
      %1279 = vmatmul.mubr.f32.gmra.mrb[0].mxu0 %v1103
      %v1280 = vpop.f32.mrb[0].mxu0
      %v1281 = vadd.f32 0.0, %v1280
      %v1282 = vpop.f32.mrb[0].mxu0
      %1283 = vmatprep.mubr.f32.mxu0 0.0
      %1284 = vmatmul.mubr.f32.gmra.mrb[0].mxu0 %v1106
      %v1285 = vpop.f32.mrb[0].mxu0
      %v1286 = vadd.f32 0.0, %v1285
      %v1287 = vpop.f32.mrb[0].mxu0
      %1288 = vmatprep.mubr.f32.mxu0 0.0
      %1289 = vmatmul.mubr.f32.gmra.mrb[0].mxu0 %v1109
      %v1290 = vpop.f32.mrb[0].mxu0
      %v1291 = vadd.f32 0.0, %v1290
      %v1292 = vpop.f32.mrb[0].mxu0
      %1293 = vmatprep.mubr.f32.mxu0 0.0
      %1294 = vmatmul.mubr.f32.gmra.mrb[0].mxu0 %v1112
      %v1295 = vpop.f32.mrb[0].mxu0
      %v1296 = vadd.f32 0.0, %v1295
      %v1297 = vpop.f32.mrb[0].mxu0
      %1298 = vmatprep.mubr.f32.mxu0 0.0
      %1299 = vmatmul.mubr.f32.gmra.mrb[0].mxu0 %v1115
      %v1300 = vpop.f32.mrb[0].mxu0
      %v1301 = vadd.f32 0.0, %v1300
      %v1302 = vpop.f32.mrb[0].mxu0
      %1303 = vmatprep.mubr.f32.mxu0 0.0
      %1304 = vmatmul.mubr.f32.gmra.mrb[0].mxu0 %v1118
      %v1305 = vpop.f32.mrb[0].mxu0
      %v1306 = vadd.f32 0.0, %v1305
      %v1307 = vpop.f32.mrb[0].mxu0
      %1308 = vmatprep.mubr.f32.mxu0 0.0
      %1309 = vmatmul.mubr.f32.gmra.mrb[0].mxu0 %v1121
      %v1310 = vpop.f32.mrb[0].mxu0
      %v1311 = vadd.f32 0.0, %v1310
      %v1312 = vpop.f32.mrb[0].mxu0
      %1313 = vmatprep.mubr.f32.mxu0 0.0
      %1314 = vmatmul.mubr.f32.gmra.mrb[0].mxu0 %v1124
      %v1315 = vpop.f32.mrb[0].mxu0
      %v1316 = vadd.f32 0.0, %v1315
      %v1317 = vpop.f32.mrb[0].mxu0
      %1318 = vdwg.mxu0
      %v1320 = vsel %vm595, %v259, 0
      %v1323 = vsel %vm595, %v260, 0
      %v1326 = vsel %vm595, %v261, 0
      %v1329 = vsel %vm595, %v262, 0
      %v1332 = vsel %vm595, %v263, 0
      %v1335 = vsel %vm595, %v264, 0
      %v1338 = vsel %vm595, %v265, 0
      %v1341 = vsel %vm595, %v266, 0
      %v1344 = vsel %vm595, %v267, 0
      %v1347 = vsel %vm595, %v268, 0
      %v1350 = vsel %vm595, %v269, 0
      %v1353 = vsel %vm595, %v270, 0
      %v1356 = vsel %vm595, %v271, 0
      %v1359 = vsel %vm595, %v272, 0
      %v1362 = vsel %vm595, %v273, 0
      %v1365 = vsel %vm595, %v274, 0
      %v1368 = vsel %vm595, %v387, 0
      %v1371 = vsel %vm595, %v388, 0
      %v1374 = vsel %vm595, %v389, 0
      %v1377 = vsel %vm595, %v390, 0
      %v1380 = vsel %vm595, %v391, 0
      %v1383 = vsel %vm595, %v392, 0
      %v1386 = vsel %vm595, %v393, 0
      %v1389 = vsel %vm595, %v394, 0
      %v1392 = vsel %vm595, %v395, 0
      %v1395 = vsel %vm595, %v396, 0
      %v1398 = vsel %vm595, %v397, 0
      %v1401 = vsel %vm595, %v398, 0
      %v1404 = vsel %vm595, %v399, 0
      %v1407 = vsel %vm595, %v400, 0
      %v1410 = vsel %vm595, %v401, 0
      %v1413 = vsel %vm595, %v402, 0
      %1415 = vmatprep.subr.mxu0 0.0
      %1416 = vmatpush1.xpose.msra.mxu0 %v1368
      %1417 = vmatprep.subr.mxu0 0.0
      %1418 = vmatpush1.xpose.msra.mxu0 %v1371
      %1419 = vmatprep.subr.mxu0 0.0
      %1420 = vmatpush1.xpose.msra.mxu0 %v1374
      %1421 = vmatprep.subr.mxu0 0.0
      %1422 = vmatpush1.xpose.msra.mxu0 %v1377
      %1423 = vmatprep.subr.mxu0 0.0
      %1424 = vmatpush1.xpose.msra.mxu0 %v1380
      %1425 = vmatprep.subr.mxu0 0.0
      %1426 = vmatpush1.xpose.msra.mxu0 %v1383
      %1427 = vmatprep.subr.mxu0 0.0
      %1428 = vmatpush1.xpose.msra.mxu0 %v1386
      %1429 = vmatprep.subr.mxu0 0.0
      %1430 = vmatpush1.xpose.msra.mxu0 %v1389
      %1431 = vmatprep.subr.mxu0 0.0
      %1432 = vmatpush1.xpose.msra.mxu0 %v1392
      %1433 = vmatprep.subr.mxu0 0.0
      %1434 = vmatpush1.xpose.msra.mxu0 %v1395
      %1435 = vmatprep.subr.mxu0 0.0
      %1436 = vmatpush1.xpose.msra.mxu0 %v1398
      %1437 = vmatprep.subr.mxu0 0.0
      %1438 = vmatpush1.xpose.msra.mxu0 %v1401
      %1439 = vmatprep.subr.mxu0 0.0
      %1440 = vmatpush1.xpose.msra.mxu0 %v1404
      %1441 = vmatprep.subr.mxu0 0.0
      %1442 = vmatpush1.xpose.msra.mxu0 %v1407
      %1443 = vmatprep.subr.mxu0 0.0
      %1444 = vmatpush1.xpose.msra.mxu0 %v1410
      %1445 = vmatprep.subr.mxu0 0.0
      %1446 = vmatpush1.xpose.msra.mxu0 %v1413
      %1447 = vmatprep.subr.mxu0 0.0
      %1448 = vmatpush1.xpose.msra.mxu0 0.0
      %1449 = vmatprep.subr.mxu0 0.0
      %1450 = vmatpush1.xpose.msra.mxu0 0.0
      %1451 = vmatprep.subr.mxu0 0.0
      %1452 = vmatpush1.xpose.msra.mxu0 0.0
      %1453 = vmatprep.subr.mxu0 0.0
      %1454 = vmatpush1.xpose.msra.mxu0 0.0
      %1455 = vmatprep.subr.mxu0 0.0
      %1456 = vmatpush1.xpose.msra.mxu0 0.0
      %1457 = vmatprep.subr.mxu0 0.0
      %1458 = vmatpush1.xpose.msra.mxu0 0.0
      %1459 = vmatprep.subr.mxu0 0.0
      %1460 = vmatpush1.xpose.msra.mxu0 0.0
      %1461 = vmatprep.subr.mxu0 0.0
      %1462 = vmatpush1.xpose.msra.mxu0 0.0
      %1463 = vmatprep.subr.mxu0 0.0
      %1464 = vmatpush1.xpose.msra.mxu0 0.0
      %1465 = vmatprep.subr.mxu0 0.0
      %1466 = vmatpush1.xpose.msra.mxu0 0.0
      %1467 = vmatprep.subr.mxu0 0.0
      %1468 = vmatpush1.xpose.msra.mxu0 0.0
      %1469 = vmatprep.subr.mxu0 0.0
      %1470 = vmatpush1.xpose.msra.mxu0 0.0
      %1471 = vmatprep.subr.mxu0 0.0
      %1472 = vmatpush1.xpose.msra.mxu0 0.0
      %1473 = vmatprep.subr.mxu0 0.0
      %1474 = vmatpush1.xpose.msra.mxu0 0.0
      %1475 = vmatprep.subr.mxu0 0.0
      %1476 = vmatpush1.xpose.msra.mxu0 0.0
      %1477 = vmatprep.subr.mxu0 0.0
      %1478 = vmatpush1.xpose.msra.mxu0 0.0
      %1479 = vmatprep.mubr.f32.mxu0 0.0
      %1480 = vmatmul.mubr.f32.gmra.mrb[0].mxu0 %v1320
      %v1481 = vpop.f32.mrb[0].mxu0
      %v1482 = vadd.f32 0.0, %v1481
      %v1483 = vpop.f32.mrb[0].mxu0
      %1484 = vmatprep.mubr.f32.mxu0 0.0
      %1485 = vmatmul.mubr.f32.gmra.mrb[0].mxu0 %v1323
      %v1486 = vpop.f32.mrb[0].mxu0
      %v1487 = vadd.f32 0.0, %v1486
      %v1488 = vpop.f32.mrb[0].mxu0
      %1489 = vmatprep.mubr.f32.mxu0 0.0
      %1490 = vmatmul.mubr.f32.gmra.mrb[0].mxu0 %v1326
      %v1491 = vpop.f32.mrb[0].mxu0
      %v1492 = vadd.f32 0.0, %v1491
      %v1493 = vpop.f32.mrb[0].mxu0
      %1494 = vmatprep.mubr.f32.mxu0 0.0
      %1495 = vmatmul.mubr.f32.gmra.mrb[0].mxu0 %v1329
      %v1496 = vpop.f32.mrb[0].mxu0
      %v1497 = vadd.f32 0.0, %v1496
      %v1498 = vpop.f32.mrb[0].mxu0
      %1499 = vmatprep.mubr.f32.mxu0 0.0
      %1500 = vmatmul.mubr.f32.gmra.mrb[0].mxu0 %v1332
      %v1501 = vpop.f32.mrb[0].mxu0
      %v1502 = vadd.f32 0.0, %v1501
      %v1503 = vpop.f32.mrb[0].mxu0
      %1504 = vmatprep.mubr.f32.mxu0 0.0
      %1505 = vmatmul.mubr.f32.gmra.mrb[0].mxu0 %v1335
      %v1506 = vpop.f32.mrb[0].mxu0
      %v1507 = vadd.f32 0.0, %v1506
      %v1508 = vpop.f32.mrb[0].mxu0
      %1509 = vmatprep.mubr.f32.mxu0 0.0
      %1510 = vmatmul.mubr.f32.gmra.mrb[0].mxu0 %v1338
      %v1511 = vpop.f32.mrb[0].mxu0
      %v1512 = vadd.f32 0.0, %v1511
      %v1513 = vpop.f32.mrb[0].mxu0
      %1514 = vmatprep.mubr.f32.mxu0 0.0
      %1515 = vmatmul.mubr.f32.gmra.mrb[0].mxu0 %v1341
      %v1516 = vpop.f32.mrb[0].mxu0
      %v1517 = vadd.f32 0.0, %v1516
      %v1518 = vpop.f32.mrb[0].mxu0
      %1519 = vmatprep.mubr.f32.mxu0 0.0
      %1520 = vmatmul.mubr.f32.gmra.mrb[0].mxu0 %v1344
      %v1521 = vpop.f32.mrb[0].mxu0
      %v1522 = vadd.f32 0.0, %v1521
      %v1523 = vpop.f32.mrb[0].mxu0
      %1524 = vmatprep.mubr.f32.mxu0 0.0
      %1525 = vmatmul.mubr.f32.gmra.mrb[0].mxu0 %v1347
      %v1526 = vpop.f32.mrb[0].mxu0
      %v1527 = vadd.f32 0.0, %v1526
      %v1528 = vpop.f32.mrb[0].mxu0
      %1529 = vmatprep.mubr.f32.mxu0 0.0
      %1530 = vmatmul.mubr.f32.gmra.mrb[0].mxu0 %v1350
      %v1531 = vpop.f32.mrb[0].mxu0
      %v1532 = vadd.f32 0.0, %v1531
      %v1533 = vpop.f32.mrb[0].mxu0
      %1534 = vmatprep.mubr.f32.mxu0 0.0
      %1535 = vmatmul.mubr.f32.gmra.mrb[0].mxu0 %v1353
      %v1536 = vpop.f32.mrb[0].mxu0
      %v1537 = vadd.f32 0.0, %v1536
      %v1538 = vpop.f32.mrb[0].mxu0
      %1539 = vmatprep.mubr.f32.mxu0 0.0
      %1540 = vmatmul.mubr.f32.gmra.mrb[0].mxu0 %v1356
      %v1541 = vpop.f32.mrb[0].mxu0
      %v1542 = vadd.f32 0.0, %v1541
      %v1543 = vpop.f32.mrb[0].mxu0
      %1544 = vmatprep.mubr.f32.mxu0 0.0
      %1545 = vmatmul.mubr.f32.gmra.mrb[0].mxu0 %v1359
      %v1546 = vpop.f32.mrb[0].mxu0
      %v1547 = vadd.f32 0.0, %v1546
      %v1548 = vpop.f32.mrb[0].mxu0
      %1549 = vmatprep.mubr.f32.mxu0 0.0
      %1550 = vmatmul.mubr.f32.gmra.mrb[0].mxu0 %v1362
      %v1551 = vpop.f32.mrb[0].mxu0
      %v1552 = vadd.f32 0.0, %v1551
      %v1553 = vpop.f32.mrb[0].mxu0
      %1554 = vmatprep.mubr.f32.mxu0 0.0
      %1555 = vmatmul.mubr.f32.gmra.mrb[0].mxu0 %v1365
      %v1556 = vpop.f32.mrb[0].mxu0
      %v1557 = vadd.f32 0.0, %v1556
      %v1558 = vpop.f32.mrb[0].mxu0
      %1559 = vdwg.mxu0
      %v1561 = vsel %vm595, %v275, 0
      %v1564 = vsel %vm595, %v276, 0
      %v1567 = vsel %vm595, %v277, 0
      %v1570 = vsel %vm595, %v278, 0
      %v1573 = vsel %vm595, %v279, 0
      %v1576 = vsel %vm595, %v280, 0
      %v1579 = vsel %vm595, %v281, 0
      %v1582 = vsel %vm595, %v282, 0
      %v1585 = vsel %vm595, %v283, 0
      %v1588 = vsel %vm595, %v284, 0
      %v1591 = vsel %vm595, %v285, 0
      %v1594 = vsel %vm595, %v286, 0
      %v1597 = vsel %vm595, %v287, 0
      %v1600 = vsel %vm595, %v288, 0
      %v1603 = vsel %vm595, %v289, 0
      %v1606 = vsel %vm595, %v290, 0
      %v1609 = vsel %vm595, %v403, 0
      %v1612 = vsel %vm595, %v404, 0
      %v1615 = vsel %vm595, %v405, 0
      %v1618 = vsel %vm595, %v406, 0
      %v1621 = vsel %vm595, %v407, 0
      %v1624 = vsel %vm595, %v408, 0
      %v1627 = vsel %vm595, %v409, 0
      %v1630 = vsel %vm595, %v410, 0
      %v1633 = vsel %vm595, %v411, 0
      %v1636 = vsel %vm595, %v412, 0
      %v1639 = vsel %vm595, %v413, 0
      %v1642 = vsel %vm595, %v414, 0
      %v1645 = vsel %vm595, %v415, 0
      %v1648 = vsel %vm595, %v416, 0
      %v1651 = vsel %vm595, %v417, 0
      %v1654 = vsel %vm595, %v418, 0
      %1656 = vmatprep.subr.mxu0 0.0
      %1657 = vmatpush1.xpose.msra.mxu0 %v1609
      %1658 = vmatprep.subr.mxu0 0.0
      %1659 = vmatpush1.xpose.msra.mxu0 %v1612
      %1660 = vmatprep.subr.mxu0 0.0
      %1661 = vmatpush1.xpose.msra.mxu0 %v1615
      %1662 = vmatprep.subr.mxu0 0.0
      %1663 = vmatpush1.xpose.msra.mxu0 %v1618
      %1664 = vmatprep.subr.mxu0 0.0
      %1665 = vmatpush1.xpose.msra.mxu0 %v1621
      %1666 = vmatprep.subr.mxu0 0.0
      %1667 = vmatpush1.xpose.msra.mxu0 %v1624
      %1668 = vmatprep.subr.mxu0 0.0
      %1669 = vmatpush1.xpose.msra.mxu0 %v1627
      %1670 = vmatprep.subr.mxu0 0.0
      %1671 = vmatpush1.xpose.msra.mxu0 %v1630
      %1672 = vmatprep.subr.mxu0 0.0
      %1673 = vmatpush1.xpose.msra.mxu0 %v1633
      %1674 = vmatprep.subr.mxu0 0.0
      %1675 = vmatpush1.xpose.msra.mxu0 %v1636
      %1676 = vmatprep.subr.mxu0 0.0
      %1677 = vmatpush1.xpose.msra.mxu0 %v1639
      %1678 = vmatprep.subr.mxu0 0.0
      %1679 = vmatpush1.xpose.msra.mxu0 %v1642
      %1680 = vmatprep.subr.mxu0 0.0
      %1681 = vmatpush1.xpose.msra.mxu0 %v1645
      %1682 = vmatprep.subr.mxu0 0.0
      %1683 = vmatpush1.xpose.msra.mxu0 %v1648
      %1684 = vmatprep.subr.mxu0 0.0
      %1685 = vmatpush1.xpose.msra.mxu0 %v1651
      %1686 = vmatprep.subr.mxu0 0.0
      %1687 = vmatpush1.xpose.msra.mxu0 %v1654
      %1688 = vmatprep.subr.mxu0 0.0
      %1689 = vmatpush1.xpose.msra.mxu0 0.0
      %1690 = vmatprep.subr.mxu0 0.0
      %1691 = vmatpush1.xpose.msra.mxu0 0.0
      %1692 = vmatprep.subr.mxu0 0.0
      %1693 = vmatpush1.xpose.msra.mxu0 0.0
      %1694 = vmatprep.subr.mxu0 0.0
      %1695 = vmatpush1.xpose.msra.mxu0 0.0
      %1696 = vmatprep.subr.mxu0 0.0
      %1697 = vmatpush1.xpose.msra.mxu0 0.0
      %1698 = vmatprep.subr.mxu0 0.0
      %1699 = vmatpush1.xpose.msra.mxu0 0.0
      %1700 = vmatprep.subr.mxu0 0.0
      %1701 = vmatpush1.xpose.msra.mxu0 0.0
      %1702 = vmatprep.subr.mxu0 0.0
      %1703 = vmatpush1.xpose.msra.mxu0 0.0
      %1704 = vmatprep.subr.mxu0 0.0
      %1705 = vmatpush1.xpose.msra.mxu0 0.0
      %1706 = vmatprep.subr.mxu0 0.0
      %1707 = vmatpush1.xpose.msra.mxu0 0.0
      %1708 = vmatprep.subr.mxu0 0.0
      %1709 = vmatpush1.xpose.msra.mxu0 0.0
      %1710 = vmatprep.subr.mxu0 0.0
      %1711 = vmatpush1.xpose.msra.mxu0 0.0
      %1712 = vmatprep.subr.mxu0 0.0
      %1713 = vmatpush1.xpose.msra.mxu0 0.0
      %1714 = vmatprep.subr.mxu0 0.0
      %1715 = vmatpush1.xpose.msra.mxu0 0.0
      %1716 = vmatprep.subr.mxu0 0.0
      %1717 = vmatpush1.xpose.msra.mxu0 0.0
      %1718 = vmatprep.subr.mxu0 0.0
      %1719 = vmatpush1.xpose.msra.mxu0 0.0
      %1720 = vmatprep.mubr.f32.mxu0 0.0
      %1721 = vmatmul.mubr.f32.gmra.mrb[0].mxu0 %v1561
      %v1722 = vpop.f32.mrb[0].mxu0
      %v1723 = vadd.f32 0.0, %v1722
      %v1724 = vpop.f32.mrb[0].mxu0
      %1725 = vmatprep.mubr.f32.mxu0 0.0
      %1726 = vmatmul.mubr.f32.gmra.mrb[0].mxu0 %v1564
      %v1727 = vpop.f32.mrb[0].mxu0
      %v1728 = vadd.f32 0.0, %v1727
      %v1729 = vpop.f32.mrb[0].mxu0
      %1730 = vmatprep.mubr.f32.mxu0 0.0
      %1731 = vmatmul.mubr.f32.gmra.mrb[0].mxu0 %v1567
      %v1732 = vpop.f32.mrb[0].mxu0
      %v1733 = vadd.f32 0.0, %v1732
      %v1734 = vpop.f32.mrb[0].mxu0
      %1735 = vmatprep.mubr.f32.mxu0 0.0
      %1736 = vmatmul.mubr.f32.gmra.mrb[0].mxu0 %v1570
      %v1737 = vpop.f32.mrb[0].mxu0
      %v1738 = vadd.f32 0.0, %v1737
      %v1739 = vpop.f32.mrb[0].mxu0
      %1740 = vmatprep.mubr.f32.mxu0 0.0
      %1741 = vmatmul.mubr.f32.gmra.mrb[0].mxu0 %v1573
      %v1742 = vpop.f32.mrb[0].mxu0
      %v1743 = vadd.f32 0.0, %v1742
      %v1744 = vpop.f32.mrb[0].mxu0
      %1745 = vmatprep.mubr.f32.mxu0 0.0
      %1746 = vmatmul.mubr.f32.gmra.mrb[0].mxu0 %v1576
      %v1747 = vpop.f32.mrb[0].mxu0
      %v1748 = vadd.f32 0.0, %v1747
      %v1749 = vpop.f32.mrb[0].mxu0
      %1750 = vmatprep.mubr.f32.mxu0 0.0
      %1751 = vmatmul.mubr.f32.gmra.mrb[0].mxu0 %v1579
      %v1752 = vpop.f32.mrb[0].mxu0
      %v1753 = vadd.f32 0.0, %v1752
      %v1754 = vpop.f32.mrb[0].mxu0
      %1755 = vmatprep.mubr.f32.mxu0 0.0
      %1756 = vmatmul.mubr.f32.gmra.mrb[0].mxu0 %v1582
      %v1757 = vpop.f32.mrb[0].mxu0
      %v1758 = vadd.f32 0.0, %v1757
      %v1759 = vpop.f32.mrb[0].mxu0
      %1760 = vmatprep.mubr.f32.mxu0 0.0
      %1761 = vmatmul.mubr.f32.gmra.mrb[0].mxu0 %v1585
      %v1762 = vpop.f32.mrb[0].mxu0
      %v1763 = vadd.f32 0.0, %v1762
      %v1764 = vpop.f32.mrb[0].mxu0
      %1765 = vmatprep.mubr.f32.mxu0 0.0
      %1766 = vmatmul.mubr.f32.gmra.mrb[0].mxu0 %v1588
      %v1767 = vpop.f32.mrb[0].mxu0
      %v1768 = vadd.f32 0.0, %v1767
      %v1769 = vpop.f32.mrb[0].mxu0
      %1770 = vmatprep.mubr.f32.mxu0 0.0
      %1771 = vmatmul.mubr.f32.gmra.mrb[0].mxu0 %v1591
      %v1772 = vpop.f32.mrb[0].mxu0
      %v1773 = vadd.f32 0.0, %v1772
      %v1774 = vpop.f32.mrb[0].mxu0
      %1775 = vmatprep.mubr.f32.mxu0 0.0
      %1776 = vmatmul.mubr.f32.gmra.mrb[0].mxu0 %v1594
      %v1777 = vpop.f32.mrb[0].mxu0
      %v1778 = vadd.f32 0.0, %v1777
      %v1779 = vpop.f32.mrb[0].mxu0
      %1780 = vmatprep.mubr.f32.mxu0 0.0
      %1781 = vmatmul.mubr.f32.gmra.mrb[0].mxu0 %v1597
      %v1782 = vpop.f32.mrb[0].mxu0
      %v1783 = vadd.f32 0.0, %v1782
      %v1784 = vpop.f32.mrb[0].mxu0
      %1785 = vmatprep.mubr.f32.mxu0 0.0
      %1786 = vmatmul.mubr.f32.gmra.mrb[0].mxu0 %v1600
      %v1787 = vpop.f32.mrb[0].mxu0
      %v1788 = vadd.f32 0.0, %v1787
      %v1789 = vpop.f32.mrb[0].mxu0
      %1790 = vmatprep.mubr.f32.mxu0 0.0
      %1791 = vmatmul.mubr.f32.gmra.mrb[0].mxu0 %v1603
      %v1792 = vpop.f32.mrb[0].mxu0
      %v1793 = vadd.f32 0.0, %v1792
      %v1794 = vpop.f32.mrb[0].mxu0
      %1795 = vmatprep.mubr.f32.mxu0 0.0
      %1796 = vmatmul.mubr.f32.gmra.mrb[0].mxu0 %v1606
      %v1797 = vpop.f32.mrb[0].mxu0
      %v1798 = vadd.f32 0.0, %v1797
      %v1799 = vpop.f32.mrb[0].mxu0
      %1800 = vdwg.mxu0
      %v1802 = vsel %vm595, %v291, 0
      %v1805 = vsel %vm595, %v292, 0
      %v1808 = vsel %vm595, %v293, 0
      %v1811 = vsel %vm595, %v294, 0
      %v1814 = vsel %vm595, %v295, 0
      %v1817 = vsel %vm595, %v296, 0
      %v1820 = vsel %vm595, %v297, 0
      %v1823 = vsel %vm595, %v298, 0
      %v1826 = vsel %vm595, %v299, 0
      %v1829 = vsel %vm595, %v300, 0
      %v1832 = vsel %vm595, %v301, 0
      %v1835 = vsel %vm595, %v302, 0
      %v1838 = vsel %vm595, %v303, 0
      %v1841 = vsel %vm595, %v304, 0
      %v1844 = vsel %vm595, %v305, 0
      %v1847 = vsel %vm595, %v306, 0
      %v1850 = vsel %vm595, %v419, 0
      %v1853 = vsel %vm595, %v420, 0
      %v1856 = vsel %vm595, %v421, 0
      %v1859 = vsel %vm595, %v422, 0
      %v1862 = vsel %vm595, %v423, 0
      %v1865 = vsel %vm595, %v424, 0
      %v1868 = vsel %vm595, %v425, 0
      %v1871 = vsel %vm595, %v426, 0
      %v1874 = vsel %vm595, %v427, 0
      %v1877 = vsel %vm595, %v428, 0
      %v1880 = vsel %vm595, %v429, 0
      %v1883 = vsel %vm595, %v430, 0
      %v1886 = vsel %vm595, %v431, 0
      %v1889 = vsel %vm595, %v432, 0
      %v1892 = vsel %vm595, %v433, 0
      %v1895 = vsel %vm595, %v434, 0
      %1897 = vmatprep.subr.mxu0 0.0
      %1898 = vmatpush1.xpose.msra.mxu0 %v1850
      %1899 = vmatprep.subr.mxu0 0.0
      %1900 = vmatpush1.xpose.msra.mxu0 %v1853
      %1901 = vmatprep.subr.mxu0 0.0
      %1902 = vmatpush1.xpose.msra.mxu0 %v1856
      %1903 = vmatprep.subr.mxu0 0.0
      %1904 = vmatpush1.xpose.msra.mxu0 %v1859
      %1905 = vmatprep.subr.mxu0 0.0
      %1906 = vmatpush1.xpose.msra.mxu0 %v1862
      %1907 = vmatprep.subr.mxu0 0.0
      %1908 = vmatpush1.xpose.msra.mxu0 %v1865
      %1909 = vmatprep.subr.mxu0 0.0
      %1910 = vmatpush1.xpose.msra.mxu0 %v1868
      %1911 = vmatprep.subr.mxu0 0.0
      %1912 = vmatpush1.xpose.msra.mxu0 %v1871
      %1913 = vmatprep.subr.mxu0 0.0
      %1914 = vmatpush1.xpose.msra.mxu0 %v1874
      %1915 = vmatprep.subr.mxu0 0.0
      %1916 = vmatpush1.xpose.msra.mxu0 %v1877
      %1917 = vmatprep.subr.mxu0 0.0
      %1918 = vmatpush1.xpose.msra.mxu0 %v1880
      %1919 = vmatprep.subr.mxu0 0.0
      %1920 = vmatpush1.xpose.msra.mxu0 %v1883
      %1921 = vmatprep.subr.mxu0 0.0
      %1922 = vmatpush1.xpose.msra.mxu0 %v1886
      %1923 = vmatprep.subr.mxu0 0.0
      %1924 = vmatpush1.xpose.msra.mxu0 %v1889
      %1925 = vmatprep.subr.mxu0 0.0
      %1926 = vmatpush1.xpose.msra.mxu0 %v1892
      %1927 = vmatprep.subr.mxu0 0.0
      %1928 = vmatpush1.xpose.msra.mxu0 %v1895
      %1929 = vmatprep.subr.mxu0 0.0
      %1930 = vmatpush1.xpose.msra.mxu0 0.0
      %1931 = vmatprep.subr.mxu0 0.0
      %1932 = vmatpush1.xpose.msra.mxu0 0.0
      %1933 = vmatprep.subr.mxu0 0.0
      %1934 = vmatpush1.xpose.msra.mxu0 0.0
      %1935 = vmatprep.subr.mxu0 0.0
      %1936 = vmatpush1.xpose.msra.mxu0 0.0
      %1937 = vmatprep.subr.mxu0 0.0
      %1938 = vmatpush1.xpose.msra.mxu0 0.0
      %1939 = vmatprep.subr.mxu0 0.0
      %1940 = vmatpush1.xpose.msra.mxu0 0.0
      %1941 = vmatprep.subr.mxu0 0.0
      %1942 = vmatpush1.xpose.msra.mxu0 0.0
      %1943 = vmatprep.subr.mxu0 0.0
      %1944 = vmatpush1.xpose.msra.mxu0 0.0
      %1945 = vmatprep.subr.mxu0 0.0
      %1946 = vmatpush1.xpose.msra.mxu0 0.0
      %1947 = vmatprep.subr.mxu0 0.0
      %1948 = vmatpush1.xpose.msra.mxu0 0.0
      %1949 = vmatprep.subr.mxu0 0.0
      %1950 = vmatpush1.xpose.msra.mxu0 0.0
      %1951 = vmatprep.subr.mxu0 0.0
      %1952 = vmatpush1.xpose.msra.mxu0 0.0
      %1953 = vmatprep.subr.mxu0 0.0
      %1954 = vmatpush1.xpose.msra.mxu0 0.0
      %1955 = vmatprep.subr.mxu0 0.0
      %1956 = vmatpush1.xpose.msra.mxu0 0.0
      %1957 = vmatprep.subr.mxu0 0.0
      %1958 = vmatpush1.xpose.msra.mxu0 0.0
      %1959 = vmatprep.subr.mxu0 0.0
      %1960 = vmatpush1.xpose.msra.mxu0 0.0
      %1961 = vmatprep.mubr.f32.mxu0 0.0
      %1962 = vmatmul.mubr.f32.gmra.mrb[0].mxu0 %v1802
      %v1963 = vpop.f32.mrb[0].mxu0
      %v1964 = vadd.f32 0.0, %v1963
      %v1965 = vpop.f32.mrb[0].mxu0
      %1966 = vmatprep.mubr.f32.mxu0 0.0
      %1967 = vmatmul.mubr.f32.gmra.mrb[0].mxu0 %v1805
      %v1968 = vpop.f32.mrb[0].mxu0
      %v1969 = vadd.f32 0.0, %v1968
      %v1970 = vpop.f32.mrb[0].mxu0
      %1971 = vmatprep.mubr.f32.mxu0 0.0
      %1972 = vmatmul.mubr.f32.gmra.mrb[0].mxu0 %v1808
      %v1973 = vpop.f32.mrb[0].mxu0
      %v1974 = vadd.f32 0.0, %v1973
      %v1975 = vpop.f32.mrb[0].mxu0
      %1976 = vmatprep.mubr.f32.mxu0 0.0
      %1977 = vmatmul.mubr.f32.gmra.mrb[0].mxu0 %v1811
      %v1978 = vpop.f32.mrb[0].mxu0
      %v1979 = vadd.f32 0.0, %v1978
      %v1980 = vpop.f32.mrb[0].mxu0
      %1981 = vmatprep.mubr.f32.mxu0 0.0
      %1982 = vmatmul.mubr.f32.gmra.mrb[0].mxu0 %v1814
      %v1983 = vpop.f32.mrb[0].mxu0
      %v1984 = vadd.f32 0.0, %v1983
      %v1985 = vpop.f32.mrb[0].mxu0
      %1986 = vmatprep.mubr.f32.mxu0 0.0
      %1987 = vmatmul.mubr.f32.gmra.mrb[0].mxu0 %v1817
      %v1988 = vpop.f32.mrb[0].mxu0
      %v1989 = vadd.f32 0.0, %v1988
      %v1990 = vpop.f32.mrb[0].mxu0
      %1991 = vmatprep.mubr.f32.mxu0 0.0
      %1992 = vmatmul.mubr.f32.gmra.mrb[0].mxu0 %v1820
      %v1993 = vpop.f32.mrb[0].mxu0
      %v1994 = vadd.f32 0.0, %v1993
      %v1995 = vpop.f32.mrb[0].mxu0
      %1996 = vmatprep.mubr.f32.mxu0 0.0
      %1997 = vmatmul.mubr.f32.gmra.mrb[0].mxu0 %v1823
      %v1998 = vpop.f32.mrb[0].mxu0
      %v1999 = vadd.f32 0.0, %v1998
      %v2000 = vpop.f32.mrb[0].mxu0
      %2001 = vmatprep.mubr.f32.mxu0 0.0
      %2002 = vmatmul.mubr.f32.gmra.mrb[0].mxu0 %v1826
      %v2003 = vpop.f32.mrb[0].mxu0
      %v2004 = vadd.f32 0.0, %v2003
      %v2005 = vpop.f32.mrb[0].mxu0
      %2006 = vmatprep.mubr.f32.mxu0 0.0
      %2007 = vmatmul.mubr.f32.gmra.mrb[0].mxu0 %v1829
      %v2008 = vpop.f32.mrb[0].mxu0
      %v2009 = vadd.f32 0.0, %v2008
      %v2010 = vpop.f32.mrb[0].mxu0
      %2011 = vmatprep.mubr.f32.mxu0 0.0
      %2012 = vmatmul.mubr.f32.gmra.mrb[0].mxu0 %v1832
      %v2013 = vpop.f32.mrb[0].mxu0
      %v2014 = vadd.f32 0.0, %v2013
      %v2015 = vpop.f32.mrb[0].mxu0
      %2016 = vmatprep.mubr.f32.mxu0 0.0
      %2017 = vmatmul.mubr.f32.gmra.mrb[0].mxu0 %v1835
      %v2018 = vpop.f32.mrb[0].mxu0
      %v2019 = vadd.f32 0.0, %v2018
      %v2020 = vpop.f32.mrb[0].mxu0
      %2021 = vmatprep.mubr.f32.mxu0 0.0
      %2022 = vmatmul.mubr.f32.gmra.mrb[0].mxu0 %v1838
      %v2023 = vpop.f32.mrb[0].mxu0
      %v2024 = vadd.f32 0.0, %v2023
      %v2025 = vpop.f32.mrb[0].mxu0
      %2026 = vmatprep.mubr.f32.mxu0 0.0
      %2027 = vmatmul.mubr.f32.gmra.mrb[0].mxu0 %v1841
      %v2028 = vpop.f32.mrb[0].mxu0
      %v2029 = vadd.f32 0.0, %v2028
      %v2030 = vpop.f32.mrb[0].mxu0
      %2031 = vmatprep.mubr.f32.mxu0 0.0
      %2032 = vmatmul.mubr.f32.gmra.mrb[0].mxu0 %v1844
      %v2033 = vpop.f32.mrb[0].mxu0
      %v2034 = vadd.f32 0.0, %v2033
      %v2035 = vpop.f32.mrb[0].mxu0
      %2036 = vmatprep.mubr.f32.mxu0 0.0
      %2037 = vmatmul.mubr.f32.gmra.mrb[0].mxu0 %v1847
      %v2038 = vpop.f32.mrb[0].mxu0
      %v2039 = vadd.f32 0.0, %v2038
      %v2040 = vpop.f32.mrb[0].mxu0
      %2041 = vdwg.mxu0
      %v2043 = vsel %vm595, %v307, 0
      %v2046 = vsel %vm595, %v308, 0
      %v2049 = vsel %vm595, %v309, 0
      %v2052 = vsel %vm595, %v310, 0
      %v2055 = vsel %vm595, %v311, 0
      %v2058 = vsel %vm595, %v312, 0
      %v2061 = vsel %vm595, %v313, 0
      %v2064 = vsel %vm595, %v314, 0
      %v2067 = vsel %vm595, %v315, 0
      %v2070 = vsel %vm595, %v316, 0
      %v2073 = vsel %vm595, %v317, 0
      %v2076 = vsel %vm595, %v318, 0
      %v2079 = vsel %vm595, %v319, 0
      %v2082 = vsel %vm595, %v320, 0
      %v2085 = vsel %vm595, %v321, 0
      %v2088 = vsel %vm595, %v322, 0
      %v2091 = vsel %vm595, %v435, 0
      %v2094 = vsel %vm595, %v436, 0
      %v2097 = vsel %vm595, %v437, 0
      %v2100 = vsel %vm595, %v438, 0
      %v2103 = vsel %vm595, %v439, 0
      %v2106 = vsel %vm595, %v440, 0
      %v2109 = vsel %vm595, %v441, 0
      %v2112 = vsel %vm595, %v442, 0
      %v2115 = vsel %vm595, %v443, 0
      %v2118 = vsel %vm595, %v444, 0
      %v2121 = vsel %vm595, %v445, 0
      %v2124 = vsel %vm595, %v446, 0
      %v2127 = vsel %vm595, %v447, 0
      %v2130 = vsel %vm595, %v448, 0
      %v2133 = vsel %vm595, %v449, 0
      %v2136 = vsel %vm595, %v450, 0
      %2138 = vmatprep.subr.mxu0 0.0
      %2139 = vmatpush1.xpose.msra.mxu0 %v2091
      %2140 = vmatprep.subr.mxu0 0.0
      %2141 = vmatpush1.xpose.msra.mxu0 %v2094
      %2142 = vmatprep.subr.mxu0 0.0
      %2143 = vmatpush1.xpose.msra.mxu0 %v2097
      %2144 = vmatprep.subr.mxu0 0.0
      %2145 = vmatpush1.xpose.msra.mxu0 %v2100
      %2146 = vmatprep.subr.mxu0 0.0
      %2147 = vmatpush1.xpose.msra.mxu0 %v2103
      %2148 = vmatprep.subr.mxu0 0.0
      %2149 = vmatpush1.xpose.msra.mxu0 %v2106
      %2150 = vmatprep.subr.mxu0 0.0
      %2151 = vmatpush1.xpose.msra.mxu0 %v2109
      %2152 = vmatprep.subr.mxu0 0.0
      %2153 = vmatpush1.xpose.msra.mxu0 %v2112
      %2154 = vmatprep.subr.mxu0 0.0
      %2155 = vmatpush1.xpose.msra.mxu0 %v2115
      %2156 = vmatprep.subr.mxu0 0.0
      %2157 = vmatpush1.xpose.msra.mxu0 %v2118
      %2158 = vmatprep.subr.mxu0 0.0
      %2159 = vmatpush1.xpose.msra.mxu0 %v2121
      %2160 = vmatprep.subr.mxu0 0.0
      %2161 = vmatpush1.xpose.msra.mxu0 %v2124
      %2162 = vmatprep.subr.mxu0 0.0
      %2163 = vmatpush1.xpose.msra.mxu0 %v2127
      %2164 = vmatprep.subr.mxu0 0.0
      %2165 = vmatpush1.xpose.msra.mxu0 %v2130
      %2166 = vmatprep.subr.mxu0 0.0
      %2167 = vmatpush1.xpose.msra.mxu0 %v2133
      %2168 = vmatprep.subr.mxu0 0.0
      %2169 = vmatpush1.xpose.msra.mxu0 %v2136
      %2170 = vmatprep.subr.mxu0 0.0
      %2171 = vmatpush1.xpose.msra.mxu0 0.0
      %2172 = vmatprep.subr.mxu0 0.0
      %2173 = vmatpush1.xpose.msra.mxu0 0.0
      %2174 = vmatprep.subr.mxu0 0.0
      %2175 = vmatpush1.xpose.msra.mxu0 0.0
      %2176 = vmatprep.subr.mxu0 0.0
      %2177 = vmatpush1.xpose.msra.mxu0 0.0
      %2178 = vmatprep.subr.mxu0 0.0
      %2179 = vmatpush1.xpose.msra.mxu0 0.0
      %2180 = vmatprep.subr.mxu0 0.0
      %2181 = vmatpush1.xpose.msra.mxu0 0.0
      %2182 = vmatprep.subr.mxu0 0.0
      %2183 = vmatpush1.xpose.msra.mxu0 0.0
      %2184 = vmatprep.subr.mxu0 0.0
      %2185 = vmatpush1.xpose.msra.mxu0 0.0
      %2186 = vmatprep.subr.mxu0 0.0
      %2187 = vmatpush1.xpose.msra.mxu0 0.0
      %2188 = vmatprep.subr.mxu0 0.0
      %2189 = vmatpush1.xpose.msra.mxu0 0.0
      %2190 = vmatprep.subr.mxu0 0.0
      %2191 = vmatpush1.xpose.msra.mxu0 0.0
      %2192 = vmatprep.subr.mxu0 0.0
      %2193 = vmatpush1.xpose.msra.mxu0 0.0
      %2194 = vmatprep.subr.mxu0 0.0
      %2195 = vmatpush1.xpose.msra.mxu0 0.0
      %2196 = vmatprep.subr.mxu0 0.0
      %2197 = vmatpush1.xpose.msra.mxu0 0.0
      %2198 = vmatprep.subr.mxu0 0.0
      %2199 = vmatpush1.xpose.msra.mxu0 0.0
      %2200 = vmatprep.subr.mxu0 0.0
      %2201 = vmatpush1.xpose.msra.mxu0 0.0
      %2202 = vmatprep.mubr.f32.mxu0 0.0
      %2203 = vmatmul.mubr.f32.gmra.mrb[0].mxu0 %v2043
      %v2204 = vpop.f32.mrb[0].mxu0
      %v2205 = vadd.f32 0.0, %v2204
      %v2206 = vpop.f32.mrb[0].mxu0
      %2207 = vmatprep.mubr.f32.mxu0 0.0
      %2208 = vmatmul.mubr.f32.gmra.mrb[0].mxu0 %v2046
      %v2209 = vpop.f32.mrb[0].mxu0
      %v2210 = vadd.f32 0.0, %v2209
      %v2211 = vpop.f32.mrb[0].mxu0
      %2212 = vmatprep.mubr.f32.mxu0 0.0
      %2213 = vmatmul.mubr.f32.gmra.mrb[0].mxu0 %v2049
      %v2214 = vpop.f32.mrb[0].mxu0
      %v2215 = vadd.f32 0.0, %v2214
      %v2216 = vpop.f32.mrb[0].mxu0
      %2217 = vmatprep.mubr.f32.mxu0 0.0
      %2218 = vmatmul.mubr.f32.gmra.mrb[0].mxu0 %v2052
      %v2219 = vpop.f32.mrb[0].mxu0
      %v2220 = vadd.f32 0.0, %v2219
      %v2221 = vpop.f32.mrb[0].mxu0
      %2222 = vmatprep.mubr.f32.mxu0 0.0
      %2223 = vmatmul.mubr.f32.gmra.mrb[0].mxu0 %v2055
      %v2224 = vpop.f32.mrb[0].mxu0
      %v2225 = vadd.f32 0.0, %v2224
      %v2226 = vpop.f32.mrb[0].mxu0
      %2227 = vmatprep.mubr.f32.mxu0 0.0
      %2228 = vmatmul.mubr.f32.gmra.mrb[0].mxu0 %v2058
      %v2229 = vpop.f32.mrb[0].mxu0
      %v2230 = vadd.f32 0.0, %v2229
      %v2231 = vpop.f32.mrb[0].mxu0
      %2232 = vmatprep.mubr.f32.mxu0 0.0
      %2233 = vmatmul.mubr.f32.gmra.mrb[0].mxu0 %v2061
      %v2234 = vpop.f32.mrb[0].mxu0
      %v2235 = vadd.f32 0.0, %v2234
      %v2236 = vpop.f32.mrb[0].mxu0
      %2237 = vmatprep.mubr.f32.mxu0 0.0
      %2238 = vmatmul.mubr.f32.gmra.mrb[0].mxu0 %v2064
      %v2239 = vpop.f32.mrb[0].mxu0
      %v2240 = vadd.f32 0.0, %v2239
      %v2241 = vpop.f32.mrb[0].mxu0
      %2242 = vmatprep.mubr.f32.mxu0 0.0
      %2243 = vmatmul.mubr.f32.gmra.mrb[0].mxu0 %v2067
      %v2244 = vpop.f32.mrb[0].mxu0
      %v2245 = vadd.f32 0.0, %v2244
      %v2246 = vpop.f32.mrb[0].mxu0
      %2247 = vmatprep.mubr.f32.mxu0 0.0
      %2248 = vmatmul.mubr.f32.gmra.mrb[0].mxu0 %v2070
      %v2249 = vpop.f32.mrb[0].mxu0
      %v2250 = vadd.f32 0.0, %v2249
      %v2251 = vpop.f32.mrb[0].mxu0
      %2252 = vmatprep.mubr.f32.mxu0 0.0
      %2253 = vmatmul.mubr.f32.gmra.mrb[0].mxu0 %v2073
      %v2254 = vpop.f32.mrb[0].mxu0
      %v2255 = vadd.f32 0.0, %v2254
      %v2256 = vpop.f32.mrb[0].mxu0
      %2257 = vmatprep.mubr.f32.mxu0 0.0
      %2258 = vmatmul.mubr.f32.gmra.mrb[0].mxu0 %v2076
      %v2259 = vpop.f32.mrb[0].mxu0
      %v2260 = vadd.f32 0.0, %v2259
      %v2261 = vpop.f32.mrb[0].mxu0
      %2262 = vmatprep.mubr.f32.mxu0 0.0
      %2263 = vmatmul.mubr.f32.gmra.mrb[0].mxu0 %v2079
      %v2264 = vpop.f32.mrb[0].mxu0
      %v2265 = vadd.f32 0.0, %v2264
      %v2266 = vpop.f32.mrb[0].mxu0
      %2267 = vmatprep.mubr.f32.mxu0 0.0
      %2268 = vmatmul.mubr.f32.gmra.mrb[0].mxu0 %v2082
      %v2269 = vpop.f32.mrb[0].mxu0
      %v2270 = vadd.f32 0.0, %v2269
      %v2271 = vpop.f32.mrb[0].mxu0
      %2272 = vmatprep.mubr.f32.mxu0 0.0
      %2273 = vmatmul.mubr.f32.gmra.mrb[0].mxu0 %v2085
      %v2274 = vpop.f32.mrb[0].mxu0
      %v2275 = vadd.f32 0.0, %v2274
      %v2276 = vpop.f32.mrb[0].mxu0
      %2277 = vmatprep.mubr.f32.mxu0 0.0
      %2278 = vmatmul.mubr.f32.gmra.mrb[0].mxu0 %v2088
      %v2279 = vpop.f32.mrb[0].mxu0
      %v2280 = vadd.f32 0.0, %v2279
      %v2281 = vpop.f32.mrb[0].mxu0
      %2282 = vdwg.mxu0
      %v2284 = vsel %vm595, %v323, 0
      %v2287 = vsel %vm595, %v324, 0
      %v2290 = vsel %vm595, %v325, 0
      %v2293 = vsel %vm595, %v326, 0
      %v2296 = vsel %vm595, %v327, 0
      %v2299 = vsel %vm595, %v328, 0
      %v2302 = vsel %vm595, %v329, 0
      %v2305 = vsel %vm595, %v330, 0
      %v2308 = vsel %vm595, %v331, 0
      %v2311 = vsel %vm595, %v332, 0
      %v2314 = vsel %vm595, %v333, 0
      %v2317 = vsel %vm595, %v334, 0
      %v2320 = vsel %vm595, %v335, 0
      %v2323 = vsel %vm595, %v336, 0
      %v2326 = vsel %vm595, %v337, 0
      %v2329 = vsel %vm595, %v338, 0
      %v2332 = vsel %vm595, %v451, 0
      %v2335 = vsel %vm595, %v452, 0
      %v2338 = vsel %vm595, %v453, 0
      %v2341 = vsel %vm595, %v454, 0
      %v2344 = vsel %vm595, %v455, 0
      %v2347 = vsel %vm595, %v456, 0
      %v2350 = vsel %vm595, %v457, 0
      %v2353 = vsel %vm595, %v458, 0
      %v2356 = vsel %vm595, %v459, 0
      %v2359 = vsel %vm595, %v460, 0
      %v2362 = vsel %vm595, %v461, 0
      %v2365 = vsel %vm595, %v462, 0
      %v2368 = vsel %vm595, %v463, 0
      %v2371 = vsel %vm595, %v464, 0
      %v2374 = vsel %vm595, %v465, 0
      %v2377 = vsel %vm595, %v466, 0
      %2379 = vmatprep.subr.mxu0 0.0
      %2380 = vmatpush1.xpose.msra.mxu0 %v2332
      %2381 = vmatprep.subr.mxu0 0.0
      %2382 = vmatpush1.xpose.msra.mxu0 %v2335
      %2383 = vmatprep.subr.mxu0 0.0
      %2384 = vmatpush1.xpose.msra.mxu0 %v2338
      %2385 = vmatprep.subr.mxu0 0.0
      %2386 = vmatpush1.xpose.msra.mxu0 %v2341
      %2387 = vmatprep.subr.mxu0 0.0
      %2388 = vmatpush1.xpose.msra.mxu0 %v2344
      %2389 = vmatprep.subr.mxu0 0.0
      %2390 = vmatpush1.xpose.msra.mxu0 %v2347
      %2391 = vmatprep.subr.mxu0 0.0
      %2392 = vmatpush1.xpose.msra.mxu0 %v2350
      %2393 = vmatprep.subr.mxu0 0.0
      %2394 = vmatpush1.xpose.msra.mxu0 %v2353
      %2395 = vmatprep.subr.mxu0 0.0
      %2396 = vmatpush1.xpose.msra.mxu0 %v2356
      %2397 = vmatprep.subr.mxu0 0.0
      %2398 = vmatpush1.xpose.msra.mxu0 %v2359
      %2399 = vmatprep.subr.mxu0 0.0
      %2400 = vmatpush1.xpose.msra.mxu0 %v2362
      %2401 = vmatprep.subr.mxu0 0.0
      %2402 = vmatpush1.xpose.msra.mxu0 %v2365
      %2403 = vmatprep.subr.mxu0 0.0
      %2404 = vmatpush1.xpose.msra.mxu0 %v2368
      %2405 = vmatprep.subr.mxu0 0.0
      %2406 = vmatpush1.xpose.msra.mxu0 %v2371
      %2407 = vmatprep.subr.mxu0 0.0
      %2408 = vmatpush1.xpose.msra.mxu0 %v2374
      %2409 = vmatprep.subr.mxu0 0.0
      %2410 = vmatpush1.xpose.msra.mxu0 %v2377
      %2411 = vmatprep.subr.mxu0 0.0
      %2412 = vmatpush1.xpose.msra.mxu0 0.0
      %2413 = vmatprep.subr.mxu0 0.0
      %2414 = vmatpush1.xpose.msra.mxu0 0.0
      %2415 = vmatprep.subr.mxu0 0.0
      %2416 = vmatpush1.xpose.msra.mxu0 0.0
      %2417 = vmatprep.subr.mxu0 0.0
      %2418 = vmatpush1.xpose.msra.mxu0 0.0
      %2419 = vmatprep.subr.mxu0 0.0
      %2420 = vmatpush1.xpose.msra.mxu0 0.0
      %2421 = vmatprep.subr.mxu0 0.0
      %2422 = vmatpush1.xpose.msra.mxu0 0.0
      %2423 = vmatprep.subr.mxu0 0.0
      %2424 = vmatpush1.xpose.msra.mxu0 0.0
      %2425 = vmatprep.subr.mxu0 0.0
      %2426 = vmatpush1.xpose.msra.mxu0 0.0
      %2427 = vmatprep.subr.mxu0 0.0
      %2428 = vmatpush1.xpose.msra.mxu0 0.0
      %2429 = vmatprep.subr.mxu0 0.0
      %2430 = vmatpush1.xpose.msra.mxu0 0.0
      %2431 = vmatprep.subr.mxu0 0.0
      %2432 = vmatpush1.xpose.msra.mxu0 0.0
      %2433 = vmatprep.subr.mxu0 0.0
      %2434 = vmatpush1.xpose.msra.mxu0 0.0
      %2435 = vmatprep.subr.mxu0 0.0
      %2436 = vmatpush1.xpose.msra.mxu0 0.0
      %2437 = vmatprep.subr.mxu0 0.0
      %2438 = vmatpush1.xpose.msra.mxu0 0.0
      %2439 = vmatprep.subr.mxu0 0.0
      %2440 = vmatpush1.xpose.msra.mxu0 0.0
      %2441 = vmatprep.subr.mxu0 0.0
      %2442 = vmatpush1.xpose.msra.mxu0 0.0
      %2443 = vmatprep.mubr.f32.mxu0 0.0
      %2444 = vmatmul.mubr.f32.gmra.mrb[0].mxu0 %v2284
      %v2445 = vpop.f32.mrb[0].mxu0
      %v2446 = vadd.f32 0.0, %v2445
      %v2447 = vpop.f32.mrb[0].mxu0
      %2448 = vmatprep.mubr.f32.mxu0 0.0
      %2449 = vmatmul.mubr.f32.gmra.mrb[0].mxu0 %v2287
      %v2450 = vpop.f32.mrb[0].mxu0
      %v2451 = vadd.f32 0.0, %v2450
      %v2452 = vpop.f32.mrb[0].mxu0
      %2453 = vmatprep.mubr.f32.mxu0 0.0
      %2454 = vmatmul.mubr.f32.gmra.mrb[0].mxu0 %v2290
      %v2455 = vpop.f32.mrb[0].mxu0
      %v2456 = vadd.f32 0.0, %v2455
      %v2457 = vpop.f32.mrb[0].mxu0
      %2458 = vmatprep.mubr.f32.mxu0 0.0
      %2459 = vmatmul.mubr.f32.gmra.mrb[0].mxu0 %v2293
      %v2460 = vpop.f32.mrb[0].mxu0
      %v2461 = vadd.f32 0.0, %v2460
      %v2462 = vpop.f32.mrb[0].mxu0
      %2463 = vmatprep.mubr.f32.mxu0 0.0
      %2464 = vmatmul.mubr.f32.gmra.mrb[0].mxu0 %v2296
      %v2465 = vpop.f32.mrb[0].mxu0
      %v2466 = vadd.f32 0.0, %v2465
      %v2467 = vpop.f32.mrb[0].mxu0
      %2468 = vmatprep.mubr.f32.mxu0 0.0
      %2469 = vmatmul.mubr.f32.gmra.mrb[0].mxu0 %v2299
      %v2470 = vpop.f32.mrb[0].mxu0
      %v2471 = vadd.f32 0.0, %v2470
      %v2472 = vpop.f32.mrb[0].mxu0
      %2473 = vmatprep.mubr.f32.mxu0 0.0
      %2474 = vmatmul.mubr.f32.gmra.mrb[0].mxu0 %v2302
      %v2475 = vpop.f32.mrb[0].mxu0
      %v2476 = vadd.f32 0.0, %v2475
      %v2477 = vpop.f32.mrb[0].mxu0
      %2478 = vmatprep.mubr.f32.mxu0 0.0
      %2479 = vmatmul.mubr.f32.gmra.mrb[0].mxu0 %v2305
      %v2480 = vpop.f32.mrb[0].mxu0
      %v2481 = vadd.f32 0.0, %v2480
      %v2482 = vpop.f32.mrb[0].mxu0
      %2483 = vmatprep.mubr.f32.mxu0 0.0
      %2484 = vmatmul.mubr.f32.gmra.mrb[0].mxu0 %v2308
      %v2485 = vpop.f32.mrb[0].mxu0
      %v2486 = vadd.f32 0.0, %v2485
      %v2487 = vpop.f32.mrb[0].mxu0
      %2488 = vmatprep.mubr.f32.mxu0 0.0
      %2489 = vmatmul.mubr.f32.gmra.mrb[0].mxu0 %v2311
      %v2490 = vpop.f32.mrb[0].mxu0
      %v2491 = vadd.f32 0.0, %v2490
      %v2492 = vpop.f32.mrb[0].mxu0
      %2493 = vmatprep.mubr.f32.mxu0 0.0
      %2494 = vmatmul.mubr.f32.gmra.mrb[0].mxu0 %v2314
      %v2495 = vpop.f32.mrb[0].mxu0
      %v2496 = vadd.f32 0.0, %v2495
      %v2497 = vpop.f32.mrb[0].mxu0
      %2498 = vmatprep.mubr.f32.mxu0 0.0
      %2499 = vmatmul.mubr.f32.gmra.mrb[0].mxu0 %v2317
      %v2500 = vpop.f32.mrb[0].mxu0
      %v2501 = vadd.f32 0.0, %v2500
      %v2502 = vpop.f32.mrb[0].mxu0
      %2503 = vmatprep.mubr.f32.mxu0 0.0
      %2504 = vmatmul.mubr.f32.gmra.mrb[0].mxu0 %v2320
      %v2505 = vpop.f32.mrb[0].mxu0
      %v2506 = vadd.f32 0.0, %v2505
      %v2507 = vpop.f32.mrb[0].mxu0
      %2508 = vmatprep.mubr.f32.mxu0 0.0
      %2509 = vmatmul.mubr.f32.gmra.mrb[0].mxu0 %v2323
      %v2510 = vpop.f32.mrb[0].mxu0
      %v2511 = vadd.f32 0.0, %v2510
      %v2512 = vpop.f32.mrb[0].mxu0
      %2513 = vmatprep.mubr.f32.mxu0 0.0
      %2514 = vmatmul.mubr.f32.gmra.mrb[0].mxu0 %v2326
      %v2515 = vpop.f32.mrb[0].mxu0
      %v2516 = vadd.f32 0.0, %v2515
      %v2517 = vpop.f32.mrb[0].mxu0
      %2518 = vmatprep.mubr.f32.mxu0 0.0
      %2519 = vmatmul.mubr.f32.gmra.mrb[0].mxu0 %v2329
      %v2520 = vpop.f32.mrb[0].mxu0
      %v2521 = vadd.f32 0.0, %v2520
      %v2522 = vpop.f32.mrb[0].mxu0
      %2523 = vdwg.mxu0
      %v2524 = vmul.f32 %v759, 0.25
      %v2525 = vmul.f32 %v764, 0.25
      %v2526 = vmul.f32 %v769, 0.25
      %v2527 = vmul.f32 %v774, 0.25
      %v2528 = vmul.f32 %v779, 0.25
      %v2529 = vmul.f32 %v784, 0.25
      %v2530 = vmul.f32 %v789, 0.25
      %v2531 = vmul.f32 %v794, 0.25
      %v2532 = vmul.f32 %v799, 0.25
      %v2533 = vmul.f32 %v804, 0.25
      %v2534 = vmul.f32 %v809, 0.25
      %v2535 = vmul.f32 %v814, 0.25
      %v2536 = vmul.f32 %v819, 0.25
      %v2537 = vmul.f32 %v824, 0.25
      %v2538 = vmul.f32 %v829, 0.25
      %v2539 = vmul.f32 %v834, 0.25
      %v2540 = vmul.f32 %v1000, 0.25
      %v2541 = vmul.f32 %v1005, 0.25
      %v2542 = vmul.f32 %v1010, 0.25
      %v2543 = vmul.f32 %v1015, 0.25
      %v2544 = vmul.f32 %v1020, 0.25
      %v2545 = vmul.f32 %v1025, 0.25
      %v2546 = vmul.f32 %v1030, 0.25
      %v2547 = vmul.f32 %v1035, 0.25
      %v2548 = vmul.f32 %v1040, 0.25
      %v2549 = vmul.f32 %v1045, 0.25
      %v2550 = vmul.f32 %v1050, 0.25
      %v2551 = vmul.f32 %v1055, 0.25
      %v2552 = vmul.f32 %v1060, 0.25
      %v2553 = vmul.f32 %v1065, 0.25
      %v2554 = vmul.f32 %v1070, 0.25
      %v2555 = vmul.f32 %v1075, 0.25
      %v2556 = vmul.f32 %v1241, 0.25
      %v2557 = vmul.f32 %v1246, 0.25
      %v2558 = vmul.f32 %v1251, 0.25
      %v2559 = vmul.f32 %v1256, 0.25
      %v2560 = vmul.f32 %v1261, 0.25
      %v2561 = vmul.f32 %v1266, 0.25
      %v2562 = vmul.f32 %v1271, 0.25
      %v2563 = vmul.f32 %v1276, 0.25
      %v2564 = vmul.f32 %v1281, 0.25
      %v2565 = vmul.f32 %v1286, 0.25
      %v2566 = vmul.f32 %v1291, 0.25
      %v2567 = vmul.f32 %v1296, 0.25
      %v2568 = vmul.f32 %v1301, 0.25
      %v2569 = vmul.f32 %v1306, 0.25
      %v2570 = vmul.f32 %v1311, 0.25
      %v2571 = vmul.f32 %v1316, 0.25
      %v2572 = vmul.f32 %v1482, 0.25
      %v2573 = vmul.f32 %v1487, 0.25
      %v2574 = vmul.f32 %v1492, 0.25
      %v2575 = vmul.f32 %v1497, 0.25
      %v2576 = vmul.f32 %v1502, 0.25
      %v2577 = vmul.f32 %v1507, 0.25
      %v2578 = vmul.f32 %v1512, 0.25
      %v2579 = vmul.f32 %v1517, 0.25
      %v2580 = vmul.f32 %v1522, 0.25
      %v2581 = vmul.f32 %v1527, 0.25
      %v2582 = vmul.f32 %v1532, 0.25
      %v2583 = vmul.f32 %v1537, 0.25
      %v2584 = vmul.f32 %v1542, 0.25
      %v2585 = vmul.f32 %v1547, 0.25
      %v2586 = vmul.f32 %v1552, 0.25
      %v2587 = vmul.f32 %v1557, 0.25
      %v2588 = vmul.f32 %v1723, 0.25
      %v2589 = vmul.f32 %v1728, 0.25
      %v2590 = vmul.f32 %v1733, 0.25
      %v2591 = vmul.f32 %v1738, 0.25
      %v2592 = vmul.f32 %v1743, 0.25
      %v2593 = vmul.f32 %v1748, 0.25
      %v2594 = vmul.f32 %v1753, 0.25
      %v2595 = vmul.f32 %v1758, 0.25
      %v2596 = vmul.f32 %v1763, 0.25
      %v2597 = vmul.f32 %v1768, 0.25
      %v2598 = vmul.f32 %v1773, 0.25
      %v2599 = vmul.f32 %v1778, 0.25
      %v2600 = vmul.f32 %v1783, 0.25
      %v2601 = vmul.f32 %v1788, 0.25
      %v2602 = vmul.f32 %v1793, 0.25
      %v2603 = vmul.f32 %v1798, 0.25
      %v2604 = vmul.f32 %v1964, 0.25
      %v2605 = vmul.f32 %v1969, 0.25
      %v2606 = vmul.f32 %v1974, 0.25
      %v2607 = vmul.f32 %v1979, 0.25
      %v2608 = vmul.f32 %v1984, 0.25
      %v2609 = vmul.f32 %v1989, 0.25
      %v2610 = vmul.f32 %v1994, 0.25
      %v2611 = vmul.f32 %v1999, 0.25
      %v2612 = vmul.f32 %v2004, 0.25
      %v2613 = vmul.f32 %v2009, 0.25
      %v2614 = vmul.f32 %v2014, 0.25
      %v2615 = vmul.f32 %v2019, 0.25
      %v2616 = vmul.f32 %v2024, 0.25
      %v2617 = vmul.f32 %v2029, 0.25
      %v2618 = vmul.f32 %v2034, 0.25
      %v2619 = vmul.f32 %v2039, 0.25
      %v2620 = vmul.f32 %v2205, 0.25
      %v2621 = vmul.f32 %v2210, 0.25
      %v2622 = vmul.f32 %v2215, 0.25
      %v2623 = vmul.f32 %v2220, 0.25
      %v2624 = vmul.f32 %v2225, 0.25
      %v2625 = vmul.f32 %v2230, 0.25
      %v2626 = vmul.f32 %v2235, 0.25
      %v2627 = vmul.f32 %v2240, 0.25
      %v2628 = vmul.f32 %v2245, 0.25
      %v2629 = vmul.f32 %v2250, 0.25
      %v2630 = vmul.f32 %v2255, 0.25
      %v2631 = vmul.f32 %v2260, 0.25
      %v2632 = vmul.f32 %v2265, 0.25
      %v2633 = vmul.f32 %v2270, 0.25
      %v2634 = vmul.f32 %v2275, 0.25
      %v2635 = vmul.f32 %v2280, 0.25
      %v2636 = vmul.f32 %v2446, 0.25
      %v2637 = vmul.f32 %v2451, 0.25
      %v2638 = vmul.f32 %v2456, 0.25
      %v2639 = vmul.f32 %v2461, 0.25
      %v2640 = vmul.f32 %v2466, 0.25
      %v2641 = vmul.f32 %v2471, 0.25
      %v2642 = vmul.f32 %v2476, 0.25
      %v2643 = vmul.f32 %v2481, 0.25
      %v2644 = vmul.f32 %v2486, 0.25
      %v2645 = vmul.f32 %v2491, 0.25
      %v2646 = vmul.f32 %v2496, 0.25
      %v2647 = vmul.f32 %v2501, 0.25
      %v2648 = vmul.f32 %v2506, 0.25
      %v2649 = vmul.f32 %v2511, 0.25
      %v2650 = vmul.f32 %v2516, 0.25
      %v2651 = vmul.f32 %v2521, 0.25
      %2652 = vmax.xlane.f32.xlu0 %v2524
      %v2653 = vpop.xlane.xlu0 %2652
      %2654 = vmax.xlane.f32.xlu0 %v2525
      %v2655 = vpop.xlane.xlu0 %2654
      %2656 = vmax.xlane.f32.xlu0 %v2526
      %v2657 = vpop.xlane.xlu0 %2656
      %2658 = vmax.xlane.f32.xlu0 %v2527
      %v2659 = vpop.xlane.xlu0 %2658
      %2660 = vmax.xlane.f32.xlu0 %v2528
      %v2661 = vpop.xlane.xlu0 %2660
      %2662 = vmax.xlane.f32.xlu0 %v2529
      %v2663 = vpop.xlane.xlu0 %2662
      %2664 = vmax.xlane.f32.xlu0 %v2530
      %v2665 = vpop.xlane.xlu0 %2664
      %2666 = vmax.xlane.f32.xlu0 %v2531
      %v2667 = vpop.xlane.xlu0 %2666
      %2668 = vmax.xlane.f32.xlu0 %v2532
      %v2669 = vpop.xlane.xlu0 %2668
      %2670 = vmax.xlane.f32.xlu0 %v2533
      %v2671 = vpop.xlane.xlu0 %2670
      %2672 = vmax.xlane.f32.xlu0 %v2534
      %v2673 = vpop.xlane.xlu0 %2672
      %2674 = vmax.xlane.f32.xlu0 %v2535
      %v2675 = vpop.xlane.xlu0 %2674
      %2676 = vmax.xlane.f32.xlu0 %v2536
      %v2677 = vpop.xlane.xlu0 %2676
      %2678 = vmax.xlane.f32.xlu0 %v2537
      %v2679 = vpop.xlane.xlu0 %2678
      %2680 = vmax.xlane.f32.xlu0 %v2538
      %v2681 = vpop.xlane.xlu0 %2680
      %2682 = vmax.xlane.f32.xlu0 %v2539
      %v2683 = vpop.xlane.xlu0 %2682
      %2684 = vmax.xlane.f32.xlu0 %v2540
      %v2685 = vpop.xlane.xlu0 %2684
      %2686 = vmax.xlane.f32.xlu0 %v2541
      %v2687 = vpop.xlane.xlu0 %2686
      %2688 = vmax.xlane.f32.xlu0 %v2542
      %v2689 = vpop.xlane.xlu0 %2688
      %2690 = vmax.xlane.f32.xlu0 %v2543
      %v2691 = vpop.xlane.xlu0 %2690
      %2692 = vmax.xlane.f32.xlu0 %v2544
      %v2693 = vpop.xlane.xlu0 %2692
      %2694 = vmax.xlane.f32.xlu0 %v2545
      %v2695 = vpop.xlane.xlu0 %2694
      %2696 = vmax.xlane.f32.xlu0 %v2546
      %v2697 = vpop.xlane.xlu0 %2696
      %2698 = vmax.xlane.f32.xlu0 %v2547
      %v2699 = vpop.xlane.xlu0 %2698
      %2700 = vmax.xlane.f32.xlu0 %v2548
      %v2701 = vpop.xlane.xlu0 %2700
      %2702 = vmax.xlane.f32.xlu0 %v2549
      %v2703 = vpop.xlane.xlu0 %2702
      %2704 = vmax.xlane.f32.xlu0 %v2550
      %v2705 = vpop.xlane.xlu0 %2704
      %2706 = vmax.xlane.f32.xlu0 %v2551
      %v2707 = vpop.xlane.xlu0 %2706
      %2708 = vmax.xlane.f32.xlu0 %v2552
      %v2709 = vpop.xlane.xlu0 %2708
      %2710 = vmax.xlane.f32.xlu0 %v2553
      %v2711 = vpop.xlane.xlu0 %2710
      %2712 = vmax.xlane.f32.xlu0 %v2554
      %v2713 = vpop.xlane.xlu0 %2712
      %2714 = vmax.xlane.f32.xlu0 %v2555
      %v2715 = vpop.xlane.xlu0 %2714
      %2716 = vmax.xlane.f32.xlu0 %v2556
      %v2717 = vpop.xlane.xlu0 %2716
      %2718 = vmax.xlane.f32.xlu0 %v2557
      %v2719 = vpop.xlane.xlu0 %2718
      %2720 = vmax.xlane.f32.xlu0 %v2558
      %v2721 = vpop.xlane.xlu0 %2720
      %2722 = vmax.xlane.f32.xlu0 %v2559
      %v2723 = vpop.xlane.xlu0 %2722
      %2724 = vmax.xlane.f32.xlu0 %v2560
      %v2725 = vpop.xlane.xlu0 %2724
      %2726 = vmax.xlane.f32.xlu0 %v2561
      %v2727 = vpop.xlane.xlu0 %2726
      %2728 = vmax.xlane.f32.xlu0 %v2562
      %v2729 = vpop.xlane.xlu0 %2728
      %2730 = vmax.xlane.f32.xlu0 %v2563
      %v2731 = vpop.xlane.xlu0 %2730
      %2732 = vmax.xlane.f32.xlu0 %v2564
      %v2733 = vpop.xlane.xlu0 %2732
      %2734 = vmax.xlane.f32.xlu0 %v2565
      %v2735 = vpop.xlane.xlu0 %2734
      %2736 = vmax.xlane.f32.xlu0 %v2566
      %v2737 = vpop.xlane.xlu0 %2736
      %2738 = vmax.xlane.f32.xlu0 %v2567
      %v2739 = vpop.xlane.xlu0 %2738
      %2740 = vmax.xlane.f32.xlu0 %v2568
      %v2741 = vpop.xlane.xlu0 %2740
      %2742 = vmax.xlane.f32.xlu0 %v2569
      %v2743 = vpop.xlane.xlu0 %2742
      %2744 = vmax.xlane.f32.xlu0 %v2570
      %v2745 = vpop.xlane.xlu0 %2744
      %2746 = vmax.xlane.f32.xlu0 %v2571
      %v2747 = vpop.xlane.xlu0 %2746
      %2748 = vmax.xlane.f32.xlu0 %v2572
      %v2749 = vpop.xlane.xlu0 %2748
      %2750 = vmax.xlane.f32.xlu0 %v2573
      %v2751 = vpop.xlane.xlu0 %2750
      %2752 = vmax.xlane.f32.xlu0 %v2574
      %v2753 = vpop.xlane.xlu0 %2752
      %2754 = vmax.xlane.f32.xlu0 %v2575
      %v2755 = vpop.xlane.xlu0 %2754
      %2756 = vmax.xlane.f32.xlu0 %v2576
      %v2757 = vpop.xlane.xlu0 %2756
      %2758 = vmax.xlane.f32.xlu0 %v2577
      %v2759 = vpop.xlane.xlu0 %2758
      %2760 = vmax.xlane.f32.xlu0 %v2578
      %v2761 = vpop.xlane.xlu0 %2760
      %2762 = vmax.xlane.f32.xlu0 %v2579
      %v2763 = vpop.xlane.xlu0 %2762
      %2764 = vmax.xlane.f32.xlu0 %v2580
      %v2765 = vpop.xlane.xlu0 %2764
      %2766 = vmax.xlane.f32.xlu0 %v2581
      %v2767 = vpop.xlane.xlu0 %2766
      %2768 = vmax.xlane.f32.xlu0 %v2582
      %v2769 = vpop.xlane.xlu0 %2768
      %2770 = vmax.xlane.f32.xlu0 %v2583
      %v2771 = vpop.xlane.xlu0 %2770
      %2772 = vmax.xlane.f32.xlu0 %v2584
      %v2773 = vpop.xlane.xlu0 %2772
      %2774 = vmax.xlane.f32.xlu0 %v2585
      %v2775 = vpop.xlane.xlu0 %2774
      %2776 = vmax.xlane.f32.xlu0 %v2586
      %v2777 = vpop.xlane.xlu0 %2776
      %2778 = vmax.xlane.f32.xlu0 %v2587
      %v2779 = vpop.xlane.xlu0 %2778
      %2780 = vmax.xlane.f32.xlu0 %v2588
      %v2781 = vpop.xlane.xlu0 %2780
      %2782 = vmax.xlane.f32.xlu0 %v2589
      %v2783 = vpop.xlane.xlu0 %2782
      %2784 = vmax.xlane.f32.xlu0 %v2590
      %v2785 = vpop.xlane.xlu0 %2784
      %2786 = vmax.xlane.f32.xlu0 %v2591
      %v2787 = vpop.xlane.xlu0 %2786
      %2788 = vmax.xlane.f32.xlu0 %v2592
      %v2789 = vpop.xlane.xlu0 %2788
      %2790 = vmax.xlane.f32.xlu0 %v2593
      %v2791 = vpop.xlane.xlu0 %2790
      %2792 = vmax.xlane.f32.xlu0 %v2594
      %v2793 = vpop.xlane.xlu0 %2792
      %2794 = vmax.xlane.f32.xlu0 %v2595
      %v2795 = vpop.xlane.xlu0 %2794
      %2796 = vmax.xlane.f32.xlu0 %v2596
      %v2797 = vpop.xlane.xlu0 %2796
      %2798 = vmax.xlane.f32.xlu0 %v2597
      %v2799 = vpop.xlane.xlu0 %2798
      %2800 = vmax.xlane.f32.xlu0 %v2598
      %v2801 = vpop.xlane.xlu0 %2800
      %2802 = vmax.xlane.f32.xlu0 %v2599
      %v2803 = vpop.xlane.xlu0 %2802
      %2804 = vmax.xlane.f32.xlu0 %v2600
      %v2805 = vpop.xlane.xlu0 %2804
      %2806 = vmax.xlane.f32.xlu0 %v2601
      %v2807 = vpop.xlane.xlu0 %2806
      %2808 = vmax.xlane.f32.xlu0 %v2602
      %v2809 = vpop.xlane.xlu0 %2808
      %2810 = vmax.xlane.f32.xlu0 %v2603
      %v2811 = vpop.xlane.xlu0 %2810
      %2812 = vmax.xlane.f32.xlu0 %v2604
      %v2813 = vpop.xlane.xlu0 %2812
      %2814 = vmax.xlane.f32.xlu0 %v2605
      %v2815 = vpop.xlane.xlu0 %2814
      %2816 = vmax.xlane.f32.xlu0 %v2606
      %v2817 = vpop.xlane.xlu0 %2816
      %2818 = vmax.xlane.f32.xlu0 %v2607
      %v2819 = vpop.xlane.xlu0 %2818
      %2820 = vmax.xlane.f32.xlu0 %v2608
      %v2821 = vpop.xlane.xlu0 %2820
      %2822 = vmax.xlane.f32.xlu0 %v2609
      %v2823 = vpop.xlane.xlu0 %2822
      %2824 = vmax.xlane.f32.xlu0 %v2610
      %v2825 = vpop.xlane.xlu0 %2824
      %2826 = vmax.xlane.f32.xlu0 %v2611
      %v2827 = vpop.xlane.xlu0 %2826
      %2828 = vmax.xlane.f32.xlu0 %v2612
      %v2829 = vpop.xlane.xlu0 %2828
      %2830 = vmax.xlane.f32.xlu0 %v2613
      %v2831 = vpop.xlane.xlu0 %2830
      %2832 = vmax.xlane.f32.xlu0 %v2614
      %v2833 = vpop.xlane.xlu0 %2832
      %2834 = vmax.xlane.f32.xlu0 %v2615
      %v2835 = vpop.xlane.xlu0 %2834
      %2836 = vmax.xlane.f32.xlu0 %v2616
      %v2837 = vpop.xlane.xlu0 %2836
      %2838 = vmax.xlane.f32.xlu0 %v2617
      %v2839 = vpop.xlane.xlu0 %2838
      %2840 = vmax.xlane.f32.xlu0 %v2618
      %v2841 = vpop.xlane.xlu0 %2840
      %2842 = vmax.xlane.f32.xlu0 %v2619
      %v2843 = vpop.xlane.xlu0 %2842
      %2844 = vmax.xlane.f32.xlu0 %v2620
      %v2845 = vpop.xlane.xlu0 %2844
      %2846 = vmax.xlane.f32.xlu0 %v2621
      %v2847 = vpop.xlane.xlu0 %2846
      %2848 = vmax.xlane.f32.xlu0 %v2622
      %v2849 = vpop.xlane.xlu0 %2848
      %2850 = vmax.xlane.f32.xlu0 %v2623
      %v2851 = vpop.xlane.xlu0 %2850
      %2852 = vmax.xlane.f32.xlu0 %v2624
      %v2853 = vpop.xlane.xlu0 %2852
      %2854 = vmax.xlane.f32.xlu0 %v2625
      %v2855 = vpop.xlane.xlu0 %2854
      %2856 = vmax.xlane.f32.xlu0 %v2626
      %v2857 = vpop.xlane.xlu0 %2856
      %2858 = vmax.xlane.f32.xlu0 %v2627
      %v2859 = vpop.xlane.xlu0 %2858
      %2860 = vmax.xlane.f32.xlu0 %v2628
      %v2861 = vpop.xlane.xlu0 %2860
      %2862 = vmax.xlane.f32.xlu0 %v2629
      %v2863 = vpop.xlane.xlu0 %2862
      %2864 = vmax.xlane.f32.xlu0 %v2630
      %v2865 = vpop.xlane.xlu0 %2864
      %2866 = vmax.xlane.f32.xlu0 %v2631
      %v2867 = vpop.xlane.xlu0 %2866
      %2868 = vmax.xlane.f32.xlu0 %v2632
      %v2869 = vpop.xlane.xlu0 %2868
      %2870 = vmax.xlane.f32.xlu0 %v2633
      %v2871 = vpop.xlane.xlu0 %2870
      %2872 = vmax.xlane.f32.xlu0 %v2634
      %v2873 = vpop.xlane.xlu0 %2872
      %2874 = vmax.xlane.f32.xlu0 %v2635
      %v2875 = vpop.xlane.xlu0 %2874
      %2876 = vmax.xlane.f32.xlu0 %v2636
      %v2877 = vpop.xlane.xlu0 %2876
      %2878 = vmax.xlane.f32.xlu0 %v2637
      %v2879 = vpop.xlane.xlu0 %2878
      %2880 = vmax.xlane.f32.xlu0 %v2638
      %v2881 = vpop.xlane.xlu0 %2880
      %2882 = vmax.xlane.f32.xlu0 %v2639
      %v2883 = vpop.xlane.xlu0 %2882
      %2884 = vmax.xlane.f32.xlu0 %v2640
      %v2885 = vpop.xlane.xlu0 %2884
      %2886 = vmax.xlane.f32.xlu0 %v2641
      %v2887 = vpop.xlane.xlu0 %2886
      %2888 = vmax.xlane.f32.xlu0 %v2642
      %v2889 = vpop.xlane.xlu0 %2888
      %2890 = vmax.xlane.f32.xlu0 %v2643
      %v2891 = vpop.xlane.xlu0 %2890
      %2892 = vmax.xlane.f32.xlu0 %v2644
      %v2893 = vpop.xlane.xlu0 %2892
      %2894 = vmax.xlane.f32.xlu0 %v2645
      %v2895 = vpop.xlane.xlu0 %2894
      %2896 = vmax.xlane.f32.xlu0 %v2646
      %v2897 = vpop.xlane.xlu0 %2896
      %2898 = vmax.xlane.f32.xlu0 %v2647
      %v2899 = vpop.xlane.xlu0 %2898
      %2900 = vmax.xlane.f32.xlu0 %v2648
      %v2901 = vpop.xlane.xlu0 %2900
      %2902 = vmax.xlane.f32.xlu0 %v2649
      %v2903 = vpop.xlane.xlu0 %2902
      %2904 = vmax.xlane.f32.xlu0 %v2650
      %v2905 = vpop.xlane.xlu0 %2904
      %2906 = vmax.xlane.f32.xlu0 %v2651
      %v2907 = vpop.xlane.xlu0 %2906
      %v2908 = vsub.f32 %v2524, %v2653
      %v2909 = vsub.f32 %v2525, %v2655
      %v2910 = vsub.f32 %v2526, %v2657
      %v2911 = vsub.f32 %v2527, %v2659
      %v2912 = vsub.f32 %v2528, %v2661
      %v2913 = vsub.f32 %v2529, %v2663
      %v2914 = vsub.f32 %v2530, %v2665
      %v2915 = vsub.f32 %v2531, %v2667
      %v2916 = vsub.f32 %v2532, %v2669
      %v2917 = vsub.f32 %v2533, %v2671
      %v2918 = vsub.f32 %v2534, %v2673
      %v2919 = vsub.f32 %v2535, %v2675
      %v2920 = vsub.f32 %v2536, %v2677
      %v2921 = vsub.f32 %v2537, %v2679
      %v2922 = vsub.f32 %v2538, %v2681
      %v2923 = vsub.f32 %v2539, %v2683
      %v2924 = vsub.f32 %v2540, %v2685
      %v2925 = vsub.f32 %v2541, %v2687
      %v2926 = vsub.f32 %v2542, %v2689
      %v2927 = vsub.f32 %v2543, %v2691
      %v2928 = vsub.f32 %v2544, %v2693
      %v2929 = vsub.f32 %v2545, %v2695
      %v2930 = vsub.f32 %v2546, %v2697
      %v2931 = vsub.f32 %v2547, %v2699
      %v2932 = vsub.f32 %v2548, %v2701
      %v2933 = vsub.f32 %v2549, %v2703
      %v2934 = vsub.f32 %v2550, %v2705
      %v2935 = vsub.f32 %v2551, %v2707
      %v2936 = vsub.f32 %v2552, %v2709
      %v2937 = vsub.f32 %v2553, %v2711
      %v2938 = vsub.f32 %v2554, %v2713
      %v2939 = vsub.f32 %v2555, %v2715
      %v2940 = vsub.f32 %v2556, %v2717
      %v2941 = vsub.f32 %v2557, %v2719
      %v2942 = vsub.f32 %v2558, %v2721
      %v2943 = vsub.f32 %v2559, %v2723
      %v2944 = vsub.f32 %v2560, %v2725
      %v2945 = vsub.f32 %v2561, %v2727
      %v2946 = vsub.f32 %v2562, %v2729
      %v2947 = vsub.f32 %v2563, %v2731
      %v2948 = vsub.f32 %v2564, %v2733
      %v2949 = vsub.f32 %v2565, %v2735
      %v2950 = vsub.f32 %v2566, %v2737
      %v2951 = vsub.f32 %v2567, %v2739
      %v2952 = vsub.f32 %v2568, %v2741
      %v2953 = vsub.f32 %v2569, %v2743
      %v2954 = vsub.f32 %v2570, %v2745
      %v2955 = vsub.f32 %v2571, %v2747
      %v2956 = vsub.f32 %v2572, %v2749
      %v2957 = vsub.f32 %v2573, %v2751
      %v2958 = vsub.f32 %v2574, %v2753
      %v2959 = vsub.f32 %v2575, %v2755
      %v2960 = vsub.f32 %v2576, %v2757
      %v2961 = vsub.f32 %v2577, %v2759
      %v2962 = vsub.f32 %v2578, %v2761
      %v2963 = vsub.f32 %v2579, %v2763
      %v2964 = vsub.f32 %v2580, %v2765
      %v2965 = vsub.f32 %v2581, %v2767
      %v2966 = vsub.f32 %v2582, %v2769
      %v2967 = vsub.f32 %v2583, %v2771
      %v2968 = vsub.f32 %v2584, %v2773
      %v2969 = vsub.f32 %v2585, %v2775
      %v2970 = vsub.f32 %v2586, %v2777
      %v2971 = vsub.f32 %v2587, %v2779
      %v2972 = vsub.f32 %v2588, %v2781
      %v2973 = vsub.f32 %v2589, %v2783
      %v2974 = vsub.f32 %v2590, %v2785
      %v2975 = vsub.f32 %v2591, %v2787
      %v2976 = vsub.f32 %v2592, %v2789
      %v2977 = vsub.f32 %v2593, %v2791
      %v2978 = vsub.f32 %v2594, %v2793
      %v2979 = vsub.f32 %v2595, %v2795
      %v2980 = vsub.f32 %v2596, %v2797
      %v2981 = vsub.f32 %v2597, %v2799
      %v2982 = vsub.f32 %v2598, %v2801
      %v2983 = vsub.f32 %v2599, %v2803
      %v2984 = vsub.f32 %v2600, %v2805
      %v2985 = vsub.f32 %v2601, %v2807
      %v2986 = vsub.f32 %v2602, %v2809
      %v2987 = vsub.f32 %v2603, %v2811
      %v2988 = vsub.f32 %v2604, %v2813
      %v2989 = vsub.f32 %v2605, %v2815
      %v2990 = vsub.f32 %v2606, %v2817
      %v2991 = vsub.f32 %v2607, %v2819
      %v2992 = vsub.f32 %v2608, %v2821
      %v2993 = vsub.f32 %v2609, %v2823
      %v2994 = vsub.f32 %v2610, %v2825
      %v2995 = vsub.f32 %v2611, %v2827
      %v2996 = vsub.f32 %v2612, %v2829
      %v2997 = vsub.f32 %v2613, %v2831
      %v2998 = vsub.f32 %v2614, %v2833
      %v2999 = vsub.f32 %v2615, %v2835
      %v3000 = vsub.f32 %v2616, %v2837
      %v3001 = vsub.f32 %v2617, %v2839
      %v3002 = vsub.f32 %v2618, %v2841
      %v3003 = vsub.f32 %v2619, %v2843
      %v3004 = vsub.f32 %v2620, %v2845
      %v3005 = vsub.f32 %v2621, %v2847
      %v3006 = vsub.f32 %v2622, %v2849
      %v3007 = vsub.f32 %v2623, %v2851
      %v3008 = vsub.f32 %v2624, %v2853
      %v3009 = vsub.f32 %v2625, %v2855
      %v3010 = vsub.f32 %v2626, %v2857
      %v3011 = vsub.f32 %v2627, %v2859
      %v3012 = vsub.f32 %v2628, %v2861
      %v3013 = vsub.f32 %v2629, %v2863
      %v3014 = vsub.f32 %v2630, %v2865
      %v3015 = vsub.f32 %v2631, %v2867
      %v3016 = vsub.f32 %v2632, %v2869
      %v3017 = vsub.f32 %v2633, %v2871
      %v3018 = vsub.f32 %v2634, %v2873
      %v3019 = vsub.f32 %v2635, %v2875
      %v3020 = vsub.f32 %v2636, %v2877
      %v3021 = vsub.f32 %v2637, %v2879
      %v3022 = vsub.f32 %v2638, %v2881
      %v3023 = vsub.f32 %v2639, %v2883
      %v3024 = vsub.f32 %v2640, %v2885
      %v3025 = vsub.f32 %v2641, %v2887
      %v3026 = vsub.f32 %v2642, %v2889
      %v3027 = vsub.f32 %v2643, %v2891
      %v3028 = vsub.f32 %v2644, %v2893
      %v3029 = vsub.f32 %v2645, %v2895
      %v3030 = vsub.f32 %v2646, %v2897
      %v3031 = vsub.f32 %v2647, %v2899
      %v3032 = vsub.f32 %v2648, %v2901
      %v3033 = vsub.f32 %v2649, %v2903
      %v3034 = vsub.f32 %v2650, %v2905
      %v3035 = vsub.f32 %v2651, %v2907
      %v3036 = vmul.f32 %v2908, 1.442695
      %v3037 = vpow.pop %v3036
      %v3038 = vmul.f32 %v2909, 1.442695
      %v3039 = vpow.pop %v3038
      %v3040 = vmul.f32 %v2910, 1.442695
      %v3041 = vpow.pop %v3040
      %v3042 = vmul.f32 %v2911, 1.442695
      %v3043 = vpow.pop %v3042
      %v3044 = vmul.f32 %v2912, 1.442695
      %v3045 = vpow.pop %v3044
      %v3046 = vmul.f32 %v2913, 1.442695
      %v3047 = vpow.pop %v3046
      %v3048 = vmul.f32 %v2914, 1.442695
      %v3049 = vpow.pop %v3048
      %v3050 = vmul.f32 %v2915, 1.442695
      %v3051 = vpow.pop %v3050
      %v3052 = vmul.f32 %v2916, 1.442695
      %v3053 = vpow.pop %v3052
      %v3054 = vmul.f32 %v2917, 1.442695
      %v3055 = vpow.pop %v3054
      %v3056 = vmul.f32 %v2918, 1.442695
      %v3057 = vpow.pop %v3056
      %v3058 = vmul.f32 %v2919, 1.442695
      %v3059 = vpow.pop %v3058
      %v3060 = vmul.f32 %v2920, 1.442695
      %v3061 = vpow.pop %v3060
      %v3062 = vmul.f32 %v2921, 1.442695
      %v3063 = vpow.pop %v3062
      %v3064 = vmul.f32 %v2922, 1.442695
      %v3065 = vpow.pop %v3064
      %v3066 = vmul.f32 %v2923, 1.442695
      %v3067 = vpow.pop %v3066
      %v3068 = vmul.f32 %v2924, 1.442695
      %v3069 = vpow.pop %v3068
      %v3070 = vmul.f32 %v2925, 1.442695
      %v3071 = vpow.pop %v3070
      %v3072 = vmul.f32 %v2926, 1.442695
      %v3073 = vpow.pop %v3072
      %v3074 = vmul.f32 %v2927, 1.442695
      %v3075 = vpow.pop %v3074
      %v3076 = vmul.f32 %v2928, 1.442695
      %v3077 = vpow.pop %v3076
      %v3078 = vmul.f32 %v2929, 1.442695
      %v3079 = vpow.pop %v3078
      %v3080 = vmul.f32 %v2930, 1.442695
      %v3081 = vpow.pop %v3080
      %v3082 = vmul.f32 %v2931, 1.442695
      %v3083 = vpow.pop %v3082
      %v3084 = vmul.f32 %v2932, 1.442695
      %v3085 = vpow.pop %v3084
      %v3086 = vmul.f32 %v2933, 1.442695
      %v3087 = vpow.pop %v3086
      %v3088 = vmul.f32 %v2934, 1.442695
      %v3089 = vpow.pop %v3088
      %v3090 = vmul.f32 %v2935, 1.442695
      %v3091 = vpow.pop %v3090
      %v3092 = vmul.f32 %v2936, 1.442695
      %v3093 = vpow.pop %v3092
      %v3094 = vmul.f32 %v2937, 1.442695
      %v3095 = vpow.pop %v3094
      %v3096 = vmul.f32 %v2938, 1.442695
      %v3097 = vpow.pop %v3096
      %v3098 = vmul.f32 %v2939, 1.442695
      %v3099 = vpow.pop %v3098
      %v3100 = vmul.f32 %v2940, 1.442695
      %v3101 = vpow.pop %v3100
      %v3102 = vmul.f32 %v2941, 1.442695
      %v3103 = vpow.pop %v3102
      %v3104 = vmul.f32 %v2942, 1.442695
      %v3105 = vpow.pop %v3104
      %v3106 = vmul.f32 %v2943, 1.442695
      %v3107 = vpow.pop %v3106
      %v3108 = vmul.f32 %v2944, 1.442695
      %v3109 = vpow.pop %v3108
      %v3110 = vmul.f32 %v2945, 1.442695
      %v3111 = vpow.pop %v3110
      %v3112 = vmul.f32 %v2946, 1.442695
      %v3113 = vpow.pop %v3112
      %v3114 = vmul.f32 %v2947, 1.442695
      %v3115 = vpow.pop %v3114
      %v3116 = vmul.f32 %v2948, 1.442695
      %v3117 = vpow.pop %v3116
      %v3118 = vmul.f32 %v2949, 1.442695
      %v3119 = vpow.pop %v3118
      %v3120 = vmul.f32 %v2950, 1.442695
      %v3121 = vpow.pop %v3120
      %v3122 = vmul.f32 %v2951, 1.442695
      %v3123 = vpow.pop %v3122
      %v3124 = vmul.f32 %v2952, 1.442695
      %v3125 = vpow.pop %v3124
      %v3126 = vmul.f32 %v2953, 1.442695
      %v3127 = vpow.pop %v3126
      %v3128 = vmul.f32 %v2954, 1.442695
      %v3129 = vpow.pop %v3128
      %v3130 = vmul.f32 %v2955, 1.442695
      %v3131 = vpow.pop %v3130
      %v3132 = vmul.f32 %v2956, 1.442695
      %v3133 = vpow.pop %v3132
      %v3134 = vmul.f32 %v2957, 1.442695
      %v3135 = vpow.pop %v3134
      %v3136 = vmul.f32 %v2958, 1.442695
      %v3137 = vpow.pop %v3136
      %v3138 = vmul.f32 %v2959, 1.442695
      %v3139 = vpow.pop %v3138
      %v3140 = vmul.f32 %v2960, 1.442695
      %v3141 = vpow.pop %v3140
      %v3142 = vmul.f32 %v2961, 1.442695
      %v3143 = vpow.pop %v3142
      %v3144 = vmul.f32 %v2962, 1.442695
      %v3145 = vpow.pop %v3144
      %v3146 = vmul.f32 %v2963, 1.442695
      %v3147 = vpow.pop %v3146
      %v3148 = vmul.f32 %v2964, 1.442695
      %v3149 = vpow.pop %v3148
      %v3150 = vmul.f32 %v2965, 1.442695
      %v3151 = vpow.pop %v3150
      %v3152 = vmul.f32 %v2966, 1.442695
      %v3153 = vpow.pop %v3152
      %v3154 = vmul.f32 %v2967, 1.442695
      %v3155 = vpow.pop %v3154
      %v3156 = vmul.f32 %v2968, 1.442695
      %v3157 = vpow.pop %v3156
      %v3158 = vmul.f32 %v2969, 1.442695
      %v3159 = vpow.pop %v3158
      %v3160 = vmul.f32 %v2970, 1.442695
      %v3161 = vpow.pop %v3160
      %v3162 = vmul.f32 %v2971, 1.442695
      %v3163 = vpow.pop %v3162
      %v3164 = vmul.f32 %v2972, 1.442695
      %v3165 = vpow.pop %v3164
      %v3166 = vmul.f32 %v2973, 1.442695
      %v3167 = vpow.pop %v3166
      %v3168 = vmul.f32 %v2974, 1.442695
      %v3169 = vpow.pop %v3168
      %v3170 = vmul.f32 %v2975, 1.442695
      %v3171 = vpow.pop %v3170
      %v3172 = vmul.f32 %v2976, 1.442695
      %v3173 = vpow.pop %v3172
      %v3174 = vmul.f32 %v2977, 1.442695
      %v3175 = vpow.pop %v3174
      %v3176 = vmul.f32 %v2978, 1.442695
      %v3177 = vpow.pop %v3176
      %v3178 = vmul.f32 %v2979, 1.442695
      %v3179 = vpow.pop %v3178
      %v3180 = vmul.f32 %v2980, 1.442695
      %v3181 = vpow.pop %v3180
      %v3182 = vmul.f32 %v2981, 1.442695
      %v3183 = vpow.pop %v3182
      %v3184 = vmul.f32 %v2982, 1.442695
      %v3185 = vpow.pop %v3184
      %v3186 = vmul.f32 %v2983, 1.442695
      %v3187 = vpow.pop %v3186
      %v3188 = vmul.f32 %v2984, 1.442695
      %v3189 = vpow.pop %v3188
      %v3190 = vmul.f32 %v2985, 1.442695
      %v3191 = vpow.pop %v3190
      %v3192 = vmul.f32 %v2986, 1.442695
      %v3193 = vpow.pop %v3192
      %v3194 = vmul.f32 %v2987, 1.442695
      %v3195 = vpow.pop %v3194
      %v3196 = vmul.f32 %v2988, 1.442695
      %v3197 = vpow.pop %v3196
      %v3198 = vmul.f32 %v2989, 1.442695
      %v3199 = vpow.pop %v3198
      %v3200 = vmul.f32 %v2990, 1.442695
      %v3201 = vpow.pop %v3200
      %v3202 = vmul.f32 %v2991, 1.442695
      %v3203 = vpow.pop %v3202
      %v3204 = vmul.f32 %v2992, 1.442695
      %v3205 = vpow.pop %v3204
      %v3206 = vmul.f32 %v2993, 1.442695
      %v3207 = vpow.pop %v3206
      %v3208 = vmul.f32 %v2994, 1.442695
      %v3209 = vpow.pop %v3208
      %v3210 = vmul.f32 %v2995, 1.442695
      %v3211 = vpow.pop %v3210
      %v3212 = vmul.f32 %v2996, 1.442695
      %v3213 = vpow.pop %v3212
      %v3214 = vmul.f32 %v2997, 1.442695
      %v3215 = vpow.pop %v3214
      %v3216 = vmul.f32 %v2998, 1.442695
      %v3217 = vpow.pop %v3216
      %v3218 = vmul.f32 %v2999, 1.442695
      %v3219 = vpow.pop %v3218
      %v3220 = vmul.f32 %v3000, 1.442695
      %v3221 = vpow.pop %v3220
      %v3222 = vmul.f32 %v3001, 1.442695
      %v3223 = vpow.pop %v3222
      %v3224 = vmul.f32 %v3002, 1.442695
      %v3225 = vpow.pop %v3224
      %v3226 = vmul.f32 %v3003, 1.442695
      %v3227 = vpow.pop %v3226
      %v3228 = vmul.f32 %v3004, 1.442695
      %v3229 = vpow.pop %v3228
      %v3230 = vmul.f32 %v3005, 1.442695
      %v3231 = vpow.pop %v3230
      %v3232 = vmul.f32 %v3006, 1.442695
      %v3233 = vpow.pop %v3232
      %v3234 = vmul.f32 %v3007, 1.442695
      %v3235 = vpow.pop %v3234
      %v3236 = vmul.f32 %v3008, 1.442695
      %v3237 = vpow.pop %v3236
      %v3238 = vmul.f32 %v3009, 1.442695
      %v3239 = vpow.pop %v3238
      %v3240 = vmul.f32 %v3010, 1.442695
      %v3241 = vpow.pop %v3240
      %v3242 = vmul.f32 %v3011, 1.442695
      %v3243 = vpow.pop %v3242
      %v3244 = vmul.f32 %v3012, 1.442695
      %v3245 = vpow.pop %v3244
      %v3246 = vmul.f32 %v3013, 1.442695
      %v3247 = vpow.pop %v3246
      %v3248 = vmul.f32 %v3014, 1.442695
      %v3249 = vpow.pop %v3248
      %v3250 = vmul.f32 %v3015, 1.442695
      %v3251 = vpow.pop %v3250
      %v3252 = vmul.f32 %v3016, 1.442695
      %v3253 = vpow.pop %v3252
      %v3254 = vmul.f32 %v3017, 1.442695
      %v3255 = vpow.pop %v3254
      %v3256 = vmul.f32 %v3018, 1.442695
      %v3257 = vpow.pop %v3256
      %v3258 = vmul.f32 %v3019, 1.442695
      %v3259 = vpow.pop %v3258
      %v3260 = vmul.f32 %v3020, 1.442695
      %v3261 = vpow.pop %v3260
      %v3262 = vmul.f32 %v3021, 1.442695
      %v3263 = vpow.pop %v3262
      %v3264 = vmul.f32 %v3022, 1.442695
      %v3265 = vpow.pop %v3264
      %v3266 = vmul.f32 %v3023, 1.442695
      %v3267 = vpow.pop %v3266
      %v3268 = vmul.f32 %v3024, 1.442695
      %v3269 = vpow.pop %v3268
      %v3270 = vmul.f32 %v3025, 1.442695
      %v3271 = vpow.pop %v3270
      %v3272 = vmul.f32 %v3026, 1.442695
      %v3273 = vpow.pop %v3272
      %v3274 = vmul.f32 %v3027, 1.442695
      %v3275 = vpow.pop %v3274
      %v3276 = vmul.f32 %v3028, 1.442695
      %v3277 = vpow.pop %v3276
      %v3278 = vmul.f32 %v3029, 1.442695
      %v3279 = vpow.pop %v3278
      %v3280 = vmul.f32 %v3030, 1.442695
      %v3281 = vpow.pop %v3280
      %v3282 = vmul.f32 %v3031, 1.442695
      %v3283 = vpow.pop %v3282
      %v3284 = vmul.f32 %v3032, 1.442695
      %v3285 = vpow.pop %v3284
      %v3286 = vmul.f32 %v3033, 1.442695
      %v3287 = vpow.pop %v3286
      %v3288 = vmul.f32 %v3034, 1.442695
      %v3289 = vpow.pop %v3288
      %v3290 = vmul.f32 %v3035, 1.442695
      %v3291 = vpow.pop %v3290
      %3292 = vadd.xlane.f32.xlu0 %v3037
      %v3293 = vpop.xlane.xlu0 %3292
      %3294 = vadd.xlane.f32.xlu0 %v3039
      %v3295 = vpop.xlane.xlu0 %3294
      %3296 = vadd.xlane.f32.xlu0 %v3041
      %v3297 = vpop.xlane.xlu0 %3296
      %3298 = vadd.xlane.f32.xlu0 %v3043
      %v3299 = vpop.xlane.xlu0 %3298
      %3300 = vadd.xlane.f32.xlu0 %v3045
      %v3301 = vpop.xlane.xlu0 %3300
      %3302 = vadd.xlane.f32.xlu0 %v3047
      %v3303 = vpop.xlane.xlu0 %3302
      %3304 = vadd.xlane.f32.xlu0 %v3049
      %v3305 = vpop.xlane.xlu0 %3304
      %3306 = vadd.xlane.f32.xlu0 %v3051
      %v3307 = vpop.xlane.xlu0 %3306
      %3308 = vadd.xlane.f32.xlu0 %v3053
      %v3309 = vpop.xlane.xlu0 %3308
      %3310 = vadd.xlane.f32.xlu0 %v3055
      %v3311 = vpop.xlane.xlu0 %3310
      %3312 = vadd.xlane.f32.xlu0 %v3057
      %v3313 = vpop.xlane.xlu0 %3312
      %3314 = vadd.xlane.f32.xlu0 %v3059
      %v3315 = vpop.xlane.xlu0 %3314
      %3316 = vadd.xlane.f32.xlu0 %v3061
      %v3317 = vpop.xlane.xlu0 %3316
      %3318 = vadd.xlane.f32.xlu0 %v3063
      %v3319 = vpop.xlane.xlu0 %3318
      %3320 = vadd.xlane.f32.xlu0 %v3065
      %v3321 = vpop.xlane.xlu0 %3320
      %3322 = vadd.xlane.f32.xlu0 %v3067
      %v3323 = vpop.xlane.xlu0 %3322
      %3324 = vadd.xlane.f32.xlu0 %v3069
      %v3325 = vpop.xlane.xlu0 %3324
      %3326 = vadd.xlane.f32.xlu0 %v3071
      %v3327 = vpop.xlane.xlu0 %3326
      %3328 = vadd.xlane.f32.xlu0 %v3073
      %v3329 = vpop.xlane.xlu0 %3328
      %3330 = vadd.xlane.f32.xlu0 %v3075
      %v3331 = vpop.xlane.xlu0 %3330
      %3332 = vadd.xlane.f32.xlu0 %v3077
      %v3333 = vpop.xlane.xlu0 %3332
      %3334 = vadd.xlane.f32.xlu0 %v3079
      %v3335 = vpop.xlane.xlu0 %3334
      %3336 = vadd.xlane.f32.xlu0 %v3081
      %v3337 = vpop.xlane.xlu0 %3336
      %3338 = vadd.xlane.f32.xlu0 %v3083
      %v3339 = vpop.xlane.xlu0 %3338
      %3340 = vadd.xlane.f32.xlu0 %v3085
      %v3341 = vpop.xlane.xlu0 %3340
      %3342 = vadd.xlane.f32.xlu0 %v3087
      %v3343 = vpop.xlane.xlu0 %3342
      %3344 = vadd.xlane.f32.xlu0 %v3089
      %v3345 = vpop.xlane.xlu0 %3344
      %3346 = vadd.xlane.f32.xlu0 %v3091
      %v3347 = vpop.xlane.xlu0 %3346
      %3348 = vadd.xlane.f32.xlu0 %v3093
      %v3349 = vpop.xlane.xlu0 %3348
      %3350 = vadd.xlane.f32.xlu0 %v3095
      %v3351 = vpop.xlane.xlu0 %3350
      %3352 = vadd.xlane.f32.xlu0 %v3097
      %v3353 = vpop.xlane.xlu0 %3352
      %3354 = vadd.xlane.f32.xlu0 %v3099
      %v3355 = vpop.xlane.xlu0 %3354
      %3356 = vadd.xlane.f32.xlu0 %v3101
      %v3357 = vpop.xlane.xlu0 %3356
      %3358 = vadd.xlane.f32.xlu0 %v3103
      %v3359 = vpop.xlane.xlu0 %3358
      %3360 = vadd.xlane.f32.xlu0 %v3105
      %v3361 = vpop.xlane.xlu0 %3360
      %3362 = vadd.xlane.f32.xlu0 %v3107
      %v3363 = vpop.xlane.xlu0 %3362
      %3364 = vadd.xlane.f32.xlu0 %v3109
      %v3365 = vpop.xlane.xlu0 %3364
      %3366 = vadd.xlane.f32.xlu0 %v3111
      %v3367 = vpop.xlane.xlu0 %3366
      %3368 = vadd.xlane.f32.xlu0 %v3113
      %v3369 = vpop.xlane.xlu0 %3368
      %3370 = vadd.xlane.f32.xlu0 %v3115
      %v3371 = vpop.xlane.xlu0 %3370
      %3372 = vadd.xlane.f32.xlu0 %v3117
      %v3373 = vpop.xlane.xlu0 %3372
      %3374 = vadd.xlane.f32.xlu0 %v3119
      %v3375 = vpop.xlane.xlu0 %3374
      %3376 = vadd.xlane.f32.xlu0 %v3121
      %v3377 = vpop.xlane.xlu0 %3376
      %3378 = vadd.xlane.f32.xlu0 %v3123
      %v3379 = vpop.xlane.xlu0 %3378
      %3380 = vadd.xlane.f32.xlu0 %v3125
      %v3381 = vpop.xlane.xlu0 %3380
      %3382 = vadd.xlane.f32.xlu0 %v3127
      %v3383 = vpop.xlane.xlu0 %3382
      %3384 = vadd.xlane.f32.xlu0 %v3129
      %v3385 = vpop.xlane.xlu0 %3384
      %3386 = vadd.xlane.f32.xlu0 %v3131
      %v3387 = vpop.xlane.xlu0 %3386
      %3388 = vadd.xlane.f32.xlu0 %v3133
      %v3389 = vpop.xlane.xlu0 %3388
      %3390 = vadd.xlane.f32.xlu0 %v3135
      %v3391 = vpop.xlane.xlu0 %3390
      %3392 = vadd.xlane.f32.xlu0 %v3137
      %v3393 = vpop.xlane.xlu0 %3392
      %3394 = vadd.xlane.f32.xlu0 %v3139
      %v3395 = vpop.xlane.xlu0 %3394
      %3396 = vadd.xlane.f32.xlu0 %v3141
      %v3397 = vpop.xlane.xlu0 %3396
      %3398 = vadd.xlane.f32.xlu0 %v3143
      %v3399 = vpop.xlane.xlu0 %3398
      %3400 = vadd.xlane.f32.xlu0 %v3145
      %v3401 = vpop.xlane.xlu0 %3400
      %3402 = vadd.xlane.f32.xlu0 %v3147
      %v3403 = vpop.xlane.xlu0 %3402
      %3404 = vadd.xlane.f32.xlu0 %v3149
      %v3405 = vpop.xlane.xlu0 %3404
      %3406 = vadd.xlane.f32.xlu0 %v3151
      %v3407 = vpop.xlane.xlu0 %3406
      %3408 = vadd.xlane.f32.xlu0 %v3153
      %v3409 = vpop.xlane.xlu0 %3408
      %3410 = vadd.xlane.f32.xlu0 %v3155
      %v3411 = vpop.xlane.xlu0 %3410
      %3412 = vadd.xlane.f32.xlu0 %v3157
      %v3413 = vpop.xlane.xlu0 %3412
      %3414 = vadd.xlane.f32.xlu0 %v3159
      %v3415 = vpop.xlane.xlu0 %3414
      %3416 = vadd.xlane.f32.xlu0 %v3161
      %v3417 = vpop.xlane.xlu0 %3416
      %3418 = vadd.xlane.f32.xlu0 %v3163
      %v3419 = vpop.xlane.xlu0 %3418
      %3420 = vadd.xlane.f32.xlu0 %v3165
      %v3421 = vpop.xlane.xlu0 %3420
      %3422 = vadd.xlane.f32.xlu0 %v3167
      %v3423 = vpop.xlane.xlu0 %3422
      %3424 = vadd.xlane.f32.xlu0 %v3169
      %v3425 = vpop.xlane.xlu0 %3424
      %3426 = vadd.xlane.f32.xlu0 %v3171
      %v3427 = vpop.xlane.xlu0 %3426
      %3428 = vadd.xlane.f32.xlu0 %v3173
      %v3429 = vpop.xlane.xlu0 %3428
      %3430 = vadd.xlane.f32.xlu0 %v3175
      %v3431 = vpop.xlane.xlu0 %3430
      %3432 = vadd.xlane.f32.xlu0 %v3177
      %v3433 = vpop.xlane.xlu0 %3432
      %3434 = vadd.xlane.f32.xlu0 %v3179
      %v3435 = vpop.xlane.xlu0 %3434
      %3436 = vadd.xlane.f32.xlu0 %v3181
      %v3437 = vpop.xlane.xlu0 %3436
      %3438 = vadd.xlane.f32.xlu0 %v3183
      %v3439 = vpop.xlane.xlu0 %3438
      %3440 = vadd.xlane.f32.xlu0 %v3185
      %v3441 = vpop.xlane.xlu0 %3440
      %3442 = vadd.xlane.f32.xlu0 %v3187
      %v3443 = vpop.xlane.xlu0 %3442
      %3444 = vadd.xlane.f32.xlu0 %v3189
      %v3445 = vpop.xlane.xlu0 %3444
      %3446 = vadd.xlane.f32.xlu0 %v3191
      %v3447 = vpop.xlane.xlu0 %3446
      %3448 = vadd.xlane.f32.xlu0 %v3193
      %v3449 = vpop.xlane.xlu0 %3448
      %3450 = vadd.xlane.f32.xlu0 %v3195
      %v3451 = vpop.xlane.xlu0 %3450
      %3452 = vadd.xlane.f32.xlu0 %v3197
      %v3453 = vpop.xlane.xlu0 %3452
      %3454 = vadd.xlane.f32.xlu0 %v3199
      %v3455 = vpop.xlane.xlu0 %3454
      %3456 = vadd.xlane.f32.xlu0 %v3201
      %v3457 = vpop.xlane.xlu0 %3456
      %3458 = vadd.xlane.f32.xlu0 %v3203
      %v3459 = vpop.xlane.xlu0 %3458
      %3460 = vadd.xlane.f32.xlu0 %v3205
      %v3461 = vpop.xlane.xlu0 %3460
      %3462 = vadd.xlane.f32.xlu0 %v3207
      %v3463 = vpop.xlane.xlu0 %3462
      %3464 = vadd.xlane.f32.xlu0 %v3209
      %v3465 = vpop.xlane.xlu0 %3464
      %3466 = vadd.xlane.f32.xlu0 %v3211
      %v3467 = vpop.xlane.xlu0 %3466
      %3468 = vadd.xlane.f32.xlu0 %v3213
      %v3469 = vpop.xlane.xlu0 %3468
      %3470 = vadd.xlane.f32.xlu0 %v3215
      %v3471 = vpop.xlane.xlu0 %3470
      %3472 = vadd.xlane.f32.xlu0 %v3217
      %v3473 = vpop.xlane.xlu0 %3472
      %3474 = vadd.xlane.f32.xlu0 %v3219
      %v3475 = vpop.xlane.xlu0 %3474
      %3476 = vadd.xlane.f32.xlu0 %v3221
      %v3477 = vpop.xlane.xlu0 %3476
      %3478 = vadd.xlane.f32.xlu0 %v3223
      %v3479 = vpop.xlane.xlu0 %3478
      %3480 = vadd.xlane.f32.xlu0 %v3225
      %v3481 = vpop.xlane.xlu0 %3480
      %3482 = vadd.xlane.f32.xlu0 %v3227
      %v3483 = vpop.xlane.xlu0 %3482
      %3484 = vadd.xlane.f32.xlu0 %v3229
      %v3485 = vpop.xlane.xlu0 %3484
      %3486 = vadd.xlane.f32.xlu0 %v3231
      %v3487 = vpop.xlane.xlu0 %3486
      %3488 = vadd.xlane.f32.xlu0 %v3233
      %v3489 = vpop.xlane.xlu0 %3488
      %3490 = vadd.xlane.f32.xlu0 %v3235
      %v3491 = vpop.xlane.xlu0 %3490
      %3492 = vadd.xlane.f32.xlu0 %v3237
      %v3493 = vpop.xlane.xlu0 %3492
      %3494 = vadd.xlane.f32.xlu0 %v3239
      %v3495 = vpop.xlane.xlu0 %3494
      %3496 = vadd.xlane.f32.xlu0 %v3241
      %v3497 = vpop.xlane.xlu0 %3496
      %3498 = vadd.xlane.f32.xlu0 %v3243
      %v3499 = vpop.xlane.xlu0 %3498
      %3500 = vadd.xlane.f32.xlu0 %v3245
      %v3501 = vpop.xlane.xlu0 %3500
      %3502 = vadd.xlane.f32.xlu0 %v3247
      %v3503 = vpop.xlane.xlu0 %3502
      %3504 = vadd.xlane.f32.xlu0 %v3249
      %v3505 = vpop.xlane.xlu0 %3504
      %3506 = vadd.xlane.f32.xlu0 %v3251
      %v3507 = vpop.xlane.xlu0 %3506
      %3508 = vadd.xlane.f32.xlu0 %v3253
      %v3509 = vpop.xlane.xlu0 %3508
      %3510 = vadd.xlane.f32.xlu0 %v3255
      %v3511 = vpop.xlane.xlu0 %3510
      %3512 = vadd.xlane.f32.xlu0 %v3257
      %v3513 = vpop.xlane.xlu0 %3512
      %3514 = vadd.xlane.f32.xlu0 %v3259
      %v3515 = vpop.xlane.xlu0 %3514
      %3516 = vadd.xlane.f32.xlu0 %v3261
      %v3517 = vpop.xlane.xlu0 %3516
      %3518 = vadd.xlane.f32.xlu0 %v3263
      %v3519 = vpop.xlane.xlu0 %3518
      %3520 = vadd.xlane.f32.xlu0 %v3265
      %v3521 = vpop.xlane.xlu0 %3520
      %3522 = vadd.xlane.f32.xlu0 %v3267
      %v3523 = vpop.xlane.xlu0 %3522
      %3524 = vadd.xlane.f32.xlu0 %v3269
      %v3525 = vpop.xlane.xlu0 %3524
      %3526 = vadd.xlane.f32.xlu0 %v3271
      %v3527 = vpop.xlane.xlu0 %3526
      %3528 = vadd.xlane.f32.xlu0 %v3273
      %v3529 = vpop.xlane.xlu0 %3528
      %3530 = vadd.xlane.f32.xlu0 %v3275
      %v3531 = vpop.xlane.xlu0 %3530
      %3532 = vadd.xlane.f32.xlu0 %v3277
      %v3533 = vpop.xlane.xlu0 %3532
      %3534 = vadd.xlane.f32.xlu0 %v3279
      %v3535 = vpop.xlane.xlu0 %3534
      %3536 = vadd.xlane.f32.xlu0 %v3281
      %v3537 = vpop.xlane.xlu0 %3536
      %3538 = vadd.xlane.f32.xlu0 %v3283
      %v3539 = vpop.xlane.xlu0 %3538
      %3540 = vadd.xlane.f32.xlu0 %v3285
      %v3541 = vpop.xlane.xlu0 %3540
      %3542 = vadd.xlane.f32.xlu0 %v3287
      %v3543 = vpop.xlane.xlu0 %3542
      %3544 = vadd.xlane.f32.xlu0 %v3289
      %v3545 = vpop.xlane.xlu0 %3544
      %3546 = vadd.xlane.f32.xlu0 %v3291
      %v3547 = vpop.xlane.xlu0 %3546
      %v3548 = vrcp.pop %v3293
      %v3549 = vmul.f32 %v3037, %v3548
      %v3550 = vrcp.pop %v3295
      %v3551 = vmul.f32 %v3039, %v3550
      %v3552 = vrcp.pop %v3297
      %v3553 = vmul.f32 %v3041, %v3552
      %v3554 = vrcp.pop %v3299
      %v3555 = vmul.f32 %v3043, %v3554
      %v3556 = vrcp.pop %v3301
      %v3557 = vmul.f32 %v3045, %v3556
      %v3558 = vrcp.pop %v3303
      %v3559 = vmul.f32 %v3047, %v3558
      %v3560 = vrcp.pop %v3305
      %v3561 = vmul.f32 %v3049, %v3560
      %v3562 = vrcp.pop %v3307
      %v3563 = vmul.f32 %v3051, %v3562
      %v3564 = vrcp.pop %v3309
      %v3565 = vmul.f32 %v3053, %v3564
      %v3566 = vrcp.pop %v3311
      %v3567 = vmul.f32 %v3055, %v3566
      %v3568 = vrcp.pop %v3313
      %v3569 = vmul.f32 %v3057, %v3568
      %v3570 = vrcp.pop %v3315
      %v3571 = vmul.f32 %v3059, %v3570
      %v3572 = vrcp.pop %v3317
      %v3573 = vmul.f32 %v3061, %v3572
      %v3574 = vrcp.pop %v3319
      %v3575 = vmul.f32 %v3063, %v3574
      %v3576 = vrcp.pop %v3321
      %v3577 = vmul.f32 %v3065, %v3576
      %v3578 = vrcp.pop %v3323
      %v3579 = vmul.f32 %v3067, %v3578
      %v3580 = vrcp.pop %v3325
      %v3581 = vmul.f32 %v3069, %v3580
      %v3582 = vrcp.pop %v3327
      %v3583 = vmul.f32 %v3071, %v3582
      %v3584 = vrcp.pop %v3329
      %v3585 = vmul.f32 %v3073, %v3584
      %v3586 = vrcp.pop %v3331
      %v3587 = vmul.f32 %v3075, %v3586
      %v3588 = vrcp.pop %v3333
      %v3589 = vmul.f32 %v3077, %v3588
      %v3590 = vrcp.pop %v3335
      %v3591 = vmul.f32 %v3079, %v3590
      %v3592 = vrcp.pop %v3337
      %v3593 = vmul.f32 %v3081, %v3592
      %v3594 = vrcp.pop %v3339
      %v3595 = vmul.f32 %v3083, %v3594
      %v3596 = vrcp.pop %v3341
      %v3597 = vmul.f32 %v3085, %v3596
      %v3598 = vrcp.pop %v3343
      %v3599 = vmul.f32 %v3087, %v3598
      %v3600 = vrcp.pop %v3345
      %v3601 = vmul.f32 %v3089, %v3600
      %v3602 = vrcp.pop %v3347
      %v3603 = vmul.f32 %v3091, %v3602
      %v3604 = vrcp.pop %v3349
      %v3605 = vmul.f32 %v3093, %v3604
      %v3606 = vrcp.pop %v3351
      %v3607 = vmul.f32 %v3095, %v3606
      %v3608 = vrcp.pop %v3353
      %v3609 = vmul.f32 %v3097, %v3608
      %v3610 = vrcp.pop %v3355
      %v3611 = vmul.f32 %v3099, %v3610
      %v3612 = vrcp.pop %v3357
      %v3613 = vmul.f32 %v3101, %v3612
      %v3614 = vrcp.pop %v3359
      %v3615 = vmul.f32 %v3103, %v3614
      %v3616 = vrcp.pop %v3361
      %v3617 = vmul.f32 %v3105, %v3616
      %v3618 = vrcp.pop %v3363
      %v3619 = vmul.f32 %v3107, %v3618
      %v3620 = vrcp.pop %v3365
      %v3621 = vmul.f32 %v3109, %v3620
      %v3622 = vrcp.pop %v3367
      %v3623 = vmul.f32 %v3111, %v3622
      %v3624 = vrcp.pop %v3369
      %v3625 = vmul.f32 %v3113, %v3624
      %v3626 = vrcp.pop %v3371
      %v3627 = vmul.f32 %v3115, %v3626
      %v3628 = vrcp.pop %v3373
      %v3629 = vmul.f32 %v3117, %v3628
      %v3630 = vrcp.pop %v3375
      %v3631 = vmul.f32 %v3119, %v3630
      %v3632 = vrcp.pop %v3377
      %v3633 = vmul.f32 %v3121, %v3632
      %v3634 = vrcp.pop %v3379
      %v3635 = vmul.f32 %v3123, %v3634
      %v3636 = vrcp.pop %v3381
      %v3637 = vmul.f32 %v3125, %v3636
      %v3638 = vrcp.pop %v3383
      %v3639 = vmul.f32 %v3127, %v3638
      %v3640 = vrcp.pop %v3385
      %v3641 = vmul.f32 %v3129, %v3640
      %v3642 = vrcp.pop %v3387
      %v3643 = vmul.f32 %v3131, %v3642
      %v3644 = vrcp.pop %v3389
      %v3645 = vmul.f32 %v3133, %v3644
      %v3646 = vrcp.pop %v3391
      %v3647 = vmul.f32 %v3135, %v3646
      %v3648 = vrcp.pop %v3393
      %v3649 = vmul.f32 %v3137, %v3648
      %v3650 = vrcp.pop %v3395
      %v3651 = vmul.f32 %v3139, %v3650
      %v3652 = vrcp.pop %v3397
      %v3653 = vmul.f32 %v3141, %v3652
      %v3654 = vrcp.pop %v3399
      %v3655 = vmul.f32 %v3143, %v3654
      %v3656 = vrcp.pop %v3401
      %v3657 = vmul.f32 %v3145, %v3656
      %v3658 = vrcp.pop %v3403
      %v3659 = vmul.f32 %v3147, %v3658
      %v3660 = vrcp.pop %v3405
      %v3661 = vmul.f32 %v3149, %v3660
      %v3662 = vrcp.pop %v3407
      %v3663 = vmul.f32 %v3151, %v3662
      %v3664 = vrcp.pop %v3409
      %v3665 = vmul.f32 %v3153, %v3664
      %v3666 = vrcp.pop %v3411
      %v3667 = vmul.f32 %v3155, %v3666
      %v3668 = vrcp.pop %v3413
      %v3669 = vmul.f32 %v3157, %v3668
      %v3670 = vrcp.pop %v3415
      %v3671 = vmul.f32 %v3159, %v3670
      %v3672 = vrcp.pop %v3417
      %v3673 = vmul.f32 %v3161, %v3672
      %v3674 = vrcp.pop %v3419
      %v3675 = vmul.f32 %v3163, %v3674
      %v3676 = vrcp.pop %v3421
      %v3677 = vmul.f32 %v3165, %v3676
      %v3678 = vrcp.pop %v3423
      %v3679 = vmul.f32 %v3167, %v3678
      %v3680 = vrcp.pop %v3425
      %v3681 = vmul.f32 %v3169, %v3680
      %v3682 = vrcp.pop %v3427
      %v3683 = vmul.f32 %v3171, %v3682
      %v3684 = vrcp.pop %v3429
      %v3685 = vmul.f32 %v3173, %v3684
      %v3686 = vrcp.pop %v3431
      %v3687 = vmul.f32 %v3175, %v3686
      %v3688 = vrcp.pop %v3433
      %v3689 = vmul.f32 %v3177, %v3688
      %v3690 = vrcp.pop %v3435
      %v3691 = vmul.f32 %v3179, %v3690
      %v3692 = vrcp.pop %v3437
      %v3693 = vmul.f32 %v3181, %v3692
      %v3694 = vrcp.pop %v3439
      %v3695 = vmul.f32 %v3183, %v3694
      %v3696 = vrcp.pop %v3441
      %v3697 = vmul.f32 %v3185, %v3696
      %v3698 = vrcp.pop %v3443
      %v3699 = vmul.f32 %v3187, %v3698
      %v3700 = vrcp.pop %v3445
      %v3701 = vmul.f32 %v3189, %v3700
      %v3702 = vrcp.pop %v3447
      %v3703 = vmul.f32 %v3191, %v3702
      %v3704 = vrcp.pop %v3449
      %v3705 = vmul.f32 %v3193, %v3704
      %v3706 = vrcp.pop %v3451
      %v3707 = vmul.f32 %v3195, %v3706
      %v3708 = vrcp.pop %v3453
      %v3709 = vmul.f32 %v3197, %v3708
      %v3710 = vrcp.pop %v3455
      %v3711 = vmul.f32 %v3199, %v3710
      %v3712 = vrcp.pop %v3457
      %v3713 = vmul.f32 %v3201, %v3712
      %v3714 = vrcp.pop %v3459
      %v3715 = vmul.f32 %v3203, %v3714
      %v3716 = vrcp.pop %v3461
      %v3717 = vmul.f32 %v3205, %v3716
      %v3718 = vrcp.pop %v3463
      %v3719 = vmul.f32 %v3207, %v3718
      %v3720 = vrcp.pop %v3465
      %v3721 = vmul.f32 %v3209, %v3720
      %v3722 = vrcp.pop %v3467
      %v3723 = vmul.f32 %v3211, %v3722
      %v3724 = vrcp.pop %v3469
      %v3725 = vmul.f32 %v3213, %v3724
      %v3726 = vrcp.pop %v3471
      %v3727 = vmul.f32 %v3215, %v3726
      %v3728 = vrcp.pop %v3473
      %v3729 = vmul.f32 %v3217, %v3728
      %v3730 = vrcp.pop %v3475
      %v3731 = vmul.f32 %v3219, %v3730
      %v3732 = vrcp.pop %v3477
      %v3733 = vmul.f32 %v3221, %v3732
      %v3734 = vrcp.pop %v3479
      %v3735 = vmul.f32 %v3223, %v3734
      %v3736 = vrcp.pop %v3481
      %v3737 = vmul.f32 %v3225, %v3736
      %v3738 = vrcp.pop %v3483
      %v3739 = vmul.f32 %v3227, %v3738
      %v3740 = vrcp.pop %v3485
      %v3741 = vmul.f32 %v3229, %v3740
      %v3742 = vrcp.pop %v3487
      %v3743 = vmul.f32 %v3231, %v3742
      %v3744 = vrcp.pop %v3489
      %v3745 = vmul.f32 %v3233, %v3744
      %v3746 = vrcp.pop %v3491
      %v3747 = vmul.f32 %v3235, %v3746
      %v3748 = vrcp.pop %v3493
      %v3749 = vmul.f32 %v3237, %v3748
      %v3750 = vrcp.pop %v3495
      %v3751 = vmul.f32 %v3239, %v3750
      %v3752 = vrcp.pop %v3497
      %v3753 = vmul.f32 %v3241, %v3752
      %v3754 = vrcp.pop %v3499
      %v3755 = vmul.f32 %v3243, %v3754
      %v3756 = vrcp.pop %v3501
      %v3757 = vmul.f32 %v3245, %v3756
      %v3758 = vrcp.pop %v3503
      %v3759 = vmul.f32 %v3247, %v3758
      %v3760 = vrcp.pop %v3505
      %v3761 = vmul.f32 %v3249, %v3760
      %v3762 = vrcp.pop %v3507
      %v3763 = vmul.f32 %v3251, %v3762
      %v3764 = vrcp.pop %v3509
      %v3765 = vmul.f32 %v3253, %v3764
      %v3766 = vrcp.pop %v3511
      %v3767 = vmul.f32 %v3255, %v3766
      %v3768 = vrcp.pop %v3513
      %v3769 = vmul.f32 %v3257, %v3768
      %v3770 = vrcp.pop %v3515
      %v3771 = vmul.f32 %v3259, %v3770
      %v3772 = vrcp.pop %v3517
      %v3773 = vmul.f32 %v3261, %v3772
      %v3774 = vrcp.pop %v3519
      %v3775 = vmul.f32 %v3263, %v3774
      %v3776 = vrcp.pop %v3521
      %v3777 = vmul.f32 %v3265, %v3776
      %v3778 = vrcp.pop %v3523
      %v3779 = vmul.f32 %v3267, %v3778
      %v3780 = vrcp.pop %v3525
      %v3781 = vmul.f32 %v3269, %v3780
      %v3782 = vrcp.pop %v3527
      %v3783 = vmul.f32 %v3271, %v3782
      %v3784 = vrcp.pop %v3529
      %v3785 = vmul.f32 %v3273, %v3784
      %v3786 = vrcp.pop %v3531
      %v3787 = vmul.f32 %v3275, %v3786
      %v3788 = vrcp.pop %v3533
      %v3789 = vmul.f32 %v3277, %v3788
      %v3790 = vrcp.pop %v3535
      %v3791 = vmul.f32 %v3279, %v3790
      %v3792 = vrcp.pop %v3537
      %v3793 = vmul.f32 %v3281, %v3792
      %v3794 = vrcp.pop %v3539
      %v3795 = vmul.f32 %v3283, %v3794
      %v3796 = vrcp.pop %v3541
      %v3797 = vmul.f32 %v3285, %v3796
      %v3798 = vrcp.pop %v3543
      %v3799 = vmul.f32 %v3287, %v3798
      %v3800 = vrcp.pop %v3545
      %v3801 = vmul.f32 %v3289, %v3800
      %v3802 = vrcp.pop %v3547
      %v3803 = vmul.f32 %v3291, %v3802
      %3804 = vmatprep.subr.mxu0 0.0
      %3805 = vmatpush1.msra.mxu0 %v467
      %3806 = vmatprep.subr.mxu0 0.0
      %3807 = vmatpush1.msra.mxu0 %v468
      %3808 = vmatprep.subr.mxu0 0.0
      %3809 = vmatpush1.msra.mxu0 %v469
      %3810 = vmatprep.subr.mxu0 0.0
      %3811 = vmatpush1.msra.mxu0 %v470
      %3812 = vmatprep.subr.mxu0 0.0
      %3813 = vmatpush1.msra.mxu0 %v471
      %3814 = vmatprep.subr.mxu0 0.0
      %3815 = vmatpush1.msra.mxu0 %v472
      %3816 = vmatprep.subr.mxu0 0.0
      %3817 = vmatpush1.msra.mxu0 %v473
      %3818 = vmatprep.subr.mxu0 0.0
      %3819 = vmatpush1.msra.mxu0 %v474
      %3820 = vmatprep.subr.mxu0 0.0
      %3821 = vmatpush1.msra.mxu0 %v475
      %3822 = vmatprep.subr.mxu0 0.0
      %3823 = vmatpush1.msra.mxu0 %v476
      %3824 = vmatprep.subr.mxu0 0.0
      %3825 = vmatpush1.msra.mxu0 %v477
      %3826 = vmatprep.subr.mxu0 0.0
      %3827 = vmatpush1.msra.mxu0 %v478
      %3828 = vmatprep.subr.mxu0 0.0
      %3829 = vmatpush1.msra.mxu0 %v479
      %3830 = vmatprep.subr.mxu0 0.0
      %3831 = vmatpush1.msra.mxu0 %v480
      %3832 = vmatprep.subr.mxu0 0.0
      %3833 = vmatpush1.msra.mxu0 %v481
      %3834 = vmatprep.subr.mxu0 0.0
      %3835 = vmatpush1.msra.mxu0 %v482
      %3836 = vmatprep.subr.mxu0 0.0
      %3837 = vmatpush1.msra.mxu0 0.0
      %3838 = vmatprep.subr.mxu0 0.0
      %3839 = vmatpush1.msra.mxu0 0.0
      %3840 = vmatprep.subr.mxu0 0.0
      %3841 = vmatpush1.msra.mxu0 0.0
      %3842 = vmatprep.subr.mxu0 0.0
      %3843 = vmatpush1.msra.mxu0 0.0
      %3844 = vmatprep.subr.mxu0 0.0
      %3845 = vmatpush1.msra.mxu0 0.0
      %3846 = vmatprep.subr.mxu0 0.0
      %3847 = vmatpush1.msra.mxu0 0.0
      %3848 = vmatprep.subr.mxu0 0.0
      %3849 = vmatpush1.msra.mxu0 0.0
      %3850 = vmatprep.subr.mxu0 0.0
      %3851 = vmatpush1.msra.mxu0 0.0
      %3852 = vmatprep.subr.mxu0 0.0
      %3853 = vmatpush1.msra.mxu0 0.0
      %3854 = vmatprep.subr.mxu0 0.0
      %3855 = vmatpush1.msra.mxu0 0.0
      %3856 = vmatprep.subr.mxu0 0.0
      %3857 = vmatpush1.msra.mxu0 0.0
      %3858 = vmatprep.subr.mxu0 0.0
      %3859 = vmatpush1.msra.mxu0 0.0
      %3860 = vmatprep.subr.mxu0 0.0
      %3861 = vmatpush1.msra.mxu0 0.0
      %3862 = vmatprep.subr.mxu0 0.0
      %3863 = vmatpush1.msra.mxu0 0.0
      %3864 = vmatprep.subr.mxu0 0.0
      %3865 = vmatpush1.msra.mxu0 0.0
      %3866 = vmatprep.subr.mxu0 0.0
      %3867 = vmatpush1.msra.mxu0 0.0
      %3868 = vmatprep.mubr.f32.mxu0 0.0
      %3869 = vmatmul.mubr.f32.gmra.mrb[0].mxu0 %v3549
      %v3870 = vpop.f32.mrb[0].mxu0
      %v3871 = vadd.f32 0.0, %v3870
      %v3872 = vpop.f32.mrb[0].mxu0
      %3873 = vmatprep.mubr.f32.mxu0 0.0
      %3874 = vmatmul.mubr.f32.gmra.mrb[0].mxu0 %v3551
      %v3875 = vpop.f32.mrb[0].mxu0
      %v3876 = vadd.f32 0.0, %v3875
      %v3877 = vpop.f32.mrb[0].mxu0
      %3878 = vmatprep.mubr.f32.mxu0 0.0
      %3879 = vmatmul.mubr.f32.gmra.mrb[0].mxu0 %v3553
      %v3880 = vpop.f32.mrb[0].mxu0
      %v3881 = vadd.f32 0.0, %v3880
      %v3882 = vpop.f32.mrb[0].mxu0
      %3883 = vmatprep.mubr.f32.mxu0 0.0
      %3884 = vmatmul.mubr.f32.gmra.mrb[0].mxu0 %v3555
      %v3885 = vpop.f32.mrb[0].mxu0
      %v3886 = vadd.f32 0.0, %v3885
      %v3887 = vpop.f32.mrb[0].mxu0
      %3888 = vmatprep.mubr.f32.mxu0 0.0
      %3889 = vmatmul.mubr.f32.gmra.mrb[0].mxu0 %v3557
      %v3890 = vpop.f32.mrb[0].mxu0
      %v3891 = vadd.f32 0.0, %v3890
      %v3892 = vpop.f32.mrb[0].mxu0
      %3893 = vmatprep.mubr.f32.mxu0 0.0
      %3894 = vmatmul.mubr.f32.gmra.mrb[0].mxu0 %v3559
      %v3895 = vpop.f32.mrb[0].mxu0
      %v3896 = vadd.f32 0.0, %v3895
      %v3897 = vpop.f32.mrb[0].mxu0
      %3898 = vmatprep.mubr.f32.mxu0 0.0
      %3899 = vmatmul.mubr.f32.gmra.mrb[0].mxu0 %v3561
      %v3900 = vpop.f32.mrb[0].mxu0
      %v3901 = vadd.f32 0.0, %v3900
      %v3902 = vpop.f32.mrb[0].mxu0
      %3903 = vmatprep.mubr.f32.mxu0 0.0
      %3904 = vmatmul.mubr.f32.gmra.mrb[0].mxu0 %v3563
      %v3905 = vpop.f32.mrb[0].mxu0
      %v3906 = vadd.f32 0.0, %v3905
      %v3907 = vpop.f32.mrb[0].mxu0
      %3908 = vmatprep.mubr.f32.mxu0 0.0
      %3909 = vmatmul.mubr.f32.gmra.mrb[0].mxu0 %v3565
      %v3910 = vpop.f32.mrb[0].mxu0
      %v3911 = vadd.f32 0.0, %v3910
      %v3912 = vpop.f32.mrb[0].mxu0
      %3913 = vmatprep.mubr.f32.mxu0 0.0
      %3914 = vmatmul.mubr.f32.gmra.mrb[0].mxu0 %v3567
      %v3915 = vpop.f32.mrb[0].mxu0
      %v3916 = vadd.f32 0.0, %v3915
      %v3917 = vpop.f32.mrb[0].mxu0
      %3918 = vmatprep.mubr.f32.mxu0 0.0
      %3919 = vmatmul.mubr.f32.gmra.mrb[0].mxu0 %v3569
      %v3920 = vpop.f32.mrb[0].mxu0
      %v3921 = vadd.f32 0.0, %v3920
      %v3922 = vpop.f32.mrb[0].mxu0
      %3923 = vmatprep.mubr.f32.mxu0 0.0
      %3924 = vmatmul.mubr.f32.gmra.mrb[0].mxu0 %v3571
      %v3925 = vpop.f32.mrb[0].mxu0
      %v3926 = vadd.f32 0.0, %v3925
      %v3927 = vpop.f32.mrb[0].mxu0
      %3928 = vmatprep.mubr.f32.mxu0 0.0
      %3929 = vmatmul.mubr.f32.gmra.mrb[0].mxu0 %v3573
      %v3930 = vpop.f32.mrb[0].mxu0
      %v3931 = vadd.f32 0.0, %v3930
      %v3932 = vpop.f32.mrb[0].mxu0
      %3933 = vmatprep.mubr.f32.mxu0 0.0
      %3934 = vmatmul.mubr.f32.gmra.mrb[0].mxu0 %v3575
      %v3935 = vpop.f32.mrb[0].mxu0
      %v3936 = vadd.f32 0.0, %v3935
      %v3937 = vpop.f32.mrb[0].mxu0
      %3938 = vmatprep.mubr.f32.mxu0 0.0
      %3939 = vmatmul.mubr.f32.gmra.mrb[0].mxu0 %v3577
      %v3940 = vpop.f32.mrb[0].mxu0
      %v3941 = vadd.f32 0.0, %v3940
      %v3942 = vpop.f32.mrb[0].mxu0
      %3943 = vmatprep.mubr.f32.mxu0 0.0
      %3944 = vmatmul.mubr.f32.gmra.mrb[0].mxu0 %v3579
      %v3945 = vpop.f32.mrb[0].mxu0
      %v3946 = vadd.f32 0.0, %v3945
      %v3947 = vpop.f32.mrb[0].mxu0
      %3948 = vdwg.mxu0
      %3949 = vmatprep.subr.mxu0 0.0
      %3950 = vmatpush1.msra.mxu0 %v483
      %3951 = vmatprep.subr.mxu0 0.0
      %3952 = vmatpush1.msra.mxu0 %v484
      %3953 = vmatprep.subr.mxu0 0.0
      %3954 = vmatpush1.msra.mxu0 %v485
      %3955 = vmatprep.subr.mxu0 0.0
      %3956 = vmatpush1.msra.mxu0 %v486
      %3957 = vmatprep.subr.mxu0 0.0
      %3958 = vmatpush1.msra.mxu0 %v487
      %3959 = vmatprep.subr.mxu0 0.0
      %3960 = vmatpush1.msra.mxu0 %v488
      %3961 = vmatprep.subr.mxu0 0.0
      %3962 = vmatpush1.msra.mxu0 %v489
      %3963 = vmatprep.subr.mxu0 0.0
      %3964 = vmatpush1.msra.mxu0 %v490
      %3965 = vmatprep.subr.mxu0 0.0
      %3966 = vmatpush1.msra.mxu0 %v491
      %3967 = vmatprep.subr.mxu0 0.0
      %3968 = vmatpush1.msra.mxu0 %v492
      %3969 = vmatprep.subr.mxu0 0.0
      %3970 = vmatpush1.msra.mxu0 %v493
      %3971 = vmatprep.subr.mxu0 0.0
      %3972 = vmatpush1.msra.mxu0 %v494
      %3973 = vmatprep.subr.mxu0 0.0
      %3974 = vmatpush1.msra.mxu0 %v495
      %3975 = vmatprep.subr.mxu0 0.0
      %3976 = vmatpush1.msra.mxu0 %v496
      %3977 = vmatprep.subr.mxu0 0.0
      %3978 = vmatpush1.msra.mxu0 %v497
      %3979 = vmatprep.subr.mxu0 0.0
      %3980 = vmatpush1.msra.mxu0 %v498
      %3981 = vmatprep.subr.mxu0 0.0
      %3982 = vmatpush1.msra.mxu0 0.0
      %3983 = vmatprep.subr.mxu0 0.0
      %3984 = vmatpush1.msra.mxu0 0.0
      %3985 = vmatprep.subr.mxu0 0.0
      %3986 = vmatpush1.msra.mxu0 0.0
      %3987 = vmatprep.subr.mxu0 0.0
      %3988 = vmatpush1.msra.mxu0 0.0
      %3989 = vmatprep.subr.mxu0 0.0
      %3990 = vmatpush1.msra.mxu0 0.0
      %3991 = vmatprep.subr.mxu0 0.0
      %3992 = vmatpush1.msra.mxu0 0.0
      %3993 = vmatprep.subr.mxu0 0.0
      %3994 = vmatpush1.msra.mxu0 0.0
      %3995 = vmatprep.subr.mxu0 0.0
      %3996 = vmatpush1.msra.mxu0 0.0
      %3997 = vmatprep.subr.mxu0 0.0
      %3998 = vmatpush1.msra.mxu0 0.0
      %3999 = vmatprep.subr.mxu0 0.0
      %4000 = vmatpush1.msra.mxu0 0.0
      %4001 = vmatprep.subr.mxu0 0.0
      %4002 = vmatpush1.msra.mxu0 0.0
      %4003 = vmatprep.subr.mxu0 0.0
      %4004 = vmatpush1.msra.mxu0 0.0
      %4005 = vmatprep.subr.mxu0 0.0
      %4006 = vmatpush1.msra.mxu0 0.0
      %4007 = vmatprep.subr.mxu0 0.0
      %4008 = vmatpush1.msra.mxu0 0.0
      %4009 = vmatprep.subr.mxu0 0.0
      %4010 = vmatpush1.msra.mxu0 0.0
      %4011 = vmatprep.subr.mxu0 0.0
      %4012 = vmatpush1.msra.mxu0 0.0
      %4013 = vmatprep.mubr.f32.mxu0 0.0
      %4014 = vmatmul.mubr.f32.gmra.mrb[0].mxu0 %v3581
      %v4015 = vpop.f32.mrb[0].mxu0
      %v4016 = vadd.f32 0.0, %v4015
      %v4017 = vpop.f32.mrb[0].mxu0
      %4018 = vmatprep.mubr.f32.mxu0 0.0
      %4019 = vmatmul.mubr.f32.gmra.mrb[0].mxu0 %v3583
      %v4020 = vpop.f32.mrb[0].mxu0
      %v4021 = vadd.f32 0.0, %v4020
      %v4022 = vpop.f32.mrb[0].mxu0
      %4023 = vmatprep.mubr.f32.mxu0 0.0
      %4024 = vmatmul.mubr.f32.gmra.mrb[0].mxu0 %v3585
      %v4025 = vpop.f32.mrb[0].mxu0
      %v4026 = vadd.f32 0.0, %v4025
      %v4027 = vpop.f32.mrb[0].mxu0
      %4028 = vmatprep.mubr.f32.mxu0 0.0
      %4029 = vmatmul.mubr.f32.gmra.mrb[0].mxu0 %v3587
      %v4030 = vpop.f32.mrb[0].mxu0
      %v4031 = vadd.f32 0.0, %v4030
      %v4032 = vpop.f32.mrb[0].mxu0
      %4033 = vmatprep.mubr.f32.mxu0 0.0
      %4034 = vmatmul.mubr.f32.gmra.mrb[0].mxu0 %v3589
      %v4035 = vpop.f32.mrb[0].mxu0
      %v4036 = vadd.f32 0.0, %v4035
      %v4037 = vpop.f32.mrb[0].mxu0
      %4038 = vmatprep.mubr.f32.mxu0 0.0
      %4039 = vmatmul.mubr.f32.gmra.mrb[0].mxu0 %v3591
      %v4040 = vpop.f32.mrb[0].mxu0
      %v4041 = vadd.f32 0.0, %v4040
      %v4042 = vpop.f32.mrb[0].mxu0
      %4043 = vmatprep.mubr.f32.mxu0 0.0
      %4044 = vmatmul.mubr.f32.gmra.mrb[0].mxu0 %v3593
      %v4045 = vpop.f32.mrb[0].mxu0
      %v4046 = vadd.f32 0.0, %v4045
      %v4047 = vpop.f32.mrb[0].mxu0
      %4048 = vmatprep.mubr.f32.mxu0 0.0
      %4049 = vmatmul.mubr.f32.gmra.mrb[0].mxu0 %v3595
      %v4050 = vpop.f32.mrb[0].mxu0
      %v4051 = vadd.f32 0.0, %v4050
      %v4052 = vpop.f32.mrb[0].mxu0
      %4053 = vmatprep.mubr.f32.mxu0 0.0
      %4054 = vmatmul.mubr.f32.gmra.mrb[0].mxu0 %v3597
      %v4055 = vpop.f32.mrb[0].mxu0
      %v4056 = vadd.f32 0.0, %v4055
      %v4057 = vpop.f32.mrb[0].mxu0
      %4058 = vmatprep.mubr.f32.mxu0 0.0
      %4059 = vmatmul.mubr.f32.gmra.mrb[0].mxu0 %v3599
      %v4060 = vpop.f32.mrb[0].mxu0
      %v4061 = vadd.f32 0.0, %v4060
      %v4062 = vpop.f32.mrb[0].mxu0
      %4063 = vmatprep.mubr.f32.mxu0 0.0
      %4064 = vmatmul.mubr.f32.gmra.mrb[0].mxu0 %v3601
      %v4065 = vpop.f32.mrb[0].mxu0
      %v4066 = vadd.f32 0.0, %v4065
      %v4067 = vpop.f32.mrb[0].mxu0
      %4068 = vmatprep.mubr.f32.mxu0 0.0
      %4069 = vmatmul.mubr.f32.gmra.mrb[0].mxu0 %v3603
      %v4070 = vpop.f32.mrb[0].mxu0
      %v4071 = vadd.f32 0.0, %v4070
      %v4072 = vpop.f32.mrb[0].mxu0
      %4073 = vmatprep.mubr.f32.mxu0 0.0
      %4074 = vmatmul.mubr.f32.gmra.mrb[0].mxu0 %v3605
      %v4075 = vpop.f32.mrb[0].mxu0
      %v4076 = vadd.f32 0.0, %v4075
      %v4077 = vpop.f32.mrb[0].mxu0
      %4078 = vmatprep.mubr.f32.mxu0 0.0
      %4079 = vmatmul.mubr.f32.gmra.mrb[0].mxu0 %v3607
      %v4080 = vpop.f32.mrb[0].mxu0
      %v4081 = vadd.f32 0.0, %v4080
      %v4082 = vpop.f32.mrb[0].mxu0
      %4083 = vmatprep.mubr.f32.mxu0 0.0
      %4084 = vmatmul.mubr.f32.gmra.mrb[0].mxu0 %v3609
      %v4085 = vpop.f32.mrb[0].mxu0
      %v4086 = vadd.f32 0.0, %v4085
      %v4087 = vpop.f32.mrb[0].mxu0
      %4088 = vmatprep.mubr.f32.mxu0 0.0
      %4089 = vmatmul.mubr.f32.gmra.mrb[0].mxu0 %v3611
      %v4090 = vpop.f32.mrb[0].mxu0
      %v4091 = vadd.f32 0.0, %v4090
      %v4092 = vpop.f32.mrb[0].mxu0
      %4093 = vdwg.mxu0
      %4094 = vmatprep.subr.mxu0 0.0
      %4095 = vmatpush1.msra.mxu0 %v499
      %4096 = vmatprep.subr.mxu0 0.0
      %4097 = vmatpush1.msra.mxu0 %v500
      %4098 = vmatprep.subr.mxu0 0.0
      %4099 = vmatpush1.msra.mxu0 %v501
      %4100 = vmatprep.subr.mxu0 0.0
      %4101 = vmatpush1.msra.mxu0 %v502
      %4102 = vmatprep.subr.mxu0 0.0
      %4103 = vmatpush1.msra.mxu0 %v503
      %4104 = vmatprep.subr.mxu0 0.0
      %4105 = vmatpush1.msra.mxu0 %v504
      %4106 = vmatprep.subr.mxu0 0.0
      %4107 = vmatpush1.msra.mxu0 %v505
      %4108 = vmatprep.subr.mxu0 0.0
      %4109 = vmatpush1.msra.mxu0 %v506
      %4110 = vmatprep.subr.mxu0 0.0
      %4111 = vmatpush1.msra.mxu0 %v507
      %4112 = vmatprep.subr.mxu0 0.0
      %4113 = vmatpush1.msra.mxu0 %v508
      %4114 = vmatprep.subr.mxu0 0.0
      %4115 = vmatpush1.msra.mxu0 %v509
      %4116 = vmatprep.subr.mxu0 0.0
      %4117 = vmatpush1.msra.mxu0 %v510
      %4118 = vmatprep.subr.mxu0 0.0
      %4119 = vmatpush1.msra.mxu0 %v511
      %4120 = vmatprep.subr.mxu0 0.0
      %4121 = vmatpush1.msra.mxu0 %v512
      %4122 = vmatprep.subr.mxu0 0.0
      %4123 = vmatpush1.msra.mxu0 %v513
      %4124 = vmatprep.subr.mxu0 0.0
      %4125 = vmatpush1.msra.mxu0 %v514
      %4126 = vmatprep.subr.mxu0 0.0
      %4127 = vmatpush1.msra.mxu0 0.0
      %4128 = vmatprep.subr.mxu0 0.0
      %4129 = vmatpush1.msra.mxu0 0.0
      %4130 = vmatprep.subr.mxu0 0.0
      %4131 = vmatpush1.msra.mxu0 0.0
      %4132 = vmatprep.subr.mxu0 0.0
      %4133 = vmatpush1.msra.mxu0 0.0
      %4134 = vmatprep.subr.mxu0 0.0
      %4135 = vmatpush1.msra.mxu0 0.0
      %4136 = vmatprep.subr.mxu0 0.0
      %4137 = vmatpush1.msra.mxu0 0.0
      %4138 = vmatprep.subr.mxu0 0.0
      %4139 = vmatpush1.msra.mxu0 0.0
      %4140 = vmatprep.subr.mxu0 0.0
      %4141 = vmatpush1.msra.mxu0 0.0
      %4142 = vmatprep.subr.mxu0 0.0
      %4143 = vmatpush1.msra.mxu0 0.0
      %4144 = vmatprep.subr.mxu0 0.0
      %4145 = vmatpush1.msra.mxu0 0.0
      %4146 = vmatprep.subr.mxu0 0.0
      %4147 = vmatpush1.msra.mxu0 0.0
      %4148 = vmatprep.subr.mxu0 0.0
      %4149 = vmatpush1.msra.mxu0 0.0
      %4150 = vmatprep.subr.mxu0 0.0
      %4151 = vmatpush1.msra.mxu0 0.0
      %4152 = vmatprep.subr.mxu0 0.0
      %4153 = vmatpush1.msra.mxu0 0.0
      %4154 = vmatprep.subr.mxu0 0.0
      %4155 = vmatpush1.msra.mxu0 0.0
      %4156 = vmatprep.subr.mxu0 0.0
      %4157 = vmatpush1.msra.mxu0 0.0
      %4158 = vmatprep.mubr.f32.mxu0 0.0
      %4159 = vmatmul.mubr.f32.gmra.mrb[0].mxu0 %v3613
      %v4160 = vpop.f32.mrb[0].mxu0
      %v4161 = vadd.f32 0.0, %v4160
      %v4162 = vpop.f32.mrb[0].mxu0
      %4163 = vmatprep.mubr.f32.mxu0 0.0
      %4164 = vmatmul.mubr.f32.gmra.mrb[0].mxu0 %v3615
      %v4165 = vpop.f32.mrb[0].mxu0
      %v4166 = vadd.f32 0.0, %v4165
      %v4167 = vpop.f32.mrb[0].mxu0
      %4168 = vmatprep.mubr.f32.mxu0 0.0
      %4169 = vmatmul.mubr.f32.gmra.mrb[0].mxu0 %v3617
      %v4170 = vpop.f32.mrb[0].mxu0
      %v4171 = vadd.f32 0.0, %v4170
      %v4172 = vpop.f32.mrb[0].mxu0
      %4173 = vmatprep.mubr.f32.mxu0 0.0
      %4174 = vmatmul.mubr.f32.gmra.mrb[0].mxu0 %v3619
      %v4175 = vpop.f32.mrb[0].mxu0
      %v4176 = vadd.f32 0.0, %v4175
      %v4177 = vpop.f32.mrb[0].mxu0
      %4178 = vmatprep.mubr.f32.mxu0 0.0
      %4179 = vmatmul.mubr.f32.gmra.mrb[0].mxu0 %v3621
      %v4180 = vpop.f32.mrb[0].mxu0
      %v4181 = vadd.f32 0.0, %v4180
      %v4182 = vpop.f32.mrb[0].mxu0
      %4183 = vmatprep.mubr.f32.mxu0 0.0
      %4184 = vmatmul.mubr.f32.gmra.mrb[0].mxu0 %v3623
      %v4185 = vpop.f32.mrb[0].mxu0
      %v4186 = vadd.f32 0.0, %v4185
      %v4187 = vpop.f32.mrb[0].mxu0
      %4188 = vmatprep.mubr.f32.mxu0 0.0
      %4189 = vmatmul.mubr.f32.gmra.mrb[0].mxu0 %v3625
      %v4190 = vpop.f32.mrb[0].mxu0
      %v4191 = vadd.f32 0.0, %v4190
      %v4192 = vpop.f32.mrb[0].mxu0
      %4193 = vmatprep.mubr.f32.mxu0 0.0
      %4194 = vmatmul.mubr.f32.gmra.mrb[0].mxu0 %v3627
      %v4195 = vpop.f32.mrb[0].mxu0
      %v4196 = vadd.f32 0.0, %v4195
      %v4197 = vpop.f32.mrb[0].mxu0
      %4198 = vmatprep.mubr.f32.mxu0 0.0
      %4199 = vmatmul.mubr.f32.gmra.mrb[0].mxu0 %v3629
      %v4200 = vpop.f32.mrb[0].mxu0
      %v4201 = vadd.f32 0.0, %v4200
      %v4202 = vpop.f32.mrb[0].mxu0
      %4203 = vmatprep.mubr.f32.mxu0 0.0
      %4204 = vmatmul.mubr.f32.gmra.mrb[0].mxu0 %v3631
      %v4205 = vpop.f32.mrb[0].mxu0
      %v4206 = vadd.f32 0.0, %v4205
      %v4207 = vpop.f32.mrb[0].mxu0
      %4208 = vmatprep.mubr.f32.mxu0 0.0
      %4209 = vmatmul.mubr.f32.gmra.mrb[0].mxu0 %v3633
      %v4210 = vpop.f32.mrb[0].mxu0
      %v4211 = vadd.f32 0.0, %v4210
      %v4212 = vpop.f32.mrb[0].mxu0
      %4213 = vmatprep.mubr.f32.mxu0 0.0
      %4214 = vmatmul.mubr.f32.gmra.mrb[0].mxu0 %v3635
      %v4215 = vpop.f32.mrb[0].mxu0
      %v4216 = vadd.f32 0.0, %v4215
      %v4217 = vpop.f32.mrb[0].mxu0
      %4218 = vmatprep.mubr.f32.mxu0 0.0
      %4219 = vmatmul.mubr.f32.gmra.mrb[0].mxu0 %v3637
      %v4220 = vpop.f32.mrb[0].mxu0
      %v4221 = vadd.f32 0.0, %v4220
      %v4222 = vpop.f32.mrb[0].mxu0
      %4223 = vmatprep.mubr.f32.mxu0 0.0
      %4224 = vmatmul.mubr.f32.gmra.mrb[0].mxu0 %v3639
      %v4225 = vpop.f32.mrb[0].mxu0
      %v4226 = vadd.f32 0.0, %v4225
      %v4227 = vpop.f32.mrb[0].mxu0
      %4228 = vmatprep.mubr.f32.mxu0 0.0
      %4229 = vmatmul.mubr.f32.gmra.mrb[0].mxu0 %v3641
      %v4230 = vpop.f32.mrb[0].mxu0
      %v4231 = vadd.f32 0.0, %v4230
      %v4232 = vpop.f32.mrb[0].mxu0
      %4233 = vmatprep.mubr.f32.mxu0 0.0
      %4234 = vmatmul.mubr.f32.gmra.mrb[0].mxu0 %v3643
      %v4235 = vpop.f32.mrb[0].mxu0
      %v4236 = vadd.f32 0.0, %v4235
      %v4237 = vpop.f32.mrb[0].mxu0
      %4238 = vdwg.mxu0
      %4239 = vmatprep.subr.mxu0 0.0
      %4240 = vmatpush1.msra.mxu0 %v515
      %4241 = vmatprep.subr.mxu0 0.0
      %4242 = vmatpush1.msra.mxu0 %v516
      %4243 = vmatprep.subr.mxu0 0.0
      %4244 = vmatpush1.msra.mxu0 %v517
      %4245 = vmatprep.subr.mxu0 0.0
      %4246 = vmatpush1.msra.mxu0 %v518
      %4247 = vmatprep.subr.mxu0 0.0
      %4248 = vmatpush1.msra.mxu0 %v519
      %4249 = vmatprep.subr.mxu0 0.0
      %4250 = vmatpush1.msra.mxu0 %v520
      %4251 = vmatprep.subr.mxu0 0.0
      %4252 = vmatpush1.msra.mxu0 %v521
      %4253 = vmatprep.subr.mxu0 0.0
      %4254 = vmatpush1.msra.mxu0 %v522
      %4255 = vmatprep.subr.mxu0 0.0
      %4256 = vmatpush1.msra.mxu0 %v523
      %4257 = vmatprep.subr.mxu0 0.0
      %4258 = vmatpush1.msra.mxu0 %v524
      %4259 = vmatprep.subr.mxu0 0.0
      %4260 = vmatpush1.msra.mxu0 %v525
      %4261 = vmatprep.subr.mxu0 0.0
      %4262 = vmatpush1.msra.mxu0 %v526
      %4263 = vmatprep.subr.mxu0 0.0
      %4264 = vmatpush1.msra.mxu0 %v527
      %4265 = vmatprep.subr.mxu0 0.0
      %4266 = vmatpush1.msra.mxu0 %v528
      %4267 = vmatprep.subr.mxu0 0.0
      %4268 = vmatpush1.msra.mxu0 %v529
      %4269 = vmatprep.subr.mxu0 0.0
      %4270 = vmatpush1.msra.mxu0 %v530
      %4271 = vmatprep.subr.mxu0 0.0
      %4272 = vmatpush1.msra.mxu0 0.0
      %4273 = vmatprep.subr.mxu0 0.0
      %4274 = vmatpush1.msra.mxu0 0.0
      %4275 = vmatprep.subr.mxu0 0.0
      %4276 = vmatpush1.msra.mxu0 0.0
      %4277 = vmatprep.subr.mxu0 0.0
      %4278 = vmatpush1.msra.mxu0 0.0
      %4279 = vmatprep.subr.mxu0 0.0
      %4280 = vmatpush1.msra.mxu0 0.0
      %4281 = vmatprep.subr.mxu0 0.0
      %4282 = vmatpush1.msra.mxu0 0.0
      %4283 = vmatprep.subr.mxu0 0.0
      %4284 = vmatpush1.msra.mxu0 0.0
      %4285 = vmatprep.subr.mxu0 0.0
      %4286 = vmatpush1.msra.mxu0 0.0
      %4287 = vmatprep.subr.mxu0 0.0
      %4288 = vmatpush1.msra.mxu0 0.0
      %4289 = vmatprep.subr.mxu0 0.0
      %4290 = vmatpush1.msra.mxu0 0.0
      %4291 = vmatprep.subr.mxu0 0.0
      %4292 = vmatpush1.msra.mxu0 0.0
      %4293 = vmatprep.subr.mxu0 0.0
      %4294 = vmatpush1.msra.mxu0 0.0
      %4295 = vmatprep.subr.mxu0 0.0
      %4296 = vmatpush1.msra.mxu0 0.0
      %4297 = vmatprep.subr.mxu0 0.0
      %4298 = vmatpush1.msra.mxu0 0.0
      %4299 = vmatprep.subr.mxu0 0.0
      %4300 = vmatpush1.msra.mxu0 0.0
      %4301 = vmatprep.subr.mxu0 0.0
      %4302 = vmatpush1.msra.mxu0 0.0
      %4303 = vmatprep.mubr.f32.mxu0 0.0
      %4304 = vmatmul.mubr.f32.gmra.mrb[0].mxu0 %v3645
      %v4305 = vpop.f32.mrb[0].mxu0
      %v4306 = vadd.f32 0.0, %v4305
      %v4307 = vpop.f32.mrb[0].mxu0
      %4308 = vmatprep.mubr.f32.mxu0 0.0
      %4309 = vmatmul.mubr.f32.gmra.mrb[0].mxu0 %v3647
      %v4310 = vpop.f32.mrb[0].mxu0
      %v4311 = vadd.f32 0.0, %v4310
      %v4312 = vpop.f32.mrb[0].mxu0
      %4313 = vmatprep.mubr.f32.mxu0 0.0
      %4314 = vmatmul.mubr.f32.gmra.mrb[0].mxu0 %v3649
      %v4315 = vpop.f32.mrb[0].mxu0
      %v4316 = vadd.f32 0.0, %v4315
      %v4317 = vpop.f32.mrb[0].mxu0
      %4318 = vmatprep.mubr.f32.mxu0 0.0
      %4319 = vmatmul.mubr.f32.gmra.mrb[0].mxu0 %v3651
      %v4320 = vpop.f32.mrb[0].mxu0
      %v4321 = vadd.f32 0.0, %v4320
      %v4322 = vpop.f32.mrb[0].mxu0
      %4323 = vmatprep.mubr.f32.mxu0 0.0
      %4324 = vmatmul.mubr.f32.gmra.mrb[0].mxu0 %v3653
      %v4325 = vpop.f32.mrb[0].mxu0
      %v4326 = vadd.f32 0.0, %v4325
      %v4327 = vpop.f32.mrb[0].mxu0
      %4328 = vmatprep.mubr.f32.mxu0 0.0
      %4329 = vmatmul.mubr.f32.gmra.mrb[0].mxu0 %v3655
      %v4330 = vpop.f32.mrb[0].mxu0
      %v4331 = vadd.f32 0.0, %v4330
      %v4332 = vpop.f32.mrb[0].mxu0
      %4333 = vmatprep.mubr.f32.mxu0 0.0
      %4334 = vmatmul.mubr.f32.gmra.mrb[0].mxu0 %v3657
      %v4335 = vpop.f32.mrb[0].mxu0
      %v4336 = vadd.f32 0.0, %v4335
      %v4337 = vpop.f32.mrb[0].mxu0
      %4338 = vmatprep.mubr.f32.mxu0 0.0
      %4339 = vmatmul.mubr.f32.gmra.mrb[0].mxu0 %v3659
      %v4340 = vpop.f32.mrb[0].mxu0
      %v4341 = vadd.f32 0.0, %v4340
      %v4342 = vpop.f32.mrb[0].mxu0
      %4343 = vmatprep.mubr.f32.mxu0 0.0
      %4344 = vmatmul.mubr.f32.gmra.mrb[0].mxu0 %v3661
      %v4345 = vpop.f32.mrb[0].mxu0
      %v4346 = vadd.f32 0.0, %v4345
      %v4347 = vpop.f32.mrb[0].mxu0
      %4348 = vmatprep.mubr.f32.mxu0 0.0
      %4349 = vmatmul.mubr.f32.gmra.mrb[0].mxu0 %v3663
      %v4350 = vpop.f32.mrb[0].mxu0
      %v4351 = vadd.f32 0.0, %v4350
      %v4352 = vpop.f32.mrb[0].mxu0
      %4353 = vmatprep.mubr.f32.mxu0 0.0
      %4354 = vmatmul.mubr.f32.gmra.mrb[0].mxu0 %v3665
      %v4355 = vpop.f32.mrb[0].mxu0
      %v4356 = vadd.f32 0.0, %v4355
      %v4357 = vpop.f32.mrb[0].mxu0
      %4358 = vmatprep.mubr.f32.mxu0 0.0
      %4359 = vmatmul.mubr.f32.gmra.mrb[0].mxu0 %v3667
      %v4360 = vpop.f32.mrb[0].mxu0
      %v4361 = vadd.f32 0.0, %v4360
      %v4362 = vpop.f32.mrb[0].mxu0
      %4363 = vmatprep.mubr.f32.mxu0 0.0
      %4364 = vmatmul.mubr.f32.gmra.mrb[0].mxu0 %v3669
      %v4365 = vpop.f32.mrb[0].mxu0
      %v4366 = vadd.f32 0.0, %v4365
      %v4367 = vpop.f32.mrb[0].mxu0
      %4368 = vmatprep.mubr.f32.mxu0 0.0
      %4369 = vmatmul.mubr.f32.gmra.mrb[0].mxu0 %v3671
      %v4370 = vpop.f32.mrb[0].mxu0
      %v4371 = vadd.f32 0.0, %v4370
      %v4372 = vpop.f32.mrb[0].mxu0
      %4373 = vmatprep.mubr.f32.mxu0 0.0
      %4374 = vmatmul.mubr.f32.gmra.mrb[0].mxu0 %v3673
      %v4375 = vpop.f32.mrb[0].mxu0
      %v4376 = vadd.f32 0.0, %v4375
      %v4377 = vpop.f32.mrb[0].mxu0
      %4378 = vmatprep.mubr.f32.mxu0 0.0
      %4379 = vmatmul.mubr.f32.gmra.mrb[0].mxu0 %v3675
      %v4380 = vpop.f32.mrb[0].mxu0
      %v4381 = vadd.f32 0.0, %v4380
      %v4382 = vpop.f32.mrb[0].mxu0
      %4383 = vdwg.mxu0
      %4384 = vmatprep.subr.mxu0 0.0
      %4385 = vmatpush1.msra.mxu0 %v531
      %4386 = vmatprep.subr.mxu0 0.0
      %4387 = vmatpush1.msra.mxu0 %v532
      %4388 = vmatprep.subr.mxu0 0.0
      %4389 = vmatpush1.msra.mxu0 %v533
      %4390 = vmatprep.subr.mxu0 0.0
      %4391 = vmatpush1.msra.mxu0 %v534
      %4392 = vmatprep.subr.mxu0 0.0
      %4393 = vmatpush1.msra.mxu0 %v535
      %4394 = vmatprep.subr.mxu0 0.0
      %4395 = vmatpush1.msra.mxu0 %v536
      %4396 = vmatprep.subr.mxu0 0.0
      %4397 = vmatpush1.msra.mxu0 %v537
      %4398 = vmatprep.subr.mxu0 0.0
      %4399 = vmatpush1.msra.mxu0 %v538
      %4400 = vmatprep.subr.mxu0 0.0
      %4401 = vmatpush1.msra.mxu0 %v539
      %4402 = vmatprep.subr.mxu0 0.0
      %4403 = vmatpush1.msra.mxu0 %v540
      %4404 = vmatprep.subr.mxu0 0.0
      %4405 = vmatpush1.msra.mxu0 %v541
      %4406 = vmatprep.subr.mxu0 0.0
      %4407 = vmatpush1.msra.mxu0 %v542
      %4408 = vmatprep.subr.mxu0 0.0
      %4409 = vmatpush1.msra.mxu0 %v543
      %4410 = vmatprep.subr.mxu0 0.0
      %4411 = vmatpush1.msra.mxu0 %v544
      %4412 = vmatprep.subr.mxu0 0.0
      %4413 = vmatpush1.msra.mxu0 %v545
      %4414 = vmatprep.subr.mxu0 0.0
      %4415 = vmatpush1.msra.mxu0 %v546
      %4416 = vmatprep.subr.mxu0 0.0
      %4417 = vmatpush1.msra.mxu0 0.0
      %4418 = vmatprep.subr.mxu0 0.0
      %4419 = vmatpush1.msra.mxu0 0.0
      %4420 = vmatprep.subr.mxu0 0.0
      %4421 = vmatpush1.msra.mxu0 0.0
      %4422 = vmatprep.subr.mxu0 0.0
      %4423 = vmatpush1.msra.mxu0 0.0
      %4424 = vmatprep.subr.mxu0 0.0
      %4425 = vmatpush1.msra.mxu0 0.0
      %4426 = vmatprep.subr.mxu0 0.0
      %4427 = vmatpush1.msra.mxu0 0.0
      %4428 = vmatprep.subr.mxu0 0.0
      %4429 = vmatpush1.msra.mxu0 0.0
      %4430 = vmatprep.subr.mxu0 0.0
      %4431 = vmatpush1.msra.mxu0 0.0
      %4432 = vmatprep.subr.mxu0 0.0
      %4433 = vmatpush1.msra.mxu0 0.0
      %4434 = vmatprep.subr.mxu0 0.0
      %4435 = vmatpush1.msra.mxu0 0.0
      %4436 = vmatprep.subr.mxu0 0.0
      %4437 = vmatpush1.msra.mxu0 0.0
      %4438 = vmatprep.subr.mxu0 0.0
      %4439 = vmatpush1.msra.mxu0 0.0
      %4440 = vmatprep.subr.mxu0 0.0
      %4441 = vmatpush1.msra.mxu0 0.0
      %4442 = vmatprep.subr.mxu0 0.0
      %4443 = vmatpush1.msra.mxu0 0.0
      %4444 = vmatprep.subr.mxu0 0.0
      %4445 = vmatpush1.msra.mxu0 0.0
      %4446 = vmatprep.subr.mxu0 0.0
      %4447 = vmatpush1.msra.mxu0 0.0
      %4448 = vmatprep.mubr.f32.mxu0 0.0
      %4449 = vmatmul.mubr.f32.gmra.mrb[0].mxu0 %v3677
      %v4450 = vpop.f32.mrb[0].mxu0
      %v4451 = vadd.f32 0.0, %v4450
      %v4452 = vpop.f32.mrb[0].mxu0
      %4453 = vmatprep.mubr.f32.mxu0 0.0
      %4454 = vmatmul.mubr.f32.gmra.mrb[0].mxu0 %v3679
      %v4455 = vpop.f32.mrb[0].mxu0
      %v4456 = vadd.f32 0.0, %v4455
      %v4457 = vpop.f32.mrb[0].mxu0
      %4458 = vmatprep.mubr.f32.mxu0 0.0
      %4459 = vmatmul.mubr.f32.gmra.mrb[0].mxu0 %v3681
      %v4460 = vpop.f32.mrb[0].mxu0
      %v4461 = vadd.f32 0.0, %v4460
      %v4462 = vpop.f32.mrb[0].mxu0
      %4463 = vmatprep.mubr.f32.mxu0 0.0
      %4464 = vmatmul.mubr.f32.gmra.mrb[0].mxu0 %v3683
      %v4465 = vpop.f32.mrb[0].mxu0
      %v4466 = vadd.f32 0.0, %v4465
      %v4467 = vpop.f32.mrb[0].mxu0
      %4468 = vmatprep.mubr.f32.mxu0 0.0
      %4469 = vmatmul.mubr.f32.gmra.mrb[0].mxu0 %v3685
      %v4470 = vpop.f32.mrb[0].mxu0
      %v4471 = vadd.f32 0.0, %v4470
      %v4472 = vpop.f32.mrb[0].mxu0
      %4473 = vmatprep.mubr.f32.mxu0 0.0
      %4474 = vmatmul.mubr.f32.gmra.mrb[0].mxu0 %v3687
      %v4475 = vpop.f32.mrb[0].mxu0
      %v4476 = vadd.f32 0.0, %v4475
      %v4477 = vpop.f32.mrb[0].mxu0
      %4478 = vmatprep.mubr.f32.mxu0 0.0
      %4479 = vmatmul.mubr.f32.gmra.mrb[0].mxu0 %v3689
      %v4480 = vpop.f32.mrb[0].mxu0
      %v4481 = vadd.f32 0.0, %v4480
      %v4482 = vpop.f32.mrb[0].mxu0
      %4483 = vmatprep.mubr.f32.mxu0 0.0
      %4484 = vmatmul.mubr.f32.gmra.mrb[0].mxu0 %v3691
      %v4485 = vpop.f32.mrb[0].mxu0
      %v4486 = vadd.f32 0.0, %v4485
      %v4487 = vpop.f32.mrb[0].mxu0
      %4488 = vmatprep.mubr.f32.mxu0 0.0
      %4489 = vmatmul.mubr.f32.gmra.mrb[0].mxu0 %v3693
      %v4490 = vpop.f32.mrb[0].mxu0
      %v4491 = vadd.f32 0.0, %v4490
      %v4492 = vpop.f32.mrb[0].mxu0
      %4493 = vmatprep.mubr.f32.mxu0 0.0
      %4494 = vmatmul.mubr.f32.gmra.mrb[0].mxu0 %v3695
      %v4495 = vpop.f32.mrb[0].mxu0
      %v4496 = vadd.f32 0.0, %v4495
      %v4497 = vpop.f32.mrb[0].mxu0
      %4498 = vmatprep.mubr.f32.mxu0 0.0
      %4499 = vmatmul.mubr.f32.gmra.mrb[0].mxu0 %v3697
      %v4500 = vpop.f32.mrb[0].mxu0
      %v4501 = vadd.f32 0.0, %v4500
      %v4502 = vpop.f32.mrb[0].mxu0
      %4503 = vmatprep.mubr.f32.mxu0 0.0
      %4504 = vmatmul.mubr.f32.gmra.mrb[0].mxu0 %v3699
      %v4505 = vpop.f32.mrb[0].mxu0
      %v4506 = vadd.f32 0.0, %v4505
      %v4507 = vpop.f32.mrb[0].mxu0
      %4508 = vmatprep.mubr.f32.mxu0 0.0
      %4509 = vmatmul.mubr.f32.gmra.mrb[0].mxu0 %v3701
      %v4510 = vpop.f32.mrb[0].mxu0
      %v4511 = vadd.f32 0.0, %v4510
      %v4512 = vpop.f32.mrb[0].mxu0
      %4513 = vmatprep.mubr.f32.mxu0 0.0
      %4514 = vmatmul.mubr.f32.gmra.mrb[0].mxu0 %v3703
      %v4515 = vpop.f32.mrb[0].mxu0
      %v4516 = vadd.f32 0.0, %v4515
      %v4517 = vpop.f32.mrb[0].mxu0
      %4518 = vmatprep.mubr.f32.mxu0 0.0
      %4519 = vmatmul.mubr.f32.gmra.mrb[0].mxu0 %v3705
      %v4520 = vpop.f32.mrb[0].mxu0
      %v4521 = vadd.f32 0.0, %v4520
      %v4522 = vpop.f32.mrb[0].mxu0
      %4523 = vmatprep.mubr.f32.mxu0 0.0
      %4524 = vmatmul.mubr.f32.gmra.mrb[0].mxu0 %v3707
      %v4525 = vpop.f32.mrb[0].mxu0
      %v4526 = vadd.f32 0.0, %v4525
      %v4527 = vpop.f32.mrb[0].mxu0
      %4528 = vdwg.mxu0
      %4529 = vmatprep.subr.mxu0 0.0
      %4530 = vmatpush1.msra.mxu0 %v547
      %4531 = vmatprep.subr.mxu0 0.0
      %4532 = vmatpush1.msra.mxu0 %v548
      %4533 = vmatprep.subr.mxu0 0.0
      %4534 = vmatpush1.msra.mxu0 %v549
      %4535 = vmatprep.subr.mxu0 0.0
      %4536 = vmatpush1.msra.mxu0 %v550
      %4537 = vmatprep.subr.mxu0 0.0
      %4538 = vmatpush1.msra.mxu0 %v551
      %4539 = vmatprep.subr.mxu0 0.0
      %4540 = vmatpush1.msra.mxu0 %v552
      %4541 = vmatprep.subr.mxu0 0.0
      %4542 = vmatpush1.msra.mxu0 %v553
      %4543 = vmatprep.subr.mxu0 0.0
      %4544 = vmatpush1.msra.mxu0 %v554
      %4545 = vmatprep.subr.mxu0 0.0
      %4546 = vmatpush1.msra.mxu0 %v555
      %4547 = vmatprep.subr.mxu0 0.0
      %4548 = vmatpush1.msra.mxu0 %v556
      %4549 = vmatprep.subr.mxu0 0.0
      %4550 = vmatpush1.msra.mxu0 %v557
      %4551 = vmatprep.subr.mxu0 0.0
      %4552 = vmatpush1.msra.mxu0 %v558
      %4553 = vmatprep.subr.mxu0 0.0
      %4554 = vmatpush1.msra.mxu0 %v559
      %4555 = vmatprep.subr.mxu0 0.0
      %4556 = vmatpush1.msra.mxu0 %v560
      %4557 = vmatprep.subr.mxu0 0.0
      %4558 = vmatpush1.msra.mxu0 %v561
      %4559 = vmatprep.subr.mxu0 0.0
      %4560 = vmatpush1.msra.mxu0 %v562
      %4561 = vmatprep.subr.mxu0 0.0
      %4562 = vmatpush1.msra.mxu0 0.0
      %4563 = vmatprep.subr.mxu0 0.0
      %4564 = vmatpush1.msra.mxu0 0.0
      %4565 = vmatprep.subr.mxu0 0.0
      %4566 = vmatpush1.msra.mxu0 0.0
      %4567 = vmatprep.subr.mxu0 0.0
      %4568 = vmatpush1.msra.mxu0 0.0
      %4569 = vmatprep.subr.mxu0 0.0
      %4570 = vmatpush1.msra.mxu0 0.0
      %4571 = vmatprep.subr.mxu0 0.0
      %4572 = vmatpush1.msra.mxu0 0.0
      %4573 = vmatprep.subr.mxu0 0.0
      %4574 = vmatpush1.msra.mxu0 0.0
      %4575 = vmatprep.subr.mxu0 0.0
      %4576 = vmatpush1.msra.mxu0 0.0
      %4577 = vmatprep.subr.mxu0 0.0
      %4578 = vmatpush1.msra.mxu0 0.0
      %4579 = vmatprep.subr.mxu0 0.0
      %4580 = vmatpush1.msra.mxu0 0.0
      %4581 = vmatprep.subr.mxu0 0.0
      %4582 = vmatpush1.msra.mxu0 0.0
      %4583 = vmatprep.subr.mxu0 0.0
      %4584 = vmatpush1.msra.mxu0 0.0
      %4585 = vmatprep.subr.mxu0 0.0
      %4586 = vmatpush1.msra.mxu0 0.0
      %4587 = vmatprep.subr.mxu0 0.0
      %4588 = vmatpush1.msra.mxu0 0.0
      %4589 = vmatprep.subr.mxu0 0.0
      %4590 = vmatpush1.msra.mxu0 0.0
      %4591 = vmatprep.subr.mxu0 0.0
      %4592 = vmatpush1.msra.mxu0 0.0
      %4593 = vmatprep.mubr.f32.mxu0 0.0
      %4594 = vmatmul.mubr.f32.gmra.mrb[0].mxu0 %v3709
      %v4595 = vpop.f32.mrb[0].mxu0
      %v4596 = vadd.f32 0.0, %v4595
      %v4597 = vpop.f32.mrb[0].mxu0
      %4598 = vmatprep.mubr.f32.mxu0 0.0
      %4599 = vmatmul.mubr.f32.gmra.mrb[0].mxu0 %v3711
      %v4600 = vpop.f32.mrb[0].mxu0
      %v4601 = vadd.f32 0.0, %v4600
      %v4602 = vpop.f32.mrb[0].mxu0
      %4603 = vmatprep.mubr.f32.mxu0 0.0
      %4604 = vmatmul.mubr.f32.gmra.mrb[0].mxu0 %v3713
      %v4605 = vpop.f32.mrb[0].mxu0
      %v4606 = vadd.f32 0.0, %v4605
      %v4607 = vpop.f32.mrb[0].mxu0
      %4608 = vmatprep.mubr.f32.mxu0 0.0
      %4609 = vmatmul.mubr.f32.gmra.mrb[0].mxu0 %v3715
      %v4610 = vpop.f32.mrb[0].mxu0
      %v4611 = vadd.f32 0.0, %v4610
      %v4612 = vpop.f32.mrb[0].mxu0
      %4613 = vmatprep.mubr.f32.mxu0 0.0
      %4614 = vmatmul.mubr.f32.gmra.mrb[0].mxu0 %v3717
      %v4615 = vpop.f32.mrb[0].mxu0
      %v4616 = vadd.f32 0.0, %v4615
      %v4617 = vpop.f32.mrb[0].mxu0
      %4618 = vmatprep.mubr.f32.mxu0 0.0
      %4619 = vmatmul.mubr.f32.gmra.mrb[0].mxu0 %v3719
      %v4620 = vpop.f32.mrb[0].mxu0
      %v4621 = vadd.f32 0.0, %v4620
      %v4622 = vpop.f32.mrb[0].mxu0
      %4623 = vmatprep.mubr.f32.mxu0 0.0
      %4624 = vmatmul.mubr.f32.gmra.mrb[0].mxu0 %v3721
      %v4625 = vpop.f32.mrb[0].mxu0
      %v4626 = vadd.f32 0.0, %v4625
      %v4627 = vpop.f32.mrb[0].mxu0
      %4628 = vmatprep.mubr.f32.mxu0 0.0
      %4629 = vmatmul.mubr.f32.gmra.mrb[0].mxu0 %v3723
      %v4630 = vpop.f32.mrb[0].mxu0
      %v4631 = vadd.f32 0.0, %v4630
      %v4632 = vpop.f32.mrb[0].mxu0
      %4633 = vmatprep.mubr.f32.mxu0 0.0
      %4634 = vmatmul.mubr.f32.gmra.mrb[0].mxu0 %v3725
      %v4635 = vpop.f32.mrb[0].mxu0
      %v4636 = vadd.f32 0.0, %v4635
      %v4637 = vpop.f32.mrb[0].mxu0
      %4638 = vmatprep.mubr.f32.mxu0 0.0
      %4639 = vmatmul.mubr.f32.gmra.mrb[0].mxu0 %v3727
      %v4640 = vpop.f32.mrb[0].mxu0
      %v4641 = vadd.f32 0.0, %v4640
      %v4642 = vpop.f32.mrb[0].mxu0
      %4643 = vmatprep.mubr.f32.mxu0 0.0
      %4644 = vmatmul.mubr.f32.gmra.mrb[0].mxu0 %v3729
      %v4645 = vpop.f32.mrb[0].mxu0
      %v4646 = vadd.f32 0.0, %v4645
      %v4647 = vpop.f32.mrb[0].mxu0
      %4648 = vmatprep.mubr.f32.mxu0 0.0
      %4649 = vmatmul.mubr.f32.gmra.mrb[0].mxu0 %v3731
      %v4650 = vpop.f32.mrb[0].mxu0
      %v4651 = vadd.f32 0.0, %v4650
      %v4652 = vpop.f32.mrb[0].mxu0
      %4653 = vmatprep.mubr.f32.mxu0 0.0
      %4654 = vmatmul.mubr.f32.gmra.mrb[0].mxu0 %v3733
      %v4655 = vpop.f32.mrb[0].mxu0
      %v4656 = vadd.f32 0.0, %v4655
      %v4657 = vpop.f32.mrb[0].mxu0
      %4658 = vmatprep.mubr.f32.mxu0 0.0
      %4659 = vmatmul.mubr.f32.gmra.mrb[0].mxu0 %v3735
      %v4660 = vpop.f32.mrb[0].mxu0
      %v4661 = vadd.f32 0.0, %v4660
      %v4662 = vpop.f32.mrb[0].mxu0
      %4663 = vmatprep.mubr.f32.mxu0 0.0
      %4664 = vmatmul.mubr.f32.gmra.mrb[0].mxu0 %v3737
      %v4665 = vpop.f32.mrb[0].mxu0
      %v4666 = vadd.f32 0.0, %v4665
      %v4667 = vpop.f32.mrb[0].mxu0
      %4668 = vmatprep.mubr.f32.mxu0 0.0
      %4669 = vmatmul.mubr.f32.gmra.mrb[0].mxu0 %v3739
      %v4670 = vpop.f32.mrb[0].mxu0
      %v4671 = vadd.f32 0.0, %v4670
      %v4672 = vpop.f32.mrb[0].mxu0
      %4673 = vdwg.mxu0
      %4674 = vmatprep.subr.mxu0 0.0
      %4675 = vmatpush1.msra.mxu0 %v563
      %4676 = vmatprep.subr.mxu0 0.0
      %4677 = vmatpush1.msra.mxu0 %v564
      %4678 = vmatprep.subr.mxu0 0.0
      %4679 = vmatpush1.msra.mxu0 %v565
      %4680 = vmatprep.subr.mxu0 0.0
      %4681 = vmatpush1.msra.mxu0 %v566
      %4682 = vmatprep.subr.mxu0 0.0
      %4683 = vmatpush1.msra.mxu0 %v567
      %4684 = vmatprep.subr.mxu0 0.0
      %4685 = vmatpush1.msra.mxu0 %v568
      %4686 = vmatprep.subr.mxu0 0.0
      %4687 = vmatpush1.msra.mxu0 %v569
      %4688 = vmatprep.subr.mxu0 0.0
      %4689 = vmatpush1.msra.mxu0 %v570
      %4690 = vmatprep.subr.mxu0 0.0
      %4691 = vmatpush1.msra.mxu0 %v571
      %4692 = vmatprep.subr.mxu0 0.0
      %4693 = vmatpush1.msra.mxu0 %v572
      %4694 = vmatprep.subr.mxu0 0.0
      %4695 = vmatpush1.msra.mxu0 %v573
      %4696 = vmatprep.subr.mxu0 0.0
      %4697 = vmatpush1.msra.mxu0 %v574
      %4698 = vmatprep.subr.mxu0 0.0
      %4699 = vmatpush1.msra.mxu0 %v575
      %4700 = vmatprep.subr.mxu0 0.0
      %4701 = vmatpush1.msra.mxu0 %v576
      %4702 = vmatprep.subr.mxu0 0.0
      %4703 = vmatpush1.msra.mxu0 %v577
      %4704 = vmatprep.subr.mxu0 0.0
      %4705 = vmatpush1.msra.mxu0 %v578
      %4706 = vmatprep.subr.mxu0 0.0
      %4707 = vmatpush1.msra.mxu0 0.0
      %4708 = vmatprep.subr.mxu0 0.0
      %4709 = vmatpush1.msra.mxu0 0.0
      %4710 = vmatprep.subr.mxu0 0.0
      %4711 = vmatpush1.msra.mxu0 0.0
      %4712 = vmatprep.subr.mxu0 0.0
      %4713 = vmatpush1.msra.mxu0 0.0
      %4714 = vmatprep.subr.mxu0 0.0
      %4715 = vmatpush1.msra.mxu0 0.0
      %4716 = vmatprep.subr.mxu0 0.0
      %4717 = vmatpush1.msra.mxu0 0.0
      %4718 = vmatprep.subr.mxu0 0.0
      %4719 = vmatpush1.msra.mxu0 0.0
      %4720 = vmatprep.subr.mxu0 0.0
      %4721 = vmatpush1.msra.mxu0 0.0
      %4722 = vmatprep.subr.mxu0 0.0
      %4723 = vmatpush1.msra.mxu0 0.0
      %4724 = vmatprep.subr.mxu0 0.0
      %4725 = vmatpush1.msra.mxu0 0.0
      %4726 = vmatprep.subr.mxu0 0.0
      %4727 = vmatpush1.msra.mxu0 0.0
      %4728 = vmatprep.subr.mxu0 0.0
      %4729 = vmatpush1.msra.mxu0 0.0
      %4730 = vmatprep.subr.mxu0 0.0
      %4731 = vmatpush1.msra.mxu0 0.0
      %4732 = vmatprep.subr.mxu0 0.0
      %4733 = vmatpush1.msra.mxu0 0.0
      %4734 = vmatprep.subr.mxu0 0.0
      %4735 = vmatpush1.msra.mxu0 0.0
      %4736 = vmatprep.subr.mxu0 0.0
      %4737 = vmatpush1.msra.mxu0 0.0
      %4738 = vmatprep.mubr.f32.mxu0 0.0
      %4739 = vmatmul.mubr.f32.gmra.mrb[0].mxu0 %v3741
      %v4740 = vpop.f32.mrb[0].mxu0
      %v4741 = vadd.f32 0.0, %v4740
      %v4742 = vpop.f32.mrb[0].mxu0
      %4743 = vmatprep.mubr.f32.mxu0 0.0
      %4744 = vmatmul.mubr.f32.gmra.mrb[0].mxu0 %v3743
      %v4745 = vpop.f32.mrb[0].mxu0
      %v4746 = vadd.f32 0.0, %v4745
      %v4747 = vpop.f32.mrb[0].mxu0
      %4748 = vmatprep.mubr.f32.mxu0 0.0
      %4749 = vmatmul.mubr.f32.gmra.mrb[0].mxu0 %v3745
      %v4750 = vpop.f32.mrb[0].mxu0
      %v4751 = vadd.f32 0.0, %v4750
      %v4752 = vpop.f32.mrb[0].mxu0
      %4753 = vmatprep.mubr.f32.mxu0 0.0
      %4754 = vmatmul.mubr.f32.gmra.mrb[0].mxu0 %v3747
      %v4755 = vpop.f32.mrb[0].mxu0
      %v4756 = vadd.f32 0.0, %v4755
      %v4757 = vpop.f32.mrb[0].mxu0
      %4758 = vmatprep.mubr.f32.mxu0 0.0
      %4759 = vmatmul.mubr.f32.gmra.mrb[0].mxu0 %v3749
      %v4760 = vpop.f32.mrb[0].mxu0
      %v4761 = vadd.f32 0.0, %v4760
      %v4762 = vpop.f32.mrb[0].mxu0
      %4763 = vmatprep.mubr.f32.mxu0 0.0
      %4764 = vmatmul.mubr.f32.gmra.mrb[0].mxu0 %v3751
      %v4765 = vpop.f32.mrb[0].mxu0
      %v4766 = vadd.f32 0.0, %v4765
      %v4767 = vpop.f32.mrb[0].mxu0
      %4768 = vmatprep.mubr.f32.mxu0 0.0
      %4769 = vmatmul.mubr.f32.gmra.mrb[0].mxu0 %v3753
      %v4770 = vpop.f32.mrb[0].mxu0
      %v4771 = vadd.f32 0.0, %v4770
      %v4772 = vpop.f32.mrb[0].mxu0
      %4773 = vmatprep.mubr.f32.mxu0 0.0
      %4774 = vmatmul.mubr.f32.gmra.mrb[0].mxu0 %v3755
      %v4775 = vpop.f32.mrb[0].mxu0
      %v4776 = vadd.f32 0.0, %v4775
      %v4777 = vpop.f32.mrb[0].mxu0
      %4778 = vmatprep.mubr.f32.mxu0 0.0
      %4779 = vmatmul.mubr.f32.gmra.mrb[0].mxu0 %v3757
      %v4780 = vpop.f32.mrb[0].mxu0
      %v4781 = vadd.f32 0.0, %v4780
      %v4782 = vpop.f32.mrb[0].mxu0
      %4783 = vmatprep.mubr.f32.mxu0 0.0
      %4784 = vmatmul.mubr.f32.gmra.mrb[0].mxu0 %v3759
      %v4785 = vpop.f32.mrb[0].mxu0
      %v4786 = vadd.f32 0.0, %v4785
      %v4787 = vpop.f32.mrb[0].mxu0
      %4788 = vmatprep.mubr.f32.mxu0 0.0
      %4789 = vmatmul.mubr.f32.gmra.mrb[0].mxu0 %v3761
      %v4790 = vpop.f32.mrb[0].mxu0
      %v4791 = vadd.f32 0.0, %v4790
      %v4792 = vpop.f32.mrb[0].mxu0
      %4793 = vmatprep.mubr.f32.mxu0 0.0
      %4794 = vmatmul.mubr.f32.gmra.mrb[0].mxu0 %v3763
      %v4795 = vpop.f32.mrb[0].mxu0
      %v4796 = vadd.f32 0.0, %v4795
      %v4797 = vpop.f32.mrb[0].mxu0
      %4798 = vmatprep.mubr.f32.mxu0 0.0
      %4799 = vmatmul.mubr.f32.gmra.mrb[0].mxu0 %v3765
      %v4800 = vpop.f32.mrb[0].mxu0
      %v4801 = vadd.f32 0.0, %v4800
      %v4802 = vpop.f32.mrb[0].mxu0
      %4803 = vmatprep.mubr.f32.mxu0 0.0
      %4804 = vmatmul.mubr.f32.gmra.mrb[0].mxu0 %v3767
      %v4805 = vpop.f32.mrb[0].mxu0
      %v4806 = vadd.f32 0.0, %v4805
      %v4807 = vpop.f32.mrb[0].mxu0
      %4808 = vmatprep.mubr.f32.mxu0 0.0
      %4809 = vmatmul.mubr.f32.gmra.mrb[0].mxu0 %v3769
      %v4810 = vpop.f32.mrb[0].mxu0
      %v4811 = vadd.f32 0.0, %v4810
      %v4812 = vpop.f32.mrb[0].mxu0
      %4813 = vmatprep.mubr.f32.mxu0 0.0
      %4814 = vmatmul.mubr.f32.gmra.mrb[0].mxu0 %v3771
      %v4815 = vpop.f32.mrb[0].mxu0
      %v4816 = vadd.f32 0.0, %v4815
      %v4817 = vpop.f32.mrb[0].mxu0
      %4818 = vdwg.mxu0
      %4819 = vmatprep.subr.mxu0 0.0
      %4820 = vmatpush1.msra.mxu0 %v579
      %4821 = vmatprep.subr.mxu0 0.0
      %4822 = vmatpush1.msra.mxu0 %v580
      %4823 = vmatprep.subr.mxu0 0.0
      %4824 = vmatpush1.msra.mxu0 %v581
      %4825 = vmatprep.subr.mxu0 0.0
      %4826 = vmatpush1.msra.mxu0 %v582
      %4827 = vmatprep.subr.mxu0 0.0
      %4828 = vmatpush1.msra.mxu0 %v583
      %4829 = vmatprep.subr.mxu0 0.0
      %4830 = vmatpush1.msra.mxu0 %v584
      %4831 = vmatprep.subr.mxu0 0.0
      %4832 = vmatpush1.msra.mxu0 %v585
      %4833 = vmatprep.subr.mxu0 0.0
      %4834 = vmatpush1.msra.mxu0 %v586
      %4835 = vmatprep.subr.mxu0 0.0
      %4836 = vmatpush1.msra.mxu0 %v587
      %4837 = vmatprep.subr.mxu0 0.0
      %4838 = vmatpush1.msra.mxu0 %v588
      %4839 = vmatprep.subr.mxu0 0.0
      %4840 = vmatpush1.msra.mxu0 %v589
      %4841 = vmatprep.subr.mxu0 0.0
      %4842 = vmatpush1.msra.mxu0 %v590
      %4843 = vmatprep.subr.mxu0 0.0
      %4844 = vmatpush1.msra.mxu0 %v591
      %4845 = vmatprep.subr.mxu0 0.0
      %4846 = vmatpush1.msra.mxu0 %v592
      %4847 = vmatprep.subr.mxu0 0.0
      %4848 = vmatpush1.msra.mxu0 %v593
      %4849 = vmatprep.subr.mxu0 0.0
      %4850 = vmatpush1.msra.mxu0 %v594
      %4851 = vmatprep.subr.mxu0 0.0
      %4852 = vmatpush1.msra.mxu0 0.0
      %4853 = vmatprep.subr.mxu0 0.0
      %4854 = vmatpush1.msra.mxu0 0.0
      %4855 = vmatprep.subr.mxu0 0.0
      %4856 = vmatpush1.msra.mxu0 0.0
      %4857 = vmatprep.subr.mxu0 0.0
      %4858 = vmatpush1.msra.mxu0 0.0
      %4859 = vmatprep.subr.mxu0 0.0
      %4860 = vmatpush1.msra.mxu0 0.0
      %4861 = vmatprep.subr.mxu0 0.0
      %4862 = vmatpush1.msra.mxu0 0.0
      %4863 = vmatprep.subr.mxu0 0.0
      %4864 = vmatpush1.msra.mxu0 0.0
      %4865 = vmatprep.subr.mxu0 0.0
      %4866 = vmatpush1.msra.mxu0 0.0
      %4867 = vmatprep.subr.mxu0 0.0
      %4868 = vmatpush1.msra.mxu0 0.0
      %4869 = vmatprep.subr.mxu0 0.0
      %4870 = vmatpush1.msra.mxu0 0.0
      %4871 = vmatprep.subr.mxu0 0.0
      %4872 = vmatpush1.msra.mxu0 0.0
      %4873 = vmatprep.subr.mxu0 0.0
      %4874 = vmatpush1.msra.mxu0 0.0
      %4875 = vmatprep.subr.mxu0 0.0
      %4876 = vmatpush1.msra.mxu0 0.0
      %4877 = vmatprep.subr.mxu0 0.0
      %4878 = vmatpush1.msra.mxu0 0.0
      %4879 = vmatprep.subr.mxu0 0.0
      %4880 = vmatpush1.msra.mxu0 0.0
      %4881 = vmatprep.subr.mxu0 0.0
      %4882 = vmatpush1.msra.mxu0 0.0
      %4883 = vmatprep.mubr.f32.mxu0 0.0
      %4884 = vmatmul.mubr.f32.gmra.mrb[0].mxu0 %v3773
      %v4885 = vpop.f32.mrb[0].mxu0
      %v4886 = vadd.f32 0.0, %v4885
      %v4887 = vpop.f32.mrb[0].mxu0
      %4888 = vmatprep.mubr.f32.mxu0 0.0
      %4889 = vmatmul.mubr.f32.gmra.mrb[0].mxu0 %v3775
      %v4890 = vpop.f32.mrb[0].mxu0
      %v4891 = vadd.f32 0.0, %v4890
      %v4892 = vpop.f32.mrb[0].mxu0
      %4893 = vmatprep.mubr.f32.mxu0 0.0
      %4894 = vmatmul.mubr.f32.gmra.mrb[0].mxu0 %v3777
      %v4895 = vpop.f32.mrb[0].mxu0
      %v4896 = vadd.f32 0.0, %v4895
      %v4897 = vpop.f32.mrb[0].mxu0
      %4898 = vmatprep.mubr.f32.mxu0 0.0
      %4899 = vmatmul.mubr.f32.gmra.mrb[0].mxu0 %v3779
      %v4900 = vpop.f32.mrb[0].mxu0
      %v4901 = vadd.f32 0.0, %v4900
      %v4902 = vpop.f32.mrb[0].mxu0
      %4903 = vmatprep.mubr.f32.mxu0 0.0
      %4904 = vmatmul.mubr.f32.gmra.mrb[0].mxu0 %v3781
      %v4905 = vpop.f32.mrb[0].mxu0
      %v4906 = vadd.f32 0.0, %v4905
      %v4907 = vpop.f32.mrb[0].mxu0
      %4908 = vmatprep.mubr.f32.mxu0 0.0
      %4909 = vmatmul.mubr.f32.gmra.mrb[0].mxu0 %v3783
      %v4910 = vpop.f32.mrb[0].mxu0
      %v4911 = vadd.f32 0.0, %v4910
      %v4912 = vpop.f32.mrb[0].mxu0
      %4913 = vmatprep.mubr.f32.mxu0 0.0
      %4914 = vmatmul.mubr.f32.gmra.mrb[0].mxu0 %v3785
      %v4915 = vpop.f32.mrb[0].mxu0
      %v4916 = vadd.f32 0.0, %v4915
      %v4917 = vpop.f32.mrb[0].mxu0
      %4918 = vmatprep.mubr.f32.mxu0 0.0
      %4919 = vmatmul.mubr.f32.gmra.mrb[0].mxu0 %v3787
      %v4920 = vpop.f32.mrb[0].mxu0
      %v4921 = vadd.f32 0.0, %v4920
      %v4922 = vpop.f32.mrb[0].mxu0
      %4923 = vmatprep.mubr.f32.mxu0 0.0
      %4924 = vmatmul.mubr.f32.gmra.mrb[0].mxu0 %v3789
      %v4925 = vpop.f32.mrb[0].mxu0
      %v4926 = vadd.f32 0.0, %v4925
      %v4927 = vpop.f32.mrb[0].mxu0
      %4928 = vmatprep.mubr.f32.mxu0 0.0
      %4929 = vmatmul.mubr.f32.gmra.mrb[0].mxu0 %v3791
      %v4930 = vpop.f32.mrb[0].mxu0
      %v4931 = vadd.f32 0.0, %v4930
      %v4932 = vpop.f32.mrb[0].mxu0
      %4933 = vmatprep.mubr.f32.mxu0 0.0
      %4934 = vmatmul.mubr.f32.gmra.mrb[0].mxu0 %v3793
      %v4935 = vpop.f32.mrb[0].mxu0
      %v4936 = vadd.f32 0.0, %v4935
      %v4937 = vpop.f32.mrb[0].mxu0
      %4938 = vmatprep.mubr.f32.mxu0 0.0
      %4939 = vmatmul.mubr.f32.gmra.mrb[0].mxu0 %v3795
      %v4940 = vpop.f32.mrb[0].mxu0
      %v4941 = vadd.f32 0.0, %v4940
      %v4942 = vpop.f32.mrb[0].mxu0
      %4943 = vmatprep.mubr.f32.mxu0 0.0
      %4944 = vmatmul.mubr.f32.gmra.mrb[0].mxu0 %v3797
      %v4945 = vpop.f32.mrb[0].mxu0
      %v4946 = vadd.f32 0.0, %v4945
      %v4947 = vpop.f32.mrb[0].mxu0
      %4948 = vmatprep.mubr.f32.mxu0 0.0
      %4949 = vmatmul.mubr.f32.gmra.mrb[0].mxu0 %v3799
      %v4950 = vpop.f32.mrb[0].mxu0
      %v4951 = vadd.f32 0.0, %v4950
      %v4952 = vpop.f32.mrb[0].mxu0
      %4953 = vmatprep.mubr.f32.mxu0 0.0
      %4954 = vmatmul.mubr.f32.gmra.mrb[0].mxu0 %v3801
      %v4955 = vpop.f32.mrb[0].mxu0
      %v4956 = vadd.f32 0.0, %v4955
      %v4957 = vpop.f32.mrb[0].mxu0
      %4958 = vmatprep.mubr.f32.mxu0 0.0
      %4959 = vmatmul.mubr.f32.gmra.mrb[0].mxu0 %v3803
      %v4960 = vpop.f32.mrb[0].mxu0
      %v4961 = vadd.f32 0.0, %v4960
      %v4962 = vpop.f32.mrb[0].mxu0
      %4963 = vdwg.mxu0
      %4964 = vst.msk [vmem:[%s210] sm:$0xff] %vm595, %v3871
      %4965 = vst.msk [vmem:[%s210 + $0x8] sm:$0xff] %vm595, %v3876
      %4966 = vst.msk [vmem:[%s210 + $0x10] sm:$0xff] %vm595, %v3881
      %4967 = vst.msk [vmem:[%s210 + $0x18] sm:$0xff] %vm595, %v3886
      %4968 = vst.msk [vmem:[%s210 + $0x20] sm:$0xff] %vm595, %v3891
      %4969 = vst.msk [vmem:[%s210 + $0x28] sm:$0xff] %vm595, %v3896
      %4970 = vst.msk [vmem:[%s210 + $0x30] sm:$0xff] %vm595, %v3901
      %4971 = vst.msk [vmem:[%s210 + $0x38] sm:$0xff] %vm595, %v3906
      %4972 = vst.msk [vmem:[%s210 + $0x40] sm:$0xff] %vm595, %v3911
      %4973 = vst.msk [vmem:[%s210 + $0x48] sm:$0xff] %vm595, %v3916
      %4974 = vst.msk [vmem:[%s210 + $0x50] sm:$0xff] %vm595, %v3921
      %4975 = vst.msk [vmem:[%s210 + $0x58] sm:$0xff] %vm595, %v3926
      %4976 = vst.msk [vmem:[%s210 + $0x60] sm:$0xff] %vm595, %v3931
      %4977 = vst.msk [vmem:[%s210 + $0x68] sm:$0xff] %vm595, %v3936
      %4978 = vst.msk [vmem:[%s210 + $0x70] sm:$0xff] %vm595, %v3941
      %4979 = vst.msk [vmem:[%s210 + $0x78] sm:$0xff] %vm595, %v3946
      %4980 = vst.msk [vmem:[%s210 + $0x80] sm:$0xff] %vm595, %v4016
      %4981 = vst.msk [vmem:[%s210 + $0x88] sm:$0xff] %vm595, %v4021
      %4982 = vst.msk [vmem:[%s210 + $0x90] sm:$0xff] %vm595, %v4026
      %4983 = vst.msk [vmem:[%s210 + $0x98] sm:$0xff] %vm595, %v4031
      %4984 = vst.msk [vmem:[%s210 + $0xa0] sm:$0xff] %vm595, %v4036
      %4985 = vst.msk [vmem:[%s210 + $0xa8] sm:$0xff] %vm595, %v4041
      %4986 = vst.msk [vmem:[%s210 + $0xb0] sm:$0xff] %vm595, %v4046
      %4987 = vst.msk [vmem:[%s210 + $0xb8] sm:$0xff] %vm595, %v4051
      %4988 = vst.msk [vmem:[%s210 + $0xc0] sm:$0xff] %vm595, %v4056
      %4989 = vst.msk [vmem:[%s210 + $0xc8] sm:$0xff] %vm595, %v4061
      %4990 = vst.msk [vmem:[%s210 + $0xd0] sm:$0xff] %vm595, %v4066
      %4991 = vst.msk [vmem:[%s210 + $0xd8] sm:$0xff] %vm595, %v4071
      %4992 = vst.msk [vmem:[%s210 + $0xe0] sm:$0xff] %vm595, %v4076
      %4993 = vst.msk [vmem:[%s210 + $0xe8] sm:$0xff] %vm595, %v4081
      %4994 = vst.msk [vmem:[%s210 + $0xf0] sm:$0xff] %vm595, %v4086
      %4995 = vst.msk [vmem:[%s210 + $0xf8] sm:$0xff] %vm595, %v4091
      %4996 = vst.msk [vmem:[%s210 + $0x100] sm:$0xff] %vm595, %v4161
      %4997 = vst.msk [vmem:[%s210 + $0x108] sm:$0xff] %vm595, %v4166
      %4998 = vst.msk [vmem:[%s210 + $0x110] sm:$0xff] %vm595, %v4171
      %4999 = vst.msk [vmem:[%s210 + $0x118] sm:$0xff] %vm595, %v4176
      %5000 = vst.msk [vmem:[%s210 + $0x120] sm:$0xff] %vm595, %v4181
      %5001 = vst.msk [vmem:[%s210 + $0x128] sm:$0xff] %vm595, %v4186
      %5002 = vst.msk [vmem:[%s210 + $0x130] sm:$0xff] %vm595, %v4191
      %5003 = vst.msk [vmem:[%s210 + $0x138] sm:$0xff] %vm595, %v4196
      %5004 = vst.msk [vmem:[%s210 + $0x140] sm:$0xff] %vm595, %v4201
      %5005 = vst.msk [vmem:[%s210 + $0x148] sm:$0xff] %vm595, %v4206
      %5006 = vst.msk [vmem:[%s210 + $0x150] sm:$0xff] %vm595, %v4211
      %5007 = vst.msk [vmem:[%s210 + $0x158] sm:$0xff] %vm595, %v4216
      %5008 = vst.msk [vmem:[%s210 + $0x160] sm:$0xff] %vm595, %v4221
      %5009 = vst.msk [vmem:[%s210 + $0x168] sm:$0xff] %vm595, %v4226
      %5010 = vst.msk [vmem:[%s210 + $0x170] sm:$0xff] %vm595, %v4231
      %5011 = vst.msk [vmem:[%s210 + $0x178] sm:$0xff] %vm595, %v4236
      %5012 = vst.msk [vmem:[%s210 + $0x180] sm:$0xff] %vm595, %v4306
      %5013 = vst.msk [vmem:[%s210 + $0x188] sm:$0xff] %vm595, %v4311
      %5014 = vst.msk [vmem:[%s210 + $0x190] sm:$0xff] %vm595, %v4316
      %5015 = vst.msk [vmem:[%s210 + $0x198] sm:$0xff] %vm595, %v4321
      %5016 = vst.msk [vmem:[%s210 + $0x1a0] sm:$0xff] %vm595, %v4326
      %5017 = vst.msk [vmem:[%s210 + $0x1a8] sm:$0xff] %vm595, %v4331
      %5018 = vst.msk [vmem:[%s210 + $0x1b0] sm:$0xff] %vm595, %v4336
      %5019 = vst.msk [vmem:[%s210 + $0x1b8] sm:$0xff] %vm595, %v4341
      %5020 = vst.msk [vmem:[%s210 + $0x1c0] sm:$0xff] %vm595, %v4346
      %5021 = vst.msk [vmem:[%s210 + $0x1c8] sm:$0xff] %vm595, %v4351
      %5022 = vst.msk [vmem:[%s210 + $0x1d0] sm:$0xff] %vm595, %v4356
      %5023 = vst.msk [vmem:[%s210 + $0x1d8] sm:$0xff] %vm595, %v4361
      %5024 = vst.msk [vmem:[%s210 + $0x1e0] sm:$0xff] %vm595, %v4366
      %5025 = vst.msk [vmem:[%s210 + $0x1e8] sm:$0xff] %vm595, %v4371
      %5026 = vst.msk [vmem:[%s210 + $0x1f0] sm:$0xff] %vm595, %v4376
      %5027 = vst.msk [vmem:[%s210 + $0x1f8] sm:$0xff] %vm595, %v4381
      %5028 = vst.msk [vmem:[%s210 + $0x200] sm:$0xff] %vm595, %v4451
      %5029 = vst.msk [vmem:[%s210 + $0x208] sm:$0xff] %vm595, %v4456
      %5030 = vst.msk [vmem:[%s210 + $0x210] sm:$0xff] %vm595, %v4461
      %5031 = vst.msk [vmem:[%s210 + $0x218] sm:$0xff] %vm595, %v4466
      %5032 = vst.msk [vmem:[%s210 + $0x220] sm:$0xff] %vm595, %v4471
      %5033 = vst.msk [vmem:[%s210 + $0x228] sm:$0xff] %vm595, %v4476
      %5034 = vst.msk [vmem:[%s210 + $0x230] sm:$0xff] %vm595, %v4481
      %5035 = vst.msk [vmem:[%s210 + $0x238] sm:$0xff] %vm595, %v4486
      %5036 = vst.msk [vmem:[%s210 + $0x240] sm:$0xff] %vm595, %v4491
      %5037 = vst.msk [vmem:[%s210 + $0x248] sm:$0xff] %vm595, %v4496
      %5038 = vst.msk [vmem:[%s210 + $0x250] sm:$0xff] %vm595, %v4501
      %5039 = vst.msk [vmem:[%s210 + $0x258] sm:$0xff] %vm595, %v4506
      %5040 = vst.msk [vmem:[%s210 + $0x260] sm:$0xff] %vm595, %v4511
      %5041 = vst.msk [vmem:[%s210 + $0x268] sm:$0xff] %vm595, %v4516
      %5042 = vst.msk [vmem:[%s210 + $0x270] sm:$0xff] %vm595, %v4521
      %5043 = vst.msk [vmem:[%s210 + $0x278] sm:$0xff] %vm595, %v4526
      %5044 = vst.msk [vmem:[%s210 + $0x280] sm:$0xff] %vm595, %v4596
      %5045 = vst.msk [vmem:[%s210 + $0x288] sm:$0xff] %vm595, %v4601
      %5046 = vst.msk [vmem:[%s210 + $0x290] sm:$0xff] %vm595, %v4606
      %5047 = vst.msk [vmem:[%s210 + $0x298] sm:$0xff] %vm595, %v4611
      %5048 = vst.msk [vmem:[%s210 + $0x2a0] sm:$0xff] %vm595, %v4616
      %5049 = vst.msk [vmem:[%s210 + $0x2a8] sm:$0xff] %vm595, %v4621
      %5050 = vst.msk [vmem:[%s210 + $0x2b0] sm:$0xff] %vm595, %v4626
      %5051 = vst.msk [vmem:[%s210 + $0x2b8] sm:$0xff] %vm595, %v4631
      %5052 = vst.msk [vmem:[%s210 + $0x2c0] sm:$0xff] %vm595, %v4636
      %5053 = vst.msk [vmem:[%s210 + $0x2c8] sm:$0xff] %vm595, %v4641
      %5054 = vst.msk [vmem:[%s210 + $0x2d0] sm:$0xff] %vm595, %v4646
      %5055 = vst.msk [vmem:[%s210 + $0x2d8] sm:$0xff] %vm595, %v4651
      %5056 = vst.msk [vmem:[%s210 + $0x2e0] sm:$0xff] %vm595, %v4656
      %5057 = vst.msk [vmem:[%s210 + $0x2e8] sm:$0xff] %vm595, %v4661
      %5058 = vst.msk [vmem:[%s210 + $0x2f0] sm:$0xff] %vm595, %v4666
      %5059 = vst.msk [vmem:[%s210 + $0x2f8] sm:$0xff] %vm595, %v4671
      %5060 = vst.msk [vmem:[%s210 + $0x300] sm:$0xff] %vm595, %v4741
      %5061 = vst.msk [vmem:[%s210 + $0x308] sm:$0xff] %vm595, %v4746
      %5062 = vst.msk [vmem:[%s210 + $0x310] sm:$0xff] %vm595, %v4751
      %5063 = vst.msk [vmem:[%s210 + $0x318] sm:$0xff] %vm595, %v4756
      %5064 = vst.msk [vmem:[%s210 + $0x320] sm:$0xff] %vm595, %v4761
      %5065 = vst.msk [vmem:[%s210 + $0x328] sm:$0xff] %vm595, %v4766
      %5066 = vst.msk [vmem:[%s210 + $0x330] sm:$0xff] %vm595, %v4771
      %5067 = vst.msk [vmem:[%s210 + $0x338] sm:$0xff] %vm595, %v4776
      %5068 = vst.msk [vmem:[%s210 + $0x340] sm:$0xff] %vm595, %v4781
      %5069 = vst.msk [vmem:[%s210 + $0x348] sm:$0xff] %vm595, %v4786
      %5070 = vst.msk [vmem:[%s210 + $0x350] sm:$0xff] %vm595, %v4791
      %5071 = vst.msk [vmem:[%s210 + $0x358] sm:$0xff] %vm595, %v4796
      %5072 = vst.msk [vmem:[%s210 + $0x360] sm:$0xff] %vm595, %v4801
      %5073 = vst.msk [vmem:[%s210 + $0x368] sm:$0xff] %vm595, %v4806
      %5074 = vst.msk [vmem:[%s210 + $0x370] sm:$0xff] %vm595, %v4811
      %5075 = vst.msk [vmem:[%s210 + $0x378] sm:$0xff] %vm595, %v4816
      %5076 = vst.msk [vmem:[%s210 + $0x380] sm:$0xff] %vm595, %v4886
      %5077 = vst.msk [vmem:[%s210 + $0x388] sm:$0xff] %vm595, %v4891
      %5078 = vst.msk [vmem:[%s210 + $0x390] sm:$0xff] %vm595, %v4896
      %5079 = vst.msk [vmem:[%s210 + $0x398] sm:$0xff] %vm595, %v4901
      %5080 = vst.msk [vmem:[%s210 + $0x3a0] sm:$0xff] %vm595, %v4906
      %5081 = vst.msk [vmem:[%s210 + $0x3a8] sm:$0xff] %vm595, %v4911
      %5082 = vst.msk [vmem:[%s210 + $0x3b0] sm:$0xff] %vm595, %v4916
      %5083 = vst.msk [vmem:[%s210 + $0x3b8] sm:$0xff] %vm595, %v4921
      %5084 = vst.msk [vmem:[%s210 + $0x3c0] sm:$0xff] %vm595, %v4926
      %5085 = vst.msk [vmem:[%s210 + $0x3c8] sm:$0xff] %vm595, %v4931
      %5086 = vst.msk [vmem:[%s210 + $0x3d0] sm:$0xff] %vm595, %v4936
      %5087 = vst.msk [vmem:[%s210 + $0x3d8] sm:$0xff] %vm595, %v4941
      %5088 = vst.msk [vmem:[%s210 + $0x3e0] sm:$0xff] %vm595, %v4946
      %5089 = vst.msk [vmem:[%s210 + $0x3e8] sm:$0xff] %vm595, %v4951
      %5090 = vst.msk [vmem:[%s210 + $0x3f0] sm:$0xff] %vm595, %v4956
      %5091 = vst.msk [vmem:[%s210 + $0x3f8] sm:$0xff] %vm595, %v4961
      %p5092 = scmp.lt.s32.totalorder %s14, 1
      %s5093 = scalar_select %p5092, %s14, 1
      %s5094 = smul.addr %s5093, 128
      %s5095 = smul.addr %s5094, 8
      %s5096 = scalar_lea.vmem %s3, %s5095
      // Predicated region
      $region33: #{transformer_block.5} parent=31 // pred_check
        %p5097 = pneg %p110
      $region34: #{transformer_block.5} parent=31 // pred_check_branch
        %5099 = sbr.rel (%p5097) target = $region36
      $region35: #{transformer_block.5} parent=31 // pred_region
        _
      $region36: #{transformer_block.5} parent=31 // pred_fallthru
        _
    $region32: #{transformer_block.5} parent=5 // pred_fallthru
      _
    %p5100 = scmp.le.s32.totalorder 2, %s9
    // Predicated region
    $region37: #{transformer_block.5} parent=5 // pred_check
      %p5101 = pneg %p5100
    $region38: #{transformer_block.5} parent=5 // pred_check_branch
      %5103 = sbr.rel (%p5101) target = $region40
    $region39: #{transformer_block.5} parent=5 // pred_region
      %s5104 = ssub.s32 %s9, 2
      // Predicated region
      $region41: #{transformer_block.5} parent=39 // pred_check
        %p5105 = pneg %p116
      $region42: #{transformer_block.5} parent=39 // pred_check_branch
        %5107 = sbr.rel (%p5105) target = $region44
      $region43: #{transformer_block.5} parent=39 // pred_region
        %p5108 = scmp.lt.s32.totalorder %s15, 1
        %s5109 = scalar_select %p5108, %s15, 1
        %s5110 = smul.addr %s5109, 128
        %s5111 = smul.addr %s5110, 8
        %s5112 = scalar_lea.vmem %s3, %s5111
      $region44: #{transformer_block.5} parent=39 // pred_fallthru
        _
    $region40: #{transformer_block.5} parent=5 // pred_fallthru
      _
  $region6: #{transformer_block.5} parent=0 // loop_footer
    %s13 = sadd.s32 1, %s9
  $region7: #{transformer_block.5} parent=0 // loop_footer_branch
    %8 = sbr.rel target = $region3
  $region8: #{transformer_block.5} parent=0 // loop_exit
    _

</llo_original>
